<compile_context>
chip_gen: v5e
topology: v5e:2x2
jax: 0.10.0
libtpu: 0.0.40
codegen_flags: <defaults>
</compile_context>

<pallas_src>
import functools
import math

import jax
import jax.numpy as jnp
from jax.experimental import pallas as pl
from jax.experimental.pallas import tpu as pltpu


_TAPS = tuple((dy, dx) for dy in (-1, 0, 1) for dx in (-1, 0, 1))  # PyTorch (ky, kx) order
_P = 128          # q/k/v each occupy one 128-lane slab -> tile-aligned slices
_N_PROWS = 16     # packed (1, C) parameter rows (15 used + 1 pad)


# ----------------------------------------------------------------------------
# In-kernel helpers (traced inside the fused Pallas kernel)
# ----------------------------------------------------------------------------
def _group_norm(h, gamma, beta, gmap, gmapT, inv_n, NB, HW, eps=1e-6):
    """GroupNorm over a stacked (NB*HW, C) f32 tile with per-image statistics.

    All NB images' [sum; sum-of-squares] rows are stacked and pushed through
    TWO tiny MXU matmuls total (stats @ gmap, then [rstd; mean*rstd] @ gmap.T),
    then applied as a fused  h * coef0 + coef1  per image.
    """
    srows, ssrows = [], []
    for b in range(NB):
        hb = h[b * HW:(b + 1) * HW]
        srows.append(jnp.sum(hb, axis=0, keepdims=True))
        ssrows.append(jnp.sum(hb * hb, axis=0, keepdims=True))
    stats = jnp.concatenate(srows + ssrows, axis=0)                           # (2NB, C)
    stats_g = jnp.dot(stats, gmap, preferred_element_type=jnp.float32) * inv_n  # (2NB, G)
    mean_g = stats_g[0:NB]
    msq_g = stats_g[NB:2 * NB]
    # NOTE: one-pass E[x^2]-E[x]^2 in f32 with a clamp; adequate for the
    # near-zero-mean activations this block sees (see review concern).
    var_g = jnp.maximum(msq_g - mean_g * mean_g, 0.0)
    rstd_g = jax.lax.rsqrt(var_g + eps)
    sc = jnp.concatenate([rstd_g, mean_g * rstd_g], axis=0)                   # (2NB, G)
    sc_c = jnp.dot(sc, gmapT, preferred_element_type=jnp.float32)             # (2NB, C)
    outs = []
    for b in range(NB):
        coef0 = sc_c[b:b + 1] * gamma                        # rstd_c * gamma
        coef1 = beta - sc_c[NB + b:NB + b + 1] * gamma       # beta - mean_c*rstd_c*gamma
        outs.append(h[b * HW:(b + 1) * HW] * coef0 + coef1)
    return outs[0] if NB == 1 else jnp.concatenate(outs, axis=0)


def _conv3x3(h, convw_ref, w_base, bias, masks_ref, HWT, W):
    """3x3 'same' conv on a stacked (HWT, Cin) tile.

    Per tap (dy, dx): an XLU roll (out[p] = h[p + dy*W + dx]) zeroed at image
    borders by the precomputed mask, then ONE small MXU matmul against the
    tap's (Cin, Cout) weight slab, accumulated in f32.  No im2col concatenate.
    """
    acc = None
    for idx, (dy, dx) in enumerate(_TAPS):
        s = dy * W + dx
        shifted = h if s == 0 else pltpu.roll(h, (-s) % HWT, 0)
        tap = (shifted * masks_ref[idx]).astype(jnp.bfloat16)
        c = jnp.dot(tap, convw_ref[w_base + idx], preferred_element_type=jnp.float32)
        acc = c if acc is None else acc + c
    return acc + bias


def _add_rows(h, rows, NB, HW):
    """Per-image broadcast add: h[b*HW:(b+1)*HW] += rows[b]."""
    if NB == 1:
        return h + rows
    return jnp.concatenate(
        [h[b * HW:(b + 1) * HW] + rows[b:b + 1] for b in range(NB)], axis=0)


def _res_block(x, temb, g1, b1, cb1, g2, b2, cb2, convw_ref, w_base,
               gmap, gmapT, inv_n, masks_ref, NB, HW, W):
    h = jax.nn.silu(_group_norm(x, g1, b1, gmap, gmapT, inv_n, NB, HW))
    h = _conv3x3(h, convw_ref, w_base, cb1, masks_ref, NB * HW, W)
    h = _add_rows(h, temb, NB, HW)            # time-emb projection hoisted to wrapper
    h = jax.nn.silu(_group_norm(h, g2, b2, gmap, gmapT, inv_n, NB, HW))
    # TODO(synk): nn.Dropout is treated as eval-mode identity (no in-kernel RNG).
    h = _conv3x3(h, convw_ref, w_base + 9, cb2, masks_ref, NB * HW, W)
    return x + h                              # shortcut = Identity (Cin == Cout)


def _attention(x, gamma, beta, wqkv_ref, bqkv, w3_ref, b3,
               gmap, gmapT, inv_n, NB, HW):
    h = _group_norm(x, gamma, beta, gmap, gmapT, inv_n, NB, HW)
    # Fused, lane-padded QKV projection; the 1/sqrt(C) attention scale is
    # already folded into the q slab of wqkv/bqkv (wrapper-side).
    qkv = jnp.dot(h.astype(jnp.bfloat16), wqkv_ref[...],
                  preferred_element_type=jnp.float32) + bqkv       # (NB*HW, 3*128)
    outs = []
    for b in range(NB):                       # per-image softmax attention
        sl = slice(b * HW, (b + 1) * HW)
        q = qkv[sl, 0:_P].astype(jnp.bfloat16)
        k = qkv[sl, _P:2 * _P].astype(jnp.bfloat16)
        v = qkv[sl, 2 * _P:3 * _P].astype(jnp.bfloat16)
        s = jax.lax.dot_general(q, k, (((1,), (1,)), ((), ())),
                                preferred_element_type=jnp.float32)  # (HW, HW)
        s = s - jnp.max(s, axis=-1, keepdims=True)
        e = jnp.exp(s)
        p = e * pl.reciprocal(jnp.sum(e, axis=-1, keepdims=True), approx=True)
        outs.append(jnp.dot(p.astype(jnp.bfloat16), v,
                            preferred_element_type=jnp.float32))     # (HW, 128)
    a = outs[0] if NB == 1 else jnp.concatenate(outs, axis=0)
    out = jnp.dot(a.astype(jnp.bfloat16), w3_ref[...],
                  preferred_element_type=jnp.float32) + b3           # (NB*HW, C)
    return x + out


# ----------------------------------------------------------------------------
# Fused MiddleBlock kernel
# ----------------------------------------------------------------------------
def _middle_block_kernel(x_ref, temb_ref, pvec_ref, bqkv_ref, convw_ref,
                         wqkv_ref, w3_ref, masks_ref, gmap_ref, gmapT_ref,
                         o_ref, *, NB, H, W, n_groups):
    HW = H * W
    x = x_ref[...].astype(jnp.float32)        # (NB*HW, C)
    C = x.shape[-1]
    pv = pvec_ref[...]                        # (16, C) packed small params
    row = lambda i: pv[i:i + 1, :]
    gmap = gmap_ref[...]
    gmapT = gmapT_ref[...]
    inv_n = 1.0 / float(HW * (C // n_groups))
    tv = temb_ref[...]                        # (NB, 2, C) hoisted time embeddings
    temb1 = tv[:, 0, :]
    temb2 = tv[:, 1, :]

    h = _res_block(x, temb1, row(0), row(1), row(2), row(3), row(4), row(5),
                   convw_ref, 0, gmap, gmapT, inv_n, masks_ref, NB, HW, W)
    h = _attention(h, row(6), row(7), wqkv_ref, bqkv_ref[...], w3_ref, row(8),
                   gmap, gmapT, inv_n, NB, HW)
    h = _res_block(h, temb2, row(9), row(10), row(11), row(12), row(13), row(14),
                   convw_ref, 18, gmap, gmapT, inv_n, masks_ref, NB, HW, W)
    o_ref[...] = h.astype(o_ref.dtype)


# ----------------------------------------------------------------------------
# Wrapper-side constant builders (run once, outside the kernel)
# ----------------------------------------------------------------------------
def _make_group_map(C, n_groups):
    cg = C // n_groups
    ch = jnp.arange(C, dtype=jnp.int32) // cg
    g = jnp.arange(n_groups, dtype=jnp.int32)
    return (ch[:, None] == g[None, :]).astype(jnp.float32)           # (C, G)


def _make_conv_masks(H, W, NB):
    """(9, NB*HW, 1) tap-validity masks (zero outside the image, per image)."""
    HW = H * W
    pid = jnp.arange(HW, dtype=jnp.int32)
    prow, pcol = pid // W, pid % W
    masks = []
    for dy, dx in _TAPS:
        ok = ((prow + dy >= 0) & (prow + dy < H) &
              (pcol + dx >= 0) & (pcol + dx < W)).astype(jnp.float32)
        masks.append(jnp.tile(ok, (NB,))[:, None])                    # (NB*HW, 1)
    return jnp.stack(masks, axis=0)                                   # (9, NB*HW, 1)


def _default_images_per_block(B):
    """Fold the batch into one tile on single-TC chips; keep one image per grid
    step on multi-TC chips (v7x) so "parallel" can shard across TensorCores."""
    try:
        kind = jax.devices()[0].device_kind.lower()
    except Exception:
        return B
    if "v7" in kind or "7x" in kind:
        return 1
    return B


# ----------------------------------------------------------------------------
# pallas_call wrapper
# ----------------------------------------------------------------------------
def middle_block(x, t, res1_params, attn_params, res2_params, *,
                 n_groups, images_per_block=None):
    B, H, W, C = x.shape
    HW = H * W
    assert C % n_groups == 0
    assert C <= _P, "q/k/v lane padding assumes C <= 128"
    assert HW % 8 == 0, "per-image sublane slices need HW to be a multiple of 8"
    NB = _default_images_per_block(B) if images_per_block is None else images_per_block
    assert B % NB == 0
    HWT = NB * HW

    xf = x.reshape(B * HW, C)

    def prep_res(params):
        g1, b1, w1, cb1, tw, tb, g2, b2, w2, cb2 = params
        # Hoisted time-embedding projection (PyTorch applies no activation to t).
        temb = t @ tw + tb.reshape(1, C)                              # (B, C)
        return temb, [g1, b1, cb1, g2, b2, cb2], [w1, w2]

    temb1, rows1, cw1 = prep_res(res1_params)
    temb2, rows2, cw2 = prep_res(res2_params)
    temb = jnp.stack([temb1, temb2], axis=1)                          # (B, 2, C)

    ag, ab, wq, bq, wk, bk, wv, bv, w3, b3 = attn_params
    scale = float(C) ** -0.5

    def pad_w(w):                                                     # (C, C) -> (C, 128)
        return jnp.zeros((C, _P), jnp.float32).at[:, :C].set(w)

    def pad_b(bias):
        return jnp.zeros((1, _P), jnp.float32).at[:, :C].set(bias.reshape(1, C))

    # attention scale folded into the q slab; padded lanes are exactly zero
    wqkv = jnp.concatenate([pad_w(wq * scale), pad_w(wk), pad_w(wv)],
                           axis=1).astype(jnp.bfloat16)               # (C, 384)
    bqkv = jnp.concatenate([pad_b(bq * scale), pad_b(bk), pad_b(bv)], axis=1)  # (1, 384)
    w3p = jnp.zeros((_P, C), jnp.float32).at[:C, :].set(w3).astype(jnp.bfloat16)

    # pack all tiny (1, C) parameters into one (16, C) operand
    prow_list = rows1 + [ag, ab, b3.reshape(1, C)] + rows2            # 15 rows
    prow_list.append(jnp.zeros((1, C), jnp.float32))                  # pad to 16
    pvec = jnp.concatenate(
        [r.reshape(1, C).astype(jnp.float32) for r in prow_list], axis=0)
    assert pvec.shape[0] == _N_PROWS

    # pack all four 3x3 conv weights into one (36, C, C) bf16 stack (tap-major)
    convw = jnp.concatenate([cw1[0], cw1[1], cw2[0], cw2[1]],
                            axis=0).astype(jnp.bfloat16)              # (36, C, C)

    gmap = _make_group_map(C, n_groups)                               # (C, G)
    gmapT = jnp.transpose(gmap)                                       # (G, C)
    masks = _make_conv_masks(H, W, NB)                                # (9, HWT, 1)

    kernel = functools.partial(_middle_block_kernel, NB=NB, H=H, W=W,
                               n_groups=n_groups)

    def const_spec(shape):
        nd = len(shape)
        return pl.BlockSpec(shape, lambda g, nd=nd: (0,) * nd)

    in_specs = [
        pl.BlockSpec((HWT, C), lambda g: (g, 0)),                     # x
        pl.BlockSpec((NB, 2, C), lambda g: (g, 0, 0)),                # time embeddings
        const_spec(pvec.shape),
        const_spec(bqkv.shape),
        const_spec(convw.shape),
        const_spec(wqkv.shape),
        const_spec(w3p.shape),
        const_spec(masks.shape),
        const_spec(gmap.shape),
        const_spec(gmapT.shape),
    ]

    out = pl.pallas_call(
        kernel,
        out_shape=jax.ShapeDtypeStruct((B * HW, C), x.dtype),
        grid_spec=pltpu.PrefetchScalarGridSpec(
            num_scalar_prefetch=0,
            grid=(B // NB,),
            in_specs=in_specs,
            out_specs=pl.BlockSpec((HWT, C), lambda g: (g, 0)),
        ),
        compiler_params=pltpu.CompilerParams(dimension_semantics=("parallel",)),
    )(xf, temb, pvec, bqkv, convw, wqkv, w3p, masks, gmap, gmapT)
    return out.reshape(B, H, W, C)


# ----------------------------------------------------------------------------
# Deterministic DDPM-style parameter init (variance_scaling fan_avg uniform)
# ----------------------------------------------------------------------------
def _ddpm_uniform(key, shape, fan_in, fan_out, scale=1.0):
    scale = 1e-10 if scale == 0 else scale
    variance = scale / ((fan_in + fan_out) / 2.0)
    bound = math.sqrt(3.0 * variance)
    return jax.random.uniform(key, shape, jnp.float32, -bound, bound)


def init_res_params(key, C, Tc):
    k1, k2, k3 = jax.random.split(key, 3)
    g1 = jnp.ones((1, C), jnp.float32)
    b1 = jnp.zeros((1, C), jnp.float32)
    w1 = _ddpm_uniform(k1, (9, C, C), fan_in=C * 9, fan_out=C * 9)      # conv1 taps
    cb1 = jnp.zeros((1, C), jnp.float32)
    tw = _ddpm_uniform(k2, (Tc, C), fan_in=Tc, fan_out=C)               # time_emb (in, out)
    tb = jnp.zeros((1, C), jnp.float32)
    g2 = jnp.ones((1, C), jnp.float32)
    b2 = jnp.zeros((1, C), jnp.float32)
    w2 = _ddpm_uniform(k3, (9, C, C), fan_in=C * 9, fan_out=C * 9)
    cb2 = jnp.zeros((1, C), jnp.float32)
    return [g1, b1, w1, cb1, tw, tb, g2, b2, w2, cb2]


def init_attn_params(key, C):
    kq, kk, kv, k3 = jax.random.split(key, 4)
    g = jnp.ones((1, C), jnp.float32)
    b = jnp.zeros((1, C), jnp.float32)
    wq = _ddpm_uniform(kq, (C, C), C, C, scale=0.1)   # NIN_0
    wk = _ddpm_uniform(kk, (C, C), C, C, scale=0.1)   # NIN_1
    wv = _ddpm_uniform(kv, (C, C), C, C, scale=0.1)   # NIN_2
    w3 = _ddpm_uniform(k3, (C, C), C, C, scale=0.0)   # NIN_3 (init_scale=0 -> 1e-10)
    z = jnp.zeros((1, C), jnp.float32)
    return [g, b, wq, z, wk, z, wv, z, w3, z]


# ----------------------------------------------------------------------------
# Pure-JAX reference (same NHWC layout) for the correctness check
# ----------------------------------------------------------------------------
def _group_norm_ref(x, gamma, beta, n_groups, eps=1e-6):
    B, H, W, C = x.shape
    cg = C // n_groups
    xg = x.reshape(B, H, W, n_groups, cg)
    mean = jnp.mean(xg, axis=(1, 2, 4), keepdims=True)
    var = jnp.mean((xg - mean) ** 2, axis=(1, 2, 4), keepdims=True)
    xn = ((xg - mean) / jnp.sqrt(var + eps)).reshape(B, H, W, C)
    return xn * gamma.reshape(1, 1, 1, C) + beta.reshape(1, 1, 1, C)


def _conv3x3_ref(x, w9, b):
    c_in, c_out = w9.shape[1], w9.shape[2]
    w = w9.reshape(3, 3, c_in, c_out)
    y = jax.lax.conv_general_dilated(
        x, w, window_strides=(1, 1), padding=((1, 1), (1, 1)),
        dimension_numbers=("NHWC", "HWIO", "NHWC"),
        precision=jax.lax.Precision.HIGHEST)
    return y + b.reshape(1, 1, 1, c_out)


def _res_block_ref(x, t, params, n_groups):
    g1, b1, w1, cb1, tw, tb, g2, b2, w2, cb2 = params
    h = jax.nn.silu(_group_norm_ref(x, g1, b1, n_groups))
    h = _conv3x3_ref(h, w1, cb1)
    temb = t @ tw + tb.reshape(1, -1)
    h = h + temb[:, None, None, :]
    h = jax.nn.silu(_group_norm_ref(h, g2, b2, n_groups))
    h = _conv3x3_ref(h, w2, cb2)
    return h + x


def _attn_block_ref(x, params, n_groups):
    g, bta, wq, bq, wk, bk, wv, bv, w3, b3 = params
    B, H, W, C = x.shape
    h = _group_norm_ref(x, g, bta, n_groups).reshape(B, H * W, C)
    q = h @ wq + bq
    k = h @ wk + bk
    v = h @ wv + bv
    s = jnp.einsum("bqc,bkc->bqk", q, k) * (float(C) ** -0.5)
    p = jax.nn.softmax(s, axis=-1)
    a = jnp.einsum("bqk,bkc->bqc", p, v)
    out = a @ w3 + b3
    return x + out.reshape(B, H, W, C)


def middle_block_ref(x, t, res1_params, attn_params, res2_params, n_groups):
    with jax.default_matmul_precision("highest"):
        x = _res_block_ref(x, t, res1_params, n_groups)
        x = _attn_block_ref(x, attn_params, n_groups)
        x = _res_block_ref(x, t, res2_params, n_groups)
    return x


# ----------------------------------------------------------------------------
if __name__ == "__main__":
    B, C, H, W = 2, 32, 8, 8          # n_channels = 32
    time_channels = 16
    n_groups = 8                      # group_norm_n

    key = jax.random.PRNGKey(0)
    kx, kt, kr1, ka, kr2 = jax.random.split(key, 5)
    x = jax.random.normal(kx, (B, H, W, C), jnp.float32)   # NHWC (== NCHW [2,32,8,8])
    t = jax.random.normal(kt, (B, time_channels), jnp.float32)

    res1_params = init_res_params(kr1, C, time_channels)
    attn_params = init_attn_params(ka, C)
    res2_params = init_res_params(kr2, C, time_channels)

    y_ref = middle_block_ref(x, t, res1_params, attn_params, res2_params, n_groups)
    tol = 2e-2 * (1.0 + float(jnp.max(jnp.abs(y_ref))))    # bf16-matmul tolerance

    # Exercise both the batch-folded (single-TC) and the per-image (multi-TC) paths.
    for nb in sorted({1, B, _default_images_per_block(B)}):
        y = middle_block(x, t, res1_params, attn_params, res2_params,
                         n_groups=n_groups, images_per_block=nb)
        y = jax.block_until_ready(y)
        assert y.shape == (B, H, W, C)
        assert bool(jnp.all(jnp.isfinite(y)))
        err = float(jnp.max(jnp.abs(y - y_ref)))
        assert err < tol, f"images_per_block={nb}: max abs err {err} (tol {tol})"
    print("KERNEL_OK")
</pallas_src>

<mosaic_0001>
module attributes {stable_mosaic.version = 11 : i64} {
  func.func @_middle_block_kernel(%arg0: i32, %arg1: memref<64x32xf32, #tpu.memory_space<vmem>>, %arg2: memref<1x2x32xf32, #tpu.memory_space<vmem>>, %arg3: memref<16x32xf32, #tpu.memory_space<vmem>>, %arg4: memref<1x384xf32, #tpu.memory_space<vmem>>, %arg5: memref<36x32x32xbf16, #tpu.memory_space<vmem>>, %arg6: memref<32x384xbf16, #tpu.memory_space<vmem>>, %arg7: memref<128x32xbf16, #tpu.memory_space<vmem>>, %arg8: memref<9x64x1xf32, #tpu.memory_space<vmem>>, %arg9: memref<32x8xf32, #tpu.memory_space<vmem>>, %arg10: memref<8x32xf32, #tpu.memory_space<vmem>>, %arg11: memref<64x32xf32, #tpu.memory_space<vmem>>) attributes {dimension_semantics = [#tpu.dimension_semantics<parallel>], iteration_bounds = array<i64: 2>, scalar_prefetch = 0 : i64, scratch_operands = 0 : i64, tpu.core_type = #tpu.core_type<tc>, window_params = [{transform_indices = @transform_0, window_bounds = array<i64: 64, 32>}, {transform_indices = @transform_1, window_bounds = array<i64: 1, 2, 32>}, {pipeline_mode = #tpu.pipeline_mode<synchronous>, transform_indices = @transform_2, window_bounds = array<i64: 16, 32>}, {pipeline_mode = #tpu.pipeline_mode<synchronous>, transform_indices = @transform_3, window_bounds = array<i64: 1, 384>}, {pipeline_mode = #tpu.pipeline_mode<synchronous>, transform_indices = @transform_4, window_bounds = array<i64: 36, 32, 32>}, {pipeline_mode = #tpu.pipeline_mode<synchronous>, transform_indices = @transform_5, window_bounds = array<i64: 32, 384>}, {pipeline_mode = #tpu.pipeline_mode<synchronous>, transform_indices = @transform_6, window_bounds = array<i64: 128, 32>}, {pipeline_mode = #tpu.pipeline_mode<synchronous>, transform_indices = @transform_7, window_bounds = array<i64: 9, 64, 1>}, {pipeline_mode = #tpu.pipeline_mode<synchronous>, transform_indices = @transform_8, window_bounds = array<i64: 32, 8>}, {pipeline_mode = #tpu.pipeline_mode<synchronous>, transform_indices = @transform_9, window_bounds = array<i64: 8, 32>}, {transform_indices = @transform_10, window_bounds = array<i64: 64, 32>}]} {
    %c0 = arith.constant 0 : index
    %c0_0 = arith.constant 0 : index
    %0 = vector.load %arg1[%c0, %c0_0] : memref<64x32xf32, #tpu.memory_space<vmem>>, vector<64x32xf32>
    %c0_1 = arith.constant 0 : index
    %c0_2 = arith.constant 0 : index
    %1 = vector.load %arg3[%c0_1, %c0_2] : memref<16x32xf32, #tpu.memory_space<vmem>>, vector<16x32xf32>
    %c0_3 = arith.constant 0 : index
    %c0_4 = arith.constant 0 : index
    %2 = vector.load %arg9[%c0_3, %c0_4] : memref<32x8xf32, #tpu.memory_space<vmem>>, vector<32x8xf32>
    %c0_5 = arith.constant 0 : index
    %c0_6 = arith.constant 0 : index
    %3 = vector.load %arg10[%c0_5, %c0_6] : memref<8x32xf32, #tpu.memory_space<vmem>>, vector<8x32xf32>
    %c0_7 = arith.constant 0 : index
    %c0_8 = arith.constant 0 : index
    %c0_9 = arith.constant 0 : index
    %4 = vector.load %arg2[%c0_7, %c0_8, %c0_9] : memref<1x2x32xf32, #tpu.memory_space<vmem>>, vector<1x2x32xf32>
    %5 = vector.extract_strided_slice %4 {offsets = [0, 0, 0], sizes = [1, 1, 32], strides = [1, 1, 1]} : vector<1x2x32xf32> to vector<1x1x32xf32>
    %6 = vector.shape_cast %5 : vector<1x1x32xf32> to vector<1x32xf32>
    %7 = vector.extract_strided_slice %4 {offsets = [0, 1, 0], sizes = [1, 1, 32], strides = [1, 1, 1]} : vector<1x2x32xf32> to vector<1x1x32xf32>
    %8 = vector.shape_cast %7 : vector<1x1x32xf32> to vector<1x32xf32>
    %9 = vector.extract_strided_slice %1 {offsets = [0, 0], sizes = [1, 32], strides = [1, 1]} : vector<16x32xf32> to vector<1x32xf32>
    %10 = vector.extract_strided_slice %1 {offsets = [1, 0], sizes = [1, 32], strides = [1, 1]} : vector<16x32xf32> to vector<1x32xf32>
    %11 = vector.extract_strided_slice %1 {offsets = [2, 0], sizes = [1, 32], strides = [1, 1]} : vector<16x32xf32> to vector<1x32xf32>
    %12 = vector.extract_strided_slice %1 {offsets = [3, 0], sizes = [1, 32], strides = [1, 1]} : vector<16x32xf32> to vector<1x32xf32>
    %13 = vector.extract_strided_slice %1 {offsets = [4, 0], sizes = [1, 32], strides = [1, 1]} : vector<16x32xf32> to vector<1x32xf32>
    %14 = vector.extract_strided_slice %1 {offsets = [5, 0], sizes = [1, 32], strides = [1, 1]} : vector<16x32xf32> to vector<1x32xf32>
    %cst = arith.constant dense<0.000000e+00> : vector<32xf32>
    %15 = vector.multi_reduction <add>, %0, %cst [0] : vector<64x32xf32> to vector<32xf32>
    %16 = vector.shape_cast %15 : vector<32xf32> to vector<1x32xf32>
    %17 = arith.mulf %0, %0 : vector<64x32xf32>
    %cst_10 = arith.constant dense<0.000000e+00> : vector<32xf32>
    %18 = vector.multi_reduction <add>, %17, %cst_10 [0] : vector<64x32xf32> to vector<32xf32>
    %19 = vector.shape_cast %18 : vector<32xf32> to vector<1x32xf32>
    %20 = tpu.concatenate %16, %19 in 0 : vector<1x32xf32>, vector<1x32xf32> -> vector<2x32xf32>
    %cst_11 = arith.constant dense<0.000000e+00> : vector<2x8xf32>
    %21 = tpu.matmul %20, %2, %cst_11 {dimension_numbers = #tpu.dot_dimension_numbers<[1], [0], [0], [1], [0, 0, 1, 1], [], []>} : vector<2x32xf32>, vector<32x8xf32>, vector<2x8xf32> -> vector<2x8xf32>
    %cst_12 = arith.constant 3.906250e-03 : f32
    %22 = vector.broadcast %cst_12 : f32 to vector<2x8xf32>
    %23 = arith.mulf %21, %22 : vector<2x8xf32>
    %24 = vector.extract_strided_slice %23 {offsets = [0, 0], sizes = [1, 8], strides = [1, 1]} : vector<2x8xf32> to vector<1x8xf32>
    %25 = vector.extract_strided_slice %23 {offsets = [1, 0], sizes = [1, 8], strides = [1, 1]} : vector<2x8xf32> to vector<1x8xf32>
    %26 = arith.mulf %24, %24 : vector<1x8xf32>
    %27 = arith.subf %25, %26 : vector<1x8xf32>
    %cst_13 = arith.constant 0.000000e+00 : f32
    %28 = vector.broadcast %cst_13 : f32 to vector<1x8xf32>
    %29 = arith.maximumf %27, %28 : vector<1x8xf32>
    %cst_14 = arith.constant 9.99999997E-7 : f32
    %30 = vector.broadcast %cst_14 : f32 to vector<1x8xf32>
    %31 = arith.addf %29, %30 : vector<1x8xf32>
    %32 = math.rsqrt %31 : vector<1x8xf32>
    %33 = arith.mulf %24, %32 : vector<1x8xf32>
    %34 = tpu.concatenate %32, %33 in 0 : vector<1x8xf32>, vector<1x8xf32> -> vector<2x8xf32>
    %cst_15 = arith.constant dense<0.000000e+00> : vector<2x32xf32>
    %35 = tpu.matmul %34, %3, %cst_15 {dimension_numbers = #tpu.dot_dimension_numbers<[1], [0], [0], [1], [0, 0, 1, 1], [], []>} : vector<2x8xf32>, vector<8x32xf32>, vector<2x32xf32> -> vector<2x32xf32>
    %36 = vector.extract_strided_slice %35 {offsets = [0, 0], sizes = [1, 32], strides = [1, 1]} : vector<2x32xf32> to vector<1x32xf32>
    %37 = arith.mulf %36, %9 : vector<1x32xf32>
    %38 = vector.extract_strided_slice %35 {offsets = [1, 0], sizes = [1, 32], strides = [1, 1]} : vector<2x32xf32> to vector<1x32xf32>
    %39 = arith.mulf %38, %9 : vector<1x32xf32>
    %40 = arith.subf %10, %39 : vector<1x32xf32>
    %41 = vector.broadcast %37 : vector<1x32xf32> to vector<64x32xf32>
    %42 = arith.mulf %0, %41 : vector<64x32xf32>
    %43 = vector.broadcast %40 : vector<1x32xf32> to vector<64x32xf32>
    %44 = arith.addf %42, %43 : vector<64x32xf32>
    %45 = arith.negf %44 : vector<64x32xf32>
    %46 = math.exp %45 : vector<64x32xf32>
    %cst_16 = arith.constant 1.000000e+00 : f32
    %47 = vector.broadcast %cst_16 : f32 to vector<64x32xf32>
    %48 = arith.addf %47, %46 : vector<64x32xf32>
    %49 = arith.divf %47, %48 : vector<64x32xf32>
    %50 = arith.mulf %44, %49 : vector<64x32xf32>
    %c9_i32 = arith.constant 9 : i32
    %51 = tpu.dynamic_rotate %50 by %c9_i32 dim 0 : vector<64x32xf32>, i32 -> vector<64x32xf32>
    %c0_17 = arith.constant 0 : index
    %c0_18 = arith.constant 0 : index
    %c0_19 = arith.constant 0 : index
    %52 = vector.load %arg8[%c0_17, %c0_18, %c0_19] : memref<9x64x1xf32, #tpu.memory_space<vmem>>, vector<1x64x1xf32>
    %53 = vector.shape_cast %52 : vector<1x64x1xf32> to vector<64x1xf32>
    %54 = vector.broadcast %53 : vector<64x1xf32> to vector<64x32xf32>
    %55 = arith.mulf %51, %54 : vector<64x32xf32>
    %56 = arith.truncf %55 : vector<64x32xf32> to vector<64x32xbf16>
    %c0_20 = arith.constant 0 : index
    %c0_21 = arith.constant 0 : index
    %c0_22 = arith.constant 0 : index
    %57 = vector.load %arg5[%c0_20, %c0_21, %c0_22] : memref<36x32x32xbf16, #tpu.memory_space<vmem>>, vector<1x32x32xbf16>
    %58 = vector.shape_cast %57 : vector<1x32x32xbf16> to vector<32x32xbf16>
    %cst_23 = arith.constant dense<0.000000e+00> : vector<64x32xf32>
    %59 = tpu.matmul %56, %58, %cst_23 {dimension_numbers = #tpu.dot_dimension_numbers<[1], [0], [0], [1], [0, 0, 1, 1], [], []>} : vector<64x32xbf16>, vector<32x32xbf16>, vector<64x32xf32> -> vector<64x32xf32>
    %c8_i32 = arith.constant 8 : i32
    %60 = tpu.dynamic_rotate %50 by %c8_i32 dim 0 : vector<64x32xf32>, i32 -> vector<64x32xf32>
    %c1 = arith.constant 1 : index
    %c0_24 = arith.constant 0 : index
    %c0_25 = arith.constant 0 : index
    %61 = vector.load %arg8[%c1, %c0_24, %c0_25] : memref<9x64x1xf32, #tpu.memory_space<vmem>>, vector<1x64x1xf32>
    %62 = vector.shape_cast %61 : vector<1x64x1xf32> to vector<64x1xf32>
    %63 = vector.broadcast %62 : vector<64x1xf32> to vector<64x32xf32>
    %64 = arith.mulf %60, %63 : vector<64x32xf32>
    %65 = arith.truncf %64 : vector<64x32xf32> to vector<64x32xbf16>
    %c1_26 = arith.constant 1 : index
    %c0_27 = arith.constant 0 : index
    %c0_28 = arith.constant 0 : index
    %66 = vector.load %arg5[%c1_26, %c0_27, %c0_28] : memref<36x32x32xbf16, #tpu.memory_space<vmem>>, vector<1x32x32xbf16>
    %67 = vector.shape_cast %66 : vector<1x32x32xbf16> to vector<32x32xbf16>
    %cst_29 = arith.constant dense<0.000000e+00> : vector<64x32xf32>
    %68 = tpu.matmul %65, %67, %cst_29 {dimension_numbers = #tpu.dot_dimension_numbers<[1], [0], [0], [1], [0, 0, 1, 1], [], []>} : vector<64x32xbf16>, vector<32x32xbf16>, vector<64x32xf32> -> vector<64x32xf32>
    %69 = arith.addf %59, %68 : vector<64x32xf32>
    %c7_i32 = arith.constant 7 : i32
    %70 = tpu.dynamic_rotate %50 by %c7_i32 dim 0 : vector<64x32xf32>, i32 -> vector<64x32xf32>
    %c2 = arith.constant 2 : index
    %c0_30 = arith.constant 0 : index
    %c0_31 = arith.constant 0 : index
    %71 = vector.load %arg8[%c2, %c0_30, %c0_31] : memref<9x64x1xf32, #tpu.memory_space<vmem>>, vector<1x64x1xf32>
    %72 = vector.shape_cast %71 : vector<1x64x1xf32> to vector<64x1xf32>
    %73 = vector.broadcast %72 : vector<64x1xf32> to vector<64x32xf32>
    %74 = arith.mulf %70, %73 : vector<64x32xf32>
    %75 = arith.truncf %74 : vector<64x32xf32> to vector<64x32xbf16>
    %c2_32 = arith.constant 2 : index
    %c0_33 = arith.constant 0 : index
    %c0_34 = arith.constant 0 : index
    %76 = vector.load %arg5[%c2_32, %c0_33, %c0_34] : memref<36x32x32xbf16, #tpu.memory_space<vmem>>, vector<1x32x32xbf16>
    %77 = vector.shape_cast %76 : vector<1x32x32xbf16> to vector<32x32xbf16>
    %cst_35 = arith.constant dense<0.000000e+00> : vector<64x32xf32>
    %78 = tpu.matmul %75, %77, %cst_35 {dimension_numbers = #tpu.dot_dimension_numbers<[1], [0], [0], [1], [0, 0, 1, 1], [], []>} : vector<64x32xbf16>, vector<32x32xbf16>, vector<64x32xf32> -> vector<64x32xf32>
    %79 = arith.addf %69, %78 : vector<64x32xf32>
    %c1_i32 = arith.constant 1 : i32
    %80 = tpu.dynamic_rotate %50 by %c1_i32 dim 0 : vector<64x32xf32>, i32 -> vector<64x32xf32>
    %c3 = arith.constant 3 : index
    %c0_36 = arith.constant 0 : index
    %c0_37 = arith.constant 0 : index
    %81 = vector.load %arg8[%c3, %c0_36, %c0_37] : memref<9x64x1xf32, #tpu.memory_space<vmem>>, vector<1x64x1xf32>
    %82 = vector.shape_cast %81 : vector<1x64x1xf32> to vector<64x1xf32>
    %83 = vector.broadcast %82 : vector<64x1xf32> to vector<64x32xf32>
    %84 = arith.mulf %80, %83 : vector<64x32xf32>
    %85 = arith.truncf %84 : vector<64x32xf32> to vector<64x32xbf16>
    %c3_38 = arith.constant 3 : index
    %c0_39 = arith.constant 0 : index
    %c0_40 = arith.constant 0 : index
    %86 = vector.load %arg5[%c3_38, %c0_39, %c0_40] : memref<36x32x32xbf16, #tpu.memory_space<vmem>>, vector<1x32x32xbf16>
    %87 = vector.shape_cast %86 : vector<1x32x32xbf16> to vector<32x32xbf16>
    %cst_41 = arith.constant dense<0.000000e+00> : vector<64x32xf32>
    %88 = tpu.matmul %85, %87, %cst_41 {dimension_numbers = #tpu.dot_dimension_numbers<[1], [0], [0], [1], [0, 0, 1, 1], [], []>} : vector<64x32xbf16>, vector<32x32xbf16>, vector<64x32xf32> -> vector<64x32xf32>
    %89 = arith.addf %79, %88 : vector<64x32xf32>
    %c4 = arith.constant 4 : index
    %c0_42 = arith.constant 0 : index
    %c0_43 = arith.constant 0 : index
    %90 = vector.load %arg8[%c4, %c0_42, %c0_43] : memref<9x64x1xf32, #tpu.memory_space<vmem>>, vector<1x64x1xf32>
    %91 = vector.shape_cast %90 : vector<1x64x1xf32> to vector<64x1xf32>
    %92 = vector.broadcast %91 : vector<64x1xf32> to vector<64x32xf32>
    %93 = arith.mulf %50, %92 : vector<64x32xf32>
    %94 = arith.truncf %93 : vector<64x32xf32> to vector<64x32xbf16>
    %c4_44 = arith.constant 4 : index
    %c0_45 = arith.constant 0 : index
    %c0_46 = arith.constant 0 : index
    %95 = vector.load %arg5[%c4_44, %c0_45, %c0_46] : memref<36x32x32xbf16, #tpu.memory_space<vmem>>, vector<1x32x32xbf16>
    %96 = vector.shape_cast %95 : vector<1x32x32xbf16> to vector<32x32xbf16>
    %cst_47 = arith.constant dense<0.000000e+00> : vector<64x32xf32>
    %97 = tpu.matmul %94, %96, %cst_47 {dimension_numbers = #tpu.dot_dimension_numbers<[1], [0], [0], [1], [0, 0, 1, 1], [], []>} : vector<64x32xbf16>, vector<32x32xbf16>, vector<64x32xf32> -> vector<64x32xf32>
    %98 = arith.addf %89, %97 : vector<64x32xf32>
    %c63_i32 = arith.constant 63 : i32
    %99 = tpu.dynamic_rotate %50 by %c63_i32 dim 0 : vector<64x32xf32>, i32 -> vector<64x32xf32>
    %c5 = arith.constant 5 : index
    %c0_48 = arith.constant 0 : index
    %c0_49 = arith.constant 0 : index
    %100 = vector.load %arg8[%c5, %c0_48, %c0_49] : memref<9x64x1xf32, #tpu.memory_space<vmem>>, vector<1x64x1xf32>
    %101 = vector.shape_cast %100 : vector<1x64x1xf32> to vector<64x1xf32>
    %102 = vector.broadcast %101 : vector<64x1xf32> to vector<64x32xf32>
    %103 = arith.mulf %99, %102 : vector<64x32xf32>
    %104 = arith.truncf %103 : vector<64x32xf32> to vector<64x32xbf16>
    %c5_50 = arith.constant 5 : index
    %c0_51 = arith.constant 0 : index
    %c0_52 = arith.constant 0 : index
    %105 = vector.load %arg5[%c5_50, %c0_51, %c0_52] : memref<36x32x32xbf16, #tpu.memory_space<vmem>>, vector<1x32x32xbf16>
    %106 = vector.shape_cast %105 : vector<1x32x32xbf16> to vector<32x32xbf16>
    %cst_53 = arith.constant dense<0.000000e+00> : vector<64x32xf32>
    %107 = tpu.matmul %104, %106, %cst_53 {dimension_numbers = #tpu.dot_dimension_numbers<[1], [0], [0], [1], [0, 0, 1, 1], [], []>} : vector<64x32xbf16>, vector<32x32xbf16>, vector<64x32xf32> -> vector<64x32xf32>
    %108 = arith.addf %98, %107 : vector<64x32xf32>
    %c57_i32 = arith.constant 57 : i32
    %109 = tpu.dynamic_rotate %50 by %c57_i32 dim 0 : vector<64x32xf32>, i32 -> vector<64x32xf32>
    %c6 = arith.constant 6 : index
    %c0_54 = arith.constant 0 : index
    %c0_55 = arith.constant 0 : index
    %110 = vector.load %arg8[%c6, %c0_54, %c0_55] : memref<9x64x1xf32, #tpu.memory_space<vmem>>, vector<1x64x1xf32>
    %111 = vector.shape_cast %110 : vector<1x64x1xf32> to vector<64x1xf32>
    %112 = vector.broadcast %111 : vector<64x1xf32> to vector<64x32xf32>
    %113 = arith.mulf %109, %112 : vector<64x32xf32>
    %114 = arith.truncf %113 : vector<64x32xf32> to vector<64x32xbf16>
    %c6_56 = arith.constant 6 : index
    %c0_57 = arith.constant 0 : index
    %c0_58 = arith.constant 0 : index
    %115 = vector.load %arg5[%c6_56, %c0_57, %c0_58] : memref<36x32x32xbf16, #tpu.memory_space<vmem>>, vector<1x32x32xbf16>
    %116 = vector.shape_cast %115 : vector<1x32x32xbf16> to vector<32x32xbf16>
    %cst_59 = arith.constant dense<0.000000e+00> : vector<64x32xf32>
    %117 = tpu.matmul %114, %116, %cst_59 {dimension_numbers = #tpu.dot_dimension_numbers<[1], [0], [0], [1], [0, 0, 1, 1], [], []>} : vector<64x32xbf16>, vector<32x32xbf16>, vector<64x32xf32> -> vector<64x32xf32>
    %118 = arith.addf %108, %117 : vector<64x32xf32>
    %c56_i32 = arith.constant 56 : i32
    %119 = tpu.dynamic_rotate %50 by %c56_i32 dim 0 : vector<64x32xf32>, i32 -> vector<64x32xf32>
    %c7 = arith.constant 7 : index
    %c0_60 = arith.constant 0 : index
    %c0_61 = arith.constant 0 : index
    %120 = vector.load %arg8[%c7, %c0_60, %c0_61] : memref<9x64x1xf32, #tpu.memory_space<vmem>>, vector<1x64x1xf32>
    %121 = vector.shape_cast %120 : vector<1x64x1xf32> to vector<64x1xf32>
    %122 = vector.broadcast %121 : vector<64x1xf32> to vector<64x32xf32>
    %123 = arith.mulf %119, %122 : vector<64x32xf32>
    %124 = arith.truncf %123 : vector<64x32xf32> to vector<64x32xbf16>
    %c7_62 = arith.constant 7 : index
    %c0_63 = arith.constant 0 : index
    %c0_64 = arith.constant 0 : index
    %125 = vector.load %arg5[%c7_62, %c0_63, %c0_64] : memref<36x32x32xbf16, #tpu.memory_space<vmem>>, vector<1x32x32xbf16>
    %126 = vector.shape_cast %125 : vector<1x32x32xbf16> to vector<32x32xbf16>
    %cst_65 = arith.constant dense<0.000000e+00> : vector<64x32xf32>
    %127 = tpu.matmul %124, %126, %cst_65 {dimension_numbers = #tpu.dot_dimension_numbers<[1], [0], [0], [1], [0, 0, 1, 1], [], []>} : vector<64x32xbf16>, vector<32x32xbf16>, vector<64x32xf32> -> vector<64x32xf32>
    %128 = arith.addf %118, %127 : vector<64x32xf32>
    %c55_i32 = arith.constant 55 : i32
    %129 = tpu.dynamic_rotate %50 by %c55_i32 dim 0 : vector<64x32xf32>, i32 -> vector<64x32xf32>
    %c8 = arith.constant 8 : index
    %c0_66 = arith.constant 0 : index
    %c0_67 = arith.constant 0 : index
    %130 = vector.load %arg8[%c8, %c0_66, %c0_67] : memref<9x64x1xf32, #tpu.memory_space<vmem>>, vector<1x64x1xf32>
    %131 = vector.shape_cast %130 : vector<1x64x1xf32> to vector<64x1xf32>
    %132 = vector.broadcast %131 : vector<64x1xf32> to vector<64x32xf32>
    %133 = arith.mulf %129, %132 : vector<64x32xf32>
    %134 = arith.truncf %133 : vector<64x32xf32> to vector<64x32xbf16>
    %c8_68 = arith.constant 8 : index
    %c0_69 = arith.constant 0 : index
    %c0_70 = arith.constant 0 : index
    %135 = vector.load %arg5[%c8_68, %c0_69, %c0_70] : memref<36x32x32xbf16, #tpu.memory_space<vmem>>, vector<1x32x32xbf16>
    %136 = vector.shape_cast %135 : vector<1x32x32xbf16> to vector<32x32xbf16>
    %cst_71 = arith.constant dense<0.000000e+00> : vector<64x32xf32>
    %137 = tpu.matmul %134, %136, %cst_71 {dimension_numbers = #tpu.dot_dimension_numbers<[1], [0], [0], [1], [0, 0, 1, 1], [], []>} : vector<64x32xbf16>, vector<32x32xbf16>, vector<64x32xf32> -> vector<64x32xf32>
    %138 = arith.addf %128, %137 : vector<64x32xf32>
    %139 = vector.broadcast %11 : vector<1x32xf32> to vector<64x32xf32>
    %140 = arith.addf %138, %139 : vector<64x32xf32>
    %141 = vector.broadcast %6 : vector<1x32xf32> to vector<64x32xf32>
    %142 = arith.addf %140, %141 : vector<64x32xf32>
    %cst_72 = arith.constant dense<0.000000e+00> : vector<32xf32>
    %143 = vector.multi_reduction <add>, %142, %cst_72 [0] : vector<64x32xf32> to vector<32xf32>
    %144 = vector.shape_cast %143 : vector<32xf32> to vector<1x32xf32>
    %145 = arith.mulf %142, %142 : vector<64x32xf32>
    %cst_73 = arith.constant dense<0.000000e+00> : vector<32xf32>
    %146 = vector.multi_reduction <add>, %145, %cst_73 [0] : vector<64x32xf32> to vector<32xf32>
    %147 = vector.shape_cast %146 : vector<32xf32> to vector<1x32xf32>
    %148 = tpu.concatenate %144, %147 in 0 : vector<1x32xf32>, vector<1x32xf32> -> vector<2x32xf32>
    %cst_74 = arith.constant dense<0.000000e+00> : vector<2x8xf32>
    %149 = tpu.matmul %148, %2, %cst_74 {dimension_numbers = #tpu.dot_dimension_numbers<[1], [0], [0], [1], [0, 0, 1, 1], [], []>} : vector<2x32xf32>, vector<32x8xf32>, vector<2x8xf32> -> vector<2x8xf32>
    %cst_75 = arith.constant 3.906250e-03 : f32
    %150 = vector.broadcast %cst_75 : f32 to vector<2x8xf32>
    %151 = arith.mulf %149, %150 : vector<2x8xf32>
    %152 = vector.extract_strided_slice %151 {offsets = [0, 0], sizes = [1, 8], strides = [1, 1]} : vector<2x8xf32> to vector<1x8xf32>
    %153 = vector.extract_strided_slice %151 {offsets = [1, 0], sizes = [1, 8], strides = [1, 1]} : vector<2x8xf32> to vector<1x8xf32>
    %154 = arith.mulf %152, %152 : vector<1x8xf32>
    %155 = arith.subf %153, %154 : vector<1x8xf32>
    %cst_76 = arith.constant 0.000000e+00 : f32
    %156 = vector.broadcast %cst_76 : f32 to vector<1x8xf32>
    %157 = arith.maximumf %155, %156 : vector<1x8xf32>
    %cst_77 = arith.constant 9.99999997E-7 : f32
    %158 = vector.broadcast %cst_77 : f32 to vector<1x8xf32>
    %159 = arith.addf %157, %158 : vector<1x8xf32>
    %160 = math.rsqrt %159 : vector<1x8xf32>
    %161 = arith.mulf %152, %160 : vector<1x8xf32>
    %162 = tpu.concatenate %160, %161 in 0 : vector<1x8xf32>, vector<1x8xf32> -> vector<2x8xf32>
    %cst_78 = arith.constant dense<0.000000e+00> : vector<2x32xf32>
    %163 = tpu.matmul %162, %3, %cst_78 {dimension_numbers = #tpu.dot_dimension_numbers<[1], [0], [0], [1], [0, 0, 1, 1], [], []>} : vector<2x8xf32>, vector<8x32xf32>, vector<2x32xf32> -> vector<2x32xf32>
    %164 = vector.extract_strided_slice %163 {offsets = [0, 0], sizes = [1, 32], strides = [1, 1]} : vector<2x32xf32> to vector<1x32xf32>
    %165 = arith.mulf %164, %12 : vector<1x32xf32>
    %166 = vector.extract_strided_slice %163 {offsets = [1, 0], sizes = [1, 32], strides = [1, 1]} : vector<2x32xf32> to vector<1x32xf32>
    %167 = arith.mulf %166, %12 : vector<1x32xf32>
    %168 = arith.subf %13, %167 : vector<1x32xf32>
    %169 = vector.broadcast %165 : vector<1x32xf32> to vector<64x32xf32>
    %170 = arith.mulf %142, %169 : vector<64x32xf32>
    %171 = vector.broadcast %168 : vector<1x32xf32> to vector<64x32xf32>
    %172 = arith.addf %170, %171 : vector<64x32xf32>
    %173 = arith.negf %172 : vector<64x32xf32>
    %174 = math.exp %173 : vector<64x32xf32>
    %cst_79 = arith.constant 1.000000e+00 : f32
    %175 = vector.broadcast %cst_79 : f32 to vector<64x32xf32>
    %176 = arith.addf %175, %174 : vector<64x32xf32>
    %177 = arith.divf %175, %176 : vector<64x32xf32>
    %178 = arith.mulf %172, %177 : vector<64x32xf32>
    %c9_i32_80 = arith.constant 9 : i32
    %179 = tpu.dynamic_rotate %178 by %c9_i32_80 dim 0 : vector<64x32xf32>, i32 -> vector<64x32xf32>
    %c0_81 = arith.constant 0 : index
    %c0_82 = arith.constant 0 : index
    %c0_83 = arith.constant 0 : index
    %180 = vector.load %arg8[%c0_81, %c0_82, %c0_83] : memref<9x64x1xf32, #tpu.memory_space<vmem>>, vector<1x64x1xf32>
    %181 = vector.shape_cast %180 : vector<1x64x1xf32> to vector<64x1xf32>
    %182 = vector.broadcast %181 : vector<64x1xf32> to vector<64x32xf32>
    %183 = arith.mulf %179, %182 : vector<64x32xf32>
    %184 = arith.truncf %183 : vector<64x32xf32> to vector<64x32xbf16>
    %c9 = arith.constant 9 : index
    %c0_84 = arith.constant 0 : index
    %c0_85 = arith.constant 0 : index
    %185 = vector.load %arg5[%c9, %c0_84, %c0_85] : memref<36x32x32xbf16, #tpu.memory_space<vmem>>, vector<1x32x32xbf16>
    %186 = vector.shape_cast %185 : vector<1x32x32xbf16> to vector<32x32xbf16>
    %cst_86 = arith.constant dense<0.000000e+00> : vector<64x32xf32>
    %187 = tpu.matmul %184, %186, %cst_86 {dimension_numbers = #tpu.dot_dimension_numbers<[1], [0], [0], [1], [0, 0, 1, 1], [], []>} : vector<64x32xbf16>, vector<32x32xbf16>, vector<64x32xf32> -> vector<64x32xf32>
    %c8_i32_87 = arith.constant 8 : i32
    %188 = tpu.dynamic_rotate %178 by %c8_i32_87 dim 0 : vector<64x32xf32>, i32 -> vector<64x32xf32>
    %c1_88 = arith.constant 1 : index
    %c0_89 = arith.constant 0 : index
    %c0_90 = arith.constant 0 : index
    %189 = vector.load %arg8[%c1_88, %c0_89, %c0_90] : memref<9x64x1xf32, #tpu.memory_space<vmem>>, vector<1x64x1xf32>
    %190 = vector.shape_cast %189 : vector<1x64x1xf32> to vector<64x1xf32>
    %191 = vector.broadcast %190 : vector<64x1xf32> to vector<64x32xf32>
    %192 = arith.mulf %188, %191 : vector<64x32xf32>
    %193 = arith.truncf %192 : vector<64x32xf32> to vector<64x32xbf16>
    %c10 = arith.constant 10 : index
    %c0_91 = arith.constant 0 : index
    %c0_92 = arith.constant 0 : index
    %194 = vector.load %arg5[%c10, %c0_91, %c0_92] : memref<36x32x32xbf16, #tpu.memory_space<vmem>>, vector<1x32x32xbf16>
    %195 = vector.shape_cast %194 : vector<1x32x32xbf16> to vector<32x32xbf16>
    %cst_93 = arith.constant dense<0.000000e+00> : vector<64x32xf32>
    %196 = tpu.matmul %193, %195, %cst_93 {dimension_numbers = #tpu.dot_dimension_numbers<[1], [0], [0], [1], [0, 0, 1, 1], [], []>} : vector<64x32xbf16>, vector<32x32xbf16>, vector<64x32xf32> -> vector<64x32xf32>
    %197 = arith.addf %187, %196 : vector<64x32xf32>
    %c7_i32_94 = arith.constant 7 : i32
    %198 = tpu.dynamic_rotate %178 by %c7_i32_94 dim 0 : vector<64x32xf32>, i32 -> vector<64x32xf32>
    %c2_95 = arith.constant 2 : index
    %c0_96 = arith.constant 0 : index
    %c0_97 = arith.constant 0 : index
    %199 = vector.load %arg8[%c2_95, %c0_96, %c0_97] : memref<9x64x1xf32, #tpu.memory_space<vmem>>, vector<1x64x1xf32>
    %200 = vector.shape_cast %199 : vector<1x64x1xf32> to vector<64x1xf32>
    %201 = vector.broadcast %200 : vector<64x1xf32> to vector<64x32xf32>
    %202 = arith.mulf %198, %201 : vector<64x32xf32>
    %203 = arith.truncf %202 : vector<64x32xf32> to vector<64x32xbf16>
    %c11 = arith.constant 11 : index
    %c0_98 = arith.constant 0 : index
    %c0_99 = arith.constant 0 : index
    %204 = vector.load %arg5[%c11, %c0_98, %c0_99] : memref<36x32x32xbf16, #tpu.memory_space<vmem>>, vector<1x32x32xbf16>
    %205 = vector.shape_cast %204 : vector<1x32x32xbf16> to vector<32x32xbf16>
    %cst_100 = arith.constant dense<0.000000e+00> : vector<64x32xf32>
    %206 = tpu.matmul %203, %205, %cst_100 {dimension_numbers = #tpu.dot_dimension_numbers<[1], [0], [0], [1], [0, 0, 1, 1], [], []>} : vector<64x32xbf16>, vector<32x32xbf16>, vector<64x32xf32> -> vector<64x32xf32>
    %207 = arith.addf %197, %206 : vector<64x32xf32>
    %c1_i32_101 = arith.constant 1 : i32
    %208 = tpu.dynamic_rotate %178 by %c1_i32_101 dim 0 : vector<64x32xf32>, i32 -> vector<64x32xf32>
    %c3_102 = arith.constant 3 : index
    %c0_103 = arith.constant 0 : index
    %c0_104 = arith.constant 0 : index
    %209 = vector.load %arg8[%c3_102, %c0_103, %c0_104] : memref<9x64x1xf32, #tpu.memory_space<vmem>>, vector<1x64x1xf32>
    %210 = vector.shape_cast %209 : vector<1x64x1xf32> to vector<64x1xf32>
    %211 = vector.broadcast %210 : vector<64x1xf32> to vector<64x32xf32>
    %212 = arith.mulf %208, %211 : vector<64x32xf32>
    %213 = arith.truncf %212 : vector<64x32xf32> to vector<64x32xbf16>
    %c12 = arith.constant 12 : index
    %c0_105 = arith.constant 0 : index
    %c0_106 = arith.constant 0 : index
    %214 = vector.load %arg5[%c12, %c0_105, %c0_106] : memref<36x32x32xbf16, #tpu.memory_space<vmem>>, vector<1x32x32xbf16>
    %215 = vector.shape_cast %214 : vector<1x32x32xbf16> to vector<32x32xbf16>
    %cst_107 = arith.constant dense<0.000000e+00> : vector<64x32xf32>
    %216 = tpu.matmul %213, %215, %cst_107 {dimension_numbers = #tpu.dot_dimension_numbers<[1], [0], [0], [1], [0, 0, 1, 1], [], []>} : vector<64x32xbf16>, vector<32x32xbf16>, vector<64x32xf32> -> vector<64x32xf32>
    %217 = arith.addf %207, %216 : vector<64x32xf32>
    %c4_108 = arith.constant 4 : index
    %c0_109 = arith.constant 0 : index
    %c0_110 = arith.constant 0 : index
    %218 = vector.load %arg8[%c4_108, %c0_109, %c0_110] : memref<9x64x1xf32, #tpu.memory_space<vmem>>, vector<1x64x1xf32>
    %219 = vector.shape_cast %218 : vector<1x64x1xf32> to vector<64x1xf32>
    %220 = vector.broadcast %219 : vector<64x1xf32> to vector<64x32xf32>
    %221 = arith.mulf %178, %220 : vector<64x32xf32>
    %222 = arith.truncf %221 : vector<64x32xf32> to vector<64x32xbf16>
    %c13 = arith.constant 13 : index
    %c0_111 = arith.constant 0 : index
    %c0_112 = arith.constant 0 : index
    %223 = vector.load %arg5[%c13, %c0_111, %c0_112] : memref<36x32x32xbf16, #tpu.memory_space<vmem>>, vector<1x32x32xbf16>
    %224 = vector.shape_cast %223 : vector<1x32x32xbf16> to vector<32x32xbf16>
    %cst_113 = arith.constant dense<0.000000e+00> : vector<64x32xf32>
    %225 = tpu.matmul %222, %224, %cst_113 {dimension_numbers = #tpu.dot_dimension_numbers<[1], [0], [0], [1], [0, 0, 1, 1], [], []>} : vector<64x32xbf16>, vector<32x32xbf16>, vector<64x32xf32> -> vector<64x32xf32>
    %226 = arith.addf %217, %225 : vector<64x32xf32>
    %c63_i32_114 = arith.constant 63 : i32
    %227 = tpu.dynamic_rotate %178 by %c63_i32_114 dim 0 : vector<64x32xf32>, i32 -> vector<64x32xf32>
    %c5_115 = arith.constant 5 : index
    %c0_116 = arith.constant 0 : index
    %c0_117 = arith.constant 0 : index
    %228 = vector.load %arg8[%c5_115, %c0_116, %c0_117] : memref<9x64x1xf32, #tpu.memory_space<vmem>>, vector<1x64x1xf32>
    %229 = vector.shape_cast %228 : vector<1x64x1xf32> to vector<64x1xf32>
    %230 = vector.broadcast %229 : vector<64x1xf32> to vector<64x32xf32>
    %231 = arith.mulf %227, %230 : vector<64x32xf32>
    %232 = arith.truncf %231 : vector<64x32xf32> to vector<64x32xbf16>
    %c14 = arith.constant 14 : index
    %c0_118 = arith.constant 0 : index
    %c0_119 = arith.constant 0 : index
    %233 = vector.load %arg5[%c14, %c0_118, %c0_119] : memref<36x32x32xbf16, #tpu.memory_space<vmem>>, vector<1x32x32xbf16>
    %234 = vector.shape_cast %233 : vector<1x32x32xbf16> to vector<32x32xbf16>
    %cst_120 = arith.constant dense<0.000000e+00> : vector<64x32xf32>
    %235 = tpu.matmul %232, %234, %cst_120 {dimension_numbers = #tpu.dot_dimension_numbers<[1], [0], [0], [1], [0, 0, 1, 1], [], []>} : vector<64x32xbf16>, vector<32x32xbf16>, vector<64x32xf32> -> vector<64x32xf32>
    %236 = arith.addf %226, %235 : vector<64x32xf32>
    %c57_i32_121 = arith.constant 57 : i32
    %237 = tpu.dynamic_rotate %178 by %c57_i32_121 dim 0 : vector<64x32xf32>, i32 -> vector<64x32xf32>
    %c6_122 = arith.constant 6 : index
    %c0_123 = arith.constant 0 : index
    %c0_124 = arith.constant 0 : index
    %238 = vector.load %arg8[%c6_122, %c0_123, %c0_124] : memref<9x64x1xf32, #tpu.memory_space<vmem>>, vector<1x64x1xf32>
    %239 = vector.shape_cast %238 : vector<1x64x1xf32> to vector<64x1xf32>
    %240 = vector.broadcast %239 : vector<64x1xf32> to vector<64x32xf32>
    %241 = arith.mulf %237, %240 : vector<64x32xf32>
    %242 = arith.truncf %241 : vector<64x32xf32> to vector<64x32xbf16>
    %c15 = arith.constant 15 : index
    %c0_125 = arith.constant 0 : index
    %c0_126 = arith.constant 0 : index
    %243 = vector.load %arg5[%c15, %c0_125, %c0_126] : memref<36x32x32xbf16, #tpu.memory_space<vmem>>, vector<1x32x32xbf16>
    %244 = vector.shape_cast %243 : vector<1x32x32xbf16> to vector<32x32xbf16>
    %cst_127 = arith.constant dense<0.000000e+00> : vector<64x32xf32>
    %245 = tpu.matmul %242, %244, %cst_127 {dimension_numbers = #tpu.dot_dimension_numbers<[1], [0], [0], [1], [0, 0, 1, 1], [], []>} : vector<64x32xbf16>, vector<32x32xbf16>, vector<64x32xf32> -> vector<64x32xf32>
    %246 = arith.addf %236, %245 : vector<64x32xf32>
    %c56_i32_128 = arith.constant 56 : i32
    %247 = tpu.dynamic_rotate %178 by %c56_i32_128 dim 0 : vector<64x32xf32>, i32 -> vector<64x32xf32>
    %c7_129 = arith.constant 7 : index
    %c0_130 = arith.constant 0 : index
    %c0_131 = arith.constant 0 : index
    %248 = vector.load %arg8[%c7_129, %c0_130, %c0_131] : memref<9x64x1xf32, #tpu.memory_space<vmem>>, vector<1x64x1xf32>
    %249 = vector.shape_cast %248 : vector<1x64x1xf32> to vector<64x1xf32>
    %250 = vector.broadcast %249 : vector<64x1xf32> to vector<64x32xf32>
    %251 = arith.mulf %247, %250 : vector<64x32xf32>
    %252 = arith.truncf %251 : vector<64x32xf32> to vector<64x32xbf16>
    %c16 = arith.constant 16 : index
    %c0_132 = arith.constant 0 : index
    %c0_133 = arith.constant 0 : index
    %253 = vector.load %arg5[%c16, %c0_132, %c0_133] : memref<36x32x32xbf16, #tpu.memory_space<vmem>>, vector<1x32x32xbf16>
    %254 = vector.shape_cast %253 : vector<1x32x32xbf16> to vector<32x32xbf16>
    %cst_134 = arith.constant dense<0.000000e+00> : vector<64x32xf32>
    %255 = tpu.matmul %252, %254, %cst_134 {dimension_numbers = #tpu.dot_dimension_numbers<[1], [0], [0], [1], [0, 0, 1, 1], [], []>} : vector<64x32xbf16>, vector<32x32xbf16>, vector<64x32xf32> -> vector<64x32xf32>
    %256 = arith.addf %246, %255 : vector<64x32xf32>
    %c55_i32_135 = arith.constant 55 : i32
    %257 = tpu.dynamic_rotate %178 by %c55_i32_135 dim 0 : vector<64x32xf32>, i32 -> vector<64x32xf32>
    %c8_136 = arith.constant 8 : index
    %c0_137 = arith.constant 0 : index
    %c0_138 = arith.constant 0 : index
    %258 = vector.load %arg8[%c8_136, %c0_137, %c0_138] : memref<9x64x1xf32, #tpu.memory_space<vmem>>, vector<1x64x1xf32>
    %259 = vector.shape_cast %258 : vector<1x64x1xf32> to vector<64x1xf32>
    %260 = vector.broadcast %259 : vector<64x1xf32> to vector<64x32xf32>
    %261 = arith.mulf %257, %260 : vector<64x32xf32>
    %262 = arith.truncf %261 : vector<64x32xf32> to vector<64x32xbf16>
    %c17 = arith.constant 17 : index
    %c0_139 = arith.constant 0 : index
    %c0_140 = arith.constant 0 : index
    %263 = vector.load %arg5[%c17, %c0_139, %c0_140] : memref<36x32x32xbf16, #tpu.memory_space<vmem>>, vector<1x32x32xbf16>
    %264 = vector.shape_cast %263 : vector<1x32x32xbf16> to vector<32x32xbf16>
    %cst_141 = arith.constant dense<0.000000e+00> : vector<64x32xf32>
    %265 = tpu.matmul %262, %264, %cst_141 {dimension_numbers = #tpu.dot_dimension_numbers<[1], [0], [0], [1], [0, 0, 1, 1], [], []>} : vector<64x32xbf16>, vector<32x32xbf16>, vector<64x32xf32> -> vector<64x32xf32>
    %266 = arith.addf %256, %265 : vector<64x32xf32>
    %267 = vector.broadcast %14 : vector<1x32xf32> to vector<64x32xf32>
    %268 = arith.addf %266, %267 : vector<64x32xf32>
    %269 = arith.addf %0, %268 : vector<64x32xf32>
    %270 = vector.extract_strided_slice %1 {offsets = [6, 0], sizes = [1, 32], strides = [1, 1]} : vector<16x32xf32> to vector<1x32xf32>
    %271 = vector.extract_strided_slice %1 {offsets = [7, 0], sizes = [1, 32], strides = [1, 1]} : vector<16x32xf32> to vector<1x32xf32>
    %c0_142 = arith.constant 0 : index
    %c0_143 = arith.constant 0 : index
    %272 = vector.load %arg4[%c0_142, %c0_143] : memref<1x384xf32, #tpu.memory_space<vmem>>, vector<1x384xf32>
    %273 = vector.extract_strided_slice %1 {offsets = [8, 0], sizes = [1, 32], strides = [1, 1]} : vector<16x32xf32> to vector<1x32xf32>
    %cst_144 = arith.constant dense<0.000000e+00> : vector<32xf32>
    %274 = vector.multi_reduction <add>, %269, %cst_144 [0] : vector<64x32xf32> to vector<32xf32>
    %275 = vector.shape_cast %274 : vector<32xf32> to vector<1x32xf32>
    %276 = arith.mulf %269, %269 : vector<64x32xf32>
    %cst_145 = arith.constant dense<0.000000e+00> : vector<32xf32>
    %277 = vector.multi_reduction <add>, %276, %cst_145 [0] : vector<64x32xf32> to vector<32xf32>
    %278 = vector.shape_cast %277 : vector<32xf32> to vector<1x32xf32>
    %279 = tpu.concatenate %275, %278 in 0 : vector<1x32xf32>, vector<1x32xf32> -> vector<2x32xf32>
    %cst_146 = arith.constant dense<0.000000e+00> : vector<2x8xf32>
    %280 = tpu.matmul %279, %2, %cst_146 {dimension_numbers = #tpu.dot_dimension_numbers<[1], [0], [0], [1], [0, 0, 1, 1], [], []>} : vector<2x32xf32>, vector<32x8xf32>, vector<2x8xf32> -> vector<2x8xf32>
    %cst_147 = arith.constant 3.906250e-03 : f32
    %281 = vector.broadcast %cst_147 : f32 to vector<2x8xf32>
    %282 = arith.mulf %280, %281 : vector<2x8xf32>
    %283 = vector.extract_strided_slice %282 {offsets = [0, 0], sizes = [1, 8], strides = [1, 1]} : vector<2x8xf32> to vector<1x8xf32>
    %284 = vector.extract_strided_slice %282 {offsets = [1, 0], sizes = [1, 8], strides = [1, 1]} : vector<2x8xf32> to vector<1x8xf32>
    %285 = arith.mulf %283, %283 : vector<1x8xf32>
    %286 = arith.subf %284, %285 : vector<1x8xf32>
    %cst_148 = arith.constant 0.000000e+00 : f32
    %287 = vector.broadcast %cst_148 : f32 to vector<1x8xf32>
    %288 = arith.maximumf %286, %287 : vector<1x8xf32>
    %cst_149 = arith.constant 9.99999997E-7 : f32
    %289 = vector.broadcast %cst_149 : f32 to vector<1x8xf32>
    %290 = arith.addf %288, %289 : vector<1x8xf32>
    %291 = math.rsqrt %290 : vector<1x8xf32>
    %292 = arith.mulf %283, %291 : vector<1x8xf32>
    %293 = tpu.concatenate %291, %292 in 0 : vector<1x8xf32>, vector<1x8xf32> -> vector<2x8xf32>
    %cst_150 = arith.constant dense<0.000000e+00> : vector<2x32xf32>
    %294 = tpu.matmul %293, %3, %cst_150 {dimension_numbers = #tpu.dot_dimension_numbers<[1], [0], [0], [1], [0, 0, 1, 1], [], []>} : vector<2x8xf32>, vector<8x32xf32>, vector<2x32xf32> -> vector<2x32xf32>
    %295 = vector.extract_strided_slice %294 {offsets = [0, 0], sizes = [1, 32], strides = [1, 1]} : vector<2x32xf32> to vector<1x32xf32>
    %296 = arith.mulf %295, %270 : vector<1x32xf32>
    %297 = vector.extract_strided_slice %294 {offsets = [1, 0], sizes = [1, 32], strides = [1, 1]} : vector<2x32xf32> to vector<1x32xf32>
    %298 = arith.mulf %297, %270 : vector<1x32xf32>
    %299 = arith.subf %271, %298 : vector<1x32xf32>
    %300 = vector.broadcast %296 : vector<1x32xf32> to vector<64x32xf32>
    %301 = arith.mulf %269, %300 : vector<64x32xf32>
    %302 = vector.broadcast %299 : vector<1x32xf32> to vector<64x32xf32>
    %303 = arith.addf %301, %302 : vector<64x32xf32>
    %304 = arith.truncf %303 : vector<64x32xf32> to vector<64x32xbf16>
    %c0_151 = arith.constant 0 : index
    %c0_152 = arith.constant 0 : index
    %305 = vector.load %arg6[%c0_151, %c0_152] : memref<32x384xbf16, #tpu.memory_space<vmem>>, vector<32x384xbf16>
    %cst_153 = arith.constant dense<0.000000e+00> : vector<64x384xf32>
    %306 = tpu.matmul %304, %305, %cst_153 {dimension_numbers = #tpu.dot_dimension_numbers<[1], [0], [0], [1], [0, 0, 1, 1], [], []>} : vector<64x32xbf16>, vector<32x384xbf16>, vector<64x384xf32> -> vector<64x384xf32>
    %307 = vector.broadcast %272 : vector<1x384xf32> to vector<64x384xf32>
    %308 = arith.addf %306, %307 : vector<64x384xf32>
    %309 = vector.extract_strided_slice %308 {offsets = [0, 0], sizes = [64, 128], strides = [1, 1]} : vector<64x384xf32> to vector<64x128xf32>
    %310 = arith.truncf %309 : vector<64x128xf32> to vector<64x128xbf16>
    %311 = vector.extract_strided_slice %308 {offsets = [0, 128], sizes = [64, 128], strides = [1, 1]} : vector<64x384xf32> to vector<64x128xf32>
    %312 = arith.truncf %311 : vector<64x128xf32> to vector<64x128xbf16>
    %313 = vector.extract_strided_slice %308 {offsets = [0, 256], sizes = [64, 128], strides = [1, 1]} : vector<64x384xf32> to vector<64x128xf32>
    %314 = arith.truncf %313 : vector<64x128xf32> to vector<64x128xbf16>
    %cst_154 = arith.constant dense<0.000000e+00> : vector<64x64xf32>
    %315 = tpu.matmul %310, %312, %cst_154 {dimension_numbers = #tpu.dot_dimension_numbers<[1], [1], [0], [0], [0, 0, 1, 0], [], []>} : vector<64x128xbf16>, vector<64x128xbf16>, vector<64x64xf32> -> vector<64x64xf32>
    %cst_155 = arith.constant dense<0xFF800000> : vector<64xf32>
    %316 = vector.multi_reduction <maximumf>, %315, %cst_155 [1] : vector<64x64xf32> to vector<64xf32>
    %317 = vector.shape_cast %316 : vector<64xf32> to vector<64x1xf32>
    %318 = vector.broadcast %317 : vector<64x1xf32> to vector<64x64xf32>
    %319 = arith.subf %315, %318 : vector<64x64xf32>
    %320 = math.exp %319 : vector<64x64xf32>
    %cst_156 = arith.constant dense<0.000000e+00> : vector<64xf32>
    %321 = vector.multi_reduction <add>, %320, %cst_156 [1] : vector<64x64xf32> to vector<64xf32>
    %322 = vector.shape_cast %321 : vector<64xf32> to vector<64x1xf32>
    %323 = tpu.reciprocal %322 {approx = true} : vector<64x1xf32> -> vector<64x1xf32>
    %324 = vector.broadcast %323 : vector<64x1xf32> to vector<64x64xf32>
    %325 = arith.mulf %320, %324 : vector<64x64xf32>
    %326 = arith.truncf %325 : vector<64x64xf32> to vector<64x64xbf16>
    %cst_157 = arith.constant dense<0.000000e+00> : vector<64x128xf32>
    %327 = tpu.matmul %326, %314, %cst_157 {dimension_numbers = #tpu.dot_dimension_numbers<[1], [0], [0], [1], [0, 0, 1, 1], [], []>} : vector<64x64xbf16>, vector<64x128xbf16>, vector<64x128xf32> -> vector<64x128xf32>
    %328 = arith.truncf %327 : vector<64x128xf32> to vector<64x128xbf16>
    %c0_158 = arith.constant 0 : index
    %c0_159 = arith.constant 0 : index
    %329 = vector.load %arg7[%c0_158, %c0_159] : memref<128x32xbf16, #tpu.memory_space<vmem>>, vector<128x32xbf16>
    %cst_160 = arith.constant dense<0.000000e+00> : vector<64x32xf32>
    %330 = tpu.matmul %328, %329, %cst_160 {dimension_numbers = #tpu.dot_dimension_numbers<[1], [0], [0], [1], [0, 0, 1, 1], [], []>} : vector<64x128xbf16>, vector<128x32xbf16>, vector<64x32xf32> -> vector<64x32xf32>
    %331 = vector.broadcast %273 : vector<1x32xf32> to vector<64x32xf32>
    %332 = arith.addf %330, %331 : vector<64x32xf32>
    %333 = arith.addf %269, %332 : vector<64x32xf32>
    %334 = vector.extract_strided_slice %1 {offsets = [9, 0], sizes = [1, 32], strides = [1, 1]} : vector<16x32xf32> to vector<1x32xf32>
    %335 = vector.extract_strided_slice %1 {offsets = [10, 0], sizes = [1, 32], strides = [1, 1]} : vector<16x32xf32> to vector<1x32xf32>
    %336 = vector.extract_strided_slice %1 {offsets = [11, 0], sizes = [1, 32], strides = [1, 1]} : vector<16x32xf32> to vector<1x32xf32>
    %337 = vector.extract_strided_slice %1 {offsets = [12, 0], sizes = [1, 32], strides = [1, 1]} : vector<16x32xf32> to vector<1x32xf32>
    %338 = vector.extract_strided_slice %1 {offsets = [13, 0], sizes = [1, 32], strides = [1, 1]} : vector<16x32xf32> to vector<1x32xf32>
    %339 = vector.extract_strided_slice %1 {offsets = [14, 0], sizes = [1, 32], strides = [1, 1]} : vector<16x32xf32> to vector<1x32xf32>
    %cst_161 = arith.constant dense<0.000000e+00> : vector<32xf32>
    %340 = vector.multi_reduction <add>, %333, %cst_161 [0] : vector<64x32xf32> to vector<32xf32>
    %341 = vector.shape_cast %340 : vector<32xf32> to vector<1x32xf32>
    %342 = arith.mulf %333, %333 : vector<64x32xf32>
    %cst_162 = arith.constant dense<0.000000e+00> : vector<32xf32>
    %343 = vector.multi_reduction <add>, %342, %cst_162 [0] : vector<64x32xf32> to vector<32xf32>
    %344 = vector.shape_cast %343 : vector<32xf32> to vector<1x32xf32>
    %345 = tpu.concatenate %341, %344 in 0 : vector<1x32xf32>, vector<1x32xf32> -> vector<2x32xf32>
    %cst_163 = arith.constant dense<0.000000e+00> : vector<2x8xf32>
    %346 = tpu.matmul %345, %2, %cst_163 {dimension_numbers = #tpu.dot_dimension_numbers<[1], [0], [0], [1], [0, 0, 1, 1], [], []>} : vector<2x32xf32>, vector<32x8xf32>, vector<2x8xf32> -> vector<2x8xf32>
    %cst_164 = arith.constant 3.906250e-03 : f32
    %347 = vector.broadcast %cst_164 : f32 to vector<2x8xf32>
    %348 = arith.mulf %346, %347 : vector<2x8xf32>
    %349 = vector.extract_strided_slice %348 {offsets = [0, 0], sizes = [1, 8], strides = [1, 1]} : vector<2x8xf32> to vector<1x8xf32>
    %350 = vector.extract_strided_slice %348 {offsets = [1, 0], sizes = [1, 8], strides = [1, 1]} : vector<2x8xf32> to vector<1x8xf32>
    %351 = arith.mulf %349, %349 : vector<1x8xf32>
    %352 = arith.subf %350, %351 : vector<1x8xf32>
    %cst_165 = arith.constant 0.000000e+00 : f32
    %353 = vector.broadcast %cst_165 : f32 to vector<1x8xf32>
    %354 = arith.maximumf %352, %353 : vector<1x8xf32>
    %cst_166 = arith.constant 9.99999997E-7 : f32
    %355 = vector.broadcast %cst_166 : f32 to vector<1x8xf32>
    %356 = arith.addf %354, %355 : vector<1x8xf32>
    %357 = math.rsqrt %356 : vector<1x8xf32>
    %358 = arith.mulf %349, %357 : vector<1x8xf32>
    %359 = tpu.concatenate %357, %358 in 0 : vector<1x8xf32>, vector<1x8xf32> -> vector<2x8xf32>
    %cst_167 = arith.constant dense<0.000000e+00> : vector<2x32xf32>
    %360 = tpu.matmul %359, %3, %cst_167 {dimension_numbers = #tpu.dot_dimension_numbers<[1], [0], [0], [1], [0, 0, 1, 1], [], []>} : vector<2x8xf32>, vector<8x32xf32>, vector<2x32xf32> -> vector<2x32xf32>
    %361 = vector.extract_strided_slice %360 {offsets = [0, 0], sizes = [1, 32], strides = [1, 1]} : vector<2x32xf32> to vector<1x32xf32>
    %362 = arith.mulf %361, %334 : vector<1x32xf32>
    %363 = vector.extract_strided_slice %360 {offsets = [1, 0], sizes = [1, 32], strides = [1, 1]} : vector<2x32xf32> to vector<1x32xf32>
    %364 = arith.mulf %363, %334 : vector<1x32xf32>
    %365 = arith.subf %335, %364 : vector<1x32xf32>
    %366 = vector.broadcast %362 : vector<1x32xf32> to vector<64x32xf32>
    %367 = arith.mulf %333, %366 : vector<64x32xf32>
    %368 = vector.broadcast %365 : vector<1x32xf32> to vector<64x32xf32>
    %369 = arith.addf %367, %368 : vector<64x32xf32>
    %370 = arith.negf %369 : vector<64x32xf32>
    %371 = math.exp %370 : vector<64x32xf32>
    %cst_168 = arith.constant 1.000000e+00 : f32
    %372 = vector.broadcast %cst_168 : f32 to vector<64x32xf32>
    %373 = arith.addf %372, %371 : vector<64x32xf32>
    %374 = arith.divf %372, %373 : vector<64x32xf32>
    %375 = arith.mulf %369, %374 : vector<64x32xf32>
    %c9_i32_169 = arith.constant 9 : i32
    %376 = tpu.dynamic_rotate %375 by %c9_i32_169 dim 0 : vector<64x32xf32>, i32 -> vector<64x32xf32>
    %c0_170 = arith.constant 0 : index
    %c0_171 = arith.constant 0 : index
    %c0_172 = arith.constant 0 : index
    %377 = vector.load %arg8[%c0_170, %c0_171, %c0_172] : memref<9x64x1xf32, #tpu.memory_space<vmem>>, vector<1x64x1xf32>
    %378 = vector.shape_cast %377 : vector<1x64x1xf32> to vector<64x1xf32>
    %379 = vector.broadcast %378 : vector<64x1xf32> to vector<64x32xf32>
    %380 = arith.mulf %376, %379 : vector<64x32xf32>
    %381 = arith.truncf %380 : vector<64x32xf32> to vector<64x32xbf16>
    %c18 = arith.constant 18 : index
    %c0_173 = arith.constant 0 : index
    %c0_174 = arith.constant 0 : index
    %382 = vector.load %arg5[%c18, %c0_173, %c0_174] : memref<36x32x32xbf16, #tpu.memory_space<vmem>>, vector<1x32x32xbf16>
    %383 = vector.shape_cast %382 : vector<1x32x32xbf16> to vector<32x32xbf16>
    %cst_175 = arith.constant dense<0.000000e+00> : vector<64x32xf32>
    %384 = tpu.matmul %381, %383, %cst_175 {dimension_numbers = #tpu.dot_dimension_numbers<[1], [0], [0], [1], [0, 0, 1, 1], [], []>} : vector<64x32xbf16>, vector<32x32xbf16>, vector<64x32xf32> -> vector<64x32xf32>
    %c8_i32_176 = arith.constant 8 : i32
    %385 = tpu.dynamic_rotate %375 by %c8_i32_176 dim 0 : vector<64x32xf32>, i32 -> vector<64x32xf32>
    %c1_177 = arith.constant 1 : index
    %c0_178 = arith.constant 0 : index
    %c0_179 = arith.constant 0 : index
    %386 = vector.load %arg8[%c1_177, %c0_178, %c0_179] : memref<9x64x1xf32, #tpu.memory_space<vmem>>, vector<1x64x1xf32>
    %387 = vector.shape_cast %386 : vector<1x64x1xf32> to vector<64x1xf32>
    %388 = vector.broadcast %387 : vector<64x1xf32> to vector<64x32xf32>
    %389 = arith.mulf %385, %388 : vector<64x32xf32>
    %390 = arith.truncf %389 : vector<64x32xf32> to vector<64x32xbf16>
    %c19 = arith.constant 19 : index
    %c0_180 = arith.constant 0 : index
    %c0_181 = arith.constant 0 : index
    %391 = vector.load %arg5[%c19, %c0_180, %c0_181] : memref<36x32x32xbf16, #tpu.memory_space<vmem>>, vector<1x32x32xbf16>
    %392 = vector.shape_cast %391 : vector<1x32x32xbf16> to vector<32x32xbf16>
    %cst_182 = arith.constant dense<0.000000e+00> : vector<64x32xf32>
    %393 = tpu.matmul %390, %392, %cst_182 {dimension_numbers = #tpu.dot_dimension_numbers<[1], [0], [0], [1], [0, 0, 1, 1], [], []>} : vector<64x32xbf16>, vector<32x32xbf16>, vector<64x32xf32> -> vector<64x32xf32>
    %394 = arith.addf %384, %393 : vector<64x32xf32>
    %c7_i32_183 = arith.constant 7 : i32
    %395 = tpu.dynamic_rotate %375 by %c7_i32_183 dim 0 : vector<64x32xf32>, i32 -> vector<64x32xf32>
    %c2_184 = arith.constant 2 : index
    %c0_185 = arith.constant 0 : index
    %c0_186 = arith.constant 0 : index
    %396 = vector.load %arg8[%c2_184, %c0_185, %c0_186] : memref<9x64x1xf32, #tpu.memory_space<vmem>>, vector<1x64x1xf32>
    %397 = vector.shape_cast %396 : vector<1x64x1xf32> to vector<64x1xf32>
    %398 = vector.broadcast %397 : vector<64x1xf32> to vector<64x32xf32>
    %399 = arith.mulf %395, %398 : vector<64x32xf32>
    %400 = arith.truncf %399 : vector<64x32xf32> to vector<64x32xbf16>
    %c20 = arith.constant 20 : index
    %c0_187 = arith.constant 0 : index
    %c0_188 = arith.constant 0 : index
    %401 = vector.load %arg5[%c20, %c0_187, %c0_188] : memref<36x32x32xbf16, #tpu.memory_space<vmem>>, vector<1x32x32xbf16>
    %402 = vector.shape_cast %401 : vector<1x32x32xbf16> to vector<32x32xbf16>
    %cst_189 = arith.constant dense<0.000000e+00> : vector<64x32xf32>
    %403 = tpu.matmul %400, %402, %cst_189 {dimension_numbers = #tpu.dot_dimension_numbers<[1], [0], [0], [1], [0, 0, 1, 1], [], []>} : vector<64x32xbf16>, vector<32x32xbf16>, vector<64x32xf32> -> vector<64x32xf32>
    %404 = arith.addf %394, %403 : vector<64x32xf32>
    %c1_i32_190 = arith.constant 1 : i32
    %405 = tpu.dynamic_rotate %375 by %c1_i32_190 dim 0 : vector<64x32xf32>, i32 -> vector<64x32xf32>
    %c3_191 = arith.constant 3 : index
    %c0_192 = arith.constant 0 : index
    %c0_193 = arith.constant 0 : index
    %406 = vector.load %arg8[%c3_191, %c0_192, %c0_193] : memref<9x64x1xf32, #tpu.memory_space<vmem>>, vector<1x64x1xf32>
    %407 = vector.shape_cast %406 : vector<1x64x1xf32> to vector<64x1xf32>
    %408 = vector.broadcast %407 : vector<64x1xf32> to vector<64x32xf32>
    %409 = arith.mulf %405, %408 : vector<64x32xf32>
    %410 = arith.truncf %409 : vector<64x32xf32> to vector<64x32xbf16>
    %c21 = arith.constant 21 : index
    %c0_194 = arith.constant 0 : index
    %c0_195 = arith.constant 0 : index
    %411 = vector.load %arg5[%c21, %c0_194, %c0_195] : memref<36x32x32xbf16, #tpu.memory_space<vmem>>, vector<1x32x32xbf16>
    %412 = vector.shape_cast %411 : vector<1x32x32xbf16> to vector<32x32xbf16>
    %cst_196 = arith.constant dense<0.000000e+00> : vector<64x32xf32>
    %413 = tpu.matmul %410, %412, %cst_196 {dimension_numbers = #tpu.dot_dimension_numbers<[1], [0], [0], [1], [0, 0, 1, 1], [], []>} : vector<64x32xbf16>, vector<32x32xbf16>, vector<64x32xf32> -> vector<64x32xf32>
    %414 = arith.addf %404, %413 : vector<64x32xf32>
    %c4_197 = arith.constant 4 : index
    %c0_198 = arith.constant 0 : index
    %c0_199 = arith.constant 0 : index
    %415 = vector.load %arg8[%c4_197, %c0_198, %c0_199] : memref<9x64x1xf32, #tpu.memory_space<vmem>>, vector<1x64x1xf32>
    %416 = vector.shape_cast %415 : vector<1x64x1xf32> to vector<64x1xf32>
    %417 = vector.broadcast %416 : vector<64x1xf32> to vector<64x32xf32>
    %418 = arith.mulf %375, %417 : vector<64x32xf32>
    %419 = arith.truncf %418 : vector<64x32xf32> to vector<64x32xbf16>
    %c22 = arith.constant 22 : index
    %c0_200 = arith.constant 0 : index
    %c0_201 = arith.constant 0 : index
    %420 = vector.load %arg5[%c22, %c0_200, %c0_201] : memref<36x32x32xbf16, #tpu.memory_space<vmem>>, vector<1x32x32xbf16>
    %421 = vector.shape_cast %420 : vector<1x32x32xbf16> to vector<32x32xbf16>
    %cst_202 = arith.constant dense<0.000000e+00> : vector<64x32xf32>
    %422 = tpu.matmul %419, %421, %cst_202 {dimension_numbers = #tpu.dot_dimension_numbers<[1], [0], [0], [1], [0, 0, 1, 1], [], []>} : vector<64x32xbf16>, vector<32x32xbf16>, vector<64x32xf32> -> vector<64x32xf32>
    %423 = arith.addf %414, %422 : vector<64x32xf32>
    %c63_i32_203 = arith.constant 63 : i32
    %424 = tpu.dynamic_rotate %375 by %c63_i32_203 dim 0 : vector<64x32xf32>, i32 -> vector<64x32xf32>
    %c5_204 = arith.constant 5 : index
    %c0_205 = arith.constant 0 : index
    %c0_206 = arith.constant 0 : index
    %425 = vector.load %arg8[%c5_204, %c0_205, %c0_206] : memref<9x64x1xf32, #tpu.memory_space<vmem>>, vector<1x64x1xf32>
    %426 = vector.shape_cast %425 : vector<1x64x1xf32> to vector<64x1xf32>
    %427 = vector.broadcast %426 : vector<64x1xf32> to vector<64x32xf32>
    %428 = arith.mulf %424, %427 : vector<64x32xf32>
    %429 = arith.truncf %428 : vector<64x32xf32> to vector<64x32xbf16>
    %c23 = arith.constant 23 : index
    %c0_207 = arith.constant 0 : index
    %c0_208 = arith.constant 0 : index
    %430 = vector.load %arg5[%c23, %c0_207, %c0_208] : memref<36x32x32xbf16, #tpu.memory_space<vmem>>, vector<1x32x32xbf16>
    %431 = vector.shape_cast %430 : vector<1x32x32xbf16> to vector<32x32xbf16>
    %cst_209 = arith.constant dense<0.000000e+00> : vector<64x32xf32>
    %432 = tpu.matmul %429, %431, %cst_209 {dimension_numbers = #tpu.dot_dimension_numbers<[1], [0], [0], [1], [0, 0, 1, 1], [], []>} : vector<64x32xbf16>, vector<32x32xbf16>, vector<64x32xf32> -> vector<64x32xf32>
    %433 = arith.addf %423, %432 : vector<64x32xf32>
    %c57_i32_210 = arith.constant 57 : i32
    %434 = tpu.dynamic_rotate %375 by %c57_i32_210 dim 0 : vector<64x32xf32>, i32 -> vector<64x32xf32>
    %c6_211 = arith.constant 6 : index
    %c0_212 = arith.constant 0 : index
    %c0_213 = arith.constant 0 : index
    %435 = vector.load %arg8[%c6_211, %c0_212, %c0_213] : memref<9x64x1xf32, #tpu.memory_space<vmem>>, vector<1x64x1xf32>
    %436 = vector.shape_cast %435 : vector<1x64x1xf32> to vector<64x1xf32>
    %437 = vector.broadcast %436 : vector<64x1xf32> to vector<64x32xf32>
    %438 = arith.mulf %434, %437 : vector<64x32xf32>
    %439 = arith.truncf %438 : vector<64x32xf32> to vector<64x32xbf16>
    %c24 = arith.constant 24 : index
    %c0_214 = arith.constant 0 : index
    %c0_215 = arith.constant 0 : index
    %440 = vector.load %arg5[%c24, %c0_214, %c0_215] : memref<36x32x32xbf16, #tpu.memory_space<vmem>>, vector<1x32x32xbf16>
    %441 = vector.shape_cast %440 : vector<1x32x32xbf16> to vector<32x32xbf16>
    %cst_216 = arith.constant dense<0.000000e+00> : vector<64x32xf32>
    %442 = tpu.matmul %439, %441, %cst_216 {dimension_numbers = #tpu.dot_dimension_numbers<[1], [0], [0], [1], [0, 0, 1, 1], [], []>} : vector<64x32xbf16>, vector<32x32xbf16>, vector<64x32xf32> -> vector<64x32xf32>
    %443 = arith.addf %433, %442 : vector<64x32xf32>
    %c56_i32_217 = arith.constant 56 : i32
    %444 = tpu.dynamic_rotate %375 by %c56_i32_217 dim 0 : vector<64x32xf32>, i32 -> vector<64x32xf32>
    %c7_218 = arith.constant 7 : index
    %c0_219 = arith.constant 0 : index
    %c0_220 = arith.constant 0 : index
    %445 = vector.load %arg8[%c7_218, %c0_219, %c0_220] : memref<9x64x1xf32, #tpu.memory_space<vmem>>, vector<1x64x1xf32>
    %446 = vector.shape_cast %445 : vector<1x64x1xf32> to vector<64x1xf32>
    %447 = vector.broadcast %446 : vector<64x1xf32> to vector<64x32xf32>
    %448 = arith.mulf %444, %447 : vector<64x32xf32>
    %449 = arith.truncf %448 : vector<64x32xf32> to vector<64x32xbf16>
    %c25 = arith.constant 25 : index
    %c0_221 = arith.constant 0 : index
    %c0_222 = arith.constant 0 : index
    %450 = vector.load %arg5[%c25, %c0_221, %c0_222] : memref<36x32x32xbf16, #tpu.memory_space<vmem>>, vector<1x32x32xbf16>
    %451 = vector.shape_cast %450 : vector<1x32x32xbf16> to vector<32x32xbf16>
    %cst_223 = arith.constant dense<0.000000e+00> : vector<64x32xf32>
    %452 = tpu.matmul %449, %451, %cst_223 {dimension_numbers = #tpu.dot_dimension_numbers<[1], [0], [0], [1], [0, 0, 1, 1], [], []>} : vector<64x32xbf16>, vector<32x32xbf16>, vector<64x32xf32> -> vector<64x32xf32>
    %453 = arith.addf %443, %452 : vector<64x32xf32>
    %c55_i32_224 = arith.constant 55 : i32
    %454 = tpu.dynamic_rotate %375 by %c55_i32_224 dim 0 : vector<64x32xf32>, i32 -> vector<64x32xf32>
    %c8_225 = arith.constant 8 : index
    %c0_226 = arith.constant 0 : index
    %c0_227 = arith.constant 0 : index
    %455 = vector.load %arg8[%c8_225, %c0_226, %c0_227] : memref<9x64x1xf32, #tpu.memory_space<vmem>>, vector<1x64x1xf32>
    %456 = vector.shape_cast %455 : vector<1x64x1xf32> to vector<64x1xf32>
    %457 = vector.broadcast %456 : vector<64x1xf32> to vector<64x32xf32>
    %458 = arith.mulf %454, %457 : vector<64x32xf32>
    %459 = arith.truncf %458 : vector<64x32xf32> to vector<64x32xbf16>
    %c26 = arith.constant 26 : index
    %c0_228 = arith.constant 0 : index
    %c0_229 = arith.constant 0 : index
    %460 = vector.load %arg5[%c26, %c0_228, %c0_229] : memref<36x32x32xbf16, #tpu.memory_space<vmem>>, vector<1x32x32xbf16>
    %461 = vector.shape_cast %460 : vector<1x32x32xbf16> to vector<32x32xbf16>
    %cst_230 = arith.constant dense<0.000000e+00> : vector<64x32xf32>
    %462 = tpu.matmul %459, %461, %cst_230 {dimension_numbers = #tpu.dot_dimension_numbers<[1], [0], [0], [1], [0, 0, 1, 1], [], []>} : vector<64x32xbf16>, vector<32x32xbf16>, vector<64x32xf32> -> vector<64x32xf32>
    %463 = arith.addf %453, %462 : vector<64x32xf32>
    %464 = vector.broadcast %336 : vector<1x32xf32> to vector<64x32xf32>
    %465 = arith.addf %463, %464 : vector<64x32xf32>
    %466 = vector.broadcast %8 : vector<1x32xf32> to vector<64x32xf32>
    %467 = arith.addf %465, %466 : vector<64x32xf32>
    %cst_231 = arith.constant dense<0.000000e+00> : vector<32xf32>
    %468 = vector.multi_reduction <add>, %467, %cst_231 [0] : vector<64x32xf32> to vector<32xf32>
    %469 = vector.shape_cast %468 : vector<32xf32> to vector<1x32xf32>
    %470 = arith.mulf %467, %467 : vector<64x32xf32>
    %cst_232 = arith.constant dense<0.000000e+00> : vector<32xf32>
    %471 = vector.multi_reduction <add>, %470, %cst_232 [0] : vector<64x32xf32> to vector<32xf32>
    %472 = vector.shape_cast %471 : vector<32xf32> to vector<1x32xf32>
    %473 = tpu.concatenate %469, %472 in 0 : vector<1x32xf32>, vector<1x32xf32> -> vector<2x32xf32>
    %cst_233 = arith.constant dense<0.000000e+00> : vector<2x8xf32>
    %474 = tpu.matmul %473, %2, %cst_233 {dimension_numbers = #tpu.dot_dimension_numbers<[1], [0], [0], [1], [0, 0, 1, 1], [], []>} : vector<2x32xf32>, vector<32x8xf32>, vector<2x8xf32> -> vector<2x8xf32>
    %cst_234 = arith.constant 3.906250e-03 : f32
    %475 = vector.broadcast %cst_234 : f32 to vector<2x8xf32>
    %476 = arith.mulf %474, %475 : vector<2x8xf32>
    %477 = vector.extract_strided_slice %476 {offsets = [0, 0], sizes = [1, 8], strides = [1, 1]} : vector<2x8xf32> to vector<1x8xf32>
    %478 = vector.extract_strided_slice %476 {offsets = [1, 0], sizes = [1, 8], strides = [1, 1]} : vector<2x8xf32> to vector<1x8xf32>
    %479 = arith.mulf %477, %477 : vector<1x8xf32>
    %480 = arith.subf %478, %479 : vector<1x8xf32>
    %cst_235 = arith.constant 0.000000e+00 : f32
    %481 = vector.broadcast %cst_235 : f32 to vector<1x8xf32>
    %482 = arith.maximumf %480, %481 : vector<1x8xf32>
    %cst_236 = arith.constant 9.99999997E-7 : f32
    %483 = vector.broadcast %cst_236 : f32 to vector<1x8xf32>
    %484 = arith.addf %482, %483 : vector<1x8xf32>
    %485 = math.rsqrt %484 : vector<1x8xf32>
    %486 = arith.mulf %477, %485 : vector<1x8xf32>
    %487 = tpu.concatenate %485, %486 in 0 : vector<1x8xf32>, vector<1x8xf32> -> vector<2x8xf32>
    %cst_237 = arith.constant dense<0.000000e+00> : vector<2x32xf32>
    %488 = tpu.matmul %487, %3, %cst_237 {dimension_numbers = #tpu.dot_dimension_numbers<[1], [0], [0], [1], [0, 0, 1, 1], [], []>} : vector<2x8xf32>, vector<8x32xf32>, vector<2x32xf32> -> vector<2x32xf32>
    %489 = vector.extract_strided_slice %488 {offsets = [0, 0], sizes = [1, 32], strides = [1, 1]} : vector<2x32xf32> to vector<1x32xf32>
    %490 = arith.mulf %489, %337 : vector<1x32xf32>
    %491 = vector.extract_strided_slice %488 {offsets = [1, 0], sizes = [1, 32], strides = [1, 1]} : vector<2x32xf32> to vector<1x32xf32>
    %492 = arith.mulf %491, %337 : vector<1x32xf32>
    %493 = arith.subf %338, %492 : vector<1x32xf32>
    %494 = vector.broadcast %490 : vector<1x32xf32> to vector<64x32xf32>
    %495 = arith.mulf %467, %494 : vector<64x32xf32>
    %496 = vector.broadcast %493 : vector<1x32xf32> to vector<64x32xf32>
    %497 = arith.addf %495, %496 : vector<64x32xf32>
    %498 = arith.negf %497 : vector<64x32xf32>
    %499 = math.exp %498 : vector<64x32xf32>
    %cst_238 = arith.constant 1.000000e+00 : f32
    %500 = vector.broadcast %cst_238 : f32 to vector<64x32xf32>
    %501 = arith.addf %500, %499 : vector<64x32xf32>
    %502 = arith.divf %500, %501 : vector<64x32xf32>
    %503 = arith.mulf %497, %502 : vector<64x32xf32>
    %c9_i32_239 = arith.constant 9 : i32
    %504 = tpu.dynamic_rotate %503 by %c9_i32_239 dim 0 : vector<64x32xf32>, i32 -> vector<64x32xf32>
    %c0_240 = arith.constant 0 : index
    %c0_241 = arith.constant 0 : index
    %c0_242 = arith.constant 0 : index
    %505 = vector.load %arg8[%c0_240, %c0_241, %c0_242] : memref<9x64x1xf32, #tpu.memory_space<vmem>>, vector<1x64x1xf32>
    %506 = vector.shape_cast %505 : vector<1x64x1xf32> to vector<64x1xf32>
    %507 = vector.broadcast %506 : vector<64x1xf32> to vector<64x32xf32>
    %508 = arith.mulf %504, %507 : vector<64x32xf32>
    %509 = arith.truncf %508 : vector<64x32xf32> to vector<64x32xbf16>
    %c27 = arith.constant 27 : index
    %c0_243 = arith.constant 0 : index
    %c0_244 = arith.constant 0 : index
    %510 = vector.load %arg5[%c27, %c0_243, %c0_244] : memref<36x32x32xbf16, #tpu.memory_space<vmem>>, vector<1x32x32xbf16>
    %511 = vector.shape_cast %510 : vector<1x32x32xbf16> to vector<32x32xbf16>
    %cst_245 = arith.constant dense<0.000000e+00> : vector<64x32xf32>
    %512 = tpu.matmul %509, %511, %cst_245 {dimension_numbers = #tpu.dot_dimension_numbers<[1], [0], [0], [1], [0, 0, 1, 1], [], []>} : vector<64x32xbf16>, vector<32x32xbf16>, vector<64x32xf32> -> vector<64x32xf32>
    %c8_i32_246 = arith.constant 8 : i32
    %513 = tpu.dynamic_rotate %503 by %c8_i32_246 dim 0 : vector<64x32xf32>, i32 -> vector<64x32xf32>
    %c1_247 = arith.constant 1 : index
    %c0_248 = arith.constant 0 : index
    %c0_249 = arith.constant 0 : index
    %514 = vector.load %arg8[%c1_247, %c0_248, %c0_249] : memref<9x64x1xf32, #tpu.memory_space<vmem>>, vector<1x64x1xf32>
    %515 = vector.shape_cast %514 : vector<1x64x1xf32> to vector<64x1xf32>
    %516 = vector.broadcast %515 : vector<64x1xf32> to vector<64x32xf32>
    %517 = arith.mulf %513, %516 : vector<64x32xf32>
    %518 = arith.truncf %517 : vector<64x32xf32> to vector<64x32xbf16>
    %c28 = arith.constant 28 : index
    %c0_250 = arith.constant 0 : index
    %c0_251 = arith.constant 0 : index
    %519 = vector.load %arg5[%c28, %c0_250, %c0_251] : memref<36x32x32xbf16, #tpu.memory_space<vmem>>, vector<1x32x32xbf16>
    %520 = vector.shape_cast %519 : vector<1x32x32xbf16> to vector<32x32xbf16>
    %cst_252 = arith.constant dense<0.000000e+00> : vector<64x32xf32>
    %521 = tpu.matmul %518, %520, %cst_252 {dimension_numbers = #tpu.dot_dimension_numbers<[1], [0], [0], [1], [0, 0, 1, 1], [], []>} : vector<64x32xbf16>, vector<32x32xbf16>, vector<64x32xf32> -> vector<64x32xf32>
    %522 = arith.addf %512, %521 : vector<64x32xf32>
    %c7_i32_253 = arith.constant 7 : i32
    %523 = tpu.dynamic_rotate %503 by %c7_i32_253 dim 0 : vector<64x32xf32>, i32 -> vector<64x32xf32>
    %c2_254 = arith.constant 2 : index
    %c0_255 = arith.constant 0 : index
    %c0_256 = arith.constant 0 : index
    %524 = vector.load %arg8[%c2_254, %c0_255, %c0_256] : memref<9x64x1xf32, #tpu.memory_space<vmem>>, vector<1x64x1xf32>
    %525 = vector.shape_cast %524 : vector<1x64x1xf32> to vector<64x1xf32>
    %526 = vector.broadcast %525 : vector<64x1xf32> to vector<64x32xf32>
    %527 = arith.mulf %523, %526 : vector<64x32xf32>
    %528 = arith.truncf %527 : vector<64x32xf32> to vector<64x32xbf16>
    %c29 = arith.constant 29 : index
    %c0_257 = arith.constant 0 : index
    %c0_258 = arith.constant 0 : index
    %529 = vector.load %arg5[%c29, %c0_257, %c0_258] : memref<36x32x32xbf16, #tpu.memory_space<vmem>>, vector<1x32x32xbf16>
    %530 = vector.shape_cast %529 : vector<1x32x32xbf16> to vector<32x32xbf16>
    %cst_259 = arith.constant dense<0.000000e+00> : vector<64x32xf32>
    %531 = tpu.matmul %528, %530, %cst_259 {dimension_numbers = #tpu.dot_dimension_numbers<[1], [0], [0], [1], [0, 0, 1, 1], [], []>} : vector<64x32xbf16>, vector<32x32xbf16>, vector<64x32xf32> -> vector<64x32xf32>
    %532 = arith.addf %522, %531 : vector<64x32xf32>
    %c1_i32_260 = arith.constant 1 : i32
    %533 = tpu.dynamic_rotate %503 by %c1_i32_260 dim 0 : vector<64x32xf32>, i32 -> vector<64x32xf32>
    %c3_261 = arith.constant 3 : index
    %c0_262 = arith.constant 0 : index
    %c0_263 = arith.constant 0 : index
    %534 = vector.load %arg8[%c3_261, %c0_262, %c0_263] : memref<9x64x1xf32, #tpu.memory_space<vmem>>, vector<1x64x1xf32>
    %535 = vector.shape_cast %534 : vector<1x64x1xf32> to vector<64x1xf32>
    %536 = vector.broadcast %535 : vector<64x1xf32> to vector<64x32xf32>
    %537 = arith.mulf %533, %536 : vector<64x32xf32>
    %538 = arith.truncf %537 : vector<64x32xf32> to vector<64x32xbf16>
    %c30 = arith.constant 30 : index
    %c0_264 = arith.constant 0 : index
    %c0_265 = arith.constant 0 : index
    %539 = vector.load %arg5[%c30, %c0_264, %c0_265] : memref<36x32x32xbf16, #tpu.memory_space<vmem>>, vector<1x32x32xbf16>
    %540 = vector.shape_cast %539 : vector<1x32x32xbf16> to vector<32x32xbf16>
    %cst_266 = arith.constant dense<0.000000e+00> : vector<64x32xf32>
    %541 = tpu.matmul %538, %540, %cst_266 {dimension_numbers = #tpu.dot_dimension_numbers<[1], [0], [0], [1], [0, 0, 1, 1], [], []>} : vector<64x32xbf16>, vector<32x32xbf16>, vector<64x32xf32> -> vector<64x32xf32>
    %542 = arith.addf %532, %541 : vector<64x32xf32>
    %c4_267 = arith.constant 4 : index
    %c0_268 = arith.constant 0 : index
    %c0_269 = arith.constant 0 : index
    %543 = vector.load %arg8[%c4_267, %c0_268, %c0_269] : memref<9x64x1xf32, #tpu.memory_space<vmem>>, vector<1x64x1xf32>
    %544 = vector.shape_cast %543 : vector<1x64x1xf32> to vector<64x1xf32>
    %545 = vector.broadcast %544 : vector<64x1xf32> to vector<64x32xf32>
    %546 = arith.mulf %503, %545 : vector<64x32xf32>
    %547 = arith.truncf %546 : vector<64x32xf32> to vector<64x32xbf16>
    %c31 = arith.constant 31 : index
    %c0_270 = arith.constant 0 : index
    %c0_271 = arith.constant 0 : index
    %548 = vector.load %arg5[%c31, %c0_270, %c0_271] : memref<36x32x32xbf16, #tpu.memory_space<vmem>>, vector<1x32x32xbf16>
    %549 = vector.shape_cast %548 : vector<1x32x32xbf16> to vector<32x32xbf16>
    %cst_272 = arith.constant dense<0.000000e+00> : vector<64x32xf32>
    %550 = tpu.matmul %547, %549, %cst_272 {dimension_numbers = #tpu.dot_dimension_numbers<[1], [0], [0], [1], [0, 0, 1, 1], [], []>} : vector<64x32xbf16>, vector<32x32xbf16>, vector<64x32xf32> -> vector<64x32xf32>
    %551 = arith.addf %542, %550 : vector<64x32xf32>
    %c63_i32_273 = arith.constant 63 : i32
    %552 = tpu.dynamic_rotate %503 by %c63_i32_273 dim 0 : vector<64x32xf32>, i32 -> vector<64x32xf32>
    %c5_274 = arith.constant 5 : index
    %c0_275 = arith.constant 0 : index
    %c0_276 = arith.constant 0 : index
    %553 = vector.load %arg8[%c5_274, %c0_275, %c0_276] : memref<9x64x1xf32, #tpu.memory_space<vmem>>, vector<1x64x1xf32>
    %554 = vector.shape_cast %553 : vector<1x64x1xf32> to vector<64x1xf32>
    %555 = vector.broadcast %554 : vector<64x1xf32> to vector<64x32xf32>
    %556 = arith.mulf %552, %555 : vector<64x32xf32>
    %557 = arith.truncf %556 : vector<64x32xf32> to vector<64x32xbf16>
    %c32 = arith.constant 32 : index
    %c0_277 = arith.constant 0 : index
    %c0_278 = arith.constant 0 : index
    %558 = vector.load %arg5[%c32, %c0_277, %c0_278] : memref<36x32x32xbf16, #tpu.memory_space<vmem>>, vector<1x32x32xbf16>
    %559 = vector.shape_cast %558 : vector<1x32x32xbf16> to vector<32x32xbf16>
    %cst_279 = arith.constant dense<0.000000e+00> : vector<64x32xf32>
    %560 = tpu.matmul %557, %559, %cst_279 {dimension_numbers = #tpu.dot_dimension_numbers<[1], [0], [0], [1], [0, 0, 1, 1], [], []>} : vector<64x32xbf16>, vector<32x32xbf16>, vector<64x32xf32> -> vector<64x32xf32>
    %561 = arith.addf %551, %560 : vector<64x32xf32>
    %c57_i32_280 = arith.constant 57 : i32
    %562 = tpu.dynamic_rotate %503 by %c57_i32_280 dim 0 : vector<64x32xf32>, i32 -> vector<64x32xf32>
    %c6_281 = arith.constant 6 : index
    %c0_282 = arith.constant 0 : index
    %c0_283 = arith.constant 0 : index
    %563 = vector.load %arg8[%c6_281, %c0_282, %c0_283] : memref<9x64x1xf32, #tpu.memory_space<vmem>>, vector<1x64x1xf32>
    %564 = vector.shape_cast %563 : vector<1x64x1xf32> to vector<64x1xf32>
    %565 = vector.broadcast %564 : vector<64x1xf32> to vector<64x32xf32>
    %566 = arith.mulf %562, %565 : vector<64x32xf32>
    %567 = arith.truncf %566 : vector<64x32xf32> to vector<64x32xbf16>
    %c33 = arith.constant 33 : index
    %c0_284 = arith.constant 0 : index
    %c0_285 = arith.constant 0 : index
    %568 = vector.load %arg5[%c33, %c0_284, %c0_285] : memref<36x32x32xbf16, #tpu.memory_space<vmem>>, vector<1x32x32xbf16>
    %569 = vector.shape_cast %568 : vector<1x32x32xbf16> to vector<32x32xbf16>
    %cst_286 = arith.constant dense<0.000000e+00> : vector<64x32xf32>
    %570 = tpu.matmul %567, %569, %cst_286 {dimension_numbers = #tpu.dot_dimension_numbers<[1], [0], [0], [1], [0, 0, 1, 1], [], []>} : vector<64x32xbf16>, vector<32x32xbf16>, vector<64x32xf32> -> vector<64x32xf32>
    %571 = arith.addf %561, %570 : vector<64x32xf32>
    %c56_i32_287 = arith.constant 56 : i32
    %572 = tpu.dynamic_rotate %503 by %c56_i32_287 dim 0 : vector<64x32xf32>, i32 -> vector<64x32xf32>
    %c7_288 = arith.constant 7 : index
    %c0_289 = arith.constant 0 : index
    %c0_290 = arith.constant 0 : index
    %573 = vector.load %arg8[%c7_288, %c0_289, %c0_290] : memref<9x64x1xf32, #tpu.memory_space<vmem>>, vector<1x64x1xf32>
    %574 = vector.shape_cast %573 : vector<1x64x1xf32> to vector<64x1xf32>
    %575 = vector.broadcast %574 : vector<64x1xf32> to vector<64x32xf32>
    %576 = arith.mulf %572, %575 : vector<64x32xf32>
    %577 = arith.truncf %576 : vector<64x32xf32> to vector<64x32xbf16>
    %c34 = arith.constant 34 : index
    %c0_291 = arith.constant 0 : index
    %c0_292 = arith.constant 0 : index
    %578 = vector.load %arg5[%c34, %c0_291, %c0_292] : memref<36x32x32xbf16, #tpu.memory_space<vmem>>, vector<1x32x32xbf16>
    %579 = vector.shape_cast %578 : vector<1x32x32xbf16> to vector<32x32xbf16>
    %cst_293 = arith.constant dense<0.000000e+00> : vector<64x32xf32>
    %580 = tpu.matmul %577, %579, %cst_293 {dimension_numbers = #tpu.dot_dimension_numbers<[1], [0], [0], [1], [0, 0, 1, 1], [], []>} : vector<64x32xbf16>, vector<32x32xbf16>, vector<64x32xf32> -> vector<64x32xf32>
    %581 = arith.addf %571, %580 : vector<64x32xf32>
    %c55_i32_294 = arith.constant 55 : i32
    %582 = tpu.dynamic_rotate %503 by %c55_i32_294 dim 0 : vector<64x32xf32>, i32 -> vector<64x32xf32>
    %c8_295 = arith.constant 8 : index
    %c0_296 = arith.constant 0 : index
    %c0_297 = arith.constant 0 : index
    %583 = vector.load %arg8[%c8_295, %c0_296, %c0_297] : memref<9x64x1xf32, #tpu.memory_space<vmem>>, vector<1x64x1xf32>
    %584 = vector.shape_cast %583 : vector<1x64x1xf32> to vector<64x1xf32>
    %585 = vector.broadcast %584 : vector<64x1xf32> to vector<64x32xf32>
    %586 = arith.mulf %582, %585 : vector<64x32xf32>
    %587 = arith.truncf %586 : vector<64x32xf32> to vector<64x32xbf16>
    %c35 = arith.constant 35 : index
    %c0_298 = arith.constant 0 : index
    %c0_299 = arith.constant 0 : index
    %588 = vector.load %arg5[%c35, %c0_298, %c0_299] : memref<36x32x32xbf16, #tpu.memory_space<vmem>>, vector<1x32x32xbf16>
    %589 = vector.shape_cast %588 : vector<1x32x32xbf16> to vector<32x32xbf16>
    %cst_300 = arith.constant dense<0.000000e+00> : vector<64x32xf32>
    %590 = tpu.matmul %587, %589, %cst_300 {dimension_numbers = #tpu.dot_dimension_numbers<[1], [0], [0], [1], [0, 0, 1, 1], [], []>} : vector<64x32xbf16>, vector<32x32xbf16>, vector<64x32xf32> -> vector<64x32xf32>
    %591 = arith.addf %581, %590 : vector<64x32xf32>
    %592 = vector.broadcast %339 : vector<1x32xf32> to vector<64x32xf32>
    %593 = arith.addf %591, %592 : vector<64x32xf32>
    %594 = arith.addf %333, %593 : vector<64x32xf32>
    %c0_301 = arith.constant 0 : index
    %c0_302 = arith.constant 0 : index
    %595 = vector.load %arg11[%c0_301, %c0_302] : memref<64x32xf32, #tpu.memory_space<vmem>>, vector<64x32xf32>
    tpu.vector_store %arg11[%c0_301, %c0_302], %594 {strides = array<i32>} : memref<64x32xf32, #tpu.memory_space<vmem>>, vector<64x32xf32>,
    return
  }
  func.func @transform_0(%arg0: i32) -> (i32, i32) {
    %c0_i32 = arith.constant 0 : i32
    %c0_i32_0 = arith.constant 0 : i32
    return %arg0, %c0_i32 : i32, i32
  }
  func.func @transform_1(%arg0: i32) -> (i32, i32, i32) {
    %c0_i32 = arith.constant 0 : i32
    %c0_i32_0 = arith.constant 0 : i32
    %c0_i32_1 = arith.constant 0 : i32
    return %arg0, %c0_i32, %c0_i32_0 : i32, i32, i32
  }
  func.func @transform_2(%arg0: i32) -> (i32, i32) {
    %c0_i32 = arith.constant 0 : i32
    %c0_i32_0 = arith.constant 0 : i32
    %c0_i32_1 = arith.constant 0 : i32
    return %c0_i32, %c0_i32_0 : i32, i32
  }
  func.func @transform_3(%arg0: i32) -> (i32, i32) {
    %c0_i32 = arith.constant 0 : i32
    %c0_i32_0 = arith.constant 0 : i32
    %c0_i32_1 = arith.constant 0 : i32
    return %c0_i32, %c0_i32_0 : i32, i32
  }
  func.func @transform_4(%arg0: i32) -> (i32, i32, i32) {
    %c0_i32 = arith.constant 0 : i32
    %c0_i32_0 = arith.constant 0 : i32
    %c0_i32_1 = arith.constant 0 : i32
    %c0_i32_2 = arith.constant 0 : i32
    return %c0_i32, %c0_i32_0, %c0_i32_1 : i32, i32, i32
  }
  func.func @transform_5(%arg0: i32) -> (i32, i32) {
    %c0_i32 = arith.constant 0 : i32
    %c0_i32_0 = arith.constant 0 : i32
    %c0_i32_1 = arith.constant 0 : i32
    return %c0_i32, %c0_i32_0 : i32, i32
  }
  func.func @transform_6(%arg0: i32) -> (i32, i32) {
    %c0_i32 = arith.constant 0 : i32
    %c0_i32_0 = arith.constant 0 : i32
    %c0_i32_1 = arith.constant 0 : i32
    return %c0_i32, %c0_i32_0 : i32, i32
  }
  func.func @transform_7(%arg0: i32) -> (i32, i32, i32) {
    %c0_i32 = arith.constant 0 : i32
    %c0_i32_0 = arith.constant 0 : i32
    %c0_i32_1 = arith.constant 0 : i32
    %c0_i32_2 = arith.constant 0 : i32
    return %c0_i32, %c0_i32_0, %c0_i32_1 : i32, i32, i32
  }
  func.func @transform_8(%arg0: i32) -> (i32, i32) {
    %c0_i32 = arith.constant 0 : i32
    %c0_i32_0 = arith.constant 0 : i32
    %c0_i32_1 = arith.constant 0 : i32
    return %c0_i32, %c0_i32_0 : i32, i32
  }
  func.func @transform_9(%arg0: i32) -> (i32, i32) {
    %c0_i32 = arith.constant 0 : i32
    %c0_i32_0 = arith.constant 0 : i32
    %c0_i32_1 = arith.constant 0 : i32
    return %c0_i32, %c0_i32_0 : i32, i32
  }
  func.func @transform_10(%arg0: i32) -> (i32, i32) {
    %c0_i32 = arith.constant 0 : i32
    %c0_i32_0 = arith.constant 0 : i32
    return %arg0, %c0_i32 : i32, i32
  }
}

</mosaic_0001>

<llo_original>
// kernel: tpu_custom_call.1
$region0: #{tpu_custom_call.1}
  #allocation0 [shape = 'u32[]', space=smem, size = 0x4, offset = 0x4, fixed_abs, tag = 'smem constant byte address 0x4 - core index']
  #allocation1 [shape = 'u32[72,128]{1,0:T(1,128)}', space=vmem, size = 0x9000, scoped, tag = 'internal scratch']
  %s0 = inlined_call_operand.vmem [shape: f32[128,32], index: 0, kind: input, shape index: {}]
  %s1 = inlined_call_operand.vmem [shape: f32[2,2,32], index: 1, kind: input, shape index: {}]
  %s2 = inlined_call_operand.vmem [shape: f32[16,32], index: 2, kind: input, shape index: {}]
  %s3 = inlined_call_operand.vmem [shape: f32[1,384], index: 3, kind: input, shape index: {}]
  %s4 = inlined_call_operand.vmem [shape: bf16[36,32,32], index: 4, kind: input, shape index: {}]
  %s5 = inlined_call_operand.vmem [shape: bf16[32,384], index: 5, kind: input, shape index: {}]
  %s6 = inlined_call_operand.vmem [shape: bf16[128,32], index: 6, kind: input, shape index: {}]
  %s7 = inlined_call_operand.vmem [shape: f32[9,64,1], index: 7, kind: input, shape index: {}]
  %s8 = inlined_call_operand.vmem [shape: f32[32,8], index: 8, kind: input, shape index: {}]
  %s9 = inlined_call_operand.vmem [shape: f32[8,32], index: 9, kind: input, shape index: {}]
  %s10 = inlined_call_operand.vmem [shape: f32[128,32], index: 10, kind: output, shape index: {}]
  %s11 = sld [smem:[#allocation0]]
  $region73: #{tpu_custom_call.1} parent=0
    _
  %s13 = ssub.s32 1, %s11
  %s14 = scalar_select 0, %s13, %s11
  loop: start=0, step=1, limit=4
  $region2: #{tpu_custom_call.1} parent=0 // loop_pre_header
    _
  $region3: #{tpu_custom_call.1} parent=0 // loop_header
    %s16 = sphi 0, %s20
    %p17 = scmp.ge.s32.totalorder %s16, 4
    %s26 = sphi 0, %s28
    %s29 = sphi 0, %s26
    %s30 = sphi 0, %s29
    %s46 = sphi 0, %s30
    %s52 = sphi 0, %s54
    %s55 = sphi 0, %s52
    %s56 = sphi 0, %s55
    %s72 = sphi 0, %s56
    %s76 = sphi 0, %s76
    %s78 = sphi 0, %s76
    %s79 = sphi 0, %s78
    %s93 = sphi 0, %s79
    %s97 = sphi 0, %s97
    %s99 = sphi 0, %s97
    %s100 = sphi 0, %s99
    %s114 = sphi 0, %s100
    %s118 = sphi 0, %s118
    %s120 = sphi 0, %s118
    %s121 = sphi 0, %s120
    %s135 = sphi 0, %s121
    %s139 = sphi 0, %s139
    %s141 = sphi 0, %s139
    %s142 = sphi 0, %s141
    %s156 = sphi 0, %s142
    %s160 = sphi 0, %s160
    %s162 = sphi 0, %s160
    %s163 = sphi 0, %s162
    %s177 = sphi 0, %s163
    %s181 = sphi 0, %s181
    %s183 = sphi 0, %s181
    %s184 = sphi 0, %s183
    %s198 = sphi 0, %s184
    %s202 = sphi 0, %s202
    %s204 = sphi 0, %s202
    %s205 = sphi 0, %s204
    %s219 = sphi 0, %s205
    %s223 = sphi 0, %s223
    %s225 = sphi 0, %s223
    %s226 = sphi 0, %s225
    %s240 = sphi 0, %s226
    %s246 = sphi 0, %s248
    %s249 = sphi 0, %s246
    %s250 = sphi 0, %s249
    %s266 = sphi 0, %s250
  $region4: #{tpu_custom_call.1} parent=0 // loop_header_branch
    %19 = sbr.rel (%p17) target = $region8
  $region5: #{tpu_custom_call.1} parent=0 // loop_body
    %s21 = ssub.s32 %s16, 1
    %s22 = ssub.s32 %s16, 2
    %s23 = sadd.s32 %s16, 1
    %s24 = ssub.s32 %s16, %s23
    %p25 = scmp.eq.s32.totalorder %s24, 0
    %s27 = sadd.s32 %s26, 1
    %s28 = scalar_select %p25, %s26, %s27
    %p31 = pneg %p25
    %p32 = scmp.eq.s32.totalorder %s16, 1
    %p33 = por %p31, %p32
    %p34 = scmp.ne.s32.totalorder %s26, %s29
    %p35 = scmp.eq.s32.totalorder %s16, 0
    %p36 = por %p34, %p35
    %p37 = scmp.ne.s32.totalorder %s26, %s29
    %p38 = scmp.eq.s32.totalorder %s21, 1
    %p39 = por %p37, %p38
    %p40 = scmp.ne.s32.totalorder %s29, %s30
    %p41 = scmp.eq.s32.totalorder %s21, 0
    %p42 = por %p40, %p41
    %p43 = scmp.ne.s32.totalorder %s29, %s30
    %p44 = scmp.eq.s32.totalorder %s22, 1
    %p45 = por %p43, %p44
    %p47 = scmp.ne.s32.totalorder %s30, %s46
    %p48 = scmp.eq.s32.totalorder %s22, 0
    %p49 = por %p47, %p48
    %s50 = ssub.s32 %s16, %s23
    %p51 = scmp.eq.s32.totalorder %s50, 0
    %s53 = sadd.s32 %s52, 1
    %s54 = scalar_select %p51, %s52, %s53
    %p57 = pneg %p51
    %p58 = scmp.eq.s32.totalorder %s16, 1
    %p59 = por %p57, %p58
    %p60 = scmp.ne.s32.totalorder %s52, %s55
    %p61 = scmp.eq.s32.totalorder %s16, 0
    %p62 = por %p60, %p61
    %p63 = scmp.ne.s32.totalorder %s52, %s55
    %p64 = scmp.eq.s32.totalorder %s21, 1
    %p65 = por %p63, %p64
    %p66 = scmp.ne.s32.totalorder %s55, %s56
    %p67 = scmp.eq.s32.totalorder %s21, 0
    %p68 = por %p66, %p67
    %p69 = scmp.ne.s32.totalorder %s55, %s56
    %p70 = scmp.eq.s32.totalorder %s22, 1
    %p71 = por %p69, %p70
    %p73 = scmp.ne.s32.totalorder %s56, %s72
    %p74 = scmp.eq.s32.totalorder %s22, 0
    %p75 = por %p73, %p74
    %s77 = sadd.s32 %s76, 1
    %p80 = scmp.eq.s32.totalorder %s16, 1
    %p81 = scmp.ne.s32.totalorder %s76, %s78
    %p82 = scmp.eq.s32.totalorder %s16, 0
    %p83 = por %p81, %p82
    %p84 = scmp.ne.s32.totalorder %s76, %s78
    %p85 = scmp.eq.s32.totalorder %s21, 1
    %p86 = por %p84, %p85
    %p87 = scmp.ne.s32.totalorder %s78, %s79
    %p88 = scmp.eq.s32.totalorder %s21, 0
    %p89 = por %p87, %p88
    %p90 = scmp.ne.s32.totalorder %s78, %s79
    %p91 = scmp.eq.s32.totalorder %s22, 1
    %p92 = por %p90, %p91
    %p94 = scmp.ne.s32.totalorder %s79, %s93
    %p95 = scmp.eq.s32.totalorder %s22, 0
    %p96 = por %p94, %p95
    %s98 = sadd.s32 %s97, 1
    %p101 = scmp.eq.s32.totalorder %s16, 1
    %p102 = scmp.ne.s32.totalorder %s97, %s99
    %p103 = scmp.eq.s32.totalorder %s16, 0
    %p104 = por %p102, %p103
    %p105 = scmp.ne.s32.totalorder %s97, %s99
    %p106 = scmp.eq.s32.totalorder %s21, 1
    %p107 = por %p105, %p106
    %p108 = scmp.ne.s32.totalorder %s99, %s100
    %p109 = scmp.eq.s32.totalorder %s21, 0
    %p110 = por %p108, %p109
    %p111 = scmp.ne.s32.totalorder %s99, %s100
    %p112 = scmp.eq.s32.totalorder %s22, 1
    %p113 = por %p111, %p112
    %p115 = scmp.ne.s32.totalorder %s100, %s114
    %p116 = scmp.eq.s32.totalorder %s22, 0
    %p117 = por %p115, %p116
    %s119 = sadd.s32 %s118, 1
    %p122 = scmp.eq.s32.totalorder %s16, 1
    %p123 = scmp.ne.s32.totalorder %s118, %s120
    %p124 = scmp.eq.s32.totalorder %s16, 0
    %p125 = por %p123, %p124
    %p126 = scmp.ne.s32.totalorder %s118, %s120
    %p127 = scmp.eq.s32.totalorder %s21, 1
    %p128 = por %p126, %p127
    %p129 = scmp.ne.s32.totalorder %s120, %s121
    %p130 = scmp.eq.s32.totalorder %s21, 0
    %p131 = por %p129, %p130
    %p132 = scmp.ne.s32.totalorder %s120, %s121
    %p133 = scmp.eq.s32.totalorder %s22, 1
    %p134 = por %p132, %p133
    %p136 = scmp.ne.s32.totalorder %s121, %s135
    %p137 = scmp.eq.s32.totalorder %s22, 0
    %p138 = por %p136, %p137
    %s140 = sadd.s32 %s139, 1
    %p143 = scmp.eq.s32.totalorder %s16, 1
    %p144 = scmp.ne.s32.totalorder %s139, %s141
    %p145 = scmp.eq.s32.totalorder %s16, 0
    %p146 = por %p144, %p145
    %p147 = scmp.ne.s32.totalorder %s139, %s141
    %p148 = scmp.eq.s32.totalorder %s21, 1
    %p149 = por %p147, %p148
    %p150 = scmp.ne.s32.totalorder %s141, %s142
    %p151 = scmp.eq.s32.totalorder %s21, 0
    %p152 = por %p150, %p151
    %p153 = scmp.ne.s32.totalorder %s141, %s142
    %p154 = scmp.eq.s32.totalorder %s22, 1
    %p155 = por %p153, %p154
    %p157 = scmp.ne.s32.totalorder %s142, %s156
    %p158 = scmp.eq.s32.totalorder %s22, 0
    %p159 = por %p157, %p158
    %s161 = sadd.s32 %s160, 1
    %p164 = scmp.eq.s32.totalorder %s16, 1
    %p165 = scmp.ne.s32.totalorder %s160, %s162
    %p166 = scmp.eq.s32.totalorder %s16, 0
    %p167 = por %p165, %p166
    %p168 = scmp.ne.s32.totalorder %s160, %s162
    %p169 = scmp.eq.s32.totalorder %s21, 1
    %p170 = por %p168, %p169
    %p171 = scmp.ne.s32.totalorder %s162, %s163
    %p172 = scmp.eq.s32.totalorder %s21, 0
    %p173 = por %p171, %p172
    %p174 = scmp.ne.s32.totalorder %s162, %s163
    %p175 = scmp.eq.s32.totalorder %s22, 1
    %p176 = por %p174, %p175
    %p178 = scmp.ne.s32.totalorder %s163, %s177
    %p179 = scmp.eq.s32.totalorder %s22, 0
    %p180 = por %p178, %p179
    %s182 = sadd.s32 %s181, 1
    %p185 = scmp.eq.s32.totalorder %s16, 1
    %p186 = scmp.ne.s32.totalorder %s181, %s183
    %p187 = scmp.eq.s32.totalorder %s16, 0
    %p188 = por %p186, %p187
    %p189 = scmp.ne.s32.totalorder %s181, %s183
    %p190 = scmp.eq.s32.totalorder %s21, 1
    %p191 = por %p189, %p190
    %p192 = scmp.ne.s32.totalorder %s183, %s184
    %p193 = scmp.eq.s32.totalorder %s21, 0
    %p194 = por %p192, %p193
    %p195 = scmp.ne.s32.totalorder %s183, %s184
    %p196 = scmp.eq.s32.totalorder %s22, 1
    %p197 = por %p195, %p196
    %p199 = scmp.ne.s32.totalorder %s184, %s198
    %p200 = scmp.eq.s32.totalorder %s22, 0
    %p201 = por %p199, %p200
    %s203 = sadd.s32 %s202, 1
    %p206 = scmp.eq.s32.totalorder %s16, 1
    %p207 = scmp.ne.s32.totalorder %s202, %s204
    %p208 = scmp.eq.s32.totalorder %s16, 0
    %p209 = por %p207, %p208
    %p210 = scmp.ne.s32.totalorder %s202, %s204
    %p211 = scmp.eq.s32.totalorder %s21, 1
    %p212 = por %p210, %p211
    %p213 = scmp.ne.s32.totalorder %s204, %s205
    %p214 = scmp.eq.s32.totalorder %s21, 0
    %p215 = por %p213, %p214
    %p216 = scmp.ne.s32.totalorder %s204, %s205
    %p217 = scmp.eq.s32.totalorder %s22, 1
    %p218 = por %p216, %p217
    %p220 = scmp.ne.s32.totalorder %s205, %s219
    %p221 = scmp.eq.s32.totalorder %s22, 0
    %p222 = por %p220, %p221
    %s224 = sadd.s32 %s223, 1
    %p227 = scmp.eq.s32.totalorder %s16, 1
    %p228 = scmp.ne.s32.totalorder %s223, %s225
    %p229 = scmp.eq.s32.totalorder %s16, 0
    %p230 = por %p228, %p229
    %p231 = scmp.ne.s32.totalorder %s223, %s225
    %p232 = scmp.eq.s32.totalorder %s21, 1
    %p233 = por %p231, %p232
    %p234 = scmp.ne.s32.totalorder %s225, %s226
    %p235 = scmp.eq.s32.totalorder %s21, 0
    %p236 = por %p234, %p235
    %p237 = scmp.ne.s32.totalorder %s225, %s226
    %p238 = scmp.eq.s32.totalorder %s22, 1
    %p239 = por %p237, %p238
    %p241 = scmp.ne.s32.totalorder %s226, %s240
    %p242 = scmp.eq.s32.totalorder %s22, 0
    %p243 = por %p241, %p242
    %s244 = ssub.s32 %s16, %s23
    %p245 = scmp.eq.s32.totalorder %s244, 0
    %s247 = sadd.s32 %s246, 1
    %s248 = scalar_select %p245, %s246, %s247
    %p251 = pneg %p245
    %p252 = scmp.eq.s32.totalorder %s16, 1
    %p253 = por %p251, %p252
    %p254 = scmp.ne.s32.totalorder %s246, %s249
    %p255 = scmp.eq.s32.totalorder %s16, 0
    %p256 = por %p254, %p255
    %p257 = scmp.ne.s32.totalorder %s246, %s249
    %p258 = scmp.eq.s32.totalorder %s21, 1
    %p259 = por %p257, %p258
    %p260 = scmp.ne.s32.totalorder %s249, %s250
    %p261 = scmp.eq.s32.totalorder %s21, 0
    %p262 = por %p260, %p261
    %p263 = scmp.ne.s32.totalorder %s249, %s250
    %p264 = scmp.eq.s32.totalorder %s22, 1
    %p265 = por %p263, %p264
    %p267 = scmp.ne.s32.totalorder %s250, %s266
    %p268 = scmp.eq.s32.totalorder %s22, 0
    %p269 = por %p267, %p268
    %p270 = scmp.le.s32.totalorder 1, %s16
    %p271 = scmp.lt.s32.totalorder %s16, 3
    %p272 = pnand %p270, %p271
    %p273 = pneg %p272
    // Predicated region
    $region9: #{tpu_custom_call.1} parent=5 // pred_check
      _
    $region10: #{tpu_custom_call.1} parent=5 // pred_check_branch
      %275 = sbr.rel (%p272) target = $region12
    $region11: #{tpu_custom_call.1} parent=5 // pred_region
      %s276 = ssub.s32 %s16, 1
      // Predicated region
      $region13: #{tpu_custom_call.1} parent=11 // pred_check
        %p277 = pneg %p89
      $region14: #{tpu_custom_call.1} parent=11 // pred_check_branch
        %279 = sbr.rel (%p277) target = $region16
      $region15: #{tpu_custom_call.1} parent=11 // pred_region
        _
      $region16: #{tpu_custom_call.1} parent=11 // pred_fallthru
        _
      // Predicated region
      $region17: #{tpu_custom_call.1} parent=11 // pred_check
        %p280 = pneg %p110
      $region18: #{tpu_custom_call.1} parent=11 // pred_check_branch
        %282 = sbr.rel (%p280) target = $region20
      $region19: #{tpu_custom_call.1} parent=11 // pred_region
        _
      $region20: #{tpu_custom_call.1} parent=11 // pred_fallthru
        _
      // Predicated region
      $region21: #{tpu_custom_call.1} parent=11 // pred_check
        %p283 = pneg %p131
      $region22: #{tpu_custom_call.1} parent=11 // pred_check_branch
        %285 = sbr.rel (%p283) target = $region24
      $region23: #{tpu_custom_call.1} parent=11 // pred_region
        _
      $region24: #{tpu_custom_call.1} parent=11 // pred_fallthru
        _
      // Predicated region
      $region25: #{tpu_custom_call.1} parent=11 // pred_check
        %p286 = pneg %p152
      $region26: #{tpu_custom_call.1} parent=11 // pred_check_branch
        %288 = sbr.rel (%p286) target = $region28
      $region27: #{tpu_custom_call.1} parent=11 // pred_region
        _
      $region28: #{tpu_custom_call.1} parent=11 // pred_fallthru
        _
      // Predicated region
      $region29: #{tpu_custom_call.1} parent=11 // pred_check
        %p289 = pneg %p173
      $region30: #{tpu_custom_call.1} parent=11 // pred_check_branch
        %291 = sbr.rel (%p289) target = $region32
      $region31: #{tpu_custom_call.1} parent=11 // pred_region
        _
      $region32: #{tpu_custom_call.1} parent=11 // pred_fallthru
        _
      // Predicated region
      $region33: #{tpu_custom_call.1} parent=11 // pred_check
        %p292 = pneg %p194
      $region34: #{tpu_custom_call.1} parent=11 // pred_check_branch
        %294 = sbr.rel (%p292) target = $region36
      $region35: #{tpu_custom_call.1} parent=11 // pred_region
        _
      $region36: #{tpu_custom_call.1} parent=11 // pred_fallthru
        _
      // Predicated region
      $region37: #{tpu_custom_call.1} parent=11 // pred_check
        %p295 = pneg %p215
      $region38: #{tpu_custom_call.1} parent=11 // pred_check_branch
        %297 = sbr.rel (%p295) target = $region40
      $region39: #{tpu_custom_call.1} parent=11 // pred_region
        _
      $region40: #{tpu_custom_call.1} parent=11 // pred_fallthru
        _
      // Predicated region
      $region41: #{tpu_custom_call.1} parent=11 // pred_check
        %p298 = pneg %p236
      $region42: #{tpu_custom_call.1} parent=11 // pred_check_branch
        %300 = sbr.rel (%p298) target = $region44
      $region43: #{tpu_custom_call.1} parent=11 // pred_region
        _
      $region44: #{tpu_custom_call.1} parent=11 // pred_fallthru
        _
    $region12: #{tpu_custom_call.1} parent=5 // pred_fallthru
      _
    %p301 = scmp.lt.s32.totalorder %s16, 2
    // Predicated region
    $region45: #{tpu_custom_call.1} parent=5 // pred_check
      %p302 = pneg %p301
    $region46: #{tpu_custom_call.1} parent=5 // pred_check_branch
      %304 = sbr.rel (%p302) target = $region48
    $region47: #{tpu_custom_call.1} parent=5 // pred_region
      // Predicated region
      $region49: #{tpu_custom_call.1} parent=47 // pred_check
        %p305 = pneg %p36
      $region50: #{tpu_custom_call.1} parent=47 // pred_check_branch
        %307 = sbr.rel (%p305) target = $region52
      $region51: #{tpu_custom_call.1} parent=47 // pred_region
        %s308 = smul.u32 8, %s16
        %p309 = scmp.lt.s32.totalorder %s308, 15
        %s310 = scalar_select %p309, %s308, 15
        %s311 = smul.addr %s310, 8
        %s312 = scalar_lea.vmem %s0, %s311
        %s313 = smul.u32 8, %s16
      $region52: #{tpu_custom_call.1} parent=47 // pred_fallthru
        _
      // Predicated region
      $region53: #{tpu_custom_call.1} parent=47 // pred_check
        %p314 = pneg %p62
      $region54: #{tpu_custom_call.1} parent=47 // pred_check_branch
        %316 = sbr.rel (%p314) target = $region56
      $region55: #{tpu_custom_call.1} parent=47 // pred_region
        %p317 = scmp.lt.s32.totalorder %s16, 1
        %s318 = scalar_select %p317, %s16, 1
        %s319 = smul.addr %s318, 2
        %s320 = scalar_lea.vmem %s1, %s319
      $region56: #{tpu_custom_call.1} parent=47 // pred_fallthru
        _
    $region48: #{tpu_custom_call.1} parent=5 // pred_fallthru
      _
    %p321 = scmp.le.s32.totalorder 1, %s16
    %p322 = scmp.lt.s32.totalorder %s16, 3
    %p323 = pnand %p321, %p322
    %p324 = pneg %p323
    // Predicated region
    $region57: #{tpu_custom_call.1} parent=5 // pred_check
      _
    $region58: #{tpu_custom_call.1} parent=5 // pred_check_branch
      %326 = sbr.rel (%p323) target = $region60
    $region59: #{tpu_custom_call.1} parent=5 // pred_region
      %s327 = ssub.s32 %s16, 1
      %s328 = smul.u32 8, %s21
      %p329 = scmp.lt.s32.totalorder %s328, 15
      %s330 = scalar_select %p329, %s328, 15
      %s331 = smul.addr %s330, 8
      %s332 = scalar_lea.vmem %s0, %s331
      %p333 = pneg %p42
      %p334 = pneg %p39
      %p335 = scmp.lt.s32.totalorder %s21, 1
      %s336 = scalar_select %p335, %s21, 1
      %s337 = smul.addr %s336, 2
      %s338 = scalar_lea.vmem %s1, %s337
      %p339 = pneg %p68
      %p340 = pneg %p65
      %p341 = pneg %p89
      %p342 = pneg %p86
      %p343 = pneg %p110
      %p344 = pneg %p107
      %p345 = pneg %p131
      %p346 = pneg %p128
      %p347 = pneg %p152
      %p348 = pneg %p149
      %p349 = pneg %p173
      %p350 = pneg %p170
      %p351 = pneg %p194
      %p352 = pneg %p191
      %p353 = pneg %p215
      %p354 = pneg %p212
      %p355 = pneg %p236
      %p356 = pneg %p233
      %p357 = pneg %p262
      %p358 = pneg %p259
      %s359 = smul.u32 8, %s21
      %p360 = scmp.lt.s32.totalorder %s359, 15
      %s361 = scalar_select %p360, %s359, 15
      %s362 = smul.addr %s361, 8
      %s363 = scalar_lea.vmem %s10, %s362
      %s364 = smul.u32 8, %s21
      %p365 = scmp.lt.s32.totalorder %s364, 15
      %s366 = scalar_select %p365, %s364, 15
      %s367 = smul.addr %s366, 8
      %s368 = scalar_lea.vmem %s0, %s367
      %s369 = smul.u32 8, %s21
      %p370 = scmp.lt.s32.totalorder %s21, 1
      %s371 = scalar_select %p370, %s21, 1
      %s372 = smul.addr %s371, 2
      %s373 = scalar_lea.vmem %s1, %s372
      %s374 = smul.u32 8, %s21
      %p375 = scmp.lt.s32.totalorder %s374, 15
      %s376 = scalar_select %p375, %s374, 15
      %s377 = smul.addr %s376, 8
      %s378 = scalar_lea.vmem %s10, %s377
      %s379 = smul.u32 8, %s21
      %v381 = vld [vmem:[%s368] sm:$0xff]
      %v382 = vld [vmem:[%s368 + $0x8] sm:$0xff]
      %v383 = vld [vmem:[%s368 + $0x10] sm:$0xff]
      %v384 = vld [vmem:[%s368 + $0x18] sm:$0xff]
      %v385 = vld [vmem:[%s368 + $0x20] sm:$0xff]
      %v386 = vld [vmem:[%s368 + $0x28] sm:$0xff]
      %v387 = vld [vmem:[%s368 + $0x30] sm:$0xff]
      %v388 = vld [vmem:[%s368 + $0x38] sm:$0xff]
      %v389 = vld [vmem:[%s2] sm:$0xff]
      %v390 = vld [vmem:[%s2 + $0x8] sm:$0xff]
      %v391 = vld [vmem:[%s8] sm:$0xff]
      %v392 = vld [vmem:[%s8 + $0x8] sm:$0xff]
      %v393 = vld [vmem:[%s8 + $0x10] sm:$0xff]
      %v394 = vld [vmem:[%s8 + $0x18] sm:$0xff]
      %v395 = vld [vmem:[%s9] sm:$0xff]
      %v396 = vld [vmem:[%s373] sm:$0x3]
      %vm397 = vcmask 261120
      %v398 = vsel %vm397, %v381, 0.0
      %v399 = vsel %vm397, %v382, 0.0
      %v400 = vadd.f32 %v398, %v399
      %v401 = vsel %vm397, %v383, 0.0
      %v402 = vadd.f32 %v400, %v401
      %v403 = vsel %vm397, %v384, 0.0
      %v404 = vadd.f32 %v402, %v403
      %v405 = vsel %vm397, %v385, 0.0
      %v406 = vadd.f32 %v404, %v405
      %v407 = vsel %vm397, %v386, 0.0
      %v408 = vadd.f32 %v406, %v407
      %v409 = vsel %vm397, %v387, 0.0
      %v410 = vadd.f32 %v408, %v409
      %v411 = vsel %vm397, %v388, 0.0
      %v412 = vadd.f32 %v410, %v411
      %v413 = vrot.slane %v412, 4
      %v414 = vadd.f32 %v412, %v413
      %v415 = vrot.slane %v414, 2
      %v416 = vadd.f32 %v414, %v415
      %v417 = vrot.slane %v416, 1
      %v418 = vadd.f32 %v416, %v417
      %v419 = vmul.f32 %v381, %v381
      %v420 = vmul.f32 %v382, %v382
      %v421 = vmul.f32 %v383, %v383
      %v422 = vmul.f32 %v384, %v384
      %v423 = vmul.f32 %v385, %v385
      %v424 = vmul.f32 %v386, %v386
      %v425 = vmul.f32 %v387, %v387
      %v426 = vmul.f32 %v388, %v388
      %v427 = vsel %vm397, %v419, 0.0
      %v428 = vsel %vm397, %v420, 0.0
      %v429 = vadd.f32 %v427, %v428
      %v430 = vsel %vm397, %v421, 0.0
      %v431 = vadd.f32 %v429, %v430
      %v432 = vsel %vm397, %v422, 0.0
      %v433 = vadd.f32 %v431, %v432
      %v434 = vsel %vm397, %v423, 0.0
      %v435 = vadd.f32 %v433, %v434
      %v436 = vsel %vm397, %v424, 0.0
      %v437 = vadd.f32 %v435, %v436
      %v438 = vsel %vm397, %v425, 0.0
      %v439 = vadd.f32 %v437, %v438
      %v440 = vsel %vm397, %v426, 0.0
      %v441 = vadd.f32 %v439, %v440
      %v442 = vrot.slane %v441, 4
      %v443 = vadd.f32 %v441, %v442
      %v444 = vrot.slane %v443, 2
      %v445 = vadd.f32 %v443, %v444
      %v446 = vrot.slane %v445, 1
      %v447 = vadd.f32 %v445, %v446
      %vm448 = vcmask 1040384
      %v449 = vsel %vm448, %v418, %v447
      %v451 = vsel %vm397, %v449, 0
      %453 = vmatpush.msra.mxu0 0.0
      %454 = vmatpush.msra.mxu0 0.0
      %455 = vmatpush.msra.mxu0 0.0
      %456 = vmatpush.msra.mxu0 0.0
      %457 = vmatpush.msra.mxu0 0.0
      %458 = vmatpush.msra.mxu0 0.0
      %459 = vmatpush.msra.mxu0 0.0
      %460 = vmatpush.msra.mxu0 0.0
      %461 = vmatpush.msra.mxu0 0.0
      %462 = vmatpush.msra.mxu0 0.0
      %463 = vmatpush.msra.mxu0 0.0
      %464 = vmatpush.msra.mxu0 0.0
      %465 = vmatpush.msra.mxu0 %v394
      %466 = vmatpush.msra.mxu0 %v393
      %467 = vmatpush.msra.mxu0 %v392
      %468 = vmatpush.msra.mxu0 %v391
      %469 = vmatmul.f32.gmra.mxu0 %v451
      %v470 = vpop.f32.mrf.mxu0
      %v471 = vadd.f32 0.0, %v470
      %472 = vdwg.mxu0
      %v473 = vmul.f32 %v471, 0.00390625
      %v474 = vmul.f32 %v473, %v473
      %v476 = vrot.slane %v474, 7
      %v478 = vsub.f32 %v473, %v476
      %v479 = vmax.f32 %v478, 0.0
      %v480 = vadd.f32 %v479, 1e-06
      %v481 = vrsqrt.pop %v480
      %v482 = vmul.f32 %v481, %v480
      %v483 = vmul.f32 %v482, %v481
      %v484 = vmul.f32 0.5, %v483
      %v485 = vsub.f32 1.5, %v484
      %v486 = vmul.f32 %v481, %v485
      %vm487 = vweird.f32 %v480
      %vm488 = vweird.f32 %v481
      %vm489 = vmor %vm487, %vm488
      %v490 = vsel %vm489, %v481, %v486
      %v492 = vrot.slane %v490, 1
      %v494 = vmul.f32 %v473, %v492
      %v496 = vrot.slane %v494, 7
      %v498 = vsel %vm448, %v492, %v496
      %vm499 = vcmask 64512
      %v501 = vsel %vm499, %v498, 0
      %503 = vmatpush.msra.mxu0 0.0
      %504 = vmatpush.msra.mxu0 0.0
      %505 = vmatpush.msra.mxu0 0.0
      %506 = vmatpush.msra.mxu0 0.0
      %507 = vmatpush.msra.mxu0 0.0
      %508 = vmatpush.msra.mxu0 0.0
      %509 = vmatpush.msra.mxu0 0.0
      %510 = vmatpush.msra.mxu0 0.0
      %511 = vmatpush.msra.mxu0 0.0
      %512 = vmatpush.msra.mxu0 0.0
      %513 = vmatpush.msra.mxu0 0.0
      %514 = vmatpush.msra.mxu0 0.0
      %515 = vmatpush.msra.mxu0 0.0
      %516 = vmatpush.msra.mxu0 0.0
      %517 = vmatpush.msra.mxu0 0.0
      %518 = vmatpush.msra.mxu0 %v395
      %519 = vmatmul.f32.gmra.mxu0 %v501
      %v520 = vpop.f32.mrf.mxu0
      %v521 = vadd.f32 0.0, %v520
      %522 = vdwg.mxu0
      %v523 = vmul.f32 %v521, %v389
      %v525 = vrot.slane %v389, 7
      %v527 = vmul.f32 %v521, %v525
      %v528 = vsub.f32 %v389, %v527
      %v529 = vperm.slane %v523, 0
      %v530 = vmul.f32 %v381, %v529
      %v531 = vmul.f32 %v382, %v529
      %v532 = vmul.f32 %v383, %v529
      %v533 = vmul.f32 %v384, %v529
      %v534 = vmul.f32 %v385, %v529
      %v535 = vmul.f32 %v386, %v529
      %v536 = vmul.f32 %v387, %v529
      %v537 = vmul.f32 %v388, %v529
      %v538 = vperm.slane %v528, 1
      %v539 = vadd.f32 %v530, %v538
      %v540 = vadd.f32 %v531, %v538
      %v541 = vadd.f32 %v532, %v538
      %v542 = vadd.f32 %v533, %v538
      %v543 = vadd.f32 %v534, %v538
      %v544 = vadd.f32 %v535, %v538
      %v545 = vadd.f32 %v536, %v538
      %v546 = vadd.f32 %v537, %v538
      %v547 = vxor.u32 %v539, 2147483648
      %v548 = vxor.u32 %v540, 2147483648
      %v549 = vxor.u32 %v541, 2147483648
      %v550 = vxor.u32 %v542, 2147483648
      %v551 = vxor.u32 %v543, 2147483648
      %v552 = vxor.u32 %v544, 2147483648
      %v553 = vxor.u32 %v545, 2147483648
      %v554 = vxor.u32 %v546, 2147483648
      %v555 = vmul.f32 %v547, 1.442695
      %v556 = vpow.pop %v555
      %v557 = vmul.f32 %v548, 1.442695
      %v558 = vpow.pop %v557
      %v559 = vmul.f32 %v549, 1.442695
      %v560 = vpow.pop %v559
      %v561 = vmul.f32 %v550, 1.442695
      %v562 = vpow.pop %v561
      %v563 = vmul.f32 %v551, 1.442695
      %v564 = vpow.pop %v563
      %v565 = vmul.f32 %v552, 1.442695
      %v566 = vpow.pop %v565
      %v567 = vmul.f32 %v553, 1.442695
      %v568 = vpow.pop %v567
      %v569 = vmul.f32 %v554, 1.442695
      %v570 = vpow.pop %v569
      %v571 = vadd.f32 %v556, 1.0
      %v572 = vadd.f32 %v558, 1.0
      %v573 = vadd.f32 %v560, 1.0
      %v574 = vadd.f32 %v562, 1.0
      %v575 = vadd.f32 %v564, 1.0
      %v576 = vadd.f32 %v566, 1.0
      %v577 = vadd.f32 %v568, 1.0
      %v578 = vadd.f32 %v570, 1.0
      %v579 = vrcp.pop %v571
      %v580 = vmul.f32 %v571, %v579
      %v581 = vsub.f32 1.0, %v580
      %v582 = vmul.f32 %v579, %v581
      %v583 = vadd.f32 %v579, %v582
      %vm584 = vweird.f32 %v571
      %vm585 = vweird.f32 %v579
      %vm586 = vmor %vm584, %vm585
      %v587 = vsel %vm586, %v579, %v583
      %v588 = vand.u32 2147483647, %v571
      %vm589 = vcmp.eq.f32.partialorder %v588, 8.507059e+37
      %v590 = vand.u32 %v571, 2147483648
      %v591 = vor.u32 1.1754944e-38, %v590
      %v592 = vsel %vm589, %v591, %v587
      %v593 = vmul.f32 1.0, %v592
      %v594 = vrcp.pop %v572
      %v595 = vmul.f32 %v572, %v594
      %v596 = vsub.f32 1.0, %v595
      %v597 = vmul.f32 %v594, %v596
      %v598 = vadd.f32 %v594, %v597
      %vm599 = vweird.f32 %v572
      %vm600 = vweird.f32 %v594
      %vm601 = vmor %vm599, %vm600
      %v602 = vsel %vm601, %v594, %v598
      %v603 = vand.u32 2147483647, %v572
      %vm604 = vcmp.eq.f32.partialorder %v603, 8.507059e+37
      %v605 = vand.u32 %v572, 2147483648
      %v606 = vor.u32 1.1754944e-38, %v605
      %v607 = vsel %vm604, %v606, %v602
      %v608 = vmul.f32 1.0, %v607
      %v609 = vrcp.pop %v573
      %v610 = vmul.f32 %v573, %v609
      %v611 = vsub.f32 1.0, %v610
      %v612 = vmul.f32 %v609, %v611
      %v613 = vadd.f32 %v609, %v612
      %vm614 = vweird.f32 %v573
      %vm615 = vweird.f32 %v609
      %vm616 = vmor %vm614, %vm615
      %v617 = vsel %vm616, %v609, %v613
      %v618 = vand.u32 2147483647, %v573
      %vm619 = vcmp.eq.f32.partialorder %v618, 8.507059e+37
      %v620 = vand.u32 %v573, 2147483648
      %v621 = vor.u32 1.1754944e-38, %v620
      %v622 = vsel %vm619, %v621, %v617
      %v623 = vmul.f32 1.0, %v622
      %v624 = vrcp.pop %v574
      %v625 = vmul.f32 %v574, %v624
      %v626 = vsub.f32 1.0, %v625
      %v627 = vmul.f32 %v624, %v626
      %v628 = vadd.f32 %v624, %v627
      %vm629 = vweird.f32 %v574
      %vm630 = vweird.f32 %v624
      %vm631 = vmor %vm629, %vm630
      %v632 = vsel %vm631, %v624, %v628
      %v633 = vand.u32 2147483647, %v574
      %vm634 = vcmp.eq.f32.partialorder %v633, 8.507059e+37
      %v635 = vand.u32 %v574, 2147483648
      %v636 = vor.u32 1.1754944e-38, %v635
      %v637 = vsel %vm634, %v636, %v632
      %v638 = vmul.f32 1.0, %v637
      %v639 = vrcp.pop %v575
      %v640 = vmul.f32 %v575, %v639
      %v641 = vsub.f32 1.0, %v640
      %v642 = vmul.f32 %v639, %v641
      %v643 = vadd.f32 %v639, %v642
      %vm644 = vweird.f32 %v575
      %vm645 = vweird.f32 %v639
      %vm646 = vmor %vm644, %vm645
      %v647 = vsel %vm646, %v639, %v643
      %v648 = vand.u32 2147483647, %v575
      %vm649 = vcmp.eq.f32.partialorder %v648, 8.507059e+37
      %v650 = vand.u32 %v575, 2147483648
      %v651 = vor.u32 1.1754944e-38, %v650
      %v652 = vsel %vm649, %v651, %v647
      %v653 = vmul.f32 1.0, %v652
      %v654 = vrcp.pop %v576
      %v655 = vmul.f32 %v576, %v654
      %v656 = vsub.f32 1.0, %v655
      %v657 = vmul.f32 %v654, %v656
      %v658 = vadd.f32 %v654, %v657
      %vm659 = vweird.f32 %v576
      %vm660 = vweird.f32 %v654
      %vm661 = vmor %vm659, %vm660
      %v662 = vsel %vm661, %v654, %v658
      %v663 = vand.u32 2147483647, %v576
      %vm664 = vcmp.eq.f32.partialorder %v663, 8.507059e+37
      %v665 = vand.u32 %v576, 2147483648
      %v666 = vor.u32 1.1754944e-38, %v665
      %v667 = vsel %vm664, %v666, %v662
      %v668 = vmul.f32 1.0, %v667
      %v669 = vrcp.pop %v577
      %v670 = vmul.f32 %v577, %v669
      %v671 = vsub.f32 1.0, %v670
      %v672 = vmul.f32 %v669, %v671
      %v673 = vadd.f32 %v669, %v672
      %vm674 = vweird.f32 %v577
      %vm675 = vweird.f32 %v669
      %vm676 = vmor %vm674, %vm675
      %v677 = vsel %vm676, %v669, %v673
      %v678 = vand.u32 2147483647, %v577
      %vm679 = vcmp.eq.f32.partialorder %v678, 8.507059e+37
      %v680 = vand.u32 %v577, 2147483648
      %v681 = vor.u32 1.1754944e-38, %v680
      %v682 = vsel %vm679, %v681, %v677
      %v683 = vmul.f32 1.0, %v682
      %v684 = vrcp.pop %v578
      %v685 = vmul.f32 %v578, %v684
      %v686 = vsub.f32 1.0, %v685
      %v687 = vmul.f32 %v684, %v686
      %v688 = vadd.f32 %v684, %v687
      %vm689 = vweird.f32 %v578
      %vm690 = vweird.f32 %v684
      %vm691 = vmor %vm689, %vm690
      %v692 = vsel %vm691, %v684, %v688
      %v693 = vand.u32 2147483647, %v578
      %vm694 = vcmp.eq.f32.partialorder %v693, 8.507059e+37
      %v695 = vand.u32 %v578, 2147483648
      %v696 = vor.u32 1.1754944e-38, %v695
      %v697 = vsel %vm694, %v696, %v692
      %v698 = vmul.f32 1.0, %v697
      %v699 = vmul.f32 %v539, %v593
      %v700 = vmul.f32 %v540, %v608
      %v701 = vmul.f32 %v541, %v623
      %v702 = vmul.f32 %v542, %v638
      %v703 = vmul.f32 %v543, %v653
      %v704 = vmul.f32 %v544, %v668
      %v705 = vmul.f32 %v545, %v683
      %v706 = vmul.f32 %v546, %v698
      %v707 = vrot.slane %v699, 7
      %v708 = vrot.slane %v700, 7
      %v709 = vrot.slane %v701, 7
      %v710 = vrot.slane %v702, 7
      %v711 = vrot.slane %v703, 7
      %v712 = vrot.slane %v704, 7
      %v713 = vrot.slane %v705, 7
      %v714 = vrot.slane %v706, 7
      %v715 = vlaneseq
      %v716 = vshrl.u32 %v715, 7
      %vm717 = vcmp.lt.s32.totalorder %v716, 1
      %v718 = vsel %vm717, %v713, %v714
      %v719 = vsel %vm717, %v712, %v713
      %v720 = vsel %vm717, %v711, %v712
      %v721 = vsel %vm717, %v710, %v711
      %v722 = vsel %vm717, %v709, %v710
      %v723 = vsel %vm717, %v708, %v709
      %v724 = vsel %vm717, %v707, %v708
      %v725 = vsel %vm717, %v714, %v707
      %v726 = vld [vmem:[%s7] sm:$0xff]
      %v727 = vld [vmem:[%s7 + $0x8] sm:$0xff]
      %v728 = vld [vmem:[%s7 + $0x10] sm:$0xff]
      %v729 = vld [vmem:[%s7 + $0x18] sm:$0xff]
      %v730 = vld [vmem:[%s7 + $0x20] sm:$0xff]
      %v731 = vld [vmem:[%s7 + $0x28] sm:$0xff]
      %v732 = vld [vmem:[%s7 + $0x30] sm:$0xff]
      %v733 = vld [vmem:[%s7 + $0x38] sm:$0xff]
      %735 = vset.pattern.permute.xlu0 0
      %736 = vperm.xlu0 %735, %v726
      %v737 = vpop.permute.xlu0 %736
      %740 = vset.pattern.permute.xlu0 0
      %741 = vperm.xlu0 %740, %v727
      %v742 = vpop.permute.xlu0 %741
      %745 = vset.pattern.permute.xlu0 0
      %746 = vperm.xlu0 %745, %v728
      %v747 = vpop.permute.xlu0 %746
      %750 = vset.pattern.permute.xlu0 0
      %751 = vperm.xlu0 %750, %v729
      %v752 = vpop.permute.xlu0 %751
      %755 = vset.pattern.permute.xlu0 0
      %756 = vperm.xlu0 %755, %v730
      %v757 = vpop.permute.xlu0 %756
      %760 = vset.pattern.permute.xlu0 0
      %761 = vperm.xlu0 %760, %v731
      %v762 = vpop.permute.xlu0 %761
      %765 = vset.pattern.permute.xlu0 0
      %766 = vperm.xlu0 %765, %v732
      %v767 = vpop.permute.xlu0 %766
      %770 = vset.pattern.permute.xlu0 0
      %771 = vperm.xlu0 %770, %v733
      %v772 = vpop.permute.xlu0 %771
      %v774 = vmul.f32 %v718, %v737
      %v775 = vmul.f32 %v725, %v742
      %v776 = vmul.f32 %v724, %v747
      %v777 = vmul.f32 %v723, %v752
      %v778 = vmul.f32 %v722, %v757
      %v779 = vmul.f32 %v721, %v762
      %v780 = vmul.f32 %v720, %v767
      %v781 = vmul.f32 %v719, %v772
      %v782 = vpack.c.bf16 %v775, %v774
      %v783 = vpack.c.bf16 %v777, %v776
      %v784 = vpack.c.bf16 %v779, %v778
      %v785 = vpack.c.bf16 %v781, %v780
      %v786 = vld [vmem:[%s4] sm:$0xf]
      %v787 = vld [vmem:[%s4 + $0x4] sm:$0xf]
      %v788 = vld [vmem:[%s4 + $0x8] sm:$0xf]
      %v789 = vld [vmem:[%s4 + $0xc] sm:$0xf]
      %s790 = scalar_lea.vmem %s7, 64
      %v791 = vld [vmem:[%s790] sm:$0xff]
      %v792 = vld [vmem:[%s790 + $0x8] sm:$0xff]
      %v793 = vld [vmem:[%s790 + $0x10] sm:$0xff]
      %v794 = vld [vmem:[%s790 + $0x18] sm:$0xff]
      %v795 = vld [vmem:[%s790 + $0x20] sm:$0xff]
      %v796 = vld [vmem:[%s790 + $0x28] sm:$0xff]
      %v797 = vld [vmem:[%s790 + $0x30] sm:$0xff]
      %v798 = vld [vmem:[%s790 + $0x38] sm:$0xff]
      %800 = vset.pattern.permute.xlu0 0
      %801 = vperm.xlu0 %800, %v791
      %v802 = vpop.permute.xlu0 %801
      %805 = vset.pattern.permute.xlu0 0
      %806 = vperm.xlu0 %805, %v792
      %v807 = vpop.permute.xlu0 %806
      %810 = vset.pattern.permute.xlu0 0
      %811 = vperm.xlu0 %810, %v793
      %v812 = vpop.permute.xlu0 %811
      %815 = vset.pattern.permute.xlu0 0
      %816 = vperm.xlu0 %815, %v794
      %v817 = vpop.permute.xlu0 %816
      %820 = vset.pattern.permute.xlu0 0
      %821 = vperm.xlu0 %820, %v795
      %v822 = vpop.permute.xlu0 %821
      %825 = vset.pattern.permute.xlu0 0
      %826 = vperm.xlu0 %825, %v796
      %v827 = vpop.permute.xlu0 %826
      %830 = vset.pattern.permute.xlu0 0
      %831 = vperm.xlu0 %830, %v797
      %v832 = vpop.permute.xlu0 %831
      %835 = vset.pattern.permute.xlu0 0
      %836 = vperm.xlu0 %835, %v798
      %v837 = vpop.permute.xlu0 %836
      %v839 = vmul.f32 %v706, %v802
      %v840 = vmul.f32 %v699, %v807
      %v841 = vmul.f32 %v700, %v812
      %v842 = vmul.f32 %v701, %v817
      %v843 = vmul.f32 %v702, %v822
      %v844 = vmul.f32 %v703, %v827
      %v845 = vmul.f32 %v704, %v832
      %v846 = vmul.f32 %v705, %v837
      %v847 = vpack.c.bf16 %v840, %v839
      %v848 = vpack.c.bf16 %v842, %v841
      %v849 = vpack.c.bf16 %v844, %v843
      %v850 = vpack.c.bf16 %v846, %v845
      %s851 = scalar_lea.vmem %s4, 16
      %v852 = vld [vmem:[%s851] sm:$0xf]
      %v853 = vld [vmem:[%s851 + $0x4] sm:$0xf]
      %v854 = vld [vmem:[%s851 + $0x8] sm:$0xf]
      %v855 = vld [vmem:[%s851 + $0xc] sm:$0xf]
      %v860 = vunpack.c.l.b16 %v852
      %v861 = vunpack.c.l.b16 %v853
      %v862 = vunpack.c.l.b16 %v854
      %v863 = vunpack.c.l.b16 %v855
      %v864 = vpack.c.b16 %v861, %v860
      %v865 = vpack.c.b16 %v863, %v862
      %v869 = vsel %vm397, %v847, 0
      %v872 = vsel %vm397, %v848, 0
      %v875 = vsel %vm397, %v849, 0
      %v878 = vsel %vm397, %v850, 0
      %880 = vmatpush.bf16.msra.mxu0 0
      %881 = vmatpush.bf16.msra.mxu0 0
      %882 = vmatpush.bf16.msra.mxu0 0
      %883 = vmatpush.bf16.msra.mxu0 0
      %884 = vmatpush.bf16.msra.mxu0 0
      %885 = vmatpush.bf16.msra.mxu0 0
      %886 = vmatpush.bf16.msra.mxu0 %v865
      %887 = vmatpush.bf16.msra.mxu0 %v864
      %888 = vmatmul.bf16.gmra.mxu0 %v869
      %v889 = vpop.f32.mrf.mxu0
      %v890 = vadd.f32 0.0, %v889
      %v891 = vpop.f32.mrf.mxu0
      %v892 = vadd.f32 0.0, %v891
      %893 = vmatmul.bf16.gmra.mxu0 %v872
      %v894 = vpop.f32.mrf.mxu0
      %v895 = vadd.f32 0.0, %v894
      %v896 = vpop.f32.mrf.mxu0
      %v897 = vadd.f32 0.0, %v896
      %898 = vmatmul.bf16.gmra.mxu0 %v875
      %v899 = vpop.f32.mrf.mxu0
      %v900 = vadd.f32 0.0, %v899
      %v901 = vpop.f32.mrf.mxu0
      %v902 = vadd.f32 0.0, %v901
      %903 = vmatmul.bf16.gmra.mxu0 %v878
      %v904 = vpop.f32.mrf.mxu0
      %v905 = vadd.f32 0.0, %v904
      %v906 = vpop.f32.mrf.mxu0
      %v907 = vadd.f32 0.0, %v906
      %908 = vdwg.mxu0
      %v913 = vunpack.c.l.b16 %v786
      %v914 = vunpack.c.l.b16 %v787
      %v915 = vunpack.c.l.b16 %v788
      %v916 = vunpack.c.l.b16 %v789
      %v917 = vpack.c.b16 %v914, %v913
      %v918 = vpack.c.b16 %v916, %v915
      %v922 = vsel %vm397, %v782, 0
      %v925 = vsel %vm397, %v783, 0
      %v928 = vsel %vm397, %v784, 0
      %v931 = vsel %vm397, %v785, 0
      %933 = vmatpush.bf16.msra.mxu0 0
      %934 = vmatpush.bf16.msra.mxu0 0
      %935 = vmatpush.bf16.msra.mxu0 0
      %936 = vmatpush.bf16.msra.mxu0 0
      %937 = vmatpush.bf16.msra.mxu0 0
      %938 = vmatpush.bf16.msra.mxu0 0
      %939 = vmatpush.bf16.msra.mxu0 %v918
      %940 = vmatpush.bf16.msra.mxu0 %v917
      %941 = vmatmul.bf16.gmra.mxu0 %v922
      %v942 = vpop.f32.mrf.mxu0
      %v943 = vadd.f32 %v890, %v942
      %v944 = vpop.f32.mrf.mxu0
      %v945 = vadd.f32 %v892, %v944
      %946 = vmatmul.bf16.gmra.mxu0 %v925
      %v947 = vpop.f32.mrf.mxu0
      %v948 = vadd.f32 %v895, %v947
      %v949 = vpop.f32.mrf.mxu0
      %v950 = vadd.f32 %v897, %v949
      %951 = vmatmul.bf16.gmra.mxu0 %v928
      %v952 = vpop.f32.mrf.mxu0
      %v953 = vadd.f32 %v900, %v952
      %v954 = vpop.f32.mrf.mxu0
      %v955 = vadd.f32 %v902, %v954
      %956 = vmatmul.bf16.gmra.mxu0 %v931
      %v957 = vpop.f32.mrf.mxu0
      %v958 = vadd.f32 %v905, %v957
      %v959 = vpop.f32.mrf.mxu0
      %v960 = vadd.f32 %v907, %v959
      %961 = vdwg.mxu0
      %v962 = vrot.slane %v699, 1
      %v963 = vrot.slane %v700, 1
      %v964 = vrot.slane %v701, 1
      %v965 = vrot.slane %v702, 1
      %v966 = vrot.slane %v703, 1
      %v967 = vrot.slane %v704, 1
      %v968 = vrot.slane %v705, 1
      %v969 = vrot.slane %v706, 1
      %vm970 = vcmp.lt.s32.totalorder %v716, 7
      %v971 = vsel %vm970, %v968, %v969
      %v972 = vsel %vm970, %v967, %v968
      %v973 = vsel %vm970, %v966, %v967
      %v974 = vsel %vm970, %v965, %v966
      %v975 = vsel %vm970, %v964, %v965
      %v976 = vsel %vm970, %v963, %v964
      %v977 = vsel %vm970, %v962, %v963
      %v978 = vsel %vm970, %v969, %v962
      %s979 = scalar_lea.vmem %s7, 128
      %v980 = vld [vmem:[%s979] sm:$0xff]
      %v981 = vld [vmem:[%s979 + $0x8] sm:$0xff]
      %v982 = vld [vmem:[%s979 + $0x10] sm:$0xff]
      %v983 = vld [vmem:[%s979 + $0x18] sm:$0xff]
      %v984 = vld [vmem:[%s979 + $0x20] sm:$0xff]
      %v985 = vld [vmem:[%s979 + $0x28] sm:$0xff]
      %v986 = vld [vmem:[%s979 + $0x30] sm:$0xff]
      %v987 = vld [vmem:[%s979 + $0x38] sm:$0xff]
      %989 = vset.pattern.permute.xlu0 0
      %990 = vperm.xlu0 %989, %v980
      %v991 = vpop.permute.xlu0 %990
      %994 = vset.pattern.permute.xlu0 0
      %995 = vperm.xlu0 %994, %v981
      %v996 = vpop.permute.xlu0 %995
      %999 = vset.pattern.permute.xlu0 0
      %1000 = vperm.xlu0 %999, %v982
      %v1001 = vpop.permute.xlu0 %1000
      %1004 = vset.pattern.permute.xlu0 0
      %1005 = vperm.xlu0 %1004, %v983
      %v1006 = vpop.permute.xlu0 %1005
      %1009 = vset.pattern.permute.xlu0 0
      %1010 = vperm.xlu0 %1009, %v984
      %v1011 = vpop.permute.xlu0 %1010
      %1014 = vset.pattern.permute.xlu0 0
      %1015 = vperm.xlu0 %1014, %v985
      %v1016 = vpop.permute.xlu0 %1015
      %1019 = vset.pattern.permute.xlu0 0
      %1020 = vperm.xlu0 %1019, %v986
      %v1021 = vpop.permute.xlu0 %1020
      %1024 = vset.pattern.permute.xlu0 0
      %1025 = vperm.xlu0 %1024, %v987
      %v1026 = vpop.permute.xlu0 %1025
      %v1028 = vmul.f32 %v978, %v991
      %v1029 = vmul.f32 %v977, %v996
      %v1030 = vmul.f32 %v976, %v1001
      %v1031 = vmul.f32 %v975, %v1006
      %v1032 = vmul.f32 %v974, %v1011
      %v1033 = vmul.f32 %v973, %v1016
      %v1034 = vmul.f32 %v972, %v1021
      %v1035 = vmul.f32 %v971, %v1026
      %v1036 = vpack.c.bf16 %v1029, %v1028
      %v1037 = vpack.c.bf16 %v1031, %v1030
      %v1038 = vpack.c.bf16 %v1033, %v1032
      %v1039 = vpack.c.bf16 %v1035, %v1034
      %s1040 = scalar_lea.vmem %s4, 32
      %v1041 = vld [vmem:[%s1040] sm:$0xf]
      %v1042 = vld [vmem:[%s1040 + $0x4] sm:$0xf]
      %v1043 = vld [vmem:[%s1040 + $0x8] sm:$0xf]
      %v1044 = vld [vmem:[%s1040 + $0xc] sm:$0xf]
      %v1049 = vunpack.c.l.b16 %v1041
      %v1050 = vunpack.c.l.b16 %v1042
      %v1051 = vunpack.c.l.b16 %v1043
      %v1052 = vunpack.c.l.b16 %v1044
      %v1053 = vpack.c.b16 %v1050, %v1049
      %v1054 = vpack.c.b16 %v1052, %v1051
      %v1058 = vsel %vm397, %v1036, 0
      %v1061 = vsel %vm397, %v1037, 0
      %v1064 = vsel %vm397, %v1038, 0
      %v1067 = vsel %vm397, %v1039, 0
      %1069 = vmatpush.bf16.msra.mxu0 0
      %1070 = vmatpush.bf16.msra.mxu0 0
      %1071 = vmatpush.bf16.msra.mxu0 0
      %1072 = vmatpush.bf16.msra.mxu0 0
      %1073 = vmatpush.bf16.msra.mxu0 0
      %1074 = vmatpush.bf16.msra.mxu0 0
      %1075 = vmatpush.bf16.msra.mxu0 %v1054
      %1076 = vmatpush.bf16.msra.mxu0 %v1053
      %1077 = vmatmul.bf16.gmra.mxu0 %v1058
      %v1078 = vpop.f32.mrf.mxu0
      %v1079 = vadd.f32 0.0, %v1078
      %v1080 = vpop.f32.mrf.mxu0
      %v1081 = vadd.f32 0.0, %v1080
      %1082 = vmatmul.bf16.gmra.mxu0 %v1061
      %v1083 = vpop.f32.mrf.mxu0
      %v1084 = vadd.f32 0.0, %v1083
      %v1085 = vpop.f32.mrf.mxu0
      %v1086 = vadd.f32 0.0, %v1085
      %1087 = vmatmul.bf16.gmra.mxu0 %v1064
      %v1088 = vpop.f32.mrf.mxu0
      %v1089 = vadd.f32 0.0, %v1088
      %v1090 = vpop.f32.mrf.mxu0
      %v1091 = vadd.f32 0.0, %v1090
      %1092 = vmatmul.bf16.gmra.mxu0 %v1067
      %v1093 = vpop.f32.mrf.mxu0
      %v1094 = vadd.f32 0.0, %v1093
      %v1095 = vpop.f32.mrf.mxu0
      %v1096 = vadd.f32 0.0, %v1095
      %1097 = vdwg.mxu0
      %v1098 = vadd.f32 %v943, %v1079
      %v1099 = vadd.f32 %v945, %v1081
      %v1100 = vadd.f32 %v948, %v1084
      %v1101 = vadd.f32 %v950, %v1086
      %v1102 = vadd.f32 %v953, %v1089
      %v1103 = vadd.f32 %v955, %v1091
      %v1104 = vadd.f32 %v958, %v1094
      %v1105 = vadd.f32 %v960, %v1096
      %s1106 = scalar_lea.vmem %s7, 192
      %v1107 = vld [vmem:[%s1106] sm:$0xff]
      %v1108 = vld [vmem:[%s1106 + $0x8] sm:$0xff]
      %v1109 = vld [vmem:[%s1106 + $0x10] sm:$0xff]
      %v1110 = vld [vmem:[%s1106 + $0x18] sm:$0xff]
      %v1111 = vld [vmem:[%s1106 + $0x20] sm:$0xff]
      %v1112 = vld [vmem:[%s1106 + $0x28] sm:$0xff]
      %v1113 = vld [vmem:[%s1106 + $0x30] sm:$0xff]
      %v1114 = vld [vmem:[%s1106 + $0x38] sm:$0xff]
      %1116 = vset.pattern.permute.xlu0 0
      %1117 = vperm.xlu0 %1116, %v1107
      %v1118 = vpop.permute.xlu0 %1117
      %1121 = vset.pattern.permute.xlu0 0
      %1122 = vperm.xlu0 %1121, %v1108
      %v1123 = vpop.permute.xlu0 %1122
      %1126 = vset.pattern.permute.xlu0 0
      %1127 = vperm.xlu0 %1126, %v1109
      %v1128 = vpop.permute.xlu0 %1127
      %1131 = vset.pattern.permute.xlu0 0
      %1132 = vperm.xlu0 %1131, %v1110
      %v1133 = vpop.permute.xlu0 %1132
      %1136 = vset.pattern.permute.xlu0 0
      %1137 = vperm.xlu0 %1136, %v1111
      %v1138 = vpop.permute.xlu0 %1137
      %1141 = vset.pattern.permute.xlu0 0
      %1142 = vperm.xlu0 %1141, %v1112
      %v1143 = vpop.permute.xlu0 %1142
      %1146 = vset.pattern.permute.xlu0 0
      %1147 = vperm.xlu0 %1146, %v1113
      %v1148 = vpop.permute.xlu0 %1147
      %1151 = vset.pattern.permute.xlu0 0
      %1152 = vperm.xlu0 %1151, %v1114
      %v1153 = vpop.permute.xlu0 %1152
      %v1155 = vmul.f32 %v725, %v1118
      %v1156 = vmul.f32 %v724, %v1123
      %v1157 = vmul.f32 %v723, %v1128
      %v1158 = vmul.f32 %v722, %v1133
      %v1159 = vmul.f32 %v721, %v1138
      %v1160 = vmul.f32 %v720, %v1143
      %v1161 = vmul.f32 %v719, %v1148
      %v1162 = vmul.f32 %v718, %v1153
      %v1163 = vpack.c.bf16 %v1156, %v1155
      %v1164 = vpack.c.bf16 %v1158, %v1157
      %v1165 = vpack.c.bf16 %v1160, %v1159
      %v1166 = vpack.c.bf16 %v1162, %v1161
      %s1167 = scalar_lea.vmem %s4, 48
      %v1168 = vld [vmem:[%s1167] sm:$0xf]
      %v1169 = vld [vmem:[%s1167 + $0x4] sm:$0xf]
      %v1170 = vld [vmem:[%s1167 + $0x8] sm:$0xf]
      %v1171 = vld [vmem:[%s1167 + $0xc] sm:$0xf]
      %v1176 = vunpack.c.l.b16 %v1168
      %v1177 = vunpack.c.l.b16 %v1169
      %v1178 = vunpack.c.l.b16 %v1170
      %v1179 = vunpack.c.l.b16 %v1171
      %v1180 = vpack.c.b16 %v1177, %v1176
      %v1181 = vpack.c.b16 %v1179, %v1178
      %v1185 = vsel %vm397, %v1163, 0
      %v1188 = vsel %vm397, %v1164, 0
      %v1191 = vsel %vm397, %v1165, 0
      %v1194 = vsel %vm397, %v1166, 0
      %1196 = vmatpush.bf16.msra.mxu0 0
      %1197 = vmatpush.bf16.msra.mxu0 0
      %1198 = vmatpush.bf16.msra.mxu0 0
      %1199 = vmatpush.bf16.msra.mxu0 0
      %1200 = vmatpush.bf16.msra.mxu0 0
      %1201 = vmatpush.bf16.msra.mxu0 0
      %1202 = vmatpush.bf16.msra.mxu0 %v1181
      %1203 = vmatpush.bf16.msra.mxu0 %v1180
      %1204 = vmatmul.bf16.gmra.mxu0 %v1185
      %v1205 = vpop.f32.mrf.mxu0
      %v1206 = vadd.f32 0.0, %v1205
      %v1207 = vpop.f32.mrf.mxu0
      %v1208 = vadd.f32 0.0, %v1207
      %1209 = vmatmul.bf16.gmra.mxu0 %v1188
      %v1210 = vpop.f32.mrf.mxu0
      %v1211 = vadd.f32 0.0, %v1210
      %v1212 = vpop.f32.mrf.mxu0
      %v1213 = vadd.f32 0.0, %v1212
      %1214 = vmatmul.bf16.gmra.mxu0 %v1191
      %v1215 = vpop.f32.mrf.mxu0
      %v1216 = vadd.f32 0.0, %v1215
      %v1217 = vpop.f32.mrf.mxu0
      %v1218 = vadd.f32 0.0, %v1217
      %1219 = vmatmul.bf16.gmra.mxu0 %v1194
      %v1220 = vpop.f32.mrf.mxu0
      %v1221 = vadd.f32 0.0, %v1220
      %v1222 = vpop.f32.mrf.mxu0
      %v1223 = vadd.f32 0.0, %v1222
      %1224 = vdwg.mxu0
      %v1225 = vadd.f32 %v1098, %v1206
      %v1226 = vadd.f32 %v1099, %v1208
      %v1227 = vadd.f32 %v1100, %v1211
      %v1228 = vadd.f32 %v1101, %v1213
      %v1229 = vadd.f32 %v1102, %v1216
      %v1230 = vadd.f32 %v1103, %v1218
      %v1231 = vadd.f32 %v1104, %v1221
      %v1232 = vadd.f32 %v1105, %v1223
      %s1233 = scalar_lea.vmem %s7, 256
      %v1234 = vld [vmem:[%s1233] sm:$0xff]
      %v1235 = vld [vmem:[%s1233 + $0x8] sm:$0xff]
      %v1236 = vld [vmem:[%s1233 + $0x10] sm:$0xff]
      %v1237 = vld [vmem:[%s1233 + $0x18] sm:$0xff]
      %v1238 = vld [vmem:[%s1233 + $0x20] sm:$0xff]
      %v1239 = vld [vmem:[%s1233 + $0x28] sm:$0xff]
      %v1240 = vld [vmem:[%s1233 + $0x30] sm:$0xff]
      %v1241 = vld [vmem:[%s1233 + $0x38] sm:$0xff]
      %1243 = vset.pattern.permute.xlu0 0
      %1244 = vperm.xlu0 %1243, %v1234
      %v1245 = vpop.permute.xlu0 %1244
      %1248 = vset.pattern.permute.xlu0 0
      %1249 = vperm.xlu0 %1248, %v1235
      %v1250 = vpop.permute.xlu0 %1249
      %1253 = vset.pattern.permute.xlu0 0
      %1254 = vperm.xlu0 %1253, %v1236
      %v1255 = vpop.permute.xlu0 %1254
      %1258 = vset.pattern.permute.xlu0 0
      %1259 = vperm.xlu0 %1258, %v1237
      %v1260 = vpop.permute.xlu0 %1259
      %1263 = vset.pattern.permute.xlu0 0
      %1264 = vperm.xlu0 %1263, %v1238
      %v1265 = vpop.permute.xlu0 %1264
      %1268 = vset.pattern.permute.xlu0 0
      %1269 = vperm.xlu0 %1268, %v1239
      %v1270 = vpop.permute.xlu0 %1269
      %1273 = vset.pattern.permute.xlu0 0
      %1274 = vperm.xlu0 %1273, %v1240
      %v1275 = vpop.permute.xlu0 %1274
      %1278 = vset.pattern.permute.xlu0 0
      %1279 = vperm.xlu0 %1278, %v1241
      %v1280 = vpop.permute.xlu0 %1279
      %v1282 = vmul.f32 %v699, %v1245
      %v1283 = vmul.f32 %v700, %v1250
      %v1284 = vmul.f32 %v701, %v1255
      %v1285 = vmul.f32 %v702, %v1260
      %v1286 = vmul.f32 %v703, %v1265
      %v1287 = vmul.f32 %v704, %v1270
      %v1288 = vmul.f32 %v705, %v1275
      %v1289 = vmul.f32 %v706, %v1280
      %v1290 = vpack.c.bf16 %v1283, %v1282
      %v1291 = vpack.c.bf16 %v1285, %v1284
      %v1292 = vpack.c.bf16 %v1287, %v1286
      %v1293 = vpack.c.bf16 %v1289, %v1288
      %s1294 = scalar_lea.vmem %s4, 64
      %v1295 = vld [vmem:[%s1294] sm:$0xf]
      %v1296 = vld [vmem:[%s1294 + $0x4] sm:$0xf]
      %v1297 = vld [vmem:[%s1294 + $0x8] sm:$0xf]
      %v1298 = vld [vmem:[%s1294 + $0xc] sm:$0xf]
      %v1303 = vunpack.c.l.b16 %v1295
      %v1304 = vunpack.c.l.b16 %v1296
      %v1305 = vunpack.c.l.b16 %v1297
      %v1306 = vunpack.c.l.b16 %v1298
      %v1307 = vpack.c.b16 %v1304, %v1303
      %v1308 = vpack.c.b16 %v1306, %v1305
      %v1312 = vsel %vm397, %v1290, 0
      %v1315 = vsel %vm397, %v1291, 0
      %v1318 = vsel %vm397, %v1292, 0
      %v1321 = vsel %vm397, %v1293, 0
      %1323 = vmatpush.bf16.msra.mxu0 0
      %1324 = vmatpush.bf16.msra.mxu0 0
      %1325 = vmatpush.bf16.msra.mxu0 0
      %1326 = vmatpush.bf16.msra.mxu0 0
      %1327 = vmatpush.bf16.msra.mxu0 0
      %1328 = vmatpush.bf16.msra.mxu0 0
      %1329 = vmatpush.bf16.msra.mxu0 %v1308
      %1330 = vmatpush.bf16.msra.mxu0 %v1307
      %1331 = vmatmul.bf16.gmra.mxu0 %v1312
      %v1332 = vpop.f32.mrf.mxu0
      %v1333 = vadd.f32 0.0, %v1332
      %v1334 = vpop.f32.mrf.mxu0
      %v1335 = vadd.f32 0.0, %v1334
      %1336 = vmatmul.bf16.gmra.mxu0 %v1315
      %v1337 = vpop.f32.mrf.mxu0
      %v1338 = vadd.f32 0.0, %v1337
      %v1339 = vpop.f32.mrf.mxu0
      %v1340 = vadd.f32 0.0, %v1339
      %1341 = vmatmul.bf16.gmra.mxu0 %v1318
      %v1342 = vpop.f32.mrf.mxu0
      %v1343 = vadd.f32 0.0, %v1342
      %v1344 = vpop.f32.mrf.mxu0
      %v1345 = vadd.f32 0.0, %v1344
      %1346 = vmatmul.bf16.gmra.mxu0 %v1321
      %v1347 = vpop.f32.mrf.mxu0
      %v1348 = vadd.f32 0.0, %v1347
      %v1349 = vpop.f32.mrf.mxu0
      %v1350 = vadd.f32 0.0, %v1349
      %1351 = vdwg.mxu0
      %v1352 = vadd.f32 %v1225, %v1333
      %v1353 = vadd.f32 %v1226, %v1335
      %v1354 = vadd.f32 %v1227, %v1338
      %v1355 = vadd.f32 %v1228, %v1340
      %v1356 = vadd.f32 %v1229, %v1343
      %v1357 = vadd.f32 %v1230, %v1345
      %v1358 = vadd.f32 %v1231, %v1348
      %v1359 = vadd.f32 %v1232, %v1350
      %s1360 = scalar_lea.vmem %s7, 320
      %v1361 = vld [vmem:[%s1360] sm:$0xff]
      %v1362 = vld [vmem:[%s1360 + $0x8] sm:$0xff]
      %v1363 = vld [vmem:[%s1360 + $0x10] sm:$0xff]
      %v1364 = vld [vmem:[%s1360 + $0x18] sm:$0xff]
      %v1365 = vld [vmem:[%s1360 + $0x20] sm:$0xff]
      %v1366 = vld [vmem:[%s1360 + $0x28] sm:$0xff]
      %v1367 = vld [vmem:[%s1360 + $0x30] sm:$0xff]
      %v1368 = vld [vmem:[%s1360 + $0x38] sm:$0xff]
      %1370 = vset.pattern.permute.xlu0 0
      %1371 = vperm.xlu0 %1370, %v1361
      %v1372 = vpop.permute.xlu0 %1371
      %1375 = vset.pattern.permute.xlu0 0
      %1376 = vperm.xlu0 %1375, %v1362
      %v1377 = vpop.permute.xlu0 %1376
      %1380 = vset.pattern.permute.xlu0 0
      %1381 = vperm.xlu0 %1380, %v1363
      %v1382 = vpop.permute.xlu0 %1381
      %1385 = vset.pattern.permute.xlu0 0
      %1386 = vperm.xlu0 %1385, %v1364
      %v1387 = vpop.permute.xlu0 %1386
      %1390 = vset.pattern.permute.xlu0 0
      %1391 = vperm.xlu0 %1390, %v1365
      %v1392 = vpop.permute.xlu0 %1391
      %1395 = vset.pattern.permute.xlu0 0
      %1396 = vperm.xlu0 %1395, %v1366
      %v1397 = vpop.permute.xlu0 %1396
      %1400 = vset.pattern.permute.xlu0 0
      %1401 = vperm.xlu0 %1400, %v1367
      %v1402 = vpop.permute.xlu0 %1401
      %1405 = vset.pattern.permute.xlu0 0
      %1406 = vperm.xlu0 %1405, %v1368
      %v1407 = vpop.permute.xlu0 %1406
      %v1409 = vmul.f32 %v977, %v1372
      %v1410 = vmul.f32 %v976, %v1377
      %v1411 = vmul.f32 %v975, %v1382
      %v1412 = vmul.f32 %v974, %v1387
      %v1413 = vmul.f32 %v973, %v1392
      %v1414 = vmul.f32 %v972, %v1397
      %v1415 = vmul.f32 %v971, %v1402
      %v1416 = vmul.f32 %v978, %v1407
      %v1417 = vpack.c.bf16 %v1410, %v1409
      %v1418 = vpack.c.bf16 %v1412, %v1411
      %v1419 = vpack.c.bf16 %v1414, %v1413
      %v1420 = vpack.c.bf16 %v1416, %v1415
      %s1421 = scalar_lea.vmem %s4, 80
      %v1422 = vld [vmem:[%s1421] sm:$0xf]
      %v1423 = vld [vmem:[%s1421 + $0x4] sm:$0xf]
      %v1424 = vld [vmem:[%s1421 + $0x8] sm:$0xf]
      %v1425 = vld [vmem:[%s1421 + $0xc] sm:$0xf]
      %v1430 = vunpack.c.l.b16 %v1422
      %v1431 = vunpack.c.l.b16 %v1423
      %v1432 = vunpack.c.l.b16 %v1424
      %v1433 = vunpack.c.l.b16 %v1425
      %v1434 = vpack.c.b16 %v1431, %v1430
      %v1435 = vpack.c.b16 %v1433, %v1432
      %v1439 = vsel %vm397, %v1417, 0
      %v1442 = vsel %vm397, %v1418, 0
      %v1445 = vsel %vm397, %v1419, 0
      %v1448 = vsel %vm397, %v1420, 0
      %1450 = vmatpush.bf16.msra.mxu0 0
      %1451 = vmatpush.bf16.msra.mxu0 0
      %1452 = vmatpush.bf16.msra.mxu0 0
      %1453 = vmatpush.bf16.msra.mxu0 0
      %1454 = vmatpush.bf16.msra.mxu0 0
      %1455 = vmatpush.bf16.msra.mxu0 0
      %1456 = vmatpush.bf16.msra.mxu0 %v1435
      %1457 = vmatpush.bf16.msra.mxu0 %v1434
      %1458 = vmatmul.bf16.gmra.mxu0 %v1439
      %v1459 = vpop.f32.mrf.mxu0
      %v1460 = vadd.f32 0.0, %v1459
      %v1461 = vpop.f32.mrf.mxu0
      %v1462 = vadd.f32 0.0, %v1461
      %1463 = vmatmul.bf16.gmra.mxu0 %v1442
      %v1464 = vpop.f32.mrf.mxu0
      %v1465 = vadd.f32 0.0, %v1464
      %v1466 = vpop.f32.mrf.mxu0
      %v1467 = vadd.f32 0.0, %v1466
      %1468 = vmatmul.bf16.gmra.mxu0 %v1445
      %v1469 = vpop.f32.mrf.mxu0
      %v1470 = vadd.f32 0.0, %v1469
      %v1471 = vpop.f32.mrf.mxu0
      %v1472 = vadd.f32 0.0, %v1471
      %1473 = vmatmul.bf16.gmra.mxu0 %v1448
      %v1474 = vpop.f32.mrf.mxu0
      %v1475 = vadd.f32 0.0, %v1474
      %v1476 = vpop.f32.mrf.mxu0
      %v1477 = vadd.f32 0.0, %v1476
      %1478 = vdwg.mxu0
      %v1479 = vadd.f32 %v1352, %v1460
      %v1480 = vadd.f32 %v1353, %v1462
      %v1481 = vadd.f32 %v1354, %v1465
      %v1482 = vadd.f32 %v1355, %v1467
      %v1483 = vadd.f32 %v1356, %v1470
      %v1484 = vadd.f32 %v1357, %v1472
      %v1485 = vadd.f32 %v1358, %v1475
      %v1486 = vadd.f32 %v1359, %v1477
      %s1487 = scalar_lea.vmem %s7, 384
      %v1488 = vld [vmem:[%s1487] sm:$0xff]
      %v1489 = vld [vmem:[%s1487 + $0x8] sm:$0xff]
      %v1490 = vld [vmem:[%s1487 + $0x10] sm:$0xff]
      %v1491 = vld [vmem:[%s1487 + $0x18] sm:$0xff]
      %v1492 = vld [vmem:[%s1487 + $0x20] sm:$0xff]
      %v1493 = vld [vmem:[%s1487 + $0x28] sm:$0xff]
      %v1494 = vld [vmem:[%s1487 + $0x30] sm:$0xff]
      %v1495 = vld [vmem:[%s1487 + $0x38] sm:$0xff]
      %1497 = vset.pattern.permute.xlu0 0
      %1498 = vperm.xlu0 %1497, %v1488
      %v1499 = vpop.permute.xlu0 %1498
      %1502 = vset.pattern.permute.xlu0 0
      %1503 = vperm.xlu0 %1502, %v1489
      %v1504 = vpop.permute.xlu0 %1503
      %1507 = vset.pattern.permute.xlu0 0
      %1508 = vperm.xlu0 %1507, %v1490
      %v1509 = vpop.permute.xlu0 %1508
      %1512 = vset.pattern.permute.xlu0 0
      %1513 = vperm.xlu0 %1512, %v1491
      %v1514 = vpop.permute.xlu0 %1513
      %1517 = vset.pattern.permute.xlu0 0
      %1518 = vperm.xlu0 %1517, %v1492
      %v1519 = vpop.permute.xlu0 %1518
      %1522 = vset.pattern.permute.xlu0 0
      %1523 = vperm.xlu0 %1522, %v1493
      %v1524 = vpop.permute.xlu0 %1523
      %1527 = vset.pattern.permute.xlu0 0
      %1528 = vperm.xlu0 %1527, %v1494
      %v1529 = vpop.permute.xlu0 %1528
      %1532 = vset.pattern.permute.xlu0 0
      %1533 = vperm.xlu0 %1532, %v1495
      %v1534 = vpop.permute.xlu0 %1533
      %v1536 = vmul.f32 %v724, %v1499
      %v1537 = vmul.f32 %v723, %v1504
      %v1538 = vmul.f32 %v722, %v1509
      %v1539 = vmul.f32 %v721, %v1514
      %v1540 = vmul.f32 %v720, %v1519
      %v1541 = vmul.f32 %v719, %v1524
      %v1542 = vmul.f32 %v718, %v1529
      %v1543 = vmul.f32 %v725, %v1534
      %v1544 = vpack.c.bf16 %v1537, %v1536
      %v1545 = vpack.c.bf16 %v1539, %v1538
      %v1546 = vpack.c.bf16 %v1541, %v1540
      %v1547 = vpack.c.bf16 %v1543, %v1542
      %s1548 = scalar_lea.vmem %s4, 96
      %v1549 = vld [vmem:[%s1548] sm:$0xf]
      %v1550 = vld [vmem:[%s1548 + $0x4] sm:$0xf]
      %v1551 = vld [vmem:[%s1548 + $0x8] sm:$0xf]
      %v1552 = vld [vmem:[%s1548 + $0xc] sm:$0xf]
      %v1557 = vunpack.c.l.b16 %v1549
      %v1558 = vunpack.c.l.b16 %v1550
      %v1559 = vunpack.c.l.b16 %v1551
      %v1560 = vunpack.c.l.b16 %v1552
      %v1561 = vpack.c.b16 %v1558, %v1557
      %v1562 = vpack.c.b16 %v1560, %v1559
      %v1566 = vsel %vm397, %v1544, 0
      %v1569 = vsel %vm397, %v1545, 0
      %v1572 = vsel %vm397, %v1546, 0
      %v1575 = vsel %vm397, %v1547, 0
      %1577 = vmatpush.bf16.msra.mxu0 0
      %1578 = vmatpush.bf16.msra.mxu0 0
      %1579 = vmatpush.bf16.msra.mxu0 0
      %1580 = vmatpush.bf16.msra.mxu0 0
      %1581 = vmatpush.bf16.msra.mxu0 0
      %1582 = vmatpush.bf16.msra.mxu0 0
      %1583 = vmatpush.bf16.msra.mxu0 %v1562
      %1584 = vmatpush.bf16.msra.mxu0 %v1561
      %1585 = vmatmul.bf16.gmra.mxu0 %v1566
      %v1586 = vpop.f32.mrf.mxu0
      %v1587 = vadd.f32 0.0, %v1586
      %v1588 = vpop.f32.mrf.mxu0
      %v1589 = vadd.f32 0.0, %v1588
      %1590 = vmatmul.bf16.gmra.mxu0 %v1569
      %v1591 = vpop.f32.mrf.mxu0
      %v1592 = vadd.f32 0.0, %v1591
      %v1593 = vpop.f32.mrf.mxu0
      %v1594 = vadd.f32 0.0, %v1593
      %1595 = vmatmul.bf16.gmra.mxu0 %v1572
      %v1596 = vpop.f32.mrf.mxu0
      %v1597 = vadd.f32 0.0, %v1596
      %v1598 = vpop.f32.mrf.mxu0
      %v1599 = vadd.f32 0.0, %v1598
      %1600 = vmatmul.bf16.gmra.mxu0 %v1575
      %v1601 = vpop.f32.mrf.mxu0
      %v1602 = vadd.f32 0.0, %v1601
      %v1603 = vpop.f32.mrf.mxu0
      %v1604 = vadd.f32 0.0, %v1603
      %1605 = vdwg.mxu0
      %v1606 = vadd.f32 %v1479, %v1587
      %v1607 = vadd.f32 %v1480, %v1589
      %v1608 = vadd.f32 %v1481, %v1592
      %v1609 = vadd.f32 %v1482, %v1594
      %v1610 = vadd.f32 %v1483, %v1597
      %v1611 = vadd.f32 %v1484, %v1599
      %v1612 = vadd.f32 %v1485, %v1602
      %v1613 = vadd.f32 %v1486, %v1604
      %s1614 = scalar_lea.vmem %s7, 448
      %v1615 = vld [vmem:[%s1614] sm:$0xff]
      %v1616 = vld [vmem:[%s1614 + $0x8] sm:$0xff]
      %v1617 = vld [vmem:[%s1614 + $0x10] sm:$0xff]
      %v1618 = vld [vmem:[%s1614 + $0x18] sm:$0xff]
      %v1619 = vld [vmem:[%s1614 + $0x20] sm:$0xff]
      %v1620 = vld [vmem:[%s1614 + $0x28] sm:$0xff]
      %v1621 = vld [vmem:[%s1614 + $0x30] sm:$0xff]
      %v1622 = vld [vmem:[%s1614 + $0x38] sm:$0xff]
      %1624 = vset.pattern.permute.xlu0 0
      %1625 = vperm.xlu0 %1624, %v1615
      %v1626 = vpop.permute.xlu0 %1625
      %1629 = vset.pattern.permute.xlu0 0
      %1630 = vperm.xlu0 %1629, %v1616
      %v1631 = vpop.permute.xlu0 %1630
      %1634 = vset.pattern.permute.xlu0 0
      %1635 = vperm.xlu0 %1634, %v1617
      %v1636 = vpop.permute.xlu0 %1635
      %1639 = vset.pattern.permute.xlu0 0
      %1640 = vperm.xlu0 %1639, %v1618
      %v1641 = vpop.permute.xlu0 %1640
      %1644 = vset.pattern.permute.xlu0 0
      %1645 = vperm.xlu0 %1644, %v1619
      %v1646 = vpop.permute.xlu0 %1645
      %1649 = vset.pattern.permute.xlu0 0
      %1650 = vperm.xlu0 %1649, %v1620
      %v1651 = vpop.permute.xlu0 %1650
      %1654 = vset.pattern.permute.xlu0 0
      %1655 = vperm.xlu0 %1654, %v1621
      %v1656 = vpop.permute.xlu0 %1655
      %1659 = vset.pattern.permute.xlu0 0
      %1660 = vperm.xlu0 %1659, %v1622
      %v1661 = vpop.permute.xlu0 %1660
      %v1663 = vmul.f32 %v700, %v1626
      %v1664 = vmul.f32 %v701, %v1631
      %v1665 = vmul.f32 %v702, %v1636
      %v1666 = vmul.f32 %v703, %v1641
      %v1667 = vmul.f32 %v704, %v1646
      %v1668 = vmul.f32 %v705, %v1651
      %v1669 = vmul.f32 %v706, %v1656
      %v1670 = vmul.f32 %v699, %v1661
      %v1671 = vpack.c.bf16 %v1664, %v1663
      %v1672 = vpack.c.bf16 %v1666, %v1665
      %v1673 = vpack.c.bf16 %v1668, %v1667
      %v1674 = vpack.c.bf16 %v1670, %v1669
      %s1675 = scalar_lea.vmem %s4, 112
      %v1676 = vld [vmem:[%s1675] sm:$0xf]
      %v1677 = vld [vmem:[%s1675 + $0x4] sm:$0xf]
      %v1678 = vld [vmem:[%s1675 + $0x8] sm:$0xf]
      %v1679 = vld [vmem:[%s1675 + $0xc] sm:$0xf]
      %v1684 = vunpack.c.l.b16 %v1676
      %v1685 = vunpack.c.l.b16 %v1677
      %v1686 = vunpack.c.l.b16 %v1678
      %v1687 = vunpack.c.l.b16 %v1679
      %v1688 = vpack.c.b16 %v1685, %v1684
      %v1689 = vpack.c.b16 %v1687, %v1686
      %v1693 = vsel %vm397, %v1671, 0
      %v1696 = vsel %vm397, %v1672, 0
      %v1699 = vsel %vm397, %v1673, 0
      %v1702 = vsel %vm397, %v1674, 0
      %1704 = vmatpush.bf16.msra.mxu0 0
      %1705 = vmatpush.bf16.msra.mxu0 0
      %1706 = vmatpush.bf16.msra.mxu0 0
      %1707 = vmatpush.bf16.msra.mxu0 0
      %1708 = vmatpush.bf16.msra.mxu0 0
      %1709 = vmatpush.bf16.msra.mxu0 0
      %1710 = vmatpush.bf16.msra.mxu0 %v1689
      %1711 = vmatpush.bf16.msra.mxu0 %v1688
      %1712 = vmatmul.bf16.gmra.mxu0 %v1693
      %v1713 = vpop.f32.mrf.mxu0
      %v1714 = vadd.f32 0.0, %v1713
      %v1715 = vpop.f32.mrf.mxu0
      %v1716 = vadd.f32 0.0, %v1715
      %1717 = vmatmul.bf16.gmra.mxu0 %v1696
      %v1718 = vpop.f32.mrf.mxu0
      %v1719 = vadd.f32 0.0, %v1718
      %v1720 = vpop.f32.mrf.mxu0
      %v1721 = vadd.f32 0.0, %v1720
      %1722 = vmatmul.bf16.gmra.mxu0 %v1699
      %v1723 = vpop.f32.mrf.mxu0
      %v1724 = vadd.f32 0.0, %v1723
      %v1725 = vpop.f32.mrf.mxu0
      %v1726 = vadd.f32 0.0, %v1725
      %1727 = vmatmul.bf16.gmra.mxu0 %v1702
      %v1728 = vpop.f32.mrf.mxu0
      %v1729 = vadd.f32 0.0, %v1728
      %v1730 = vpop.f32.mrf.mxu0
      %v1731 = vadd.f32 0.0, %v1730
      %1732 = vdwg.mxu0
      %v1733 = vadd.f32 %v1606, %v1714
      %v1734 = vadd.f32 %v1607, %v1716
      %v1735 = vadd.f32 %v1608, %v1719
      %v1736 = vadd.f32 %v1609, %v1721
      %v1737 = vadd.f32 %v1610, %v1724
      %v1738 = vadd.f32 %v1611, %v1726
      %v1739 = vadd.f32 %v1612, %v1729
      %v1740 = vadd.f32 %v1613, %v1731
      %s1741 = scalar_lea.vmem %s7, 512
      %v1742 = vld [vmem:[%s1741] sm:$0xff]
      %v1743 = vld [vmem:[%s1741 + $0x8] sm:$0xff]
      %v1744 = vld [vmem:[%s1741 + $0x10] sm:$0xff]
      %v1745 = vld [vmem:[%s1741 + $0x18] sm:$0xff]
      %v1746 = vld [vmem:[%s1741 + $0x20] sm:$0xff]
      %v1747 = vld [vmem:[%s1741 + $0x28] sm:$0xff]
      %v1748 = vld [vmem:[%s1741 + $0x30] sm:$0xff]
      %v1749 = vld [vmem:[%s1741 + $0x38] sm:$0xff]
      %1751 = vset.pattern.permute.xlu0 0
      %1752 = vperm.xlu0 %1751, %v1742
      %v1753 = vpop.permute.xlu0 %1752
      %1756 = vset.pattern.permute.xlu0 0
      %1757 = vperm.xlu0 %1756, %v1743
      %v1758 = vpop.permute.xlu0 %1757
      %1761 = vset.pattern.permute.xlu0 0
      %1762 = vperm.xlu0 %1761, %v1744
      %v1763 = vpop.permute.xlu0 %1762
      %1766 = vset.pattern.permute.xlu0 0
      %1767 = vperm.xlu0 %1766, %v1745
      %v1768 = vpop.permute.xlu0 %1767
      %1771 = vset.pattern.permute.xlu0 0
      %1772 = vperm.xlu0 %1771, %v1746
      %v1773 = vpop.permute.xlu0 %1772
      %1776 = vset.pattern.permute.xlu0 0
      %1777 = vperm.xlu0 %1776, %v1747
      %v1778 = vpop.permute.xlu0 %1777
      %1781 = vset.pattern.permute.xlu0 0
      %1782 = vperm.xlu0 %1781, %v1748
      %v1783 = vpop.permute.xlu0 %1782
      %1786 = vset.pattern.permute.xlu0 0
      %1787 = vperm.xlu0 %1786, %v1749
      %v1788 = vpop.permute.xlu0 %1787
      %v1790 = vmul.f32 %v976, %v1753
      %v1791 = vmul.f32 %v975, %v1758
      %v1792 = vmul.f32 %v974, %v1763
      %v1793 = vmul.f32 %v973, %v1768
      %v1794 = vmul.f32 %v972, %v1773
      %v1795 = vmul.f32 %v971, %v1778
      %v1796 = vmul.f32 %v978, %v1783
      %v1797 = vmul.f32 %v977, %v1788
      %v1798 = vpack.c.bf16 %v1791, %v1790
      %v1799 = vpack.c.bf16 %v1793, %v1792
      %v1800 = vpack.c.bf16 %v1795, %v1794
      %v1801 = vpack.c.bf16 %v1797, %v1796
      %s1802 = scalar_lea.vmem %s4, 128
      %v1803 = vld [vmem:[%s1802] sm:$0xf]
      %v1804 = vld [vmem:[%s1802 + $0x4] sm:$0xf]
      %v1805 = vld [vmem:[%s1802 + $0x8] sm:$0xf]
      %v1806 = vld [vmem:[%s1802 + $0xc] sm:$0xf]
      %v1811 = vunpack.c.l.b16 %v1803
      %v1812 = vunpack.c.l.b16 %v1804
      %v1813 = vunpack.c.l.b16 %v1805
      %v1814 = vunpack.c.l.b16 %v1806
      %v1815 = vpack.c.b16 %v1812, %v1811
      %v1816 = vpack.c.b16 %v1814, %v1813
      %v1820 = vsel %vm397, %v1798, 0
      %v1823 = vsel %vm397, %v1799, 0
      %v1826 = vsel %vm397, %v1800, 0
      %v1829 = vsel %vm397, %v1801, 0
      %1831 = vmatpush.bf16.msra.mxu0 0
      %1832 = vmatpush.bf16.msra.mxu0 0
      %1833 = vmatpush.bf16.msra.mxu0 0
      %1834 = vmatpush.bf16.msra.mxu0 0
      %1835 = vmatpush.bf16.msra.mxu0 0
      %1836 = vmatpush.bf16.msra.mxu0 0
      %1837 = vmatpush.bf16.msra.mxu0 %v1816
      %1838 = vmatpush.bf16.msra.mxu0 %v1815
      %1839 = vmatmul.bf16.gmra.mxu0 %v1820
      %v1840 = vpop.f32.mrf.mxu0
      %v1841 = vadd.f32 0.0, %v1840
      %v1842 = vpop.f32.mrf.mxu0
      %v1843 = vadd.f32 0.0, %v1842
      %1844 = vmatmul.bf16.gmra.mxu0 %v1823
      %v1845 = vpop.f32.mrf.mxu0
      %v1846 = vadd.f32 0.0, %v1845
      %v1847 = vpop.f32.mrf.mxu0
      %v1848 = vadd.f32 0.0, %v1847
      %1849 = vmatmul.bf16.gmra.mxu0 %v1826
      %v1850 = vpop.f32.mrf.mxu0
      %v1851 = vadd.f32 0.0, %v1850
      %v1852 = vpop.f32.mrf.mxu0
      %v1853 = vadd.f32 0.0, %v1852
      %1854 = vmatmul.bf16.gmra.mxu0 %v1829
      %v1855 = vpop.f32.mrf.mxu0
      %v1856 = vadd.f32 0.0, %v1855
      %v1857 = vpop.f32.mrf.mxu0
      %v1858 = vadd.f32 0.0, %v1857
      %1859 = vdwg.mxu0
      %v1860 = vadd.f32 %v1733, %v1841
      %v1861 = vadd.f32 %v1734, %v1843
      %v1862 = vadd.f32 %v1735, %v1846
      %v1863 = vadd.f32 %v1736, %v1848
      %v1864 = vadd.f32 %v1737, %v1851
      %v1865 = vadd.f32 %v1738, %v1853
      %v1866 = vadd.f32 %v1739, %v1856
      %v1867 = vadd.f32 %v1740, %v1858
      %v1868 = vperm.slane %v389, 2
      %v1869 = vadd.f32 %v1860, %v1868
      %v1870 = vadd.f32 %v1861, %v1868
      %v1871 = vadd.f32 %v1862, %v1868
      %v1872 = vadd.f32 %v1863, %v1868
      %v1873 = vadd.f32 %v1864, %v1868
      %v1874 = vadd.f32 %v1865, %v1868
      %v1875 = vadd.f32 %v1866, %v1868
      %v1876 = vadd.f32 %v1867, %v1868
      %v1877 = vperm.slane %v396, 0
      %v1878 = vadd.f32 %v1869, %v1877
      %v1879 = vadd.f32 %v1870, %v1877
      %v1880 = vadd.f32 %v1871, %v1877
      %v1881 = vadd.f32 %v1872, %v1877
      %v1882 = vadd.f32 %v1873, %v1877
      %v1883 = vadd.f32 %v1874, %v1877
      %v1884 = vadd.f32 %v1875, %v1877
      %v1885 = vadd.f32 %v1876, %v1877
      %v1886 = vsel %vm397, %v1878, 0.0
      %v1887 = vsel %vm397, %v1879, 0.0
      %v1888 = vadd.f32 %v1886, %v1887
      %v1889 = vsel %vm397, %v1880, 0.0
      %v1890 = vadd.f32 %v1888, %v1889
      %v1891 = vsel %vm397, %v1881, 0.0
      %v1892 = vadd.f32 %v1890, %v1891
      %v1893 = vsel %vm397, %v1882, 0.0
      %v1894 = vadd.f32 %v1892, %v1893
      %v1895 = vsel %vm397, %v1883, 0.0
      %v1896 = vadd.f32 %v1894, %v1895
      %v1897 = vsel %vm397, %v1884, 0.0
      %v1898 = vadd.f32 %v1896, %v1897
      %v1899 = vsel %vm397, %v1885, 0.0
      %v1900 = vadd.f32 %v1898, %v1899
      %v1901 = vrot.slane %v1900, 4
      %v1902 = vadd.f32 %v1900, %v1901
      %v1903 = vrot.slane %v1902, 2
      %v1904 = vadd.f32 %v1902, %v1903
      %v1905 = vrot.slane %v1904, 1
      %v1906 = vadd.f32 %v1904, %v1905
      %v1907 = vmul.f32 %v1878, %v1878
      %v1908 = vmul.f32 %v1879, %v1879
      %v1909 = vmul.f32 %v1880, %v1880
      %v1910 = vmul.f32 %v1881, %v1881
      %v1911 = vmul.f32 %v1882, %v1882
      %v1912 = vmul.f32 %v1883, %v1883
      %v1913 = vmul.f32 %v1884, %v1884
      %v1914 = vmul.f32 %v1885, %v1885
      %v1915 = vsel %vm397, %v1907, 0.0
      %v1916 = vsel %vm397, %v1908, 0.0
      %v1917 = vadd.f32 %v1915, %v1916
      %v1918 = vsel %vm397, %v1909, 0.0
      %v1919 = vadd.f32 %v1917, %v1918
      %v1920 = vsel %vm397, %v1910, 0.0
      %v1921 = vadd.f32 %v1919, %v1920
      %v1922 = vsel %vm397, %v1911, 0.0
      %v1923 = vadd.f32 %v1921, %v1922
      %v1924 = vsel %vm397, %v1912, 0.0
      %v1925 = vadd.f32 %v1923, %v1924
      %v1926 = vsel %vm397, %v1913, 0.0
      %v1927 = vadd.f32 %v1925, %v1926
      %v1928 = vsel %vm397, %v1914, 0.0
      %v1929 = vadd.f32 %v1927, %v1928
      %v1930 = vrot.slane %v1929, 4
      %v1931 = vadd.f32 %v1929, %v1930
      %v1932 = vrot.slane %v1931, 2
      %v1933 = vadd.f32 %v1931, %v1932
      %v1934 = vrot.slane %v1933, 1
      %v1935 = vadd.f32 %v1933, %v1934
      %v1936 = vsel %vm448, %v1906, %v1935
      %v1938 = vsel %vm397, %v1936, 0
      %1940 = vmatpush.msra.mxu0 0.0
      %1941 = vmatpush.msra.mxu0 0.0
      %1942 = vmatpush.msra.mxu0 0.0
      %1943 = vmatpush.msra.mxu0 0.0
      %1944 = vmatpush.msra.mxu0 0.0
      %1945 = vmatpush.msra.mxu0 0.0
      %1946 = vmatpush.msra.mxu0 0.0
      %1947 = vmatpush.msra.mxu0 0.0
      %1948 = vmatpush.msra.mxu0 0.0
      %1949 = vmatpush.msra.mxu0 0.0
      %1950 = vmatpush.msra.mxu0 0.0
      %1951 = vmatpush.msra.mxu0 0.0
      %1952 = vmatpush.msra.mxu0 %v394
      %1953 = vmatpush.msra.mxu0 %v393
      %1954 = vmatpush.msra.mxu0 %v392
      %1955 = vmatpush.msra.mxu0 %v391
      %1956 = vmatmul.f32.gmra.mxu0 %v1938
      %v1957 = vpop.f32.mrf.mxu0
      %v1958 = vadd.f32 0.0, %v1957
      %1959 = vdwg.mxu0
      %v1960 = vmul.f32 %v1958, 0.00390625
      %v1961 = vmul.f32 %v1960, %v1960
      %v1963 = vrot.slane %v1961, 7
      %v1965 = vsub.f32 %v1960, %v1963
      %v1966 = vmax.f32 %v1965, 0.0
      %v1967 = vadd.f32 %v1966, 1e-06
      %v1968 = vrsqrt.pop %v1967
      %v1969 = vmul.f32 %v1968, %v1967
      %v1970 = vmul.f32 %v1969, %v1968
      %v1971 = vmul.f32 0.5, %v1970
      %v1972 = vsub.f32 1.5, %v1971
      %v1973 = vmul.f32 %v1968, %v1972
      %vm1974 = vweird.f32 %v1967
      %vm1975 = vweird.f32 %v1968
      %vm1976 = vmor %vm1974, %vm1975
      %v1977 = vsel %vm1976, %v1968, %v1973
      %v1979 = vrot.slane %v1977, 1
      %v1981 = vmul.f32 %v1960, %v1979
      %v1983 = vrot.slane %v1981, 7
      %v1985 = vsel %vm448, %v1979, %v1983
      %v1987 = vsel %vm499, %v1985, 0
      %1989 = vmatpush.msra.mxu0 0.0
      %1990 = vmatpush.msra.mxu0 0.0
      %1991 = vmatpush.msra.mxu0 0.0
      %1992 = vmatpush.msra.mxu0 0.0
      %1993 = vmatpush.msra.mxu0 0.0
      %1994 = vmatpush.msra.mxu0 0.0
      %1995 = vmatpush.msra.mxu0 0.0
      %1996 = vmatpush.msra.mxu0 0.0
      %1997 = vmatpush.msra.mxu0 0.0
      %1998 = vmatpush.msra.mxu0 0.0
      %1999 = vmatpush.msra.mxu0 0.0
      %2000 = vmatpush.msra.mxu0 0.0
      %2001 = vmatpush.msra.mxu0 0.0
      %2002 = vmatpush.msra.mxu0 0.0
      %2003 = vmatpush.msra.mxu0 0.0
      %2004 = vmatpush.msra.mxu0 %v395
      %2005 = vmatmul.f32.gmra.mxu0 %v1987
      %v2006 = vpop.f32.mrf.mxu0
      %v2007 = vadd.f32 0.0, %v2006
      %2008 = vdwg.mxu0
      %v2009 = vrot.slane %v389, 3
      %v2011 = vmul.f32 %v2007, %v2009
      %v2012 = vrot.slane %v389, 2
      %v2014 = vmul.f32 %v2007, %v2012
      %v2016 = vrot.slane %v2014, 5
      %v2018 = vsub.f32 %v389, %v2016
      %v2019 = vperm.slane %v2011, 0
      %v2020 = vmul.f32 %v1878, %v2019
      %v2021 = vmul.f32 %v1879, %v2019
      %v2022 = vmul.f32 %v1880, %v2019
      %v2023 = vmul.f32 %v1881, %v2019
      %v2024 = vmul.f32 %v1882, %v2019
      %v2025 = vmul.f32 %v1883, %v2019
      %v2026 = vmul.f32 %v1884, %v2019
      %v2027 = vmul.f32 %v1885, %v2019
      %v2028 = vperm.slane %v2018, 4
      %v2029 = vadd.f32 %v2020, %v2028
      %v2030 = vadd.f32 %v2021, %v2028
      %v2031 = vadd.f32 %v2022, %v2028
      %v2032 = vadd.f32 %v2023, %v2028
      %v2033 = vadd.f32 %v2024, %v2028
      %v2034 = vadd.f32 %v2025, %v2028
      %v2035 = vadd.f32 %v2026, %v2028
      %v2036 = vadd.f32 %v2027, %v2028
      %v2037 = vxor.u32 %v2029, 2147483648
      %v2038 = vxor.u32 %v2030, 2147483648
      %v2039 = vxor.u32 %v2031, 2147483648
      %v2040 = vxor.u32 %v2032, 2147483648
      %v2041 = vxor.u32 %v2033, 2147483648
      %v2042 = vxor.u32 %v2034, 2147483648
      %v2043 = vxor.u32 %v2035, 2147483648
      %v2044 = vxor.u32 %v2036, 2147483648
      %v2045 = vmul.f32 %v2037, 1.442695
      %v2046 = vpow.pop %v2045
      %v2047 = vmul.f32 %v2038, 1.442695
      %v2048 = vpow.pop %v2047
      %v2049 = vmul.f32 %v2039, 1.442695
      %v2050 = vpow.pop %v2049
      %v2051 = vmul.f32 %v2040, 1.442695
      %v2052 = vpow.pop %v2051
      %v2053 = vmul.f32 %v2041, 1.442695
      %v2054 = vpow.pop %v2053
      %v2055 = vmul.f32 %v2042, 1.442695
      %v2056 = vpow.pop %v2055
      %v2057 = vmul.f32 %v2043, 1.442695
      %v2058 = vpow.pop %v2057
      %v2059 = vmul.f32 %v2044, 1.442695
      %v2060 = vpow.pop %v2059
      %v2061 = vadd.f32 %v2046, 1.0
      %v2062 = vadd.f32 %v2048, 1.0
      %v2063 = vadd.f32 %v2050, 1.0
      %v2064 = vadd.f32 %v2052, 1.0
      %v2065 = vadd.f32 %v2054, 1.0
      %v2066 = vadd.f32 %v2056, 1.0
      %v2067 = vadd.f32 %v2058, 1.0
      %v2068 = vadd.f32 %v2060, 1.0
      %v2069 = vrcp.pop %v2061
      %v2070 = vmul.f32 %v2061, %v2069
      %v2071 = vsub.f32 1.0, %v2070
      %v2072 = vmul.f32 %v2069, %v2071
      %v2073 = vadd.f32 %v2069, %v2072
      %vm2074 = vweird.f32 %v2061
      %vm2075 = vweird.f32 %v2069
      %vm2076 = vmor %vm2074, %vm2075
      %v2077 = vsel %vm2076, %v2069, %v2073
      %v2078 = vand.u32 2147483647, %v2061
      %vm2079 = vcmp.eq.f32.partialorder %v2078, 8.507059e+37
      %v2080 = vand.u32 %v2061, 2147483648
      %v2081 = vor.u32 1.1754944e-38, %v2080
      %v2082 = vsel %vm2079, %v2081, %v2077
      %v2083 = vmul.f32 1.0, %v2082
      %v2084 = vrcp.pop %v2062
      %v2085 = vmul.f32 %v2062, %v2084
      %v2086 = vsub.f32 1.0, %v2085
      %v2087 = vmul.f32 %v2084, %v2086
      %v2088 = vadd.f32 %v2084, %v2087
      %vm2089 = vweird.f32 %v2062
      %vm2090 = vweird.f32 %v2084
      %vm2091 = vmor %vm2089, %vm2090
      %v2092 = vsel %vm2091, %v2084, %v2088
      %v2093 = vand.u32 2147483647, %v2062
      %vm2094 = vcmp.eq.f32.partialorder %v2093, 8.507059e+37
      %v2095 = vand.u32 %v2062, 2147483648
      %v2096 = vor.u32 1.1754944e-38, %v2095
      %v2097 = vsel %vm2094, %v2096, %v2092
      %v2098 = vmul.f32 1.0, %v2097
      %v2099 = vrcp.pop %v2063
      %v2100 = vmul.f32 %v2063, %v2099
      %v2101 = vsub.f32 1.0, %v2100
      %v2102 = vmul.f32 %v2099, %v2101
      %v2103 = vadd.f32 %v2099, %v2102
      %vm2104 = vweird.f32 %v2063
      %vm2105 = vweird.f32 %v2099
      %vm2106 = vmor %vm2104, %vm2105
      %v2107 = vsel %vm2106, %v2099, %v2103
      %v2108 = vand.u32 2147483647, %v2063
      %vm2109 = vcmp.eq.f32.partialorder %v2108, 8.507059e+37
      %v2110 = vand.u32 %v2063, 2147483648
      %v2111 = vor.u32 1.1754944e-38, %v2110
      %v2112 = vsel %vm2109, %v2111, %v2107
      %v2113 = vmul.f32 1.0, %v2112
      %v2114 = vrcp.pop %v2064
      %v2115 = vmul.f32 %v2064, %v2114
      %v2116 = vsub.f32 1.0, %v2115
      %v2117 = vmul.f32 %v2114, %v2116
      %v2118 = vadd.f32 %v2114, %v2117
      %vm2119 = vweird.f32 %v2064
      %vm2120 = vweird.f32 %v2114
      %vm2121 = vmor %vm2119, %vm2120
      %v2122 = vsel %vm2121, %v2114, %v2118
      %v2123 = vand.u32 2147483647, %v2064
      %vm2124 = vcmp.eq.f32.partialorder %v2123, 8.507059e+37
      %v2125 = vand.u32 %v2064, 2147483648
      %v2126 = vor.u32 1.1754944e-38, %v2125
      %v2127 = vsel %vm2124, %v2126, %v2122
      %v2128 = vmul.f32 1.0, %v2127
      %v2129 = vrcp.pop %v2065
      %v2130 = vmul.f32 %v2065, %v2129
      %v2131 = vsub.f32 1.0, %v2130
      %v2132 = vmul.f32 %v2129, %v2131
      %v2133 = vadd.f32 %v2129, %v2132
      %vm2134 = vweird.f32 %v2065
      %vm2135 = vweird.f32 %v2129
      %vm2136 = vmor %vm2134, %vm2135
      %v2137 = vsel %vm2136, %v2129, %v2133
      %v2138 = vand.u32 2147483647, %v2065
      %vm2139 = vcmp.eq.f32.partialorder %v2138, 8.507059e+37
      %v2140 = vand.u32 %v2065, 2147483648
      %v2141 = vor.u32 1.1754944e-38, %v2140
      %v2142 = vsel %vm2139, %v2141, %v2137
      %v2143 = vmul.f32 1.0, %v2142
      %v2144 = vrcp.pop %v2066
      %v2145 = vmul.f32 %v2066, %v2144
      %v2146 = vsub.f32 1.0, %v2145
      %v2147 = vmul.f32 %v2144, %v2146
      %v2148 = vadd.f32 %v2144, %v2147
      %vm2149 = vweird.f32 %v2066
      %vm2150 = vweird.f32 %v2144
      %vm2151 = vmor %vm2149, %vm2150
      %v2152 = vsel %vm2151, %v2144, %v2148
      %v2153 = vand.u32 2147483647, %v2066
      %vm2154 = vcmp.eq.f32.partialorder %v2153, 8.507059e+37
      %v2155 = vand.u32 %v2066, 2147483648
      %v2156 = vor.u32 1.1754944e-38, %v2155
      %v2157 = vsel %vm2154, %v2156, %v2152
      %v2158 = vmul.f32 1.0, %v2157
      %v2159 = vrcp.pop %v2067
      %v2160 = vmul.f32 %v2067, %v2159
      %v2161 = vsub.f32 1.0, %v2160
      %v2162 = vmul.f32 %v2159, %v2161
      %v2163 = vadd.f32 %v2159, %v2162
      %vm2164 = vweird.f32 %v2067
      %vm2165 = vweird.f32 %v2159
      %vm2166 = vmor %vm2164, %vm2165
      %v2167 = vsel %vm2166, %v2159, %v2163
      %v2168 = vand.u32 2147483647, %v2067
      %vm2169 = vcmp.eq.f32.partialorder %v2168, 8.507059e+37
      %v2170 = vand.u32 %v2067, 2147483648
      %v2171 = vor.u32 1.1754944e-38, %v2170
      %v2172 = vsel %vm2169, %v2171, %v2167
      %v2173 = vmul.f32 1.0, %v2172
      %v2174 = vrcp.pop %v2068
      %v2175 = vmul.f32 %v2068, %v2174
      %v2176 = vsub.f32 1.0, %v2175
      %v2177 = vmul.f32 %v2174, %v2176
      %v2178 = vadd.f32 %v2174, %v2177
      %vm2179 = vweird.f32 %v2068
      %vm2180 = vweird.f32 %v2174
      %vm2181 = vmor %vm2179, %vm2180
      %v2182 = vsel %vm2181, %v2174, %v2178
      %v2183 = vand.u32 2147483647, %v2068
      %vm2184 = vcmp.eq.f32.partialorder %v2183, 8.507059e+37
      %v2185 = vand.u32 %v2068, 2147483648
      %v2186 = vor.u32 1.1754944e-38, %v2185
      %v2187 = vsel %vm2184, %v2186, %v2182
      %v2188 = vmul.f32 1.0, %v2187
      %v2189 = vmul.f32 %v2029, %v2083
      %v2190 = vmul.f32 %v2030, %v2098
      %v2191 = vmul.f32 %v2031, %v2113
      %v2192 = vmul.f32 %v2032, %v2128
      %v2193 = vmul.f32 %v2033, %v2143
      %v2194 = vmul.f32 %v2034, %v2158
      %v2195 = vmul.f32 %v2035, %v2173
      %v2196 = vmul.f32 %v2036, %v2188
      %v2197 = vrot.slane %v2189, 7
      %v2198 = vrot.slane %v2190, 7
      %v2199 = vrot.slane %v2191, 7
      %v2200 = vrot.slane %v2192, 7
      %v2201 = vrot.slane %v2193, 7
      %v2202 = vrot.slane %v2194, 7
      %v2203 = vrot.slane %v2195, 7
      %v2204 = vrot.slane %v2196, 7
      %v2205 = vsel %vm717, %v2203, %v2204
      %v2206 = vsel %vm717, %v2202, %v2203
      %v2207 = vsel %vm717, %v2201, %v2202
      %v2208 = vsel %vm717, %v2200, %v2201
      %v2209 = vsel %vm717, %v2199, %v2200
      %v2210 = vsel %vm717, %v2198, %v2199
      %v2211 = vsel %vm717, %v2197, %v2198
      %v2212 = vsel %vm717, %v2204, %v2197
      %v2213 = vmul.f32 %v2205, %v737
      %v2214 = vmul.f32 %v2212, %v742
      %v2215 = vmul.f32 %v2211, %v747
      %v2216 = vmul.f32 %v2210, %v752
      %v2217 = vmul.f32 %v2209, %v757
      %v2218 = vmul.f32 %v2208, %v762
      %v2219 = vmul.f32 %v2207, %v767
      %v2220 = vmul.f32 %v2206, %v772
      %v2221 = vpack.c.bf16 %v2214, %v2213
      %v2222 = vpack.c.bf16 %v2216, %v2215
      %v2223 = vpack.c.bf16 %v2218, %v2217
      %v2224 = vpack.c.bf16 %v2220, %v2219
      %s2225 = scalar_lea.vmem %s4, 144
      %v2226 = vld [vmem:[%s2225] sm:$0xf]
      %v2227 = vld [vmem:[%s2225 + $0x4] sm:$0xf]
      %v2228 = vld [vmem:[%s2225 + $0x8] sm:$0xf]
      %v2229 = vld [vmem:[%s2225 + $0xc] sm:$0xf]
      %v2230 = vmul.f32 %v2196, %v802
      %v2231 = vmul.f32 %v2189, %v807
      %v2232 = vmul.f32 %v2190, %v812
      %v2233 = vmul.f32 %v2191, %v817
      %v2234 = vmul.f32 %v2192, %v822
      %v2235 = vmul.f32 %v2193, %v827
      %v2236 = vmul.f32 %v2194, %v832
      %v2237 = vmul.f32 %v2195, %v837
      %v2238 = vpack.c.bf16 %v2231, %v2230
      %v2239 = vpack.c.bf16 %v2233, %v2232
      %v2240 = vpack.c.bf16 %v2235, %v2234
      %v2241 = vpack.c.bf16 %v2237, %v2236
      %s2242 = scalar_lea.vmem %s4, 160
      %v2243 = vld [vmem:[%s2242] sm:$0xf]
      %v2244 = vld [vmem:[%s2242 + $0x4] sm:$0xf]
      %v2245 = vld [vmem:[%s2242 + $0x8] sm:$0xf]
      %v2246 = vld [vmem:[%s2242 + $0xc] sm:$0xf]
      %v2251 = vunpack.c.l.b16 %v2243
      %v2252 = vunpack.c.l.b16 %v2244
      %v2253 = vunpack.c.l.b16 %v2245
      %v2254 = vunpack.c.l.b16 %v2246
      %v2255 = vpack.c.b16 %v2252, %v2251
      %v2256 = vpack.c.b16 %v2254, %v2253
      %v2260 = vsel %vm397, %v2238, 0
      %v2263 = vsel %vm397, %v2239, 0
      %v2266 = vsel %vm397, %v2240, 0
      %v2269 = vsel %vm397, %v2241, 0
      %2271 = vmatpush.bf16.msra.mxu0 0
      %2272 = vmatpush.bf16.msra.mxu0 0
      %2273 = vmatpush.bf16.msra.mxu0 0
      %2274 = vmatpush.bf16.msra.mxu0 0
      %2275 = vmatpush.bf16.msra.mxu0 0
      %2276 = vmatpush.bf16.msra.mxu0 0
      %2277 = vmatpush.bf16.msra.mxu0 %v2256
      %2278 = vmatpush.bf16.msra.mxu0 %v2255
      %2279 = vmatmul.bf16.gmra.mxu0 %v2260
      %v2280 = vpop.f32.mrf.mxu0
      %v2281 = vadd.f32 0.0, %v2280
      %v2282 = vpop.f32.mrf.mxu0
      %v2283 = vadd.f32 0.0, %v2282
      %2284 = vmatmul.bf16.gmra.mxu0 %v2263
      %v2285 = vpop.f32.mrf.mxu0
      %v2286 = vadd.f32 0.0, %v2285
      %v2287 = vpop.f32.mrf.mxu0
      %v2288 = vadd.f32 0.0, %v2287
      %2289 = vmatmul.bf16.gmra.mxu0 %v2266
      %v2290 = vpop.f32.mrf.mxu0
      %v2291 = vadd.f32 0.0, %v2290
      %v2292 = vpop.f32.mrf.mxu0
      %v2293 = vadd.f32 0.0, %v2292
      %2294 = vmatmul.bf16.gmra.mxu0 %v2269
      %v2295 = vpop.f32.mrf.mxu0
      %v2296 = vadd.f32 0.0, %v2295
      %v2297 = vpop.f32.mrf.mxu0
      %v2298 = vadd.f32 0.0, %v2297
      %2299 = vdwg.mxu0
      %v2304 = vunpack.c.l.b16 %v2226
      %v2305 = vunpack.c.l.b16 %v2227
      %v2306 = vunpack.c.l.b16 %v2228
      %v2307 = vunpack.c.l.b16 %v2229
      %v2308 = vpack.c.b16 %v2305, %v2304
      %v2309 = vpack.c.b16 %v2307, %v2306
      %v2313 = vsel %vm397, %v2221, 0
      %v2316 = vsel %vm397, %v2222, 0
      %v2319 = vsel %vm397, %v2223, 0
      %v2322 = vsel %vm397, %v2224, 0
      %2324 = vmatpush.bf16.msra.mxu0 0
      %2325 = vmatpush.bf16.msra.mxu0 0
      %2326 = vmatpush.bf16.msra.mxu0 0
      %2327 = vmatpush.bf16.msra.mxu0 0
      %2328 = vmatpush.bf16.msra.mxu0 0
      %2329 = vmatpush.bf16.msra.mxu0 0
      %2330 = vmatpush.bf16.msra.mxu0 %v2309
      %2331 = vmatpush.bf16.msra.mxu0 %v2308
      %2332 = vmatmul.bf16.gmra.mxu0 %v2313
      %v2333 = vpop.f32.mrf.mxu0
      %v2334 = vadd.f32 %v2281, %v2333
      %v2335 = vpop.f32.mrf.mxu0
      %v2336 = vadd.f32 %v2283, %v2335
      %2337 = vmatmul.bf16.gmra.mxu0 %v2316
      %v2338 = vpop.f32.mrf.mxu0
      %v2339 = vadd.f32 %v2286, %v2338
      %v2340 = vpop.f32.mrf.mxu0
      %v2341 = vadd.f32 %v2288, %v2340
      %2342 = vmatmul.bf16.gmra.mxu0 %v2319
      %v2343 = vpop.f32.mrf.mxu0
      %v2344 = vadd.f32 %v2291, %v2343
      %v2345 = vpop.f32.mrf.mxu0
      %v2346 = vadd.f32 %v2293, %v2345
      %2347 = vmatmul.bf16.gmra.mxu0 %v2322
      %v2348 = vpop.f32.mrf.mxu0
      %v2349 = vadd.f32 %v2296, %v2348
      %v2350 = vpop.f32.mrf.mxu0
      %v2351 = vadd.f32 %v2298, %v2350
      %2352 = vdwg.mxu0
      %v2353 = vrot.slane %v2189, 1
      %v2354 = vrot.slane %v2190, 1
      %v2355 = vrot.slane %v2191, 1
      %v2356 = vrot.slane %v2192, 1
      %v2357 = vrot.slane %v2193, 1
      %v2358 = vrot.slane %v2194, 1
      %v2359 = vrot.slane %v2195, 1
      %v2360 = vrot.slane %v2196, 1
      %v2361 = vsel %vm970, %v2359, %v2360
      %v2362 = vsel %vm970, %v2358, %v2359
      %v2363 = vsel %vm970, %v2357, %v2358
      %v2364 = vsel %vm970, %v2356, %v2357
      %v2365 = vsel %vm970, %v2355, %v2356
      %v2366 = vsel %vm970, %v2354, %v2355
      %v2367 = vsel %vm970, %v2353, %v2354
      %v2368 = vsel %vm970, %v2360, %v2353
      %v2369 = vmul.f32 %v2368, %v991
      %v2370 = vmul.f32 %v2367, %v996
      %v2371 = vmul.f32 %v2366, %v1001
      %v2372 = vmul.f32 %v2365, %v1006
      %v2373 = vmul.f32 %v2364, %v1011
      %v2374 = vmul.f32 %v2363, %v1016
      %v2375 = vmul.f32 %v2362, %v1021
      %v2376 = vmul.f32 %v2361, %v1026
      %v2377 = vpack.c.bf16 %v2370, %v2369
      %v2378 = vpack.c.bf16 %v2372, %v2371
      %v2379 = vpack.c.bf16 %v2374, %v2373
      %v2380 = vpack.c.bf16 %v2376, %v2375
      %s2381 = scalar_lea.vmem %s4, 176
      %v2382 = vld [vmem:[%s2381] sm:$0xf]
      %v2383 = vld [vmem:[%s2381 + $0x4] sm:$0xf]
      %v2384 = vld [vmem:[%s2381 + $0x8] sm:$0xf]
      %v2385 = vld [vmem:[%s2381 + $0xc] sm:$0xf]
      %v2390 = vunpack.c.l.b16 %v2382
      %v2391 = vunpack.c.l.b16 %v2383
      %v2392 = vunpack.c.l.b16 %v2384
      %v2393 = vunpack.c.l.b16 %v2385
      %v2394 = vpack.c.b16 %v2391, %v2390
      %v2395 = vpack.c.b16 %v2393, %v2392
      %v2399 = vsel %vm397, %v2377, 0
      %v2402 = vsel %vm397, %v2378, 0
      %v2405 = vsel %vm397, %v2379, 0
      %v2408 = vsel %vm397, %v2380, 0
      %2410 = vmatpush.bf16.msra.mxu0 0
      %2411 = vmatpush.bf16.msra.mxu0 0
      %2412 = vmatpush.bf16.msra.mxu0 0
      %2413 = vmatpush.bf16.msra.mxu0 0
      %2414 = vmatpush.bf16.msra.mxu0 0
      %2415 = vmatpush.bf16.msra.mxu0 0
      %2416 = vmatpush.bf16.msra.mxu0 %v2395
      %2417 = vmatpush.bf16.msra.mxu0 %v2394
      %2418 = vmatmul.bf16.gmra.mxu0 %v2399
      %v2419 = vpop.f32.mrf.mxu0
      %v2420 = vadd.f32 0.0, %v2419
      %v2421 = vpop.f32.mrf.mxu0
      %v2422 = vadd.f32 0.0, %v2421
      %2423 = vmatmul.bf16.gmra.mxu0 %v2402
      %v2424 = vpop.f32.mrf.mxu0
      %v2425 = vadd.f32 0.0, %v2424
      %v2426 = vpop.f32.mrf.mxu0
      %v2427 = vadd.f32 0.0, %v2426
      %2428 = vmatmul.bf16.gmra.mxu0 %v2405
      %v2429 = vpop.f32.mrf.mxu0
      %v2430 = vadd.f32 0.0, %v2429
      %v2431 = vpop.f32.mrf.mxu0
      %v2432 = vadd.f32 0.0, %v2431
      %2433 = vmatmul.bf16.gmra.mxu0 %v2408
      %v2434 = vpop.f32.mrf.mxu0
      %v2435 = vadd.f32 0.0, %v2434
      %v2436 = vpop.f32.mrf.mxu0
      %v2437 = vadd.f32 0.0, %v2436
      %2438 = vdwg.mxu0
      %v2439 = vadd.f32 %v2334, %v2420
      %v2440 = vadd.f32 %v2336, %v2422
      %v2441 = vadd.f32 %v2339, %v2425
      %v2442 = vadd.f32 %v2341, %v2427
      %v2443 = vadd.f32 %v2344, %v2430
      %v2444 = vadd.f32 %v2346, %v2432
      %v2445 = vadd.f32 %v2349, %v2435
      %v2446 = vadd.f32 %v2351, %v2437
      %v2447 = vmul.f32 %v2212, %v1118
      %v2448 = vmul.f32 %v2211, %v1123
      %v2449 = vmul.f32 %v2210, %v1128
      %v2450 = vmul.f32 %v2209, %v1133
      %v2451 = vmul.f32 %v2208, %v1138
      %v2452 = vmul.f32 %v2207, %v1143
      %v2453 = vmul.f32 %v2206, %v1148
      %v2454 = vmul.f32 %v2205, %v1153
      %v2455 = vpack.c.bf16 %v2448, %v2447
      %v2456 = vpack.c.bf16 %v2450, %v2449
      %v2457 = vpack.c.bf16 %v2452, %v2451
      %v2458 = vpack.c.bf16 %v2454, %v2453
      %s2459 = scalar_lea.vmem %s4, 192
      %v2460 = vld [vmem:[%s2459] sm:$0xf]
      %v2461 = vld [vmem:[%s2459 + $0x4] sm:$0xf]
      %v2462 = vld [vmem:[%s2459 + $0x8] sm:$0xf]
      %v2463 = vld [vmem:[%s2459 + $0xc] sm:$0xf]
      %v2468 = vunpack.c.l.b16 %v2460
      %v2469 = vunpack.c.l.b16 %v2461
      %v2470 = vunpack.c.l.b16 %v2462
      %v2471 = vunpack.c.l.b16 %v2463
      %v2472 = vpack.c.b16 %v2469, %v2468
      %v2473 = vpack.c.b16 %v2471, %v2470
      %v2477 = vsel %vm397, %v2455, 0
      %v2480 = vsel %vm397, %v2456, 0
      %v2483 = vsel %vm397, %v2457, 0
      %v2486 = vsel %vm397, %v2458, 0
      %2488 = vmatpush.bf16.msra.mxu0 0
      %2489 = vmatpush.bf16.msra.mxu0 0
      %2490 = vmatpush.bf16.msra.mxu0 0
      %2491 = vmatpush.bf16.msra.mxu0 0
      %2492 = vmatpush.bf16.msra.mxu0 0
      %2493 = vmatpush.bf16.msra.mxu0 0
      %2494 = vmatpush.bf16.msra.mxu0 %v2473
      %2495 = vmatpush.bf16.msra.mxu0 %v2472
      %2496 = vmatmul.bf16.gmra.mxu0 %v2477
      %v2497 = vpop.f32.mrf.mxu0
      %v2498 = vadd.f32 0.0, %v2497
      %v2499 = vpop.f32.mrf.mxu0
      %v2500 = vadd.f32 0.0, %v2499
      %2501 = vmatmul.bf16.gmra.mxu0 %v2480
      %v2502 = vpop.f32.mrf.mxu0
      %v2503 = vadd.f32 0.0, %v2502
      %v2504 = vpop.f32.mrf.mxu0
      %v2505 = vadd.f32 0.0, %v2504
      %2506 = vmatmul.bf16.gmra.mxu0 %v2483
      %v2507 = vpop.f32.mrf.mxu0
      %v2508 = vadd.f32 0.0, %v2507
      %v2509 = vpop.f32.mrf.mxu0
      %v2510 = vadd.f32 0.0, %v2509
      %2511 = vmatmul.bf16.gmra.mxu0 %v2486
      %v2512 = vpop.f32.mrf.mxu0
      %v2513 = vadd.f32 0.0, %v2512
      %v2514 = vpop.f32.mrf.mxu0
      %v2515 = vadd.f32 0.0, %v2514
      %2516 = vdwg.mxu0
      %v2517 = vadd.f32 %v2439, %v2498
      %v2518 = vadd.f32 %v2440, %v2500
      %v2519 = vadd.f32 %v2441, %v2503
      %v2520 = vadd.f32 %v2442, %v2505
      %v2521 = vadd.f32 %v2443, %v2508
      %v2522 = vadd.f32 %v2444, %v2510
      %v2523 = vadd.f32 %v2445, %v2513
      %v2524 = vadd.f32 %v2446, %v2515
      %v2525 = vmul.f32 %v2189, %v1245
      %v2526 = vmul.f32 %v2190, %v1250
      %v2527 = vmul.f32 %v2191, %v1255
      %v2528 = vmul.f32 %v2192, %v1260
      %v2529 = vmul.f32 %v2193, %v1265
      %v2530 = vmul.f32 %v2194, %v1270
      %v2531 = vmul.f32 %v2195, %v1275
      %v2532 = vmul.f32 %v2196, %v1280
      %v2533 = vpack.c.bf16 %v2526, %v2525
      %v2534 = vpack.c.bf16 %v2528, %v2527
      %v2535 = vpack.c.bf16 %v2530, %v2529
      %v2536 = vpack.c.bf16 %v2532, %v2531
      %s2537 = scalar_lea.vmem %s4, 208
      %v2538 = vld [vmem:[%s2537] sm:$0xf]
      %v2539 = vld [vmem:[%s2537 + $0x4] sm:$0xf]
      %v2540 = vld [vmem:[%s2537 + $0x8] sm:$0xf]
      %v2541 = vld [vmem:[%s2537 + $0xc] sm:$0xf]
      %v2546 = vunpack.c.l.b16 %v2538
      %v2547 = vunpack.c.l.b16 %v2539
      %v2548 = vunpack.c.l.b16 %v2540
      %v2549 = vunpack.c.l.b16 %v2541
      %v2550 = vpack.c.b16 %v2547, %v2546
      %v2551 = vpack.c.b16 %v2549, %v2548
      %v2555 = vsel %vm397, %v2533, 0
      %v2558 = vsel %vm397, %v2534, 0
      %v2561 = vsel %vm397, %v2535, 0
      %v2564 = vsel %vm397, %v2536, 0
      %2566 = vmatpush.bf16.msra.mxu0 0
      %2567 = vmatpush.bf16.msra.mxu0 0
      %2568 = vmatpush.bf16.msra.mxu0 0
      %2569 = vmatpush.bf16.msra.mxu0 0
      %2570 = vmatpush.bf16.msra.mxu0 0
      %2571 = vmatpush.bf16.msra.mxu0 0
      %2572 = vmatpush.bf16.msra.mxu0 %v2551
      %2573 = vmatpush.bf16.msra.mxu0 %v2550
      %2574 = vmatmul.bf16.gmra.mxu0 %v2555
      %v2575 = vpop.f32.mrf.mxu0
      %v2576 = vadd.f32 0.0, %v2575
      %v2577 = vpop.f32.mrf.mxu0
      %v2578 = vadd.f32 0.0, %v2577
      %2579 = vmatmul.bf16.gmra.mxu0 %v2558
      %v2580 = vpop.f32.mrf.mxu0
      %v2581 = vadd.f32 0.0, %v2580
      %v2582 = vpop.f32.mrf.mxu0
      %v2583 = vadd.f32 0.0, %v2582
      %2584 = vmatmul.bf16.gmra.mxu0 %v2561
      %v2585 = vpop.f32.mrf.mxu0
      %v2586 = vadd.f32 0.0, %v2585
      %v2587 = vpop.f32.mrf.mxu0
      %v2588 = vadd.f32 0.0, %v2587
      %2589 = vmatmul.bf16.gmra.mxu0 %v2564
      %v2590 = vpop.f32.mrf.mxu0
      %v2591 = vadd.f32 0.0, %v2590
      %v2592 = vpop.f32.mrf.mxu0
      %v2593 = vadd.f32 0.0, %v2592
      %2594 = vdwg.mxu0
      %v2595 = vadd.f32 %v2517, %v2576
      %v2596 = vadd.f32 %v2518, %v2578
      %v2597 = vadd.f32 %v2519, %v2581
      %v2598 = vadd.f32 %v2520, %v2583
      %v2599 = vadd.f32 %v2521, %v2586
      %v2600 = vadd.f32 %v2522, %v2588
      %v2601 = vadd.f32 %v2523, %v2591
      %v2602 = vadd.f32 %v2524, %v2593
      %v2603 = vmul.f32 %v2367, %v1372
      %v2604 = vmul.f32 %v2366, %v1377
      %v2605 = vmul.f32 %v2365, %v1382
      %v2606 = vmul.f32 %v2364, %v1387
      %v2607 = vmul.f32 %v2363, %v1392
      %v2608 = vmul.f32 %v2362, %v1397
      %v2609 = vmul.f32 %v2361, %v1402
      %v2610 = vmul.f32 %v2368, %v1407
      %v2611 = vpack.c.bf16 %v2604, %v2603
      %v2612 = vpack.c.bf16 %v2606, %v2605
      %v2613 = vpack.c.bf16 %v2608, %v2607
      %v2614 = vpack.c.bf16 %v2610, %v2609
      %s2615 = scalar_lea.vmem %s4, 224
      %v2616 = vld [vmem:[%s2615] sm:$0xf]
      %v2617 = vld [vmem:[%s2615 + $0x4] sm:$0xf]
      %v2618 = vld [vmem:[%s2615 + $0x8] sm:$0xf]
      %v2619 = vld [vmem:[%s2615 + $0xc] sm:$0xf]
      %v2624 = vunpack.c.l.b16 %v2616
      %v2625 = vunpack.c.l.b16 %v2617
      %v2626 = vunpack.c.l.b16 %v2618
      %v2627 = vunpack.c.l.b16 %v2619
      %v2628 = vpack.c.b16 %v2625, %v2624
      %v2629 = vpack.c.b16 %v2627, %v2626
      %v2633 = vsel %vm397, %v2611, 0
      %v2636 = vsel %vm397, %v2612, 0
      %v2639 = vsel %vm397, %v2613, 0
      %v2642 = vsel %vm397, %v2614, 0
      %2644 = vmatpush.bf16.msra.mxu0 0
      %2645 = vmatpush.bf16.msra.mxu0 0
      %2646 = vmatpush.bf16.msra.mxu0 0
      %2647 = vmatpush.bf16.msra.mxu0 0
      %2648 = vmatpush.bf16.msra.mxu0 0
      %2649 = vmatpush.bf16.msra.mxu0 0
      %2650 = vmatpush.bf16.msra.mxu0 %v2629
      %2651 = vmatpush.bf16.msra.mxu0 %v2628
      %2652 = vmatmul.bf16.gmra.mxu0 %v2633
      %v2653 = vpop.f32.mrf.mxu0
      %v2654 = vadd.f32 0.0, %v2653
      %v2655 = vpop.f32.mrf.mxu0
      %v2656 = vadd.f32 0.0, %v2655
      %2657 = vmatmul.bf16.gmra.mxu0 %v2636
      %v2658 = vpop.f32.mrf.mxu0
      %v2659 = vadd.f32 0.0, %v2658
      %v2660 = vpop.f32.mrf.mxu0
      %v2661 = vadd.f32 0.0, %v2660
      %2662 = vmatmul.bf16.gmra.mxu0 %v2639
      %v2663 = vpop.f32.mrf.mxu0
      %v2664 = vadd.f32 0.0, %v2663
      %v2665 = vpop.f32.mrf.mxu0
      %v2666 = vadd.f32 0.0, %v2665
      %2667 = vmatmul.bf16.gmra.mxu0 %v2642
      %v2668 = vpop.f32.mrf.mxu0
      %v2669 = vadd.f32 0.0, %v2668
      %v2670 = vpop.f32.mrf.mxu0
      %v2671 = vadd.f32 0.0, %v2670
      %2672 = vdwg.mxu0
      %v2673 = vadd.f32 %v2595, %v2654
      %v2674 = vadd.f32 %v2596, %v2656
      %v2675 = vadd.f32 %v2597, %v2659
      %v2676 = vadd.f32 %v2598, %v2661
      %v2677 = vadd.f32 %v2599, %v2664
      %v2678 = vadd.f32 %v2600, %v2666
      %v2679 = vadd.f32 %v2601, %v2669
      %v2680 = vadd.f32 %v2602, %v2671
      %v2681 = vmul.f32 %v2211, %v1499
      %v2682 = vmul.f32 %v2210, %v1504
      %v2683 = vmul.f32 %v2209, %v1509
      %v2684 = vmul.f32 %v2208, %v1514
      %v2685 = vmul.f32 %v2207, %v1519
      %v2686 = vmul.f32 %v2206, %v1524
      %v2687 = vmul.f32 %v2205, %v1529
      %v2688 = vmul.f32 %v2212, %v1534
      %v2689 = vpack.c.bf16 %v2682, %v2681
      %v2690 = vpack.c.bf16 %v2684, %v2683
      %v2691 = vpack.c.bf16 %v2686, %v2685
      %v2692 = vpack.c.bf16 %v2688, %v2687
      %s2693 = scalar_lea.vmem %s4, 240
      %v2694 = vld [vmem:[%s2693] sm:$0xf]
      %v2695 = vld [vmem:[%s2693 + $0x4] sm:$0xf]
      %v2696 = vld [vmem:[%s2693 + $0x8] sm:$0xf]
      %v2697 = vld [vmem:[%s2693 + $0xc] sm:$0xf]
      %v2702 = vunpack.c.l.b16 %v2694
      %v2703 = vunpack.c.l.b16 %v2695
      %v2704 = vunpack.c.l.b16 %v2696
      %v2705 = vunpack.c.l.b16 %v2697
      %v2706 = vpack.c.b16 %v2703, %v2702
      %v2707 = vpack.c.b16 %v2705, %v2704
      %v2711 = vsel %vm397, %v2689, 0
      %v2714 = vsel %vm397, %v2690, 0
      %v2717 = vsel %vm397, %v2691, 0
      %v2720 = vsel %vm397, %v2692, 0
      %2722 = vmatpush.bf16.msra.mxu0 0
      %2723 = vmatpush.bf16.msra.mxu0 0
      %2724 = vmatpush.bf16.msra.mxu0 0
      %2725 = vmatpush.bf16.msra.mxu0 0
      %2726 = vmatpush.bf16.msra.mxu0 0
      %2727 = vmatpush.bf16.msra.mxu0 0
      %2728 = vmatpush.bf16.msra.mxu0 %v2707
      %2729 = vmatpush.bf16.msra.mxu0 %v2706
      %2730 = vmatmul.bf16.gmra.mxu0 %v2711
      %v2731 = vpop.f32.mrf.mxu0
      %v2732 = vadd.f32 0.0, %v2731
      %v2733 = vpop.f32.mrf.mxu0
      %v2734 = vadd.f32 0.0, %v2733
      %2735 = vmatmul.bf16.gmra.mxu0 %v2714
      %v2736 = vpop.f32.mrf.mxu0
      %v2737 = vadd.f32 0.0, %v2736
      %v2738 = vpop.f32.mrf.mxu0
      %v2739 = vadd.f32 0.0, %v2738
      %2740 = vmatmul.bf16.gmra.mxu0 %v2717
      %v2741 = vpop.f32.mrf.mxu0
      %v2742 = vadd.f32 0.0, %v2741
      %v2743 = vpop.f32.mrf.mxu0
      %v2744 = vadd.f32 0.0, %v2743
      %2745 = vmatmul.bf16.gmra.mxu0 %v2720
      %v2746 = vpop.f32.mrf.mxu0
      %v2747 = vadd.f32 0.0, %v2746
      %v2748 = vpop.f32.mrf.mxu0
      %v2749 = vadd.f32 0.0, %v2748
      %2750 = vdwg.mxu0
      %v2751 = vadd.f32 %v2673, %v2732
      %v2752 = vadd.f32 %v2674, %v2734
      %v2753 = vadd.f32 %v2675, %v2737
      %v2754 = vadd.f32 %v2676, %v2739
      %v2755 = vadd.f32 %v2677, %v2742
      %v2756 = vadd.f32 %v2678, %v2744
      %v2757 = vadd.f32 %v2679, %v2747
      %v2758 = vadd.f32 %v2680, %v2749
      %v2759 = vmul.f32 %v2190, %v1626
      %v2760 = vmul.f32 %v2191, %v1631
      %v2761 = vmul.f32 %v2192, %v1636
      %v2762 = vmul.f32 %v2193, %v1641
      %v2763 = vmul.f32 %v2194, %v1646
      %v2764 = vmul.f32 %v2195, %v1651
      %v2765 = vmul.f32 %v2196, %v1656
      %v2766 = vmul.f32 %v2189, %v1661
      %v2767 = vpack.c.bf16 %v2760, %v2759
      %v2768 = vpack.c.bf16 %v2762, %v2761
      %v2769 = vpack.c.bf16 %v2764, %v2763
      %v2770 = vpack.c.bf16 %v2766, %v2765
      %s2771 = scalar_lea.vmem %s4, 256
      %v2772 = vld [vmem:[%s2771] sm:$0xf]
      %v2773 = vld [vmem:[%s2771 + $0x4] sm:$0xf]
      %v2774 = vld [vmem:[%s2771 + $0x8] sm:$0xf]
      %v2775 = vld [vmem:[%s2771 + $0xc] sm:$0xf]
      %v2780 = vunpack.c.l.b16 %v2772
      %v2781 = vunpack.c.l.b16 %v2773
      %v2782 = vunpack.c.l.b16 %v2774
      %v2783 = vunpack.c.l.b16 %v2775
      %v2784 = vpack.c.b16 %v2781, %v2780
      %v2785 = vpack.c.b16 %v2783, %v2782
      %v2789 = vsel %vm397, %v2767, 0
      %v2792 = vsel %vm397, %v2768, 0
      %v2795 = vsel %vm397, %v2769, 0
      %v2798 = vsel %vm397, %v2770, 0
      %2800 = vmatpush.bf16.msra.mxu0 0
      %2801 = vmatpush.bf16.msra.mxu0 0
      %2802 = vmatpush.bf16.msra.mxu0 0
      %2803 = vmatpush.bf16.msra.mxu0 0
      %2804 = vmatpush.bf16.msra.mxu0 0
      %2805 = vmatpush.bf16.msra.mxu0 0
      %2806 = vmatpush.bf16.msra.mxu0 %v2785
      %2807 = vmatpush.bf16.msra.mxu0 %v2784
      %2808 = vmatmul.bf16.gmra.mxu0 %v2789
      %v2809 = vpop.f32.mrf.mxu0
      %v2810 = vadd.f32 0.0, %v2809
      %v2811 = vpop.f32.mrf.mxu0
      %v2812 = vadd.f32 0.0, %v2811
      %2813 = vmatmul.bf16.gmra.mxu0 %v2792
      %v2814 = vpop.f32.mrf.mxu0
      %v2815 = vadd.f32 0.0, %v2814
      %v2816 = vpop.f32.mrf.mxu0
      %v2817 = vadd.f32 0.0, %v2816
      %2818 = vmatmul.bf16.gmra.mxu0 %v2795
      %v2819 = vpop.f32.mrf.mxu0
      %v2820 = vadd.f32 0.0, %v2819
      %v2821 = vpop.f32.mrf.mxu0
      %v2822 = vadd.f32 0.0, %v2821
      %2823 = vmatmul.bf16.gmra.mxu0 %v2798
      %v2824 = vpop.f32.mrf.mxu0
      %v2825 = vadd.f32 0.0, %v2824
      %v2826 = vpop.f32.mrf.mxu0
      %v2827 = vadd.f32 0.0, %v2826
      %2828 = vdwg.mxu0
      %v2829 = vadd.f32 %v2751, %v2810
      %v2830 = vadd.f32 %v2752, %v2812
      %v2831 = vadd.f32 %v2753, %v2815
      %v2832 = vadd.f32 %v2754, %v2817
      %v2833 = vadd.f32 %v2755, %v2820
      %v2834 = vadd.f32 %v2756, %v2822
      %v2835 = vadd.f32 %v2757, %v2825
      %v2836 = vadd.f32 %v2758, %v2827
      %v2837 = vmul.f32 %v2366, %v1753
      %v2838 = vmul.f32 %v2365, %v1758
      %v2839 = vmul.f32 %v2364, %v1763
      %v2840 = vmul.f32 %v2363, %v1768
      %v2841 = vmul.f32 %v2362, %v1773
      %v2842 = vmul.f32 %v2361, %v1778
      %v2843 = vmul.f32 %v2368, %v1783
      %v2844 = vmul.f32 %v2367, %v1788
      %v2845 = vpack.c.bf16 %v2838, %v2837
      %v2846 = vpack.c.bf16 %v2840, %v2839
      %v2847 = vpack.c.bf16 %v2842, %v2841
      %v2848 = vpack.c.bf16 %v2844, %v2843
      %s2849 = scalar_lea.vmem %s4, 272
      %v2850 = vld [vmem:[%s2849] sm:$0xf]
      %v2851 = vld [vmem:[%s2849 + $0x4] sm:$0xf]
      %v2852 = vld [vmem:[%s2849 + $0x8] sm:$0xf]
      %v2853 = vld [vmem:[%s2849 + $0xc] sm:$0xf]
      %v2858 = vunpack.c.l.b16 %v2850
      %v2859 = vunpack.c.l.b16 %v2851
      %v2860 = vunpack.c.l.b16 %v2852
      %v2861 = vunpack.c.l.b16 %v2853
      %v2862 = vpack.c.b16 %v2859, %v2858
      %v2863 = vpack.c.b16 %v2861, %v2860
      %v2867 = vsel %vm397, %v2845, 0
      %v2870 = vsel %vm397, %v2846, 0
      %v2873 = vsel %vm397, %v2847, 0
      %v2876 = vsel %vm397, %v2848, 0
      %2878 = vmatpush.bf16.msra.mxu0 0
      %2879 = vmatpush.bf16.msra.mxu0 0
      %2880 = vmatpush.bf16.msra.mxu0 0
      %2881 = vmatpush.bf16.msra.mxu0 0
      %2882 = vmatpush.bf16.msra.mxu0 0
      %2883 = vmatpush.bf16.msra.mxu0 0
      %2884 = vmatpush.bf16.msra.mxu0 %v2863
      %2885 = vmatpush.bf16.msra.mxu0 %v2862
      %2886 = vmatmul.bf16.gmra.mxu0 %v2867
      %v2887 = vpop.f32.mrf.mxu0
      %v2888 = vadd.f32 0.0, %v2887
      %v2889 = vpop.f32.mrf.mxu0
      %v2890 = vadd.f32 0.0, %v2889
      %2891 = vmatmul.bf16.gmra.mxu0 %v2870
      %v2892 = vpop.f32.mrf.mxu0
      %v2893 = vadd.f32 0.0, %v2892
      %v2894 = vpop.f32.mrf.mxu0
      %v2895 = vadd.f32 0.0, %v2894
      %2896 = vmatmul.bf16.gmra.mxu0 %v2873
      %v2897 = vpop.f32.mrf.mxu0
      %v2898 = vadd.f32 0.0, %v2897
      %v2899 = vpop.f32.mrf.mxu0
      %v2900 = vadd.f32 0.0, %v2899
      %2901 = vmatmul.bf16.gmra.mxu0 %v2876
      %v2902 = vpop.f32.mrf.mxu0
      %v2903 = vadd.f32 0.0, %v2902
      %v2904 = vpop.f32.mrf.mxu0
      %v2905 = vadd.f32 0.0, %v2904
      %2906 = vdwg.mxu0
      %v2907 = vadd.f32 %v2829, %v2888
      %v2908 = vadd.f32 %v2830, %v2890
      %v2909 = vadd.f32 %v2831, %v2893
      %v2910 = vadd.f32 %v2832, %v2895
      %v2911 = vadd.f32 %v2833, %v2898
      %v2912 = vadd.f32 %v2834, %v2900
      %v2913 = vadd.f32 %v2835, %v2903
      %v2914 = vadd.f32 %v2836, %v2905
      %v2915 = vperm.slane %v389, 5
      %v2916 = vadd.f32 %v2907, %v2915
      %v2917 = vadd.f32 %v2908, %v2915
      %v2918 = vadd.f32 %v2909, %v2915
      %v2919 = vadd.f32 %v2910, %v2915
      %v2920 = vadd.f32 %v2911, %v2915
      %v2921 = vadd.f32 %v2912, %v2915
      %v2922 = vadd.f32 %v2913, %v2915
      %v2923 = vadd.f32 %v2914, %v2915
      %v2924 = vadd.f32 %v381, %v2916
      %v2925 = vadd.f32 %v382, %v2917
      %v2926 = vadd.f32 %v383, %v2918
      %v2927 = vadd.f32 %v384, %v2919
      %v2928 = vadd.f32 %v385, %v2920
      %v2929 = vadd.f32 %v386, %v2921
      %v2930 = vadd.f32 %v387, %v2922
      %v2931 = vadd.f32 %v388, %v2923
      %v2932 = vld [vmem:[%s3] sm:$0x7]
      %v2933 = vsel %vm397, %v2924, 0.0
      %v2934 = vsel %vm397, %v2925, 0.0
      %v2935 = vadd.f32 %v2933, %v2934
      %v2936 = vsel %vm397, %v2926, 0.0
      %v2937 = vadd.f32 %v2935, %v2936
      %v2938 = vsel %vm397, %v2927, 0.0
      %v2939 = vadd.f32 %v2937, %v2938
      %v2940 = vsel %vm397, %v2928, 0.0
      %v2941 = vadd.f32 %v2939, %v2940
      %v2942 = vsel %vm397, %v2929, 0.0
      %v2943 = vadd.f32 %v2941, %v2942
      %v2944 = vsel %vm397, %v2930, 0.0
      %v2945 = vadd.f32 %v2943, %v2944
      %v2946 = vsel %vm397, %v2931, 0.0
      %v2947 = vadd.f32 %v2945, %v2946
      %v2948 = vrot.slane %v2947, 4
      %v2949 = vadd.f32 %v2947, %v2948
      %v2950 = vrot.slane %v2949, 2
      %v2951 = vadd.f32 %v2949, %v2950
      %v2952 = vrot.slane %v2951, 1
      %v2953 = vadd.f32 %v2951, %v2952
      %v2954 = vmul.f32 %v2924, %v2924
      %v2955 = vmul.f32 %v2925, %v2925
      %v2956 = vmul.f32 %v2926, %v2926
      %v2957 = vmul.f32 %v2927, %v2927
      %v2958 = vmul.f32 %v2928, %v2928
      %v2959 = vmul.f32 %v2929, %v2929
      %v2960 = vmul.f32 %v2930, %v2930
      %v2961 = vmul.f32 %v2931, %v2931
      %v2962 = vsel %vm397, %v2954, 0.0
      %v2963 = vsel %vm397, %v2955, 0.0
      %v2964 = vadd.f32 %v2962, %v2963
      %v2965 = vsel %vm397, %v2956, 0.0
      %v2966 = vadd.f32 %v2964, %v2965
      %v2967 = vsel %vm397, %v2957, 0.0
      %v2968 = vadd.f32 %v2966, %v2967
      %v2969 = vsel %vm397, %v2958, 0.0
      %v2970 = vadd.f32 %v2968, %v2969
      %v2971 = vsel %vm397, %v2959, 0.0
      %v2972 = vadd.f32 %v2970, %v2971
      %v2973 = vsel %vm397, %v2960, 0.0
      %v2974 = vadd.f32 %v2972, %v2973
      %v2975 = vsel %vm397, %v2961, 0.0
      %v2976 = vadd.f32 %v2974, %v2975
      %v2977 = vrot.slane %v2976, 4
      %v2978 = vadd.f32 %v2976, %v2977
      %v2979 = vrot.slane %v2978, 2
      %v2980 = vadd.f32 %v2978, %v2979
      %v2981 = vrot.slane %v2980, 1
      %v2982 = vadd.f32 %v2980, %v2981
      %v2983 = vsel %vm448, %v2953, %v2982
      %v2985 = vsel %vm397, %v2983, 0
      %2987 = vmatpush.msra.mxu0 0.0
      %2988 = vmatpush.msra.mxu0 0.0
      %2989 = vmatpush.msra.mxu0 0.0
      %2990 = vmatpush.msra.mxu0 0.0
      %2991 = vmatpush.msra.mxu0 0.0
      %2992 = vmatpush.msra.mxu0 0.0
      %2993 = vmatpush.msra.mxu0 0.0
      %2994 = vmatpush.msra.mxu0 0.0
      %2995 = vmatpush.msra.mxu0 0.0
      %2996 = vmatpush.msra.mxu0 0.0
      %2997 = vmatpush.msra.mxu0 0.0
      %2998 = vmatpush.msra.mxu0 0.0
      %2999 = vmatpush.msra.mxu0 %v394
      %3000 = vmatpush.msra.mxu0 %v393
      %3001 = vmatpush.msra.mxu0 %v392
      %3002 = vmatpush.msra.mxu0 %v391
      %3003 = vmatmul.f32.gmra.mxu0 %v2985
      %v3004 = vpop.f32.mrf.mxu0
      %v3005 = vadd.f32 0.0, %v3004
      %3006 = vdwg.mxu0
      %v3007 = vmul.f32 %v3005, 0.00390625
      %v3008 = vmul.f32 %v3007, %v3007
      %v3010 = vrot.slane %v3008, 7
      %v3012 = vsub.f32 %v3007, %v3010
      %v3013 = vmax.f32 %v3012, 0.0
      %v3014 = vadd.f32 %v3013, 1e-06
      %v3015 = vrsqrt.pop %v3014
      %v3016 = vmul.f32 %v3015, %v3014
      %v3017 = vmul.f32 %v3016, %v3015
      %v3018 = vmul.f32 0.5, %v3017
      %v3019 = vsub.f32 1.5, %v3018
      %v3020 = vmul.f32 %v3015, %v3019
      %vm3021 = vweird.f32 %v3014
      %vm3022 = vweird.f32 %v3015
      %vm3023 = vmor %vm3021, %vm3022
      %v3024 = vsel %vm3023, %v3015, %v3020
      %v3026 = vrot.slane %v3024, 1
      %v3028 = vmul.f32 %v3007, %v3026
      %v3030 = vrot.slane %v3028, 7
      %v3032 = vsel %vm448, %v3026, %v3030
      %v3034 = vsel %vm499, %v3032, 0
      %3036 = vmatpush.msra.mxu0 0.0
      %3037 = vmatpush.msra.mxu0 0.0
      %3038 = vmatpush.msra.mxu0 0.0
      %3039 = vmatpush.msra.mxu0 0.0
      %3040 = vmatpush.msra.mxu0 0.0
      %3041 = vmatpush.msra.mxu0 0.0
      %3042 = vmatpush.msra.mxu0 0.0
      %3043 = vmatpush.msra.mxu0 0.0
      %3044 = vmatpush.msra.mxu0 0.0
      %3045 = vmatpush.msra.mxu0 0.0
      %3046 = vmatpush.msra.mxu0 0.0
      %3047 = vmatpush.msra.mxu0 0.0
      %3048 = vmatpush.msra.mxu0 0.0
      %3049 = vmatpush.msra.mxu0 0.0
      %3050 = vmatpush.msra.mxu0 0.0
      %3051 = vmatpush.msra.mxu0 %v395
      %3052 = vmatmul.f32.gmra.mxu0 %v3034
      %v3053 = vpop.f32.mrf.mxu0
      %v3054 = vadd.f32 0.0, %v3053
      %3055 = vdwg.mxu0
      %v3056 = vrot.slane %v389, 6
      %v3058 = vmul.f32 %v3054, %v3056
      %v3059 = vrot.slane %v389, 5
      %v3061 = vmul.f32 %v3054, %v3059
      %v3063 = vrot.slane %v3061, 2
      %v3065 = vsub.f32 %v389, %v3063
      %v3066 = vperm.slane %v3058, 0
      %v3067 = vmul.f32 %v2924, %v3066
      %v3068 = vmul.f32 %v2925, %v3066
      %v3069 = vmul.f32 %v2926, %v3066
      %v3070 = vmul.f32 %v2927, %v3066
      %v3071 = vmul.f32 %v2928, %v3066
      %v3072 = vmul.f32 %v2929, %v3066
      %v3073 = vmul.f32 %v2930, %v3066
      %v3074 = vmul.f32 %v2931, %v3066
      %v3075 = vperm.slane %v3065, 7
      %v3076 = vadd.f32 %v3067, %v3075
      %v3077 = vadd.f32 %v3068, %v3075
      %v3078 = vadd.f32 %v3069, %v3075
      %v3079 = vadd.f32 %v3070, %v3075
      %v3080 = vadd.f32 %v3071, %v3075
      %v3081 = vadd.f32 %v3072, %v3075
      %v3082 = vadd.f32 %v3073, %v3075
      %v3083 = vadd.f32 %v3074, %v3075
      %v3084 = vpack.c.bf16 %v3077, %v3076
      %v3085 = vpack.c.bf16 %v3079, %v3078
      %v3086 = vpack.c.bf16 %v3081, %v3080
      %v3087 = vpack.c.bf16 %v3083, %v3082
      %v3088 = vld [vmem:[%s5] sm:$0xff]
      %v3089 = vld [vmem:[%s5 + $0x8] sm:$0xf]
      %v3090 = vld [vmem:[%s5 + $0xc] sm:$0xff]
      %v3091 = vld [vmem:[%s5 + $0x14] sm:$0xf]
      %v3092 = vld [vmem:[%s5 + $0x18] sm:$0xff]
      %v3093 = vld [vmem:[%s5 + $0x20] sm:$0xf]
      %v3094 = vld [vmem:[%s5 + $0x24] sm:$0xff]
      %v3095 = vld [vmem:[%s5 + $0x2c] sm:$0xf]
      %v3097 = vperm.slane %v2932, 0
      %v3098 = vperm.slane %v2932, 1
      %v3099 = vperm.slane %v2932, 2
      %v3111 = vunpack.c.l.b16 %v3088
      %v3112 = vunpack.c.h.b16 %v3088
      %v3113 = vunpack.c.l.b16 %v3089
      %v3114 = vunpack.c.l.b16 %v3090
      %v3115 = vunpack.c.h.b16 %v3090
      %v3116 = vunpack.c.l.b16 %v3091
      %v3117 = vunpack.c.l.b16 %v3092
      %v3118 = vunpack.c.h.b16 %v3092
      %v3119 = vunpack.c.l.b16 %v3093
      %v3120 = vunpack.c.l.b16 %v3094
      %v3121 = vunpack.c.h.b16 %v3094
      %v3122 = vunpack.c.l.b16 %v3095
      %v3123 = vpack.c.b16 %v3114, %v3111
      %v3124 = vpack.c.b16 %v3115, %v3112
      %v3125 = vpack.c.b16 %v3116, %v3113
      %v3126 = vpack.c.b16 %v3120, %v3117
      %v3127 = vpack.c.b16 %v3121, %v3118
      %v3128 = vpack.c.b16 %v3122, %v3119
      %v3136 = vsel %vm397, %v3084, 0
      %v3139 = vsel %vm397, %v3085, 0
      %v3142 = vsel %vm397, %v3086, 0
      %v3145 = vsel %vm397, %v3087, 0
      %3147 = vmatpush.bf16.msra.mxu0 0
      %3148 = vmatpush.bf16.msra.mxu0 0
      %3149 = vmatpush.bf16.msra.mxu0 0
      %3150 = vmatpush.bf16.msra.mxu0 0
      %3151 = vmatpush.bf16.msra.mxu0 0
      %3152 = vmatpush.bf16.msra.mxu0 0
      %3153 = vmatpush.bf16.msra.mxu0 %v3126
      %3154 = vmatpush.bf16.msra.mxu0 %v3123
      %3155 = vmatmul.bf16.gmra.mxu0 %v3136
      %v3156 = vpop.f32.mrf.mxu0
      %v3157 = vadd.f32 %v3097, %v3156
      %v3158 = vpop.f32.mrf.mxu0
      %v3159 = vadd.f32 %v3097, %v3158
      %3160 = vmatmul.bf16.gmra.mxu0 %v3139
      %v3161 = vpop.f32.mrf.mxu0
      %v3162 = vadd.f32 %v3097, %v3161
      %v3163 = vpop.f32.mrf.mxu0
      %v3164 = vadd.f32 %v3097, %v3163
      %3165 = vmatmul.bf16.gmra.mxu0 %v3142
      %v3166 = vpop.f32.mrf.mxu0
      %v3167 = vadd.f32 %v3097, %v3166
      %v3168 = vpop.f32.mrf.mxu0
      %v3169 = vadd.f32 %v3097, %v3168
      %3170 = vmatmul.bf16.gmra.mxu0 %v3145
      %v3171 = vpop.f32.mrf.mxu0
      %v3172 = vadd.f32 %v3097, %v3171
      %v3173 = vpop.f32.mrf.mxu0
      %v3174 = vadd.f32 %v3097, %v3173
      %3175 = vdwg.mxu0
      %3176 = vmatpush.bf16.msra.mxu0 0
      %3177 = vmatpush.bf16.msra.mxu0 0
      %3178 = vmatpush.bf16.msra.mxu0 0
      %3179 = vmatpush.bf16.msra.mxu0 0
      %3180 = vmatpush.bf16.msra.mxu0 0
      %3181 = vmatpush.bf16.msra.mxu0 0
      %3182 = vmatpush.bf16.msra.mxu0 %v3127
      %3183 = vmatpush.bf16.msra.mxu0 %v3124
      %3184 = vmatmul.bf16.gmra.mxu0 %v3136
      %v3185 = vpop.f32.mrf.mxu0
      %v3186 = vadd.f32 %v3098, %v3185
      %v3187 = vpop.f32.mrf.mxu0
      %v3188 = vadd.f32 %v3098, %v3187
      %3189 = vmatmul.bf16.gmra.mxu0 %v3139
      %v3190 = vpop.f32.mrf.mxu0
      %v3191 = vadd.f32 %v3098, %v3190
      %v3192 = vpop.f32.mrf.mxu0
      %v3193 = vadd.f32 %v3098, %v3192
      %3194 = vmatmul.bf16.gmra.mxu0 %v3142
      %v3195 = vpop.f32.mrf.mxu0
      %v3196 = vadd.f32 %v3098, %v3195
      %v3197 = vpop.f32.mrf.mxu0
      %v3198 = vadd.f32 %v3098, %v3197
      %3199 = vmatmul.bf16.gmra.mxu0 %v3145
      %v3200 = vpop.f32.mrf.mxu0
      %v3201 = vadd.f32 %v3098, %v3200
      %v3202 = vpop.f32.mrf.mxu0
      %v3203 = vadd.f32 %v3098, %v3202
      %3204 = vdwg.mxu0
      %3205 = vmatpush.bf16.msra.mxu0 0
      %3206 = vmatpush.bf16.msra.mxu0 0
      %3207 = vmatpush.bf16.msra.mxu0 0
      %3208 = vmatpush.bf16.msra.mxu0 0
      %3209 = vmatpush.bf16.msra.mxu0 0
      %3210 = vmatpush.bf16.msra.mxu0 0
      %3211 = vmatpush.bf16.msra.mxu0 %v3128
      %3212 = vmatpush.bf16.msra.mxu0 %v3125
      %3213 = vmatmul.bf16.gmra.mxu0 %v3136
      %v3214 = vpop.f32.mrf.mxu0
      %v3215 = vadd.f32 %v3099, %v3214
      %v3216 = vpop.f32.mrf.mxu0
      %v3217 = vadd.f32 %v3099, %v3216
      %3218 = vmatmul.bf16.gmra.mxu0 %v3139
      %v3219 = vpop.f32.mrf.mxu0
      %v3220 = vadd.f32 %v3099, %v3219
      %v3221 = vpop.f32.mrf.mxu0
      %v3222 = vadd.f32 %v3099, %v3221
      %3223 = vmatmul.bf16.gmra.mxu0 %v3142
      %v3224 = vpop.f32.mrf.mxu0
      %v3225 = vadd.f32 %v3099, %v3224
      %v3226 = vpop.f32.mrf.mxu0
      %v3227 = vadd.f32 %v3099, %v3226
      %3228 = vmatmul.bf16.gmra.mxu0 %v3145
      %v3229 = vpop.f32.mrf.mxu0
      %v3230 = vadd.f32 %v3099, %v3229
      %v3231 = vpop.f32.mrf.mxu0
      %v3232 = vadd.f32 %v3099, %v3231
      %3233 = vdwg.mxu0
      %v3234 = vpack.c.bf16 %v3159, %v3157
      %v3235 = vpack.c.bf16 %v3164, %v3162
      %v3236 = vpack.c.bf16 %v3169, %v3167
      %v3237 = vpack.c.bf16 %v3174, %v3172
      %v3238 = vpack.c.bf16 %v3188, %v3186
      %v3239 = vpack.c.bf16 %v3193, %v3191
      %v3240 = vpack.c.bf16 %v3198, %v3196
      %v3241 = vpack.c.bf16 %v3203, %v3201
      %v3242 = vpack.c.bf16 %v3217, %v3215
      %v3243 = vpack.c.bf16 %v3222, %v3220
      %v3244 = vpack.c.bf16 %v3227, %v3225
      %v3245 = vpack.c.bf16 %v3232, %v3230
      %3246 = vmatpush.bf16.xpose.msra.mxu0 0
      %3247 = vmatpush.bf16.xpose.msra.mxu0 0
      %3248 = vmatpush.bf16.xpose.msra.mxu0 0
      %3249 = vmatpush.bf16.xpose.msra.mxu0 0
      %3250 = vmatpush.bf16.xpose.msra.mxu0 %v3241
      %3251 = vmatpush.bf16.xpose.msra.mxu0 %v3240
      %3252 = vmatpush.bf16.xpose.msra.mxu0 %v3239
      %3253 = vmatpush.bf16.xpose.msra.mxu0 %v3238
      %3254 = vmatmul.bf16.gmra.mxu0 %v3234
      %v3255 = vpop.f32.mrf.mxu0
      %v3256 = vadd.f32 0.0, %v3255
      %v3257 = vpop.f32.mrf.mxu0
      %v3258 = vadd.f32 0.0, %v3257
      %3259 = vmatmul.bf16.gmra.mxu0 %v3235
      %v3260 = vpop.f32.mrf.mxu0
      %v3261 = vadd.f32 0.0, %v3260
      %v3262 = vpop.f32.mrf.mxu0
      %v3263 = vadd.f32 0.0, %v3262
      %3264 = vmatmul.bf16.gmra.mxu0 %v3236
      %v3265 = vpop.f32.mrf.mxu0
      %v3266 = vadd.f32 0.0, %v3265
      %v3267 = vpop.f32.mrf.mxu0
      %v3268 = vadd.f32 0.0, %v3267
      %3269 = vmatmul.bf16.gmra.mxu0 %v3237
      %v3270 = vpop.f32.mrf.mxu0
      %v3271 = vadd.f32 0.0, %v3270
      %v3272 = vpop.f32.mrf.mxu0
      %v3273 = vadd.f32 0.0, %v3272
      %3274 = vdwg.mxu0
      %vm3275 = vcmask 523264
      %v3276 = vsel %vm3275, %v3256, -inf
      %3277 = vmax.xlane.f32.xlu0 %v3276
      %v3278 = vpop.xlane.xlu0 %3277
      %v3279 = vsel %vm3275, %v3258, -inf
      %3280 = vmax.xlane.f32.xlu0 %v3279
      %v3281 = vpop.xlane.xlu0 %3280
      %v3282 = vsel %vm3275, %v3261, -inf
      %3283 = vmax.xlane.f32.xlu0 %v3282
      %v3284 = vpop.xlane.xlu0 %3283
      %v3285 = vsel %vm3275, %v3263, -inf
      %3286 = vmax.xlane.f32.xlu0 %v3285
      %v3287 = vpop.xlane.xlu0 %3286
      %v3288 = vsel %vm3275, %v3266, -inf
      %3289 = vmax.xlane.f32.xlu0 %v3288
      %v3290 = vpop.xlane.xlu0 %3289
      %v3291 = vsel %vm3275, %v3268, -inf
      %3292 = vmax.xlane.f32.xlu0 %v3291
      %v3293 = vpop.xlane.xlu0 %3292
      %v3294 = vsel %vm3275, %v3271, -inf
      %3295 = vmax.xlane.f32.xlu0 %v3294
      %v3296 = vpop.xlane.xlu0 %3295
      %v3297 = vsel %vm3275, %v3273, -inf
      %3298 = vmax.xlane.f32.xlu0 %v3297
      %v3299 = vpop.xlane.xlu0 %3298
      %v3300 = vsub.f32 %v3256, %v3278
      %v3301 = vsub.f32 %v3258, %v3281
      %v3302 = vsub.f32 %v3261, %v3284
      %v3303 = vsub.f32 %v3263, %v3287
      %v3304 = vsub.f32 %v3266, %v3290
      %v3305 = vsub.f32 %v3268, %v3293
      %v3306 = vsub.f32 %v3271, %v3296
      %v3307 = vsub.f32 %v3273, %v3299
      %v3308 = vmul.f32 %v3300, 1.442695
      %v3309 = vpow.pop %v3308
      %v3310 = vmul.f32 %v3301, 1.442695
      %v3311 = vpow.pop %v3310
      %v3312 = vmul.f32 %v3302, 1.442695
      %v3313 = vpow.pop %v3312
      %v3314 = vmul.f32 %v3303, 1.442695
      %v3315 = vpow.pop %v3314
      %v3316 = vmul.f32 %v3304, 1.442695
      %v3317 = vpow.pop %v3316
      %v3318 = vmul.f32 %v3305, 1.442695
      %v3319 = vpow.pop %v3318
      %v3320 = vmul.f32 %v3306, 1.442695
      %v3321 = vpow.pop %v3320
      %v3322 = vmul.f32 %v3307, 1.442695
      %v3323 = vpow.pop %v3322
      %v3324 = vsel %vm3275, %v3309, 0.0
      %3325 = vadd.xlane.f32.xlu0 %v3324
      %v3326 = vpop.xlane.xlu0 %3325
      %v3327 = vsel %vm3275, %v3311, 0.0
      %3328 = vadd.xlane.f32.xlu0 %v3327
      %v3329 = vpop.xlane.xlu0 %3328
      %v3330 = vsel %vm3275, %v3313, 0.0
      %3331 = vadd.xlane.f32.xlu0 %v3330
      %v3332 = vpop.xlane.xlu0 %3331
      %v3333 = vsel %vm3275, %v3315, 0.0
      %3334 = vadd.xlane.f32.xlu0 %v3333
      %v3335 = vpop.xlane.xlu0 %3334
      %v3336 = vsel %vm3275, %v3317, 0.0
      %3337 = vadd.xlane.f32.xlu0 %v3336
      %v3338 = vpop.xlane.xlu0 %3337
      %v3339 = vsel %vm3275, %v3319, 0.0
      %3340 = vadd.xlane.f32.xlu0 %v3339
      %v3341 = vpop.xlane.xlu0 %3340
      %v3342 = vsel %vm3275, %v3321, 0.0
      %3343 = vadd.xlane.f32.xlu0 %v3342
      %v3344 = vpop.xlane.xlu0 %3343
      %v3345 = vsel %vm3275, %v3323, 0.0
      %3346 = vadd.xlane.f32.xlu0 %v3345
      %v3347 = vpop.xlane.xlu0 %3346
      %v3348 = vrcp.pop %v3326
      %v3349 = vrcp.pop %v3329
      %v3350 = vrcp.pop %v3332
      %v3351 = vrcp.pop %v3335
      %v3352 = vrcp.pop %v3338
      %v3353 = vrcp.pop %v3341
      %v3354 = vrcp.pop %v3344
      %v3355 = vrcp.pop %v3347
      %v3356 = vmul.f32 %v3309, %v3348
      %v3357 = vmul.f32 %v3311, %v3349
      %v3358 = vmul.f32 %v3313, %v3350
      %v3359 = vmul.f32 %v3315, %v3351
      %v3360 = vmul.f32 %v3317, %v3352
      %v3361 = vmul.f32 %v3319, %v3353
      %v3362 = vmul.f32 %v3321, %v3354
      %v3363 = vmul.f32 %v3323, %v3355
      %v3364 = vpack.c.bf16 %v3357, %v3356
      %v3365 = vpack.c.bf16 %v3359, %v3358
      %v3366 = vpack.c.bf16 %v3361, %v3360
      %v3367 = vpack.c.bf16 %v3363, %v3362
      %v3369 = vsel %vm3275, %v3364, 0
      %v3372 = vsel %vm3275, %v3365, 0
      %v3375 = vsel %vm3275, %v3366, 0
      %v3378 = vsel %vm3275, %v3367, 0
      %3380 = vmatpush.bf16.msra.mxu0 0
      %3381 = vmatpush.bf16.msra.mxu0 0
      %3382 = vmatpush.bf16.msra.mxu0 0
      %3383 = vmatpush.bf16.msra.mxu0 0
      %3384 = vmatpush.bf16.msra.mxu0 %v3245
      %3385 = vmatpush.bf16.msra.mxu0 %v3244
      %3386 = vmatpush.bf16.msra.mxu0 %v3243
      %3387 = vmatpush.bf16.msra.mxu0 %v3242
      %3388 = vmatmul.bf16.gmra.mxu0 %v3369
      %v3389 = vpop.f32.mrf.mxu0
      %v3390 = vadd.f32 0.0, %v3389
      %v3391 = vpop.f32.mrf.mxu0
      %v3392 = vadd.f32 0.0, %v3391
      %3393 = vmatmul.bf16.gmra.mxu0 %v3372
      %v3394 = vpop.f32.mrf.mxu0
      %v3395 = vadd.f32 0.0, %v3394
      %v3396 = vpop.f32.mrf.mxu0
      %v3397 = vadd.f32 0.0, %v3396
      %3398 = vmatmul.bf16.gmra.mxu0 %v3375
      %v3399 = vpop.f32.mrf.mxu0
      %v3400 = vadd.f32 0.0, %v3399
      %v3401 = vpop.f32.mrf.mxu0
      %v3402 = vadd.f32 0.0, %v3401
      %3403 = vmatmul.bf16.gmra.mxu0 %v3378
      %v3404 = vpop.f32.mrf.mxu0
      %v3405 = vadd.f32 0.0, %v3404
      %v3406 = vpop.f32.mrf.mxu0
      %v3407 = vadd.f32 0.0, %v3406
      %3408 = vdwg.mxu0
      %v3409 = vpack.c.bf16 %v3392, %v3390
      %v3410 = vpack.c.bf16 %v3397, %v3395
      %v3411 = vpack.c.bf16 %v3402, %v3400
      %v3412 = vpack.c.bf16 %v3407, %v3405
      %v3413 = vld [vmem:[%s6] sm:$0xf]
      %v3414 = vld [vmem:[%s6 + $0x4] sm:$0xf]
      %v3415 = vld [vmem:[%s6 + $0x8] sm:$0xf]
      %v3416 = vld [vmem:[%s6 + $0xc] sm:$0xf]
      %v3417 = vld [vmem:[%s6 + $0x10] sm:$0xf]
      %v3418 = vld [vmem:[%s6 + $0x14] sm:$0xf]
      %v3419 = vld [vmem:[%s6 + $0x18] sm:$0xf]
      %v3420 = vld [vmem:[%s6 + $0x1c] sm:$0xf]
      %v3421 = vld [vmem:[%s6 + $0x20] sm:$0xf]
      %v3422 = vld [vmem:[%s6 + $0x24] sm:$0xf]
      %v3423 = vld [vmem:[%s6 + $0x28] sm:$0xf]
      %v3424 = vld [vmem:[%s6 + $0x2c] sm:$0xf]
      %v3425 = vld [vmem:[%s6 + $0x30] sm:$0xf]
      %v3426 = vld [vmem:[%s6 + $0x34] sm:$0xf]
      %v3427 = vld [vmem:[%s6 + $0x38] sm:$0xf]
      %v3428 = vld [vmem:[%s6 + $0x3c] sm:$0xf]
      %v3429 = vperm.slane %v390, 0
      %v3446 = vunpack.c.l.b16 %v3413
      %v3447 = vunpack.c.l.b16 %v3414
      %v3448 = vunpack.c.l.b16 %v3415
      %v3449 = vunpack.c.l.b16 %v3416
      %v3450 = vunpack.c.l.b16 %v3417
      %v3451 = vunpack.c.l.b16 %v3418
      %v3452 = vunpack.c.l.b16 %v3419
      %v3453 = vunpack.c.l.b16 %v3420
      %v3454 = vunpack.c.l.b16 %v3421
      %v3455 = vunpack.c.l.b16 %v3422
      %v3456 = vunpack.c.l.b16 %v3423
      %v3457 = vunpack.c.l.b16 %v3424
      %v3458 = vunpack.c.l.b16 %v3425
      %v3459 = vunpack.c.l.b16 %v3426
      %v3460 = vunpack.c.l.b16 %v3427
      %v3461 = vunpack.c.l.b16 %v3428
      %v3462 = vpack.c.b16 %v3447, %v3446
      %v3463 = vpack.c.b16 %v3449, %v3448
      %v3464 = vpack.c.b16 %v3451, %v3450
      %v3465 = vpack.c.b16 %v3453, %v3452
      %v3466 = vpack.c.b16 %v3455, %v3454
      %v3467 = vpack.c.b16 %v3457, %v3456
      %v3468 = vpack.c.b16 %v3459, %v3458
      %v3469 = vpack.c.b16 %v3461, %v3460
      %3478 = vmatpush.bf16.msra.mxu0 %v3469
      %3479 = vmatpush.bf16.msra.mxu0 %v3468
      %3480 = vmatpush.bf16.msra.mxu0 %v3467
      %3481 = vmatpush.bf16.msra.mxu0 %v3466
      %3482 = vmatpush.bf16.msra.mxu0 %v3465
      %3483 = vmatpush.bf16.msra.mxu0 %v3464
      %3484 = vmatpush.bf16.msra.mxu0 %v3463
      %3485 = vmatpush.bf16.msra.mxu0 %v3462
      %3486 = vmatmul.bf16.gmra.mxu0 %v3409
      %v3487 = vpop.f32.mrf.mxu0
      %v3488 = vadd.f32 %v3429, %v3487
      %v3489 = vpop.f32.mrf.mxu0
      %v3490 = vadd.f32 %v3429, %v3489
      %3491 = vmatmul.bf16.gmra.mxu0 %v3410
      %v3492 = vpop.f32.mrf.mxu0
      %v3493 = vadd.f32 %v3429, %v3492
      %v3494 = vpop.f32.mrf.mxu0
      %v3495 = vadd.f32 %v3429, %v3494
      %3496 = vmatmul.bf16.gmra.mxu0 %v3411
      %v3497 = vpop.f32.mrf.mxu0
      %v3498 = vadd.f32 %v3429, %v3497
      %v3499 = vpop.f32.mrf.mxu0
      %v3500 = vadd.f32 %v3429, %v3499
      %3501 = vmatmul.bf16.gmra.mxu0 %v3412
      %v3502 = vpop.f32.mrf.mxu0
      %v3503 = vadd.f32 %v3429, %v3502
      %v3504 = vpop.f32.mrf.mxu0
      %v3505 = vadd.f32 %v3429, %v3504
      %3506 = vdwg.mxu0
      %v3507 = vadd.f32 %v2924, %v3488
      %v3508 = vadd.f32 %v2925, %v3490
      %v3509 = vadd.f32 %v2926, %v3493
      %v3510 = vadd.f32 %v2927, %v3495
      %v3511 = vadd.f32 %v2928, %v3498
      %v3512 = vadd.f32 %v2929, %v3500
      %v3513 = vadd.f32 %v2930, %v3503
      %v3514 = vadd.f32 %v2931, %v3505
      %v3515 = vsel %vm397, %v3507, 0.0
      %v3516 = vsel %vm397, %v3508, 0.0
      %v3517 = vadd.f32 %v3515, %v3516
      %v3518 = vsel %vm397, %v3509, 0.0
      %v3519 = vadd.f32 %v3517, %v3518
      %v3520 = vsel %vm397, %v3510, 0.0
      %v3521 = vadd.f32 %v3519, %v3520
      %v3522 = vsel %vm397, %v3511, 0.0
      %v3523 = vadd.f32 %v3521, %v3522
      %v3524 = vsel %vm397, %v3512, 0.0
      %v3525 = vadd.f32 %v3523, %v3524
      %v3526 = vsel %vm397, %v3513, 0.0
      %v3527 = vadd.f32 %v3525, %v3526
      %v3528 = vsel %vm397, %v3514, 0.0
      %v3529 = vadd.f32 %v3527, %v3528
      %v3530 = vrot.slane %v3529, 4
      %v3531 = vadd.f32 %v3529, %v3530
      %v3532 = vrot.slane %v3531, 2
      %v3533 = vadd.f32 %v3531, %v3532
      %v3534 = vrot.slane %v3533, 1
      %v3535 = vadd.f32 %v3533, %v3534
      %v3536 = vmul.f32 %v3507, %v3507
      %v3537 = vmul.f32 %v3508, %v3508
      %v3538 = vmul.f32 %v3509, %v3509
      %v3539 = vmul.f32 %v3510, %v3510
      %v3540 = vmul.f32 %v3511, %v3511
      %v3541 = vmul.f32 %v3512, %v3512
      %v3542 = vmul.f32 %v3513, %v3513
      %v3543 = vmul.f32 %v3514, %v3514
      %v3544 = vsel %vm397, %v3536, 0.0
      %v3545 = vsel %vm397, %v3537, 0.0
      %v3546 = vadd.f32 %v3544, %v3545
      %v3547 = vsel %vm397, %v3538, 0.0
      %v3548 = vadd.f32 %v3546, %v3547
      %v3549 = vsel %vm397, %v3539, 0.0
      %v3550 = vadd.f32 %v3548, %v3549
      %v3551 = vsel %vm397, %v3540, 0.0
      %v3552 = vadd.f32 %v3550, %v3551
      %v3553 = vsel %vm397, %v3541, 0.0
      %v3554 = vadd.f32 %v3552, %v3553
      %v3555 = vsel %vm397, %v3542, 0.0
      %v3556 = vadd.f32 %v3554, %v3555
      %v3557 = vsel %vm397, %v3543, 0.0
      %v3558 = vadd.f32 %v3556, %v3557
      %v3559 = vrot.slane %v3558, 4
      %v3560 = vadd.f32 %v3558, %v3559
      %v3561 = vrot.slane %v3560, 2
      %v3562 = vadd.f32 %v3560, %v3561
      %v3563 = vrot.slane %v3562, 1
      %v3564 = vadd.f32 %v3562, %v3563
      %v3565 = vsel %vm448, %v3535, %v3564
      %v3567 = vsel %vm397, %v3565, 0
      %3569 = vmatpush.msra.mxu0 0.0
      %3570 = vmatpush.msra.mxu0 0.0
      %3571 = vmatpush.msra.mxu0 0.0
      %3572 = vmatpush.msra.mxu0 0.0
      %3573 = vmatpush.msra.mxu0 0.0
      %3574 = vmatpush.msra.mxu0 0.0
      %3575 = vmatpush.msra.mxu0 0.0
      %3576 = vmatpush.msra.mxu0 0.0
      %3577 = vmatpush.msra.mxu0 0.0
      %3578 = vmatpush.msra.mxu0 0.0
      %3579 = vmatpush.msra.mxu0 0.0
      %3580 = vmatpush.msra.mxu0 0.0
      %3581 = vmatpush.msra.mxu0 %v394
      %3582 = vmatpush.msra.mxu0 %v393
      %3583 = vmatpush.msra.mxu0 %v392
      %3584 = vmatpush.msra.mxu0 %v391
      %3585 = vmatmul.f32.gmra.mxu0 %v3567
      %v3586 = vpop.f32.mrf.mxu0
      %v3587 = vadd.f32 0.0, %v3586
      %3588 = vdwg.mxu0
      %v3589 = vmul.f32 %v3587, 0.00390625
      %v3590 = vmul.f32 %v3589, %v3589
      %v3592 = vrot.slane %v3590, 7
      %v3594 = vsub.f32 %v3589, %v3592
      %v3595 = vmax.f32 %v3594, 0.0
      %v3596 = vadd.f32 %v3595, 1e-06
      %v3597 = vrsqrt.pop %v3596
      %v3598 = vmul.f32 %v3597, %v3596
      %v3599 = vmul.f32 %v3598, %v3597
      %v3600 = vmul.f32 0.5, %v3599
      %v3601 = vsub.f32 1.5, %v3600
      %v3602 = vmul.f32 %v3597, %v3601
      %vm3603 = vweird.f32 %v3596
      %vm3604 = vweird.f32 %v3597
      %vm3605 = vmor %vm3603, %vm3604
      %v3606 = vsel %vm3605, %v3597, %v3602
      %v3608 = vrot.slane %v3606, 1
      %v3610 = vmul.f32 %v3589, %v3608
      %v3612 = vrot.slane %v3610, 7
      %v3614 = vsel %vm448, %v3608, %v3612
      %v3616 = vsel %vm499, %v3614, 0
      %3618 = vmatpush.msra.mxu0 0.0
      %3619 = vmatpush.msra.mxu0 0.0
      %3620 = vmatpush.msra.mxu0 0.0
      %3621 = vmatpush.msra.mxu0 0.0
      %3622 = vmatpush.msra.mxu0 0.0
      %3623 = vmatpush.msra.mxu0 0.0
      %3624 = vmatpush.msra.mxu0 0.0
      %3625 = vmatpush.msra.mxu0 0.0
      %3626 = vmatpush.msra.mxu0 0.0
      %3627 = vmatpush.msra.mxu0 0.0
      %3628 = vmatpush.msra.mxu0 0.0
      %3629 = vmatpush.msra.mxu0 0.0
      %3630 = vmatpush.msra.mxu0 0.0
      %3631 = vmatpush.msra.mxu0 0.0
      %3632 = vmatpush.msra.mxu0 0.0
      %3633 = vmatpush.msra.mxu0 %v395
      %3634 = vmatmul.f32.gmra.mxu0 %v3616
      %v3635 = vpop.f32.mrf.mxu0
      %v3636 = vadd.f32 0.0, %v3635
      %3637 = vdwg.mxu0
      %v3639 = vrot.slane %v390, 1
      %v3641 = vmul.f32 %v3636, %v3639
      %v3642 = vmul.f32 %v3636, %v390
      %v3644 = vrot.slane %v3642, 7
      %v3646 = vsub.f32 %v390, %v3644
      %v3647 = vperm.slane %v3641, 0
      %v3648 = vmul.f32 %v3507, %v3647
      %v3649 = vmul.f32 %v3508, %v3647
      %v3650 = vmul.f32 %v3509, %v3647
      %v3651 = vmul.f32 %v3510, %v3647
      %v3652 = vmul.f32 %v3511, %v3647
      %v3653 = vmul.f32 %v3512, %v3647
      %v3654 = vmul.f32 %v3513, %v3647
      %v3655 = vmul.f32 %v3514, %v3647
      %v3656 = vperm.slane %v3646, 2
      %v3657 = vadd.f32 %v3648, %v3656
      %v3658 = vadd.f32 %v3649, %v3656
      %v3659 = vadd.f32 %v3650, %v3656
      %v3660 = vadd.f32 %v3651, %v3656
      %v3661 = vadd.f32 %v3652, %v3656
      %v3662 = vadd.f32 %v3653, %v3656
      %v3663 = vadd.f32 %v3654, %v3656
      %v3664 = vadd.f32 %v3655, %v3656
      %v3665 = vxor.u32 %v3657, 2147483648
      %v3666 = vxor.u32 %v3658, 2147483648
      %v3667 = vxor.u32 %v3659, 2147483648
      %v3668 = vxor.u32 %v3660, 2147483648
      %v3669 = vxor.u32 %v3661, 2147483648
      %v3670 = vxor.u32 %v3662, 2147483648
      %v3671 = vxor.u32 %v3663, 2147483648
      %v3672 = vxor.u32 %v3664, 2147483648
      %v3673 = vmul.f32 %v3665, 1.442695
      %v3674 = vpow.pop %v3673
      %v3675 = vmul.f32 %v3666, 1.442695
      %v3676 = vpow.pop %v3675
      %v3677 = vmul.f32 %v3667, 1.442695
      %v3678 = vpow.pop %v3677
      %v3679 = vmul.f32 %v3668, 1.442695
      %v3680 = vpow.pop %v3679
      %v3681 = vmul.f32 %v3669, 1.442695
      %v3682 = vpow.pop %v3681
      %v3683 = vmul.f32 %v3670, 1.442695
      %v3684 = vpow.pop %v3683
      %v3685 = vmul.f32 %v3671, 1.442695
      %v3686 = vpow.pop %v3685
      %v3687 = vmul.f32 %v3672, 1.442695
      %v3688 = vpow.pop %v3687
      %v3689 = vadd.f32 %v3674, 1.0
      %v3690 = vadd.f32 %v3676, 1.0
      %v3691 = vadd.f32 %v3678, 1.0
      %v3692 = vadd.f32 %v3680, 1.0
      %v3693 = vadd.f32 %v3682, 1.0
      %v3694 = vadd.f32 %v3684, 1.0
      %v3695 = vadd.f32 %v3686, 1.0
      %v3696 = vadd.f32 %v3688, 1.0
      %v3697 = vrcp.pop %v3689
      %v3698 = vmul.f32 %v3689, %v3697
      %v3699 = vsub.f32 1.0, %v3698
      %v3700 = vmul.f32 %v3697, %v3699
      %v3701 = vadd.f32 %v3697, %v3700
      %vm3702 = vweird.f32 %v3689
      %vm3703 = vweird.f32 %v3697
      %vm3704 = vmor %vm3702, %vm3703
      %v3705 = vsel %vm3704, %v3697, %v3701
      %v3706 = vand.u32 2147483647, %v3689
      %vm3707 = vcmp.eq.f32.partialorder %v3706, 8.507059e+37
      %v3708 = vand.u32 %v3689, 2147483648
      %v3709 = vor.u32 1.1754944e-38, %v3708
      %v3710 = vsel %vm3707, %v3709, %v3705
      %v3711 = vmul.f32 1.0, %v3710
      %v3712 = vrcp.pop %v3690
      %v3713 = vmul.f32 %v3690, %v3712
      %v3714 = vsub.f32 1.0, %v3713
      %v3715 = vmul.f32 %v3712, %v3714
      %v3716 = vadd.f32 %v3712, %v3715
      %vm3717 = vweird.f32 %v3690
      %vm3718 = vweird.f32 %v3712
      %vm3719 = vmor %vm3717, %vm3718
      %v3720 = vsel %vm3719, %v3712, %v3716
      %v3721 = vand.u32 2147483647, %v3690
      %vm3722 = vcmp.eq.f32.partialorder %v3721, 8.507059e+37
      %v3723 = vand.u32 %v3690, 2147483648
      %v3724 = vor.u32 1.1754944e-38, %v3723
      %v3725 = vsel %vm3722, %v3724, %v3720
      %v3726 = vmul.f32 1.0, %v3725
      %v3727 = vrcp.pop %v3691
      %v3728 = vmul.f32 %v3691, %v3727
      %v3729 = vsub.f32 1.0, %v3728
      %v3730 = vmul.f32 %v3727, %v3729
      %v3731 = vadd.f32 %v3727, %v3730
      %vm3732 = vweird.f32 %v3691
      %vm3733 = vweird.f32 %v3727
      %vm3734 = vmor %vm3732, %vm3733
      %v3735 = vsel %vm3734, %v3727, %v3731
      %v3736 = vand.u32 2147483647, %v3691
      %vm3737 = vcmp.eq.f32.partialorder %v3736, 8.507059e+37
      %v3738 = vand.u32 %v3691, 2147483648
      %v3739 = vor.u32 1.1754944e-38, %v3738
      %v3740 = vsel %vm3737, %v3739, %v3735
      %v3741 = vmul.f32 1.0, %v3740
      %v3742 = vrcp.pop %v3692
      %v3743 = vmul.f32 %v3692, %v3742
      %v3744 = vsub.f32 1.0, %v3743
      %v3745 = vmul.f32 %v3742, %v3744
      %v3746 = vadd.f32 %v3742, %v3745
      %vm3747 = vweird.f32 %v3692
      %vm3748 = vweird.f32 %v3742
      %vm3749 = vmor %vm3747, %vm3748
      %v3750 = vsel %vm3749, %v3742, %v3746
      %v3751 = vand.u32 2147483647, %v3692
      %vm3752 = vcmp.eq.f32.partialorder %v3751, 8.507059e+37
      %v3753 = vand.u32 %v3692, 2147483648
      %v3754 = vor.u32 1.1754944e-38, %v3753
      %v3755 = vsel %vm3752, %v3754, %v3750
      %v3756 = vmul.f32 1.0, %v3755
      %v3757 = vrcp.pop %v3693
      %v3758 = vmul.f32 %v3693, %v3757
      %v3759 = vsub.f32 1.0, %v3758
      %v3760 = vmul.f32 %v3757, %v3759
      %v3761 = vadd.f32 %v3757, %v3760
      %vm3762 = vweird.f32 %v3693
      %vm3763 = vweird.f32 %v3757
      %vm3764 = vmor %vm3762, %vm3763
      %v3765 = vsel %vm3764, %v3757, %v3761
      %v3766 = vand.u32 2147483647, %v3693
      %vm3767 = vcmp.eq.f32.partialorder %v3766, 8.507059e+37
      %v3768 = vand.u32 %v3693, 2147483648
      %v3769 = vor.u32 1.1754944e-38, %v3768
      %v3770 = vsel %vm3767, %v3769, %v3765
      %v3771 = vmul.f32 1.0, %v3770
      %v3772 = vrcp.pop %v3694
      %v3773 = vmul.f32 %v3694, %v3772
      %v3774 = vsub.f32 1.0, %v3773
      %v3775 = vmul.f32 %v3772, %v3774
      %v3776 = vadd.f32 %v3772, %v3775
      %vm3777 = vweird.f32 %v3694
      %vm3778 = vweird.f32 %v3772
      %vm3779 = vmor %vm3777, %vm3778
      %v3780 = vsel %vm3779, %v3772, %v3776
      %v3781 = vand.u32 2147483647, %v3694
      %vm3782 = vcmp.eq.f32.partialorder %v3781, 8.507059e+37
      %v3783 = vand.u32 %v3694, 2147483648
      %v3784 = vor.u32 1.1754944e-38, %v3783
      %v3785 = vsel %vm3782, %v3784, %v3780
      %v3786 = vmul.f32 1.0, %v3785
      %v3787 = vrcp.pop %v3695
      %v3788 = vmul.f32 %v3695, %v3787
      %v3789 = vsub.f32 1.0, %v3788
      %v3790 = vmul.f32 %v3787, %v3789
      %v3791 = vadd.f32 %v3787, %v3790
      %vm3792 = vweird.f32 %v3695
      %vm3793 = vweird.f32 %v3787
      %vm3794 = vmor %vm3792, %vm3793
      %v3795 = vsel %vm3794, %v3787, %v3791
      %v3796 = vand.u32 2147483647, %v3695
      %vm3797 = vcmp.eq.f32.partialorder %v3796, 8.507059e+37
      %v3798 = vand.u32 %v3695, 2147483648
      %v3799 = vor.u32 1.1754944e-38, %v3798
      %v3800 = vsel %vm3797, %v3799, %v3795
      %v3801 = vmul.f32 1.0, %v3800
      %v3802 = vrcp.pop %v3696
      %v3803 = vmul.f32 %v3696, %v3802
      %v3804 = vsub.f32 1.0, %v3803
      %v3805 = vmul.f32 %v3802, %v3804
      %v3806 = vadd.f32 %v3802, %v3805
      %vm3807 = vweird.f32 %v3696
      %vm3808 = vweird.f32 %v3802
      %vm3809 = vmor %vm3807, %vm3808
      %v3810 = vsel %vm3809, %v3802, %v3806
      %v3811 = vand.u32 2147483647, %v3696
      %vm3812 = vcmp.eq.f32.partialorder %v3811, 8.507059e+37
      %v3813 = vand.u32 %v3696, 2147483648
      %v3814 = vor.u32 1.1754944e-38, %v3813
      %v3815 = vsel %vm3812, %v3814, %v3810
      %v3816 = vmul.f32 1.0, %v3815
      %v3817 = vmul.f32 %v3657, %v3711
      %v3818 = vmul.f32 %v3658, %v3726
      %v3819 = vmul.f32 %v3659, %v3741
      %v3820 = vmul.f32 %v3660, %v3756
      %v3821 = vmul.f32 %v3661, %v3771
      %v3822 = vmul.f32 %v3662, %v3786
      %v3823 = vmul.f32 %v3663, %v3801
      %v3824 = vmul.f32 %v3664, %v3816
      %v3825 = vrot.slane %v3817, 7
      %v3826 = vrot.slane %v3818, 7
      %v3827 = vrot.slane %v3819, 7
      %v3828 = vrot.slane %v3820, 7
      %v3829 = vrot.slane %v3821, 7
      %v3830 = vrot.slane %v3822, 7
      %v3831 = vrot.slane %v3823, 7
      %v3832 = vrot.slane %v3824, 7
      %v3833 = vsel %vm717, %v3831, %v3832
      %v3834 = vsel %vm717, %v3830, %v3831
      %v3835 = vsel %vm717, %v3829, %v3830
      %v3836 = vsel %vm717, %v3828, %v3829
      %v3837 = vsel %vm717, %v3827, %v3828
      %v3838 = vsel %vm717, %v3826, %v3827
      %v3839 = vsel %vm717, %v3825, %v3826
      %v3840 = vsel %vm717, %v3832, %v3825
      %v3841 = vmul.f32 %v3833, %v737
      %v3842 = vmul.f32 %v3840, %v742
      %v3843 = vmul.f32 %v3839, %v747
      %v3844 = vmul.f32 %v3838, %v752
      %v3845 = vmul.f32 %v3837, %v757
      %v3846 = vmul.f32 %v3836, %v762
      %v3847 = vmul.f32 %v3835, %v767
      %v3848 = vmul.f32 %v3834, %v772
      %v3849 = vpack.c.bf16 %v3842, %v3841
      %v3850 = vpack.c.bf16 %v3844, %v3843
      %v3851 = vpack.c.bf16 %v3846, %v3845
      %v3852 = vpack.c.bf16 %v3848, %v3847
      %s3853 = scalar_lea.vmem %s4, 288
      %v3854 = vld [vmem:[%s3853] sm:$0xf]
      %v3855 = vld [vmem:[%s3853 + $0x4] sm:$0xf]
      %v3856 = vld [vmem:[%s3853 + $0x8] sm:$0xf]
      %v3857 = vld [vmem:[%s3853 + $0xc] sm:$0xf]
      %v3858 = vmul.f32 %v3824, %v802
      %v3859 = vmul.f32 %v3817, %v807
      %v3860 = vmul.f32 %v3818, %v812
      %v3861 = vmul.f32 %v3819, %v817
      %v3862 = vmul.f32 %v3820, %v822
      %v3863 = vmul.f32 %v3821, %v827
      %v3864 = vmul.f32 %v3822, %v832
      %v3865 = vmul.f32 %v3823, %v837
      %v3866 = vpack.c.bf16 %v3859, %v3858
      %v3867 = vpack.c.bf16 %v3861, %v3860
      %v3868 = vpack.c.bf16 %v3863, %v3862
      %v3869 = vpack.c.bf16 %v3865, %v3864
      %s3870 = scalar_lea.vmem %s4, 304
      %v3871 = vld [vmem:[%s3870] sm:$0xf]
      %v3872 = vld [vmem:[%s3870 + $0x4] sm:$0xf]
      %v3873 = vld [vmem:[%s3870 + $0x8] sm:$0xf]
      %v3874 = vld [vmem:[%s3870 + $0xc] sm:$0xf]
      %v3879 = vunpack.c.l.b16 %v3871
      %v3880 = vunpack.c.l.b16 %v3872
      %v3881 = vunpack.c.l.b16 %v3873
      %v3882 = vunpack.c.l.b16 %v3874
      %v3883 = vpack.c.b16 %v3880, %v3879
      %v3884 = vpack.c.b16 %v3882, %v3881
      %v3888 = vsel %vm397, %v3866, 0
      %v3891 = vsel %vm397, %v3867, 0
      %v3894 = vsel %vm397, %v3868, 0
      %v3897 = vsel %vm397, %v3869, 0
      %3899 = vmatpush.bf16.msra.mxu0 0
      %3900 = vmatpush.bf16.msra.mxu0 0
      %3901 = vmatpush.bf16.msra.mxu0 0
      %3902 = vmatpush.bf16.msra.mxu0 0
      %3903 = vmatpush.bf16.msra.mxu0 0
      %3904 = vmatpush.bf16.msra.mxu0 0
      %3905 = vmatpush.bf16.msra.mxu0 %v3884
      %3906 = vmatpush.bf16.msra.mxu0 %v3883
      %3907 = vmatmul.bf16.gmra.mxu0 %v3888
      %v3908 = vpop.f32.mrf.mxu0
      %v3909 = vadd.f32 0.0, %v3908
      %v3910 = vpop.f32.mrf.mxu0
      %v3911 = vadd.f32 0.0, %v3910
      %3912 = vmatmul.bf16.gmra.mxu0 %v3891
      %v3913 = vpop.f32.mrf.mxu0
      %v3914 = vadd.f32 0.0, %v3913
      %v3915 = vpop.f32.mrf.mxu0
      %v3916 = vadd.f32 0.0, %v3915
      %3917 = vmatmul.bf16.gmra.mxu0 %v3894
      %v3918 = vpop.f32.mrf.mxu0
      %v3919 = vadd.f32 0.0, %v3918
      %v3920 = vpop.f32.mrf.mxu0
      %v3921 = vadd.f32 0.0, %v3920
      %3922 = vmatmul.bf16.gmra.mxu0 %v3897
      %v3923 = vpop.f32.mrf.mxu0
      %v3924 = vadd.f32 0.0, %v3923
      %v3925 = vpop.f32.mrf.mxu0
      %v3926 = vadd.f32 0.0, %v3925
      %3927 = vdwg.mxu0
      %v3932 = vunpack.c.l.b16 %v3854
      %v3933 = vunpack.c.l.b16 %v3855
      %v3934 = vunpack.c.l.b16 %v3856
      %v3935 = vunpack.c.l.b16 %v3857
      %v3936 = vpack.c.b16 %v3933, %v3932
      %v3937 = vpack.c.b16 %v3935, %v3934
      %v3941 = vsel %vm397, %v3849, 0
      %v3944 = vsel %vm397, %v3850, 0
      %v3947 = vsel %vm397, %v3851, 0
      %v3950 = vsel %vm397, %v3852, 0
      %3952 = vmatpush.bf16.msra.mxu0 0
      %3953 = vmatpush.bf16.msra.mxu0 0
      %3954 = vmatpush.bf16.msra.mxu0 0
      %3955 = vmatpush.bf16.msra.mxu0 0
      %3956 = vmatpush.bf16.msra.mxu0 0
      %3957 = vmatpush.bf16.msra.mxu0 0
      %3958 = vmatpush.bf16.msra.mxu0 %v3937
      %3959 = vmatpush.bf16.msra.mxu0 %v3936
      %3960 = vmatmul.bf16.gmra.mxu0 %v3941
      %v3961 = vpop.f32.mrf.mxu0
      %v3962 = vadd.f32 %v3909, %v3961
      %v3963 = vpop.f32.mrf.mxu0
      %v3964 = vadd.f32 %v3911, %v3963
      %3965 = vmatmul.bf16.gmra.mxu0 %v3944
      %v3966 = vpop.f32.mrf.mxu0
      %v3967 = vadd.f32 %v3914, %v3966
      %v3968 = vpop.f32.mrf.mxu0
      %v3969 = vadd.f32 %v3916, %v3968
      %3970 = vmatmul.bf16.gmra.mxu0 %v3947
      %v3971 = vpop.f32.mrf.mxu0
      %v3972 = vadd.f32 %v3919, %v3971
      %v3973 = vpop.f32.mrf.mxu0
      %v3974 = vadd.f32 %v3921, %v3973
      %3975 = vmatmul.bf16.gmra.mxu0 %v3950
      %v3976 = vpop.f32.mrf.mxu0
      %v3977 = vadd.f32 %v3924, %v3976
      %v3978 = vpop.f32.mrf.mxu0
      %v3979 = vadd.f32 %v3926, %v3978
      %3980 = vdwg.mxu0
      %v3981 = vrot.slane %v3817, 1
      %v3982 = vrot.slane %v3818, 1
      %v3983 = vrot.slane %v3819, 1
      %v3984 = vrot.slane %v3820, 1
      %v3985 = vrot.slane %v3821, 1
      %v3986 = vrot.slane %v3822, 1
      %v3987 = vrot.slane %v3823, 1
      %v3988 = vrot.slane %v3824, 1
      %v3989 = vsel %vm970, %v3987, %v3988
      %v3990 = vsel %vm970, %v3986, %v3987
      %v3991 = vsel %vm970, %v3985, %v3986
      %v3992 = vsel %vm970, %v3984, %v3985
      %v3993 = vsel %vm970, %v3983, %v3984
      %v3994 = vsel %vm970, %v3982, %v3983
      %v3995 = vsel %vm970, %v3981, %v3982
      %v3996 = vsel %vm970, %v3988, %v3981
      %v3997 = vmul.f32 %v3996, %v991
      %v3998 = vmul.f32 %v3995, %v996
      %v3999 = vmul.f32 %v3994, %v1001
      %v4000 = vmul.f32 %v3993, %v1006
      %v4001 = vmul.f32 %v3992, %v1011
      %v4002 = vmul.f32 %v3991, %v1016
      %v4003 = vmul.f32 %v3990, %v1021
      %v4004 = vmul.f32 %v3989, %v1026
      %v4005 = vpack.c.bf16 %v3998, %v3997
      %v4006 = vpack.c.bf16 %v4000, %v3999
      %v4007 = vpack.c.bf16 %v4002, %v4001
      %v4008 = vpack.c.bf16 %v4004, %v4003
      %s4009 = scalar_lea.vmem %s4, 320
      %v4010 = vld [vmem:[%s4009] sm:$0xf]
      %v4011 = vld [vmem:[%s4009 + $0x4] sm:$0xf]
      %v4012 = vld [vmem:[%s4009 + $0x8] sm:$0xf]
      %v4013 = vld [vmem:[%s4009 + $0xc] sm:$0xf]
      %v4018 = vunpack.c.l.b16 %v4010
      %v4019 = vunpack.c.l.b16 %v4011
      %v4020 = vunpack.c.l.b16 %v4012
      %v4021 = vunpack.c.l.b16 %v4013
      %v4022 = vpack.c.b16 %v4019, %v4018
      %v4023 = vpack.c.b16 %v4021, %v4020
      %v4027 = vsel %vm397, %v4005, 0
      %v4030 = vsel %vm397, %v4006, 0
      %v4033 = vsel %vm397, %v4007, 0
      %v4036 = vsel %vm397, %v4008, 0
      %4038 = vmatpush.bf16.msra.mxu0 0
      %4039 = vmatpush.bf16.msra.mxu0 0
      %4040 = vmatpush.bf16.msra.mxu0 0
      %4041 = vmatpush.bf16.msra.mxu0 0
      %4042 = vmatpush.bf16.msra.mxu0 0
      %4043 = vmatpush.bf16.msra.mxu0 0
      %4044 = vmatpush.bf16.msra.mxu0 %v4023
      %4045 = vmatpush.bf16.msra.mxu0 %v4022
      %4046 = vmatmul.bf16.gmra.mxu0 %v4027
      %v4047 = vpop.f32.mrf.mxu0
      %v4048 = vadd.f32 0.0, %v4047
      %v4049 = vpop.f32.mrf.mxu0
      %v4050 = vadd.f32 0.0, %v4049
      %4051 = vmatmul.bf16.gmra.mxu0 %v4030
      %v4052 = vpop.f32.mrf.mxu0
      %v4053 = vadd.f32 0.0, %v4052
      %v4054 = vpop.f32.mrf.mxu0
      %v4055 = vadd.f32 0.0, %v4054
      %4056 = vmatmul.bf16.gmra.mxu0 %v4033
      %v4057 = vpop.f32.mrf.mxu0
      %v4058 = vadd.f32 0.0, %v4057
      %v4059 = vpop.f32.mrf.mxu0
      %v4060 = vadd.f32 0.0, %v4059
      %4061 = vmatmul.bf16.gmra.mxu0 %v4036
      %v4062 = vpop.f32.mrf.mxu0
      %v4063 = vadd.f32 0.0, %v4062
      %v4064 = vpop.f32.mrf.mxu0
      %v4065 = vadd.f32 0.0, %v4064
      %4066 = vdwg.mxu0
      %v4067 = vadd.f32 %v3962, %v4048
      %v4068 = vadd.f32 %v3964, %v4050
      %v4069 = vadd.f32 %v3967, %v4053
      %v4070 = vadd.f32 %v3969, %v4055
      %v4071 = vadd.f32 %v3972, %v4058
      %v4072 = vadd.f32 %v3974, %v4060
      %v4073 = vadd.f32 %v3977, %v4063
      %v4074 = vadd.f32 %v3979, %v4065
      %v4075 = vmul.f32 %v3840, %v1118
      %v4076 = vmul.f32 %v3839, %v1123
      %v4077 = vmul.f32 %v3838, %v1128
      %v4078 = vmul.f32 %v3837, %v1133
      %v4079 = vmul.f32 %v3836, %v1138
      %v4080 = vmul.f32 %v3835, %v1143
      %v4081 = vmul.f32 %v3834, %v1148
      %v4082 = vmul.f32 %v3833, %v1153
      %v4083 = vpack.c.bf16 %v4076, %v4075
      %v4084 = vpack.c.bf16 %v4078, %v4077
      %v4085 = vpack.c.bf16 %v4080, %v4079
      %v4086 = vpack.c.bf16 %v4082, %v4081
      %s4087 = scalar_lea.vmem %s4, 336
      %v4088 = vld [vmem:[%s4087] sm:$0xf]
      %v4089 = vld [vmem:[%s4087 + $0x4] sm:$0xf]
      %v4090 = vld [vmem:[%s4087 + $0x8] sm:$0xf]
      %v4091 = vld [vmem:[%s4087 + $0xc] sm:$0xf]
      %v4096 = vunpack.c.l.b16 %v4088
      %v4097 = vunpack.c.l.b16 %v4089
      %v4098 = vunpack.c.l.b16 %v4090
      %v4099 = vunpack.c.l.b16 %v4091
      %v4100 = vpack.c.b16 %v4097, %v4096
      %v4101 = vpack.c.b16 %v4099, %v4098
      %v4105 = vsel %vm397, %v4083, 0
      %v4108 = vsel %vm397, %v4084, 0
      %v4111 = vsel %vm397, %v4085, 0
      %v4114 = vsel %vm397, %v4086, 0
      %4116 = vmatpush.bf16.msra.mxu0 0
      %4117 = vmatpush.bf16.msra.mxu0 0
      %4118 = vmatpush.bf16.msra.mxu0 0
      %4119 = vmatpush.bf16.msra.mxu0 0
      %4120 = vmatpush.bf16.msra.mxu0 0
      %4121 = vmatpush.bf16.msra.mxu0 0
      %4122 = vmatpush.bf16.msra.mxu0 %v4101
      %4123 = vmatpush.bf16.msra.mxu0 %v4100
      %4124 = vmatmul.bf16.gmra.mxu0 %v4105
      %v4125 = vpop.f32.mrf.mxu0
      %v4126 = vadd.f32 0.0, %v4125
      %v4127 = vpop.f32.mrf.mxu0
      %v4128 = vadd.f32 0.0, %v4127
      %4129 = vmatmul.bf16.gmra.mxu0 %v4108
      %v4130 = vpop.f32.mrf.mxu0
      %v4131 = vadd.f32 0.0, %v4130
      %v4132 = vpop.f32.mrf.mxu0
      %v4133 = vadd.f32 0.0, %v4132
      %4134 = vmatmul.bf16.gmra.mxu0 %v4111
      %v4135 = vpop.f32.mrf.mxu0
      %v4136 = vadd.f32 0.0, %v4135
      %v4137 = vpop.f32.mrf.mxu0
      %v4138 = vadd.f32 0.0, %v4137
      %4139 = vmatmul.bf16.gmra.mxu0 %v4114
      %v4140 = vpop.f32.mrf.mxu0
      %v4141 = vadd.f32 0.0, %v4140
      %v4142 = vpop.f32.mrf.mxu0
      %v4143 = vadd.f32 0.0, %v4142
      %4144 = vdwg.mxu0
      %v4145 = vadd.f32 %v4067, %v4126
      %v4146 = vadd.f32 %v4068, %v4128
      %v4147 = vadd.f32 %v4069, %v4131
      %v4148 = vadd.f32 %v4070, %v4133
      %v4149 = vadd.f32 %v4071, %v4136
      %v4150 = vadd.f32 %v4072, %v4138
      %v4151 = vadd.f32 %v4073, %v4141
      %v4152 = vadd.f32 %v4074, %v4143
      %v4153 = vmul.f32 %v3817, %v1245
      %v4154 = vmul.f32 %v3818, %v1250
      %v4155 = vmul.f32 %v3819, %v1255
      %v4156 = vmul.f32 %v3820, %v1260
      %v4157 = vmul.f32 %v3821, %v1265
      %v4158 = vmul.f32 %v3822, %v1270
      %v4159 = vmul.f32 %v3823, %v1275
      %v4160 = vmul.f32 %v3824, %v1280
      %v4161 = vpack.c.bf16 %v4154, %v4153
      %v4162 = vpack.c.bf16 %v4156, %v4155
      %v4163 = vpack.c.bf16 %v4158, %v4157
      %v4164 = vpack.c.bf16 %v4160, %v4159
      %s4165 = scalar_lea.vmem %s4, 352
      %v4166 = vld [vmem:[%s4165] sm:$0xf]
      %v4167 = vld [vmem:[%s4165 + $0x4] sm:$0xf]
      %v4168 = vld [vmem:[%s4165 + $0x8] sm:$0xf]
      %v4169 = vld [vmem:[%s4165 + $0xc] sm:$0xf]
      %v4174 = vunpack.c.l.b16 %v4166
      %v4175 = vunpack.c.l.b16 %v4167
      %v4176 = vunpack.c.l.b16 %v4168
      %v4177 = vunpack.c.l.b16 %v4169
      %v4178 = vpack.c.b16 %v4175, %v4174
      %v4179 = vpack.c.b16 %v4177, %v4176
      %v4183 = vsel %vm397, %v4161, 0
      %v4186 = vsel %vm397, %v4162, 0
      %v4189 = vsel %vm397, %v4163, 0
      %v4192 = vsel %vm397, %v4164, 0
      %4194 = vmatpush.bf16.msra.mxu0 0
      %4195 = vmatpush.bf16.msra.mxu0 0
      %4196 = vmatpush.bf16.msra.mxu0 0
      %4197 = vmatpush.bf16.msra.mxu0 0
      %4198 = vmatpush.bf16.msra.mxu0 0
      %4199 = vmatpush.bf16.msra.mxu0 0
      %4200 = vmatpush.bf16.msra.mxu0 %v4179
      %4201 = vmatpush.bf16.msra.mxu0 %v4178
      %4202 = vmatmul.bf16.gmra.mxu0 %v4183
      %v4203 = vpop.f32.mrf.mxu0
      %v4204 = vadd.f32 0.0, %v4203
      %v4205 = vpop.f32.mrf.mxu0
      %v4206 = vadd.f32 0.0, %v4205
      %4207 = vmatmul.bf16.gmra.mxu0 %v4186
      %v4208 = vpop.f32.mrf.mxu0
      %v4209 = vadd.f32 0.0, %v4208
      %v4210 = vpop.f32.mrf.mxu0
      %v4211 = vadd.f32 0.0, %v4210
      %4212 = vmatmul.bf16.gmra.mxu0 %v4189
      %v4213 = vpop.f32.mrf.mxu0
      %v4214 = vadd.f32 0.0, %v4213
      %v4215 = vpop.f32.mrf.mxu0
      %v4216 = vadd.f32 0.0, %v4215
      %4217 = vmatmul.bf16.gmra.mxu0 %v4192
      %v4218 = vpop.f32.mrf.mxu0
      %v4219 = vadd.f32 0.0, %v4218
      %v4220 = vpop.f32.mrf.mxu0
      %v4221 = vadd.f32 0.0, %v4220
      %4222 = vdwg.mxu0
      %v4223 = vadd.f32 %v4145, %v4204
      %v4224 = vadd.f32 %v4146, %v4206
      %v4225 = vadd.f32 %v4147, %v4209
      %v4226 = vadd.f32 %v4148, %v4211
      %v4227 = vadd.f32 %v4149, %v4214
      %v4228 = vadd.f32 %v4150, %v4216
      %v4229 = vadd.f32 %v4151, %v4219
      %v4230 = vadd.f32 %v4152, %v4221
      %v4231 = vmul.f32 %v3995, %v1372
      %v4232 = vmul.f32 %v3994, %v1377
      %v4233 = vmul.f32 %v3993, %v1382
      %v4234 = vmul.f32 %v3992, %v1387
      %v4235 = vmul.f32 %v3991, %v1392
      %v4236 = vmul.f32 %v3990, %v1397
      %v4237 = vmul.f32 %v3989, %v1402
      %v4238 = vmul.f32 %v3996, %v1407
      %v4239 = vpack.c.bf16 %v4232, %v4231
      %v4240 = vpack.c.bf16 %v4234, %v4233
      %v4241 = vpack.c.bf16 %v4236, %v4235
      %v4242 = vpack.c.bf16 %v4238, %v4237
      %s4243 = scalar_lea.vmem %s4, 368
      %v4244 = vld [vmem:[%s4243] sm:$0xf]
      %v4245 = vld [vmem:[%s4243 + $0x4] sm:$0xf]
      %v4246 = vld [vmem:[%s4243 + $0x8] sm:$0xf]
      %v4247 = vld [vmem:[%s4243 + $0xc] sm:$0xf]
      %v4252 = vunpack.c.l.b16 %v4244
      %v4253 = vunpack.c.l.b16 %v4245
      %v4254 = vunpack.c.l.b16 %v4246
      %v4255 = vunpack.c.l.b16 %v4247
      %v4256 = vpack.c.b16 %v4253, %v4252
      %v4257 = vpack.c.b16 %v4255, %v4254
      %v4261 = vsel %vm397, %v4239, 0
      %v4264 = vsel %vm397, %v4240, 0
      %v4267 = vsel %vm397, %v4241, 0
      %v4270 = vsel %vm397, %v4242, 0
      %4272 = vmatpush.bf16.msra.mxu0 0
      %4273 = vmatpush.bf16.msra.mxu0 0
      %4274 = vmatpush.bf16.msra.mxu0 0
      %4275 = vmatpush.bf16.msra.mxu0 0
      %4276 = vmatpush.bf16.msra.mxu0 0
      %4277 = vmatpush.bf16.msra.mxu0 0
      %4278 = vmatpush.bf16.msra.mxu0 %v4257
      %4279 = vmatpush.bf16.msra.mxu0 %v4256
      %4280 = vmatmul.bf16.gmra.mxu0 %v4261
      %v4281 = vpop.f32.mrf.mxu0
      %v4282 = vadd.f32 0.0, %v4281
      %v4283 = vpop.f32.mrf.mxu0
      %v4284 = vadd.f32 0.0, %v4283
      %4285 = vmatmul.bf16.gmra.mxu0 %v4264
      %v4286 = vpop.f32.mrf.mxu0
      %v4287 = vadd.f32 0.0, %v4286
      %v4288 = vpop.f32.mrf.mxu0
      %v4289 = vadd.f32 0.0, %v4288
      %4290 = vmatmul.bf16.gmra.mxu0 %v4267
      %v4291 = vpop.f32.mrf.mxu0
      %v4292 = vadd.f32 0.0, %v4291
      %v4293 = vpop.f32.mrf.mxu0
      %v4294 = vadd.f32 0.0, %v4293
      %4295 = vmatmul.bf16.gmra.mxu0 %v4270
      %v4296 = vpop.f32.mrf.mxu0
      %v4297 = vadd.f32 0.0, %v4296
      %v4298 = vpop.f32.mrf.mxu0
      %v4299 = vadd.f32 0.0, %v4298
      %4300 = vdwg.mxu0
      %v4301 = vadd.f32 %v4223, %v4282
      %v4302 = vadd.f32 %v4224, %v4284
      %v4303 = vadd.f32 %v4225, %v4287
      %v4304 = vadd.f32 %v4226, %v4289
      %v4305 = vadd.f32 %v4227, %v4292
      %v4306 = vadd.f32 %v4228, %v4294
      %v4307 = vadd.f32 %v4229, %v4297
      %v4308 = vadd.f32 %v4230, %v4299
      %v4309 = vmul.f32 %v3839, %v1499
      %v4310 = vmul.f32 %v3838, %v1504
      %v4311 = vmul.f32 %v3837, %v1509
      %v4312 = vmul.f32 %v3836, %v1514
      %v4313 = vmul.f32 %v3835, %v1519
      %v4314 = vmul.f32 %v3834, %v1524
      %v4315 = vmul.f32 %v3833, %v1529
      %v4316 = vmul.f32 %v3840, %v1534
      %v4317 = vpack.c.bf16 %v4310, %v4309
      %v4318 = vpack.c.bf16 %v4312, %v4311
      %v4319 = vpack.c.bf16 %v4314, %v4313
      %v4320 = vpack.c.bf16 %v4316, %v4315
      %s4321 = scalar_lea.vmem %s4, 384
      %v4322 = vld [vmem:[%s4321] sm:$0xf]
      %v4323 = vld [vmem:[%s4321 + $0x4] sm:$0xf]
      %v4324 = vld [vmem:[%s4321 + $0x8] sm:$0xf]
      %v4325 = vld [vmem:[%s4321 + $0xc] sm:$0xf]
      %v4330 = vunpack.c.l.b16 %v4322
      %v4331 = vunpack.c.l.b16 %v4323
      %v4332 = vunpack.c.l.b16 %v4324
      %v4333 = vunpack.c.l.b16 %v4325
      %v4334 = vpack.c.b16 %v4331, %v4330
      %v4335 = vpack.c.b16 %v4333, %v4332
      %v4339 = vsel %vm397, %v4317, 0
      %v4342 = vsel %vm397, %v4318, 0
      %v4345 = vsel %vm397, %v4319, 0
      %v4348 = vsel %vm397, %v4320, 0
      %4350 = vmatpush.bf16.msra.mxu0 0
      %4351 = vmatpush.bf16.msra.mxu0 0
      %4352 = vmatpush.bf16.msra.mxu0 0
      %4353 = vmatpush.bf16.msra.mxu0 0
      %4354 = vmatpush.bf16.msra.mxu0 0
      %4355 = vmatpush.bf16.msra.mxu0 0
      %4356 = vmatpush.bf16.msra.mxu0 %v4335
      %4357 = vmatpush.bf16.msra.mxu0 %v4334
      %4358 = vmatmul.bf16.gmra.mxu0 %v4339
      %v4359 = vpop.f32.mrf.mxu0
      %v4360 = vadd.f32 0.0, %v4359
      %v4361 = vpop.f32.mrf.mxu0
      %v4362 = vadd.f32 0.0, %v4361
      %4363 = vmatmul.bf16.gmra.mxu0 %v4342
      %v4364 = vpop.f32.mrf.mxu0
      %v4365 = vadd.f32 0.0, %v4364
      %v4366 = vpop.f32.mrf.mxu0
      %v4367 = vadd.f32 0.0, %v4366
      %4368 = vmatmul.bf16.gmra.mxu0 %v4345
      %v4369 = vpop.f32.mrf.mxu0
      %v4370 = vadd.f32 0.0, %v4369
      %v4371 = vpop.f32.mrf.mxu0
      %v4372 = vadd.f32 0.0, %v4371
      %4373 = vmatmul.bf16.gmra.mxu0 %v4348
      %v4374 = vpop.f32.mrf.mxu0
      %v4375 = vadd.f32 0.0, %v4374
      %v4376 = vpop.f32.mrf.mxu0
      %v4377 = vadd.f32 0.0, %v4376
      %4378 = vdwg.mxu0
      %v4379 = vadd.f32 %v4301, %v4360
      %v4380 = vadd.f32 %v4302, %v4362
      %v4381 = vadd.f32 %v4303, %v4365
      %v4382 = vadd.f32 %v4304, %v4367
      %v4383 = vadd.f32 %v4305, %v4370
      %v4384 = vadd.f32 %v4306, %v4372
      %v4385 = vadd.f32 %v4307, %v4375
      %v4386 = vadd.f32 %v4308, %v4377
      %v4387 = vmul.f32 %v3818, %v1626
      %v4388 = vmul.f32 %v3819, %v1631
      %v4389 = vmul.f32 %v3820, %v1636
      %v4390 = vmul.f32 %v3821, %v1641
      %v4391 = vmul.f32 %v3822, %v1646
      %v4392 = vmul.f32 %v3823, %v1651
      %v4393 = vmul.f32 %v3824, %v1656
      %v4394 = vmul.f32 %v3817, %v1661
      %v4395 = vpack.c.bf16 %v4388, %v4387
      %v4396 = vpack.c.bf16 %v4390, %v4389
      %v4397 = vpack.c.bf16 %v4392, %v4391
      %v4398 = vpack.c.bf16 %v4394, %v4393
      %s4399 = scalar_lea.vmem %s4, 400
      %v4400 = vld [vmem:[%s4399] sm:$0xf]
      %v4401 = vld [vmem:[%s4399 + $0x4] sm:$0xf]
      %v4402 = vld [vmem:[%s4399 + $0x8] sm:$0xf]
      %v4403 = vld [vmem:[%s4399 + $0xc] sm:$0xf]
      %v4408 = vunpack.c.l.b16 %v4400
      %v4409 = vunpack.c.l.b16 %v4401
      %v4410 = vunpack.c.l.b16 %v4402
      %v4411 = vunpack.c.l.b16 %v4403
      %v4412 = vpack.c.b16 %v4409, %v4408
      %v4413 = vpack.c.b16 %v4411, %v4410
      %v4417 = vsel %vm397, %v4395, 0
      %v4420 = vsel %vm397, %v4396, 0
      %v4423 = vsel %vm397, %v4397, 0
      %v4426 = vsel %vm397, %v4398, 0
      %4428 = vmatpush.bf16.msra.mxu0 0
      %4429 = vmatpush.bf16.msra.mxu0 0
      %4430 = vmatpush.bf16.msra.mxu0 0
      %4431 = vmatpush.bf16.msra.mxu0 0
      %4432 = vmatpush.bf16.msra.mxu0 0
      %4433 = vmatpush.bf16.msra.mxu0 0
      %4434 = vmatpush.bf16.msra.mxu0 %v4413
      %4435 = vmatpush.bf16.msra.mxu0 %v4412
      %4436 = vmatmul.bf16.gmra.mxu0 %v4417
      %v4437 = vpop.f32.mrf.mxu0
      %v4438 = vadd.f32 0.0, %v4437
      %v4439 = vpop.f32.mrf.mxu0
      %v4440 = vadd.f32 0.0, %v4439
      %4441 = vmatmul.bf16.gmra.mxu0 %v4420
      %v4442 = vpop.f32.mrf.mxu0
      %v4443 = vadd.f32 0.0, %v4442
      %v4444 = vpop.f32.mrf.mxu0
      %v4445 = vadd.f32 0.0, %v4444
      %4446 = vmatmul.bf16.gmra.mxu0 %v4423
      %v4447 = vpop.f32.mrf.mxu0
      %v4448 = vadd.f32 0.0, %v4447
      %v4449 = vpop.f32.mrf.mxu0
      %v4450 = vadd.f32 0.0, %v4449
      %4451 = vmatmul.bf16.gmra.mxu0 %v4426
      %v4452 = vpop.f32.mrf.mxu0
      %v4453 = vadd.f32 0.0, %v4452
      %v4454 = vpop.f32.mrf.mxu0
      %v4455 = vadd.f32 0.0, %v4454
      %4456 = vdwg.mxu0
      %v4457 = vadd.f32 %v4379, %v4438
      %v4458 = vadd.f32 %v4380, %v4440
      %v4459 = vadd.f32 %v4381, %v4443
      %v4460 = vadd.f32 %v4382, %v4445
      %v4461 = vadd.f32 %v4383, %v4448
      %v4462 = vadd.f32 %v4384, %v4450
      %v4463 = vadd.f32 %v4385, %v4453
      %v4464 = vadd.f32 %v4386, %v4455
      %v4465 = vmul.f32 %v3994, %v1753
      %v4466 = vmul.f32 %v3993, %v1758
      %v4467 = vmul.f32 %v3992, %v1763
      %v4468 = vmul.f32 %v3991, %v1768
      %v4469 = vmul.f32 %v3990, %v1773
      %v4470 = vmul.f32 %v3989, %v1778
      %v4471 = vmul.f32 %v3996, %v1783
      %v4472 = vmul.f32 %v3995, %v1788
      %v4473 = vpack.c.bf16 %v4466, %v4465
      %v4474 = vpack.c.bf16 %v4468, %v4467
      %v4475 = vpack.c.bf16 %v4470, %v4469
      %v4476 = vpack.c.bf16 %v4472, %v4471
      %s4477 = scalar_lea.vmem %s4, 416
      %v4478 = vld [vmem:[%s4477] sm:$0xf]
      %v4479 = vld [vmem:[%s4477 + $0x4] sm:$0xf]
      %v4480 = vld [vmem:[%s4477 + $0x8] sm:$0xf]
      %v4481 = vld [vmem:[%s4477 + $0xc] sm:$0xf]
      %v4486 = vunpack.c.l.b16 %v4478
      %v4487 = vunpack.c.l.b16 %v4479
      %v4488 = vunpack.c.l.b16 %v4480
      %v4489 = vunpack.c.l.b16 %v4481
      %v4490 = vpack.c.b16 %v4487, %v4486
      %v4491 = vpack.c.b16 %v4489, %v4488
      %v4495 = vsel %vm397, %v4473, 0
      %v4498 = vsel %vm397, %v4474, 0
      %v4501 = vsel %vm397, %v4475, 0
      %v4504 = vsel %vm397, %v4476, 0
      %4506 = vmatpush.bf16.msra.mxu0 0
      %4507 = vmatpush.bf16.msra.mxu0 0
      %4508 = vmatpush.bf16.msra.mxu0 0
      %4509 = vmatpush.bf16.msra.mxu0 0
      %4510 = vmatpush.bf16.msra.mxu0 0
      %4511 = vmatpush.bf16.msra.mxu0 0
      %4512 = vmatpush.bf16.msra.mxu0 %v4491
      %4513 = vmatpush.bf16.msra.mxu0 %v4490
      %4514 = vmatmul.bf16.gmra.mxu0 %v4495
      %v4515 = vpop.f32.mrf.mxu0
      %v4516 = vadd.f32 0.0, %v4515
      %v4517 = vpop.f32.mrf.mxu0
      %v4518 = vadd.f32 0.0, %v4517
      %4519 = vmatmul.bf16.gmra.mxu0 %v4498
      %v4520 = vpop.f32.mrf.mxu0
      %v4521 = vadd.f32 0.0, %v4520
      %v4522 = vpop.f32.mrf.mxu0
      %v4523 = vadd.f32 0.0, %v4522
      %4524 = vmatmul.bf16.gmra.mxu0 %v4501
      %v4525 = vpop.f32.mrf.mxu0
      %v4526 = vadd.f32 0.0, %v4525
      %v4527 = vpop.f32.mrf.mxu0
      %v4528 = vadd.f32 0.0, %v4527
      %4529 = vmatmul.bf16.gmra.mxu0 %v4504
      %v4530 = vpop.f32.mrf.mxu0
      %v4531 = vadd.f32 0.0, %v4530
      %v4532 = vpop.f32.mrf.mxu0
      %v4533 = vadd.f32 0.0, %v4532
      %4534 = vdwg.mxu0
      %v4535 = vadd.f32 %v4457, %v4516
      %v4536 = vadd.f32 %v4458, %v4518
      %v4537 = vadd.f32 %v4459, %v4521
      %v4538 = vadd.f32 %v4460, %v4523
      %v4539 = vadd.f32 %v4461, %v4526
      %v4540 = vadd.f32 %v4462, %v4528
      %v4541 = vadd.f32 %v4463, %v4531
      %v4542 = vadd.f32 %v4464, %v4533
      %v4543 = vperm.slane %v390, 3
      %v4544 = vadd.f32 %v4535, %v4543
      %v4545 = vadd.f32 %v4536, %v4543
      %v4546 = vadd.f32 %v4537, %v4543
      %v4547 = vadd.f32 %v4538, %v4543
      %v4548 = vadd.f32 %v4539, %v4543
      %v4549 = vadd.f32 %v4540, %v4543
      %v4550 = vadd.f32 %v4541, %v4543
      %v4551 = vadd.f32 %v4542, %v4543
      %v4552 = vperm.slane %v396, 1
      %v4553 = vadd.f32 %v4544, %v4552
      %v4554 = vadd.f32 %v4545, %v4552
      %v4555 = vadd.f32 %v4546, %v4552
      %v4556 = vadd.f32 %v4547, %v4552
      %v4557 = vadd.f32 %v4548, %v4552
      %v4558 = vadd.f32 %v4549, %v4552
      %v4559 = vadd.f32 %v4550, %v4552
      %v4560 = vadd.f32 %v4551, %v4552
      %v4561 = vsel %vm397, %v4553, 0.0
      %v4562 = vsel %vm397, %v4554, 0.0
      %v4563 = vadd.f32 %v4561, %v4562
      %v4564 = vsel %vm397, %v4555, 0.0
      %v4565 = vadd.f32 %v4563, %v4564
      %v4566 = vsel %vm397, %v4556, 0.0
      %v4567 = vadd.f32 %v4565, %v4566
      %v4568 = vsel %vm397, %v4557, 0.0
      %v4569 = vadd.f32 %v4567, %v4568
      %v4570 = vsel %vm397, %v4558, 0.0
      %v4571 = vadd.f32 %v4569, %v4570
      %v4572 = vsel %vm397, %v4559, 0.0
      %v4573 = vadd.f32 %v4571, %v4572
      %v4574 = vsel %vm397, %v4560, 0.0
      %v4575 = vadd.f32 %v4573, %v4574
      %v4576 = vrot.slane %v4575, 4
      %v4577 = vadd.f32 %v4575, %v4576
      %v4578 = vrot.slane %v4577, 2
      %v4579 = vadd.f32 %v4577, %v4578
      %v4580 = vrot.slane %v4579, 1
      %v4581 = vadd.f32 %v4579, %v4580
      %v4582 = vmul.f32 %v4553, %v4553
      %v4583 = vmul.f32 %v4554, %v4554
      %v4584 = vmul.f32 %v4555, %v4555
      %v4585 = vmul.f32 %v4556, %v4556
      %v4586 = vmul.f32 %v4557, %v4557
      %v4587 = vmul.f32 %v4558, %v4558
      %v4588 = vmul.f32 %v4559, %v4559
      %v4589 = vmul.f32 %v4560, %v4560
      %v4590 = vsel %vm397, %v4582, 0.0
      %v4591 = vsel %vm397, %v4583, 0.0
      %v4592 = vadd.f32 %v4590, %v4591
      %v4593 = vsel %vm397, %v4584, 0.0
      %v4594 = vadd.f32 %v4592, %v4593
      %v4595 = vsel %vm397, %v4585, 0.0
      %v4596 = vadd.f32 %v4594, %v4595
      %v4597 = vsel %vm397, %v4586, 0.0
      %v4598 = vadd.f32 %v4596, %v4597
      %v4599 = vsel %vm397, %v4587, 0.0
      %v4600 = vadd.f32 %v4598, %v4599
      %v4601 = vsel %vm397, %v4588, 0.0
      %v4602 = vadd.f32 %v4600, %v4601
      %v4603 = vsel %vm397, %v4589, 0.0
      %v4604 = vadd.f32 %v4602, %v4603
      %v4605 = vrot.slane %v4604, 4
      %v4606 = vadd.f32 %v4604, %v4605
      %v4607 = vrot.slane %v4606, 2
      %v4608 = vadd.f32 %v4606, %v4607
      %v4609 = vrot.slane %v4608, 1
      %v4610 = vadd.f32 %v4608, %v4609
      %v4611 = vsel %vm448, %v4581, %v4610
      %v4613 = vsel %vm397, %v4611, 0
      %4615 = vmatpush.msra.mxu0 0.0
      %4616 = vmatpush.msra.mxu0 0.0
      %4617 = vmatpush.msra.mxu0 0.0
      %4618 = vmatpush.msra.mxu0 0.0
      %4619 = vmatpush.msra.mxu0 0.0
      %4620 = vmatpush.msra.mxu0 0.0
      %4621 = vmatpush.msra.mxu0 0.0
      %4622 = vmatpush.msra.mxu0 0.0
      %4623 = vmatpush.msra.mxu0 0.0
      %4624 = vmatpush.msra.mxu0 0.0
      %4625 = vmatpush.msra.mxu0 0.0
      %4626 = vmatpush.msra.mxu0 0.0
      %4627 = vmatpush.msra.mxu0 %v394
      %4628 = vmatpush.msra.mxu0 %v393
      %4629 = vmatpush.msra.mxu0 %v392
      %4630 = vmatpush.msra.mxu0 %v391
      %4631 = vmatmul.f32.gmra.mxu0 %v4613
      %v4632 = vpop.f32.mrf.mxu0
      %v4633 = vadd.f32 0.0, %v4632
      %4634 = vdwg.mxu0
      %v4635 = vmul.f32 %v4633, 0.00390625
      %v4636 = vmul.f32 %v4635, %v4635
      %v4638 = vrot.slane %v4636, 7
      %v4640 = vsub.f32 %v4635, %v4638
      %v4641 = vmax.f32 %v4640, 0.0
      %v4642 = vadd.f32 %v4641, 1e-06
      %v4643 = vrsqrt.pop %v4642
      %v4644 = vmul.f32 %v4643, %v4642
      %v4645 = vmul.f32 %v4644, %v4643
      %v4646 = vmul.f32 0.5, %v4645
      %v4647 = vsub.f32 1.5, %v4646
      %v4648 = vmul.f32 %v4643, %v4647
      %vm4649 = vweird.f32 %v4642
      %vm4650 = vweird.f32 %v4643
      %vm4651 = vmor %vm4649, %vm4650
      %v4652 = vsel %vm4651, %v4643, %v4648
      %v4654 = vrot.slane %v4652, 1
      %v4656 = vmul.f32 %v4635, %v4654
      %v4658 = vrot.slane %v4656, 7
      %v4660 = vsel %vm448, %v4654, %v4658
      %v4662 = vsel %vm499, %v4660, 0
      %4664 = vmatpush.msra.mxu0 0.0
      %4665 = vmatpush.msra.mxu0 0.0
      %4666 = vmatpush.msra.mxu0 0.0
      %4667 = vmatpush.msra.mxu0 0.0
      %4668 = vmatpush.msra.mxu0 0.0
      %4669 = vmatpush.msra.mxu0 0.0
      %4670 = vmatpush.msra.mxu0 0.0
      %4671 = vmatpush.msra.mxu0 0.0
      %4672 = vmatpush.msra.mxu0 0.0
      %4673 = vmatpush.msra.mxu0 0.0
      %4674 = vmatpush.msra.mxu0 0.0
      %4675 = vmatpush.msra.mxu0 0.0
      %4676 = vmatpush.msra.mxu0 0.0
      %4677 = vmatpush.msra.mxu0 0.0
      %4678 = vmatpush.msra.mxu0 0.0
      %4679 = vmatpush.msra.mxu0 %v395
      %4680 = vmatmul.f32.gmra.mxu0 %v4662
      %v4681 = vpop.f32.mrf.mxu0
      %v4682 = vadd.f32 0.0, %v4681
      %4683 = vdwg.mxu0
      %v4684 = vrot.slane %v390, 4
      %v4686 = vmul.f32 %v4682, %v4684
      %v4687 = vrot.slane %v390, 3
      %v4689 = vmul.f32 %v4682, %v4687
      %v4691 = vrot.slane %v4689, 4
      %v4693 = vsub.f32 %v390, %v4691
      %v4694 = vperm.slane %v4686, 0
      %v4695 = vmul.f32 %v4553, %v4694
      %v4696 = vmul.f32 %v4554, %v4694
      %v4697 = vmul.f32 %v4555, %v4694
      %v4698 = vmul.f32 %v4556, %v4694
      %v4699 = vmul.f32 %v4557, %v4694
      %v4700 = vmul.f32 %v4558, %v4694
      %v4701 = vmul.f32 %v4559, %v4694
      %v4702 = vmul.f32 %v4560, %v4694
      %v4703 = vperm.slane %v4693, 5
      %v4704 = vadd.f32 %v4695, %v4703
      %v4705 = vadd.f32 %v4696, %v4703
      %v4706 = vadd.f32 %v4697, %v4703
      %v4707 = vadd.f32 %v4698, %v4703
      %v4708 = vadd.f32 %v4699, %v4703
      %v4709 = vadd.f32 %v4700, %v4703
      %v4710 = vadd.f32 %v4701, %v4703
      %v4711 = vadd.f32 %v4702, %v4703
      %v4712 = vxor.u32 %v4704, 2147483648
      %v4713 = vxor.u32 %v4705, 2147483648
      %v4714 = vxor.u32 %v4706, 2147483648
      %v4715 = vxor.u32 %v4707, 2147483648
      %v4716 = vxor.u32 %v4708, 2147483648
      %v4717 = vxor.u32 %v4709, 2147483648
      %v4718 = vxor.u32 %v4710, 2147483648
      %v4719 = vxor.u32 %v4711, 2147483648
      %v4720 = vmul.f32 %v4712, 1.442695
      %v4721 = vpow.pop %v4720
      %v4722 = vmul.f32 %v4713, 1.442695
      %v4723 = vpow.pop %v4722
      %v4724 = vmul.f32 %v4714, 1.442695
      %v4725 = vpow.pop %v4724
      %v4726 = vmul.f32 %v4715, 1.442695
      %v4727 = vpow.pop %v4726
      %v4728 = vmul.f32 %v4716, 1.442695
      %v4729 = vpow.pop %v4728
      %v4730 = vmul.f32 %v4717, 1.442695
      %v4731 = vpow.pop %v4730
      %v4732 = vmul.f32 %v4718, 1.442695
      %v4733 = vpow.pop %v4732
      %v4734 = vmul.f32 %v4719, 1.442695
      %v4735 = vpow.pop %v4734
      %v4736 = vadd.f32 %v4721, 1.0
      %v4737 = vadd.f32 %v4723, 1.0
      %v4738 = vadd.f32 %v4725, 1.0
      %v4739 = vadd.f32 %v4727, 1.0
      %v4740 = vadd.f32 %v4729, 1.0
      %v4741 = vadd.f32 %v4731, 1.0
      %v4742 = vadd.f32 %v4733, 1.0
      %v4743 = vadd.f32 %v4735, 1.0
      %v4744 = vrcp.pop %v4736
      %v4745 = vmul.f32 %v4736, %v4744
      %v4746 = vsub.f32 1.0, %v4745
      %v4747 = vmul.f32 %v4744, %v4746
      %v4748 = vadd.f32 %v4744, %v4747
      %vm4749 = vweird.f32 %v4736
      %vm4750 = vweird.f32 %v4744
      %vm4751 = vmor %vm4749, %vm4750
      %v4752 = vsel %vm4751, %v4744, %v4748
      %v4753 = vand.u32 2147483647, %v4736
      %vm4754 = vcmp.eq.f32.partialorder %v4753, 8.507059e+37
      %v4755 = vand.u32 %v4736, 2147483648
      %v4756 = vor.u32 1.1754944e-38, %v4755
      %v4757 = vsel %vm4754, %v4756, %v4752
      %v4758 = vmul.f32 1.0, %v4757
      %v4759 = vrcp.pop %v4737
      %v4760 = vmul.f32 %v4737, %v4759
      %v4761 = vsub.f32 1.0, %v4760
      %v4762 = vmul.f32 %v4759, %v4761
      %v4763 = vadd.f32 %v4759, %v4762
      %vm4764 = vweird.f32 %v4737
      %vm4765 = vweird.f32 %v4759
      %vm4766 = vmor %vm4764, %vm4765
      %v4767 = vsel %vm4766, %v4759, %v4763
      %v4768 = vand.u32 2147483647, %v4737
      %vm4769 = vcmp.eq.f32.partialorder %v4768, 8.507059e+37
      %v4770 = vand.u32 %v4737, 2147483648
      %v4771 = vor.u32 1.1754944e-38, %v4770
      %v4772 = vsel %vm4769, %v4771, %v4767
      %v4773 = vmul.f32 1.0, %v4772
      %v4774 = vrcp.pop %v4738
      %v4775 = vmul.f32 %v4738, %v4774
      %v4776 = vsub.f32 1.0, %v4775
      %v4777 = vmul.f32 %v4774, %v4776
      %v4778 = vadd.f32 %v4774, %v4777
      %vm4779 = vweird.f32 %v4738
      %vm4780 = vweird.f32 %v4774
      %vm4781 = vmor %vm4779, %vm4780
      %v4782 = vsel %vm4781, %v4774, %v4778
      %v4783 = vand.u32 2147483647, %v4738
      %vm4784 = vcmp.eq.f32.partialorder %v4783, 8.507059e+37
      %v4785 = vand.u32 %v4738, 2147483648
      %v4786 = vor.u32 1.1754944e-38, %v4785
      %v4787 = vsel %vm4784, %v4786, %v4782
      %v4788 = vmul.f32 1.0, %v4787
      %v4789 = vrcp.pop %v4739
      %v4790 = vmul.f32 %v4739, %v4789
      %v4791 = vsub.f32 1.0, %v4790
      %v4792 = vmul.f32 %v4789, %v4791
      %v4793 = vadd.f32 %v4789, %v4792
      %vm4794 = vweird.f32 %v4739
      %vm4795 = vweird.f32 %v4789
      %vm4796 = vmor %vm4794, %vm4795
      %v4797 = vsel %vm4796, %v4789, %v4793
      %v4798 = vand.u32 2147483647, %v4739
      %vm4799 = vcmp.eq.f32.partialorder %v4798, 8.507059e+37
      %v4800 = vand.u32 %v4739, 2147483648
      %v4801 = vor.u32 1.1754944e-38, %v4800
      %v4802 = vsel %vm4799, %v4801, %v4797
      %v4803 = vmul.f32 1.0, %v4802
      %v4804 = vrcp.pop %v4740
      %v4805 = vmul.f32 %v4740, %v4804
      %v4806 = vsub.f32 1.0, %v4805
      %v4807 = vmul.f32 %v4804, %v4806
      %v4808 = vadd.f32 %v4804, %v4807
      %vm4809 = vweird.f32 %v4740
      %vm4810 = vweird.f32 %v4804
      %vm4811 = vmor %vm4809, %vm4810
      %v4812 = vsel %vm4811, %v4804, %v4808
      %v4813 = vand.u32 2147483647, %v4740
      %vm4814 = vcmp.eq.f32.partialorder %v4813, 8.507059e+37
      %v4815 = vand.u32 %v4740, 2147483648
      %v4816 = vor.u32 1.1754944e-38, %v4815
      %v4817 = vsel %vm4814, %v4816, %v4812
      %v4818 = vmul.f32 1.0, %v4817
      %v4819 = vrcp.pop %v4741
      %v4820 = vmul.f32 %v4741, %v4819
      %v4821 = vsub.f32 1.0, %v4820
      %v4822 = vmul.f32 %v4819, %v4821
      %v4823 = vadd.f32 %v4819, %v4822
      %vm4824 = vweird.f32 %v4741
      %vm4825 = vweird.f32 %v4819
      %vm4826 = vmor %vm4824, %vm4825
      %v4827 = vsel %vm4826, %v4819, %v4823
      %v4828 = vand.u32 2147483647, %v4741
      %vm4829 = vcmp.eq.f32.partialorder %v4828, 8.507059e+37
      %v4830 = vand.u32 %v4741, 2147483648
      %v4831 = vor.u32 1.1754944e-38, %v4830
      %v4832 = vsel %vm4829, %v4831, %v4827
      %v4833 = vmul.f32 1.0, %v4832
      %v4834 = vrcp.pop %v4742
      %v4835 = vmul.f32 %v4742, %v4834
      %v4836 = vsub.f32 1.0, %v4835
      %v4837 = vmul.f32 %v4834, %v4836
      %v4838 = vadd.f32 %v4834, %v4837
      %vm4839 = vweird.f32 %v4742
      %vm4840 = vweird.f32 %v4834
      %vm4841 = vmor %vm4839, %vm4840
      %v4842 = vsel %vm4841, %v4834, %v4838
      %v4843 = vand.u32 2147483647, %v4742
      %vm4844 = vcmp.eq.f32.partialorder %v4843, 8.507059e+37
      %v4845 = vand.u32 %v4742, 2147483648
      %v4846 = vor.u32 1.1754944e-38, %v4845
      %v4847 = vsel %vm4844, %v4846, %v4842
      %v4848 = vmul.f32 1.0, %v4847
      %v4849 = vrcp.pop %v4743
      %v4850 = vmul.f32 %v4743, %v4849
      %v4851 = vsub.f32 1.0, %v4850
      %v4852 = vmul.f32 %v4849, %v4851
      %v4853 = vadd.f32 %v4849, %v4852
      %vm4854 = vweird.f32 %v4743
      %vm4855 = vweird.f32 %v4849
      %vm4856 = vmor %vm4854, %vm4855
      %v4857 = vsel %vm4856, %v4849, %v4853
      %v4858 = vand.u32 2147483647, %v4743
      %vm4859 = vcmp.eq.f32.partialorder %v4858, 8.507059e+37
      %v4860 = vand.u32 %v4743, 2147483648
      %v4861 = vor.u32 1.1754944e-38, %v4860
      %v4862 = vsel %vm4859, %v4861, %v4857
      %v4863 = vmul.f32 1.0, %v4862
      %v4864 = vmul.f32 %v4704, %v4758
      %v4865 = vmul.f32 %v4705, %v4773
      %v4866 = vmul.f32 %v4706, %v4788
      %v4867 = vmul.f32 %v4707, %v4803
      %v4868 = vmul.f32 %v4708, %v4818
      %v4869 = vmul.f32 %v4709, %v4833
      %v4870 = vmul.f32 %v4710, %v4848
      %v4871 = vmul.f32 %v4711, %v4863
      %v4872 = vrot.slane %v4864, 7
      %v4873 = vrot.slane %v4865, 7
      %v4874 = vrot.slane %v4866, 7
      %v4875 = vrot.slane %v4867, 7
      %v4876 = vrot.slane %v4868, 7
      %v4877 = vrot.slane %v4869, 7
      %v4878 = vrot.slane %v4870, 7
      %v4879 = vrot.slane %v4871, 7
      %v4880 = vsel %vm717, %v4878, %v4879
      %v4881 = vsel %vm717, %v4877, %v4878
      %v4882 = vsel %vm717, %v4876, %v4877
      %v4883 = vsel %vm717, %v4875, %v4876
      %v4884 = vsel %vm717, %v4874, %v4875
      %v4885 = vsel %vm717, %v4873, %v4874
      %v4886 = vsel %vm717, %v4872, %v4873
      %v4887 = vsel %vm717, %v4879, %v4872
      %v4888 = vmul.f32 %v4880, %v737
      %v4889 = vmul.f32 %v4887, %v742
      %v4890 = vmul.f32 %v4886, %v747
      %v4891 = vmul.f32 %v4885, %v752
      %v4892 = vmul.f32 %v4884, %v757
      %v4893 = vmul.f32 %v4883, %v762
      %v4894 = vmul.f32 %v4882, %v767
      %v4895 = vmul.f32 %v4881, %v772
      %v4896 = vpack.c.bf16 %v4889, %v4888
      %v4897 = vpack.c.bf16 %v4891, %v4890
      %v4898 = vpack.c.bf16 %v4893, %v4892
      %v4899 = vpack.c.bf16 %v4895, %v4894
      %s4900 = scalar_lea.vmem %s4, 432
      %v4901 = vld [vmem:[%s4900] sm:$0xf]
      %v4902 = vld [vmem:[%s4900 + $0x4] sm:$0xf]
      %v4903 = vld [vmem:[%s4900 + $0x8] sm:$0xf]
      %v4904 = vld [vmem:[%s4900 + $0xc] sm:$0xf]
      %v4905 = vmul.f32 %v4871, %v802
      %v4906 = vmul.f32 %v4864, %v807
      %v4907 = vmul.f32 %v4865, %v812
      %v4908 = vmul.f32 %v4866, %v817
      %v4909 = vmul.f32 %v4867, %v822
      %v4910 = vmul.f32 %v4868, %v827
      %v4911 = vmul.f32 %v4869, %v832
      %v4912 = vmul.f32 %v4870, %v837
      %v4913 = vpack.c.bf16 %v4906, %v4905
      %v4914 = vpack.c.bf16 %v4908, %v4907
      %v4915 = vpack.c.bf16 %v4910, %v4909
      %v4916 = vpack.c.bf16 %v4912, %v4911
      %s4917 = scalar_lea.vmem %s4, 448
      %v4918 = vld [vmem:[%s4917] sm:$0xf]
      %v4919 = vld [vmem:[%s4917 + $0x4] sm:$0xf]
      %v4920 = vld [vmem:[%s4917 + $0x8] sm:$0xf]
      %v4921 = vld [vmem:[%s4917 + $0xc] sm:$0xf]
      %v4926 = vunpack.c.l.b16 %v4918
      %v4927 = vunpack.c.l.b16 %v4919
      %v4928 = vunpack.c.l.b16 %v4920
      %v4929 = vunpack.c.l.b16 %v4921
      %v4930 = vpack.c.b16 %v4927, %v4926
      %v4931 = vpack.c.b16 %v4929, %v4928
      %v4935 = vsel %vm397, %v4913, 0
      %v4938 = vsel %vm397, %v4914, 0
      %v4941 = vsel %vm397, %v4915, 0
      %v4944 = vsel %vm397, %v4916, 0
      %4946 = vmatpush.bf16.msra.mxu0 0
      %4947 = vmatpush.bf16.msra.mxu0 0
      %4948 = vmatpush.bf16.msra.mxu0 0
      %4949 = vmatpush.bf16.msra.mxu0 0
      %4950 = vmatpush.bf16.msra.mxu0 0
      %4951 = vmatpush.bf16.msra.mxu0 0
      %4952 = vmatpush.bf16.msra.mxu0 %v4931
      %4953 = vmatpush.bf16.msra.mxu0 %v4930
      %4954 = vmatmul.bf16.gmra.mxu0 %v4935
      %v4955 = vpop.f32.mrf.mxu0
      %v4956 = vadd.f32 0.0, %v4955
      %v4957 = vpop.f32.mrf.mxu0
      %v4958 = vadd.f32 0.0, %v4957
      %4959 = vmatmul.bf16.gmra.mxu0 %v4938
      %v4960 = vpop.f32.mrf.mxu0
      %v4961 = vadd.f32 0.0, %v4960
      %v4962 = vpop.f32.mrf.mxu0
      %v4963 = vadd.f32 0.0, %v4962
      %4964 = vmatmul.bf16.gmra.mxu0 %v4941
      %v4965 = vpop.f32.mrf.mxu0
      %v4966 = vadd.f32 0.0, %v4965
      %v4967 = vpop.f32.mrf.mxu0
      %v4968 = vadd.f32 0.0, %v4967
      %4969 = vmatmul.bf16.gmra.mxu0 %v4944
      %v4970 = vpop.f32.mrf.mxu0
      %v4971 = vadd.f32 0.0, %v4970
      %v4972 = vpop.f32.mrf.mxu0
      %v4973 = vadd.f32 0.0, %v4972
      %4974 = vdwg.mxu0
      %v4979 = vunpack.c.l.b16 %v4901
      %v4980 = vunpack.c.l.b16 %v4902
      %v4981 = vunpack.c.l.b16 %v4903
      %v4982 = vunpack.c.l.b16 %v4904
      %v4983 = vpack.c.b16 %v4980, %v4979
      %v4984 = vpack.c.b16 %v4982, %v4981
      %v4988 = vsel %vm397, %v4896, 0
      %v4991 = vsel %vm397, %v4897, 0
      %v4994 = vsel %vm397, %v4898, 0
      %v4997 = vsel %vm397, %v4899, 0
      %4999 = vmatpush.bf16.msra.mxu0 0
      %5000 = vmatpush.bf16.msra.mxu0 0
      %5001 = vmatpush.bf16.msra.mxu0 0
      %5002 = vmatpush.bf16.msra.mxu0 0
      %5003 = vmatpush.bf16.msra.mxu0 0
      %5004 = vmatpush.bf16.msra.mxu0 0
      %5005 = vmatpush.bf16.msra.mxu0 %v4984
      %5006 = vmatpush.bf16.msra.mxu0 %v4983
      %5007 = vmatmul.bf16.gmra.mxu0 %v4988
      %v5008 = vpop.f32.mrf.mxu0
      %v5009 = vadd.f32 %v4956, %v5008
      %v5010 = vpop.f32.mrf.mxu0
      %v5011 = vadd.f32 %v4958, %v5010
      %5012 = vmatmul.bf16.gmra.mxu0 %v4991
      %v5013 = vpop.f32.mrf.mxu0
      %v5014 = vadd.f32 %v4961, %v5013
      %v5015 = vpop.f32.mrf.mxu0
      %v5016 = vadd.f32 %v4963, %v5015
      %5017 = vmatmul.bf16.gmra.mxu0 %v4994
      %v5018 = vpop.f32.mrf.mxu0
      %v5019 = vadd.f32 %v4966, %v5018
      %v5020 = vpop.f32.mrf.mxu0
      %v5021 = vadd.f32 %v4968, %v5020
      %5022 = vmatmul.bf16.gmra.mxu0 %v4997
      %v5023 = vpop.f32.mrf.mxu0
      %v5024 = vadd.f32 %v4971, %v5023
      %v5025 = vpop.f32.mrf.mxu0
      %v5026 = vadd.f32 %v4973, %v5025
      %5027 = vdwg.mxu0
      %v5028 = vrot.slane %v4864, 1
      %v5029 = vrot.slane %v4865, 1
      %v5030 = vrot.slane %v4866, 1
      %v5031 = vrot.slane %v4867, 1
      %v5032 = vrot.slane %v4868, 1
      %v5033 = vrot.slane %v4869, 1
      %v5034 = vrot.slane %v4870, 1
      %v5035 = vrot.slane %v4871, 1
      %v5036 = vsel %vm970, %v5034, %v5035
      %v5037 = vsel %vm970, %v5033, %v5034
      %v5038 = vsel %vm970, %v5032, %v5033
      %v5039 = vsel %vm970, %v5031, %v5032
      %v5040 = vsel %vm970, %v5030, %v5031
      %v5041 = vsel %vm970, %v5029, %v5030
      %v5042 = vsel %vm970, %v5028, %v5029
      %v5043 = vsel %vm970, %v5035, %v5028
      %v5044 = vmul.f32 %v5043, %v991
      %v5045 = vmul.f32 %v5042, %v996
      %v5046 = vmul.f32 %v5041, %v1001
      %v5047 = vmul.f32 %v5040, %v1006
      %v5048 = vmul.f32 %v5039, %v1011
      %v5049 = vmul.f32 %v5038, %v1016
      %v5050 = vmul.f32 %v5037, %v1021
      %v5051 = vmul.f32 %v5036, %v1026
      %v5052 = vpack.c.bf16 %v5045, %v5044
      %v5053 = vpack.c.bf16 %v5047, %v5046
      %v5054 = vpack.c.bf16 %v5049, %v5048
      %v5055 = vpack.c.bf16 %v5051, %v5050
      %s5056 = scalar_lea.vmem %s4, 464
      %v5057 = vld [vmem:[%s5056] sm:$0xf]
      %v5058 = vld [vmem:[%s5056 + $0x4] sm:$0xf]
      %v5059 = vld [vmem:[%s5056 + $0x8] sm:$0xf]
      %v5060 = vld [vmem:[%s5056 + $0xc] sm:$0xf]
      %v5065 = vunpack.c.l.b16 %v5057
      %v5066 = vunpack.c.l.b16 %v5058
      %v5067 = vunpack.c.l.b16 %v5059
      %v5068 = vunpack.c.l.b16 %v5060
      %v5069 = vpack.c.b16 %v5066, %v5065
      %v5070 = vpack.c.b16 %v5068, %v5067
      %v5074 = vsel %vm397, %v5052, 0
      %v5077 = vsel %vm397, %v5053, 0
      %v5080 = vsel %vm397, %v5054, 0
      %v5083 = vsel %vm397, %v5055, 0
      %5085 = vmatpush.bf16.msra.mxu0 0
      %5086 = vmatpush.bf16.msra.mxu0 0
      %5087 = vmatpush.bf16.msra.mxu0 0
      %5088 = vmatpush.bf16.msra.mxu0 0
      %5089 = vmatpush.bf16.msra.mxu0 0
      %5090 = vmatpush.bf16.msra.mxu0 0
      %5091 = vmatpush.bf16.msra.mxu0 %v5070
      %5092 = vmatpush.bf16.msra.mxu0 %v5069
      %5093 = vmatmul.bf16.gmra.mxu0 %v5074
      %v5094 = vpop.f32.mrf.mxu0
      %v5095 = vadd.f32 0.0, %v5094
      %v5096 = vpop.f32.mrf.mxu0
      %v5097 = vadd.f32 0.0, %v5096
      %5098 = vmatmul.bf16.gmra.mxu0 %v5077
      %v5099 = vpop.f32.mrf.mxu0
      %v5100 = vadd.f32 0.0, %v5099
      %v5101 = vpop.f32.mrf.mxu0
      %v5102 = vadd.f32 0.0, %v5101
      %5103 = vmatmul.bf16.gmra.mxu0 %v5080
      %v5104 = vpop.f32.mrf.mxu0
      %v5105 = vadd.f32 0.0, %v5104
      %v5106 = vpop.f32.mrf.mxu0
      %v5107 = vadd.f32 0.0, %v5106
      %5108 = vmatmul.bf16.gmra.mxu0 %v5083
      %v5109 = vpop.f32.mrf.mxu0
      %v5110 = vadd.f32 0.0, %v5109
      %v5111 = vpop.f32.mrf.mxu0
      %v5112 = vadd.f32 0.0, %v5111
      %5113 = vdwg.mxu0
      %v5114 = vadd.f32 %v5009, %v5095
      %v5115 = vadd.f32 %v5011, %v5097
      %v5116 = vadd.f32 %v5014, %v5100
      %v5117 = vadd.f32 %v5016, %v5102
      %v5118 = vadd.f32 %v5019, %v5105
      %v5119 = vadd.f32 %v5021, %v5107
      %v5120 = vadd.f32 %v5024, %v5110
      %v5121 = vadd.f32 %v5026, %v5112
      %v5122 = vmul.f32 %v4887, %v1118
      %v5123 = vmul.f32 %v4886, %v1123
      %v5124 = vmul.f32 %v4885, %v1128
      %v5125 = vmul.f32 %v4884, %v1133
      %v5126 = vmul.f32 %v4883, %v1138
      %v5127 = vmul.f32 %v4882, %v1143
      %v5128 = vmul.f32 %v4881, %v1148
      %v5129 = vmul.f32 %v4880, %v1153
      %v5130 = vpack.c.bf16 %v5123, %v5122
      %v5131 = vpack.c.bf16 %v5125, %v5124
      %v5132 = vpack.c.bf16 %v5127, %v5126
      %v5133 = vpack.c.bf16 %v5129, %v5128
      %s5134 = scalar_lea.vmem %s4, 480
      %v5135 = vld [vmem:[%s5134] sm:$0xf]
      %v5136 = vld [vmem:[%s5134 + $0x4] sm:$0xf]
      %v5137 = vld [vmem:[%s5134 + $0x8] sm:$0xf]
      %v5138 = vld [vmem:[%s5134 + $0xc] sm:$0xf]
      %v5143 = vunpack.c.l.b16 %v5135
      %v5144 = vunpack.c.l.b16 %v5136
      %v5145 = vunpack.c.l.b16 %v5137
      %v5146 = vunpack.c.l.b16 %v5138
      %v5147 = vpack.c.b16 %v5144, %v5143
      %v5148 = vpack.c.b16 %v5146, %v5145
      %v5152 = vsel %vm397, %v5130, 0
      %v5155 = vsel %vm397, %v5131, 0
      %v5158 = vsel %vm397, %v5132, 0
      %v5161 = vsel %vm397, %v5133, 0
      %5163 = vmatpush.bf16.msra.mxu0 0
      %5164 = vmatpush.bf16.msra.mxu0 0
      %5165 = vmatpush.bf16.msra.mxu0 0
      %5166 = vmatpush.bf16.msra.mxu0 0
      %5167 = vmatpush.bf16.msra.mxu0 0
      %5168 = vmatpush.bf16.msra.mxu0 0
      %5169 = vmatpush.bf16.msra.mxu0 %v5148
      %5170 = vmatpush.bf16.msra.mxu0 %v5147
      %5171 = vmatmul.bf16.gmra.mxu0 %v5152
      %v5172 = vpop.f32.mrf.mxu0
      %v5173 = vadd.f32 0.0, %v5172
      %v5174 = vpop.f32.mrf.mxu0
      %v5175 = vadd.f32 0.0, %v5174
      %5176 = vmatmul.bf16.gmra.mxu0 %v5155
      %v5177 = vpop.f32.mrf.mxu0
      %v5178 = vadd.f32 0.0, %v5177
      %v5179 = vpop.f32.mrf.mxu0
      %v5180 = vadd.f32 0.0, %v5179
      %5181 = vmatmul.bf16.gmra.mxu0 %v5158
      %v5182 = vpop.f32.mrf.mxu0
      %v5183 = vadd.f32 0.0, %v5182
      %v5184 = vpop.f32.mrf.mxu0
      %v5185 = vadd.f32 0.0, %v5184
      %5186 = vmatmul.bf16.gmra.mxu0 %v5161
      %v5187 = vpop.f32.mrf.mxu0
      %v5188 = vadd.f32 0.0, %v5187
      %v5189 = vpop.f32.mrf.mxu0
      %v5190 = vadd.f32 0.0, %v5189
      %5191 = vdwg.mxu0
      %v5192 = vadd.f32 %v5114, %v5173
      %v5193 = vadd.f32 %v5115, %v5175
      %v5194 = vadd.f32 %v5116, %v5178
      %v5195 = vadd.f32 %v5117, %v5180
      %v5196 = vadd.f32 %v5118, %v5183
      %v5197 = vadd.f32 %v5119, %v5185
      %v5198 = vadd.f32 %v5120, %v5188
      %v5199 = vadd.f32 %v5121, %v5190
      %v5200 = vmul.f32 %v4864, %v1245
      %v5201 = vmul.f32 %v4865, %v1250
      %v5202 = vmul.f32 %v4866, %v1255
      %v5203 = vmul.f32 %v4867, %v1260
      %v5204 = vmul.f32 %v4868, %v1265
      %v5205 = vmul.f32 %v4869, %v1270
      %v5206 = vmul.f32 %v4870, %v1275
      %v5207 = vmul.f32 %v4871, %v1280
      %v5208 = vpack.c.bf16 %v5201, %v5200
      %v5209 = vpack.c.bf16 %v5203, %v5202
      %v5210 = vpack.c.bf16 %v5205, %v5204
      %v5211 = vpack.c.bf16 %v5207, %v5206
      %s5212 = scalar_lea.vmem %s4, 496
      %v5213 = vld [vmem:[%s5212] sm:$0xf]
      %v5214 = vld [vmem:[%s5212 + $0x4] sm:$0xf]
      %v5215 = vld [vmem:[%s5212 + $0x8] sm:$0xf]
      %v5216 = vld [vmem:[%s5212 + $0xc] sm:$0xf]
      %v5221 = vunpack.c.l.b16 %v5213
      %v5222 = vunpack.c.l.b16 %v5214
      %v5223 = vunpack.c.l.b16 %v5215
      %v5224 = vunpack.c.l.b16 %v5216
      %v5225 = vpack.c.b16 %v5222, %v5221
      %v5226 = vpack.c.b16 %v5224, %v5223
      %v5230 = vsel %vm397, %v5208, 0
      %v5233 = vsel %vm397, %v5209, 0
      %v5236 = vsel %vm397, %v5210, 0
      %v5239 = vsel %vm397, %v5211, 0
      %5241 = vmatpush.bf16.msra.mxu0 0
      %5242 = vmatpush.bf16.msra.mxu0 0
      %5243 = vmatpush.bf16.msra.mxu0 0
      %5244 = vmatpush.bf16.msra.mxu0 0
      %5245 = vmatpush.bf16.msra.mxu0 0
      %5246 = vmatpush.bf16.msra.mxu0 0
      %5247 = vmatpush.bf16.msra.mxu0 %v5226
      %5248 = vmatpush.bf16.msra.mxu0 %v5225
      %5249 = vmatmul.bf16.gmra.mxu0 %v5230
      %v5250 = vpop.f32.mrf.mxu0
      %v5251 = vadd.f32 0.0, %v5250
      %v5252 = vpop.f32.mrf.mxu0
      %v5253 = vadd.f32 0.0, %v5252
      %5254 = vmatmul.bf16.gmra.mxu0 %v5233
      %v5255 = vpop.f32.mrf.mxu0
      %v5256 = vadd.f32 0.0, %v5255
      %v5257 = vpop.f32.mrf.mxu0
      %v5258 = vadd.f32 0.0, %v5257
      %5259 = vmatmul.bf16.gmra.mxu0 %v5236
      %v5260 = vpop.f32.mrf.mxu0
      %v5261 = vadd.f32 0.0, %v5260
      %v5262 = vpop.f32.mrf.mxu0
      %v5263 = vadd.f32 0.0, %v5262
      %5264 = vmatmul.bf16.gmra.mxu0 %v5239
      %v5265 = vpop.f32.mrf.mxu0
      %v5266 = vadd.f32 0.0, %v5265
      %v5267 = vpop.f32.mrf.mxu0
      %v5268 = vadd.f32 0.0, %v5267
      %5269 = vdwg.mxu0
      %v5270 = vadd.f32 %v5192, %v5251
      %v5271 = vadd.f32 %v5193, %v5253
      %v5272 = vadd.f32 %v5194, %v5256
      %v5273 = vadd.f32 %v5195, %v5258
      %v5274 = vadd.f32 %v5196, %v5261
      %v5275 = vadd.f32 %v5197, %v5263
      %v5276 = vadd.f32 %v5198, %v5266
      %v5277 = vadd.f32 %v5199, %v5268
      %v5278 = vmul.f32 %v5042, %v1372
      %v5279 = vmul.f32 %v5041, %v1377
      %v5280 = vmul.f32 %v5040, %v1382
      %v5281 = vmul.f32 %v5039, %v1387
      %v5282 = vmul.f32 %v5038, %v1392
      %v5283 = vmul.f32 %v5037, %v1397
      %v5284 = vmul.f32 %v5036, %v1402
      %v5285 = vmul.f32 %v5043, %v1407
      %v5286 = vpack.c.bf16 %v5279, %v5278
      %v5287 = vpack.c.bf16 %v5281, %v5280
      %v5288 = vpack.c.bf16 %v5283, %v5282
      %v5289 = vpack.c.bf16 %v5285, %v5284
      %s5290 = scalar_lea.vmem %s4, 512
      %v5291 = vld [vmem:[%s5290] sm:$0xf]
      %v5292 = vld [vmem:[%s5290 + $0x4] sm:$0xf]
      %v5293 = vld [vmem:[%s5290 + $0x8] sm:$0xf]
      %v5294 = vld [vmem:[%s5290 + $0xc] sm:$0xf]
      %v5299 = vunpack.c.l.b16 %v5291
      %v5300 = vunpack.c.l.b16 %v5292
      %v5301 = vunpack.c.l.b16 %v5293
      %v5302 = vunpack.c.l.b16 %v5294
      %v5303 = vpack.c.b16 %v5300, %v5299
      %v5304 = vpack.c.b16 %v5302, %v5301
      %v5308 = vsel %vm397, %v5286, 0
      %v5311 = vsel %vm397, %v5287, 0
      %v5314 = vsel %vm397, %v5288, 0
      %v5317 = vsel %vm397, %v5289, 0
      %5319 = vmatpush.bf16.msra.mxu0 0
      %5320 = vmatpush.bf16.msra.mxu0 0
      %5321 = vmatpush.bf16.msra.mxu0 0
      %5322 = vmatpush.bf16.msra.mxu0 0
      %5323 = vmatpush.bf16.msra.mxu0 0
      %5324 = vmatpush.bf16.msra.mxu0 0
      %5325 = vmatpush.bf16.msra.mxu0 %v5304
      %5326 = vmatpush.bf16.msra.mxu0 %v5303
      %5327 = vmatmul.bf16.gmra.mxu0 %v5308
      %v5328 = vpop.f32.mrf.mxu0
      %v5329 = vadd.f32 0.0, %v5328
      %v5330 = vpop.f32.mrf.mxu0
      %v5331 = vadd.f32 0.0, %v5330
      %5332 = vmatmul.bf16.gmra.mxu0 %v5311
      %v5333 = vpop.f32.mrf.mxu0
      %v5334 = vadd.f32 0.0, %v5333
      %v5335 = vpop.f32.mrf.mxu0
      %v5336 = vadd.f32 0.0, %v5335
      %5337 = vmatmul.bf16.gmra.mxu0 %v5314
      %v5338 = vpop.f32.mrf.mxu0
      %v5339 = vadd.f32 0.0, %v5338
      %v5340 = vpop.f32.mrf.mxu0
      %v5341 = vadd.f32 0.0, %v5340
      %5342 = vmatmul.bf16.gmra.mxu0 %v5317
      %v5343 = vpop.f32.mrf.mxu0
      %v5344 = vadd.f32 0.0, %v5343
      %v5345 = vpop.f32.mrf.mxu0
      %v5346 = vadd.f32 0.0, %v5345
      %5347 = vdwg.mxu0
      %v5348 = vadd.f32 %v5270, %v5329
      %v5349 = vadd.f32 %v5271, %v5331
      %v5350 = vadd.f32 %v5272, %v5334
      %v5351 = vadd.f32 %v5273, %v5336
      %v5352 = vadd.f32 %v5274, %v5339
      %v5353 = vadd.f32 %v5275, %v5341
      %v5354 = vadd.f32 %v5276, %v5344
      %v5355 = vadd.f32 %v5277, %v5346
      %v5356 = vmul.f32 %v4886, %v1499
      %v5357 = vmul.f32 %v4885, %v1504
      %v5358 = vmul.f32 %v4884, %v1509
      %v5359 = vmul.f32 %v4883, %v1514
      %v5360 = vmul.f32 %v4882, %v1519
      %v5361 = vmul.f32 %v4881, %v1524
      %v5362 = vmul.f32 %v4880, %v1529
      %v5363 = vmul.f32 %v4887, %v1534
      %v5364 = vpack.c.bf16 %v5357, %v5356
      %v5365 = vpack.c.bf16 %v5359, %v5358
      %v5366 = vpack.c.bf16 %v5361, %v5360
      %v5367 = vpack.c.bf16 %v5363, %v5362
      %s5368 = scalar_lea.vmem %s4, 528
      %v5369 = vld [vmem:[%s5368] sm:$0xf]
      %v5370 = vld [vmem:[%s5368 + $0x4] sm:$0xf]
      %v5371 = vld [vmem:[%s5368 + $0x8] sm:$0xf]
      %v5372 = vld [vmem:[%s5368 + $0xc] sm:$0xf]
      %v5377 = vunpack.c.l.b16 %v5369
      %v5378 = vunpack.c.l.b16 %v5370
      %v5379 = vunpack.c.l.b16 %v5371
      %v5380 = vunpack.c.l.b16 %v5372
      %v5381 = vpack.c.b16 %v5378, %v5377
      %v5382 = vpack.c.b16 %v5380, %v5379
      %v5386 = vsel %vm397, %v5364, 0
      %v5389 = vsel %vm397, %v5365, 0
      %v5392 = vsel %vm397, %v5366, 0
      %v5395 = vsel %vm397, %v5367, 0
      %5397 = vmatpush.bf16.msra.mxu0 0
      %5398 = vmatpush.bf16.msra.mxu0 0
      %5399 = vmatpush.bf16.msra.mxu0 0
      %5400 = vmatpush.bf16.msra.mxu0 0
      %5401 = vmatpush.bf16.msra.mxu0 0
      %5402 = vmatpush.bf16.msra.mxu0 0
      %5403 = vmatpush.bf16.msra.mxu0 %v5382
      %5404 = vmatpush.bf16.msra.mxu0 %v5381
      %5405 = vmatmul.bf16.gmra.mxu0 %v5386
      %v5406 = vpop.f32.mrf.mxu0
      %v5407 = vadd.f32 0.0, %v5406
      %v5408 = vpop.f32.mrf.mxu0
      %v5409 = vadd.f32 0.0, %v5408
      %5410 = vmatmul.bf16.gmra.mxu0 %v5389
      %v5411 = vpop.f32.mrf.mxu0
      %v5412 = vadd.f32 0.0, %v5411
      %v5413 = vpop.f32.mrf.mxu0
      %v5414 = vadd.f32 0.0, %v5413
      %5415 = vmatmul.bf16.gmra.mxu0 %v5392
      %v5416 = vpop.f32.mrf.mxu0
      %v5417 = vadd.f32 0.0, %v5416
      %v5418 = vpop.f32.mrf.mxu0
      %v5419 = vadd.f32 0.0, %v5418
      %5420 = vmatmul.bf16.gmra.mxu0 %v5395
      %v5421 = vpop.f32.mrf.mxu0
      %v5422 = vadd.f32 0.0, %v5421
      %v5423 = vpop.f32.mrf.mxu0
      %v5424 = vadd.f32 0.0, %v5423
      %5425 = vdwg.mxu0
      %v5426 = vadd.f32 %v5348, %v5407
      %v5427 = vadd.f32 %v5349, %v5409
      %v5428 = vadd.f32 %v5350, %v5412
      %v5429 = vadd.f32 %v5351, %v5414
      %v5430 = vadd.f32 %v5352, %v5417
      %v5431 = vadd.f32 %v5353, %v5419
      %v5432 = vadd.f32 %v5354, %v5422
      %v5433 = vadd.f32 %v5355, %v5424
      %v5434 = vmul.f32 %v4865, %v1626
      %v5435 = vmul.f32 %v4866, %v1631
      %v5436 = vmul.f32 %v4867, %v1636
      %v5437 = vmul.f32 %v4868, %v1641
      %v5438 = vmul.f32 %v4869, %v1646
      %v5439 = vmul.f32 %v4870, %v1651
      %v5440 = vmul.f32 %v4871, %v1656
      %v5441 = vmul.f32 %v4864, %v1661
      %v5442 = vpack.c.bf16 %v5435, %v5434
      %v5443 = vpack.c.bf16 %v5437, %v5436
      %v5444 = vpack.c.bf16 %v5439, %v5438
      %v5445 = vpack.c.bf16 %v5441, %v5440
      %s5446 = scalar_lea.vmem %s4, 544
      %v5447 = vld [vmem:[%s5446] sm:$0xf]
      %v5448 = vld [vmem:[%s5446 + $0x4] sm:$0xf]
      %v5449 = vld [vmem:[%s5446 + $0x8] sm:$0xf]
      %v5450 = vld [vmem:[%s5446 + $0xc] sm:$0xf]
      %v5455 = vunpack.c.l.b16 %v5447
      %v5456 = vunpack.c.l.b16 %v5448
      %v5457 = vunpack.c.l.b16 %v5449
      %v5458 = vunpack.c.l.b16 %v5450
      %v5459 = vpack.c.b16 %v5456, %v5455
      %v5460 = vpack.c.b16 %v5458, %v5457
      %v5464 = vsel %vm397, %v5442, 0
      %v5467 = vsel %vm397, %v5443, 0
      %v5470 = vsel %vm397, %v5444, 0
      %v5473 = vsel %vm397, %v5445, 0
      %5475 = vmatpush.bf16.msra.mxu0 0
      %5476 = vmatpush.bf16.msra.mxu0 0
      %5477 = vmatpush.bf16.msra.mxu0 0
      %5478 = vmatpush.bf16.msra.mxu0 0
      %5479 = vmatpush.bf16.msra.mxu0 0
      %5480 = vmatpush.bf16.msra.mxu0 0
      %5481 = vmatpush.bf16.msra.mxu0 %v5460
      %5482 = vmatpush.bf16.msra.mxu0 %v5459
      %5483 = vmatmul.bf16.gmra.mxu0 %v5464
      %v5484 = vpop.f32.mrf.mxu0
      %v5485 = vadd.f32 0.0, %v5484
      %v5486 = vpop.f32.mrf.mxu0
      %v5487 = vadd.f32 0.0, %v5486
      %5488 = vmatmul.bf16.gmra.mxu0 %v5467
      %v5489 = vpop.f32.mrf.mxu0
      %v5490 = vadd.f32 0.0, %v5489
      %v5491 = vpop.f32.mrf.mxu0
      %v5492 = vadd.f32 0.0, %v5491
      %5493 = vmatmul.bf16.gmra.mxu0 %v5470
      %v5494 = vpop.f32.mrf.mxu0
      %v5495 = vadd.f32 0.0, %v5494
      %v5496 = vpop.f32.mrf.mxu0
      %v5497 = vadd.f32 0.0, %v5496
      %5498 = vmatmul.bf16.gmra.mxu0 %v5473
      %v5499 = vpop.f32.mrf.mxu0
      %v5500 = vadd.f32 0.0, %v5499
      %v5501 = vpop.f32.mrf.mxu0
      %v5502 = vadd.f32 0.0, %v5501
      %5503 = vdwg.mxu0
      %v5504 = vadd.f32 %v5426, %v5485
      %v5505 = vadd.f32 %v5427, %v5487
      %v5506 = vadd.f32 %v5428, %v5490
      %v5507 = vadd.f32 %v5429, %v5492
      %v5508 = vadd.f32 %v5430, %v5495
      %v5509 = vadd.f32 %v5431, %v5497
      %v5510 = vadd.f32 %v5432, %v5500
      %v5511 = vadd.f32 %v5433, %v5502
      %v5512 = vmul.f32 %v5041, %v1753
      %v5513 = vmul.f32 %v5040, %v1758
      %v5514 = vmul.f32 %v5039, %v1763
      %v5515 = vmul.f32 %v5038, %v1768
      %v5516 = vmul.f32 %v5037, %v1773
      %v5517 = vmul.f32 %v5036, %v1778
      %v5518 = vmul.f32 %v5043, %v1783
      %v5519 = vmul.f32 %v5042, %v1788
      %v5520 = vpack.c.bf16 %v5513, %v5512
      %v5521 = vpack.c.bf16 %v5515, %v5514
      %v5522 = vpack.c.bf16 %v5517, %v5516
      %v5523 = vpack.c.bf16 %v5519, %v5518
      %s5524 = scalar_lea.vmem %s4, 560
      %v5525 = vld [vmem:[%s5524] sm:$0xf]
      %v5526 = vld [vmem:[%s5524 + $0x4] sm:$0xf]
      %v5527 = vld [vmem:[%s5524 + $0x8] sm:$0xf]
      %v5528 = vld [vmem:[%s5524 + $0xc] sm:$0xf]
      %v5533 = vunpack.c.l.b16 %v5525
      %v5534 = vunpack.c.l.b16 %v5526
      %v5535 = vunpack.c.l.b16 %v5527
      %v5536 = vunpack.c.l.b16 %v5528
      %v5537 = vpack.c.b16 %v5534, %v5533
      %v5538 = vpack.c.b16 %v5536, %v5535
      %v5542 = vsel %vm397, %v5520, 0
      %v5545 = vsel %vm397, %v5521, 0
      %v5548 = vsel %vm397, %v5522, 0
      %v5551 = vsel %vm397, %v5523, 0
      %5553 = vmatpush.bf16.msra.mxu0 0
      %5554 = vmatpush.bf16.msra.mxu0 0
      %5555 = vmatpush.bf16.msra.mxu0 0
      %5556 = vmatpush.bf16.msra.mxu0 0
      %5557 = vmatpush.bf16.msra.mxu0 0
      %5558 = vmatpush.bf16.msra.mxu0 0
      %5559 = vmatpush.bf16.msra.mxu0 %v5538
      %5560 = vmatpush.bf16.msra.mxu0 %v5537
      %5561 = vmatmul.bf16.gmra.mxu0 %v5542
      %v5562 = vpop.f32.mrf.mxu0
      %v5563 = vadd.f32 0.0, %v5562
      %v5564 = vpop.f32.mrf.mxu0
      %v5565 = vadd.f32 0.0, %v5564
      %5566 = vmatmul.bf16.gmra.mxu0 %v5545
      %v5567 = vpop.f32.mrf.mxu0
      %v5568 = vadd.f32 0.0, %v5567
      %v5569 = vpop.f32.mrf.mxu0
      %v5570 = vadd.f32 0.0, %v5569
      %5571 = vmatmul.bf16.gmra.mxu0 %v5548
      %v5572 = vpop.f32.mrf.mxu0
      %v5573 = vadd.f32 0.0, %v5572
      %v5574 = vpop.f32.mrf.mxu0
      %v5575 = vadd.f32 0.0, %v5574
      %5576 = vmatmul.bf16.gmra.mxu0 %v5551
      %v5577 = vpop.f32.mrf.mxu0
      %v5578 = vadd.f32 0.0, %v5577
      %v5579 = vpop.f32.mrf.mxu0
      %v5580 = vadd.f32 0.0, %v5579
      %5581 = vdwg.mxu0
      %v5582 = vadd.f32 %v5504, %v5563
      %v5583 = vadd.f32 %v5505, %v5565
      %v5584 = vadd.f32 %v5506, %v5568
      %v5585 = vadd.f32 %v5507, %v5570
      %v5586 = vadd.f32 %v5508, %v5573
      %v5587 = vadd.f32 %v5509, %v5575
      %v5588 = vadd.f32 %v5510, %v5578
      %v5589 = vadd.f32 %v5511, %v5580
      %v5590 = vperm.slane %v390, 6
      %v5591 = vadd.f32 %v5582, %v5590
      %v5592 = vadd.f32 %v5583, %v5590
      %v5593 = vadd.f32 %v5584, %v5590
      %v5594 = vadd.f32 %v5585, %v5590
      %v5595 = vadd.f32 %v5586, %v5590
      %v5596 = vadd.f32 %v5587, %v5590
      %v5597 = vadd.f32 %v5588, %v5590
      %v5598 = vadd.f32 %v5589, %v5590
      %v5599 = vadd.f32 %v3507, %v5591
      %v5600 = vadd.f32 %v3508, %v5592
      %v5601 = vadd.f32 %v3509, %v5593
      %v5602 = vadd.f32 %v3510, %v5594
      %v5603 = vadd.f32 %v3511, %v5595
      %v5604 = vadd.f32 %v3512, %v5596
      %v5605 = vadd.f32 %v3513, %v5597
      %v5606 = vadd.f32 %v3514, %v5598
      %5607 = vst.msk [vmem:[%s378] sm:$0xff] %vm397, %v5599
      %5608 = vst.msk [vmem:[%s378 + $0x8] sm:$0xff] %vm397, %v5600
      %5609 = vst.msk [vmem:[%s378 + $0x10] sm:$0xff] %vm397, %v5601
      %5610 = vst.msk [vmem:[%s378 + $0x18] sm:$0xff] %vm397, %v5602
      %5611 = vst.msk [vmem:[%s378 + $0x20] sm:$0xff] %vm397, %v5603
      %5612 = vst.msk [vmem:[%s378 + $0x28] sm:$0xff] %vm397, %v5604
      %5613 = vst.msk [vmem:[%s378 + $0x30] sm:$0xff] %vm397, %v5605
      %5614 = vst.msk [vmem:[%s378 + $0x38] sm:$0xff] %vm397, %v5606
      %s5615 = smul.u32 8, %s21
      %p5616 = scmp.lt.s32.totalorder %s5615, 15
      %s5617 = scalar_select %p5616, %s5615, 15
      %s5618 = smul.addr %s5617, 8
      %s5619 = scalar_lea.vmem %s10, %s5618
      // Predicated region
      $region61: #{tpu_custom_call.1} parent=59 // pred_check
        %p5620 = pneg %p259
      $region62: #{tpu_custom_call.1} parent=59 // pred_check_branch
        %5622 = sbr.rel (%p5620) target = $region64
      $region63: #{tpu_custom_call.1} parent=59 // pred_region
        %s5623 = smul.u32 8, %s21
      $region64: #{tpu_custom_call.1} parent=59 // pred_fallthru
        _
    $region60: #{tpu_custom_call.1} parent=5 // pred_fallthru
      _
    %p5624 = scmp.le.s32.totalorder 2, %s16
    // Predicated region
    $region65: #{tpu_custom_call.1} parent=5 // pred_check
      %p5625 = pneg %p5624
    $region66: #{tpu_custom_call.1} parent=5 // pred_check_branch
      %5627 = sbr.rel (%p5625) target = $region68
    $region67: #{tpu_custom_call.1} parent=5 // pred_region
      %s5628 = ssub.s32 %s16, 2
      // Predicated region
      $region69: #{tpu_custom_call.1} parent=67 // pred_check
        %p5629 = pneg %p265
      $region70: #{tpu_custom_call.1} parent=67 // pred_check_branch
        %5631 = sbr.rel (%p5629) target = $region72
      $region71: #{tpu_custom_call.1} parent=67 // pred_region
        %s5632 = smul.u32 8, %s22
        %p5633 = scmp.lt.s32.totalorder %s5632, 15
        %s5634 = scalar_select %p5633, %s5632, 15
        %s5635 = smul.addr %s5634, 8
        %s5636 = scalar_lea.vmem %s10, %s5635
      $region72: #{tpu_custom_call.1} parent=67 // pred_fallthru
        _
    $region68: #{tpu_custom_call.1} parent=5 // pred_fallthru
      _
  $region6: #{tpu_custom_call.1} parent=0 // loop_footer
    %s20 = sadd.s32 1, %s16
  $region7: #{tpu_custom_call.1} parent=0 // loop_footer_branch
    %15 = sbr.rel target = $region3
  $region8: #{tpu_custom_call.1} parent=0 // loop_exit
    _

</llo_original>
